<compile_context>
chip_gen: v5e
topology: v5e:2x2
jax: 0.10.0
libtpu: 0.0.40
codegen_flags: <defaults>
</compile_context>

<pallas_src>
import jax
import jax.numpy as jnp
from jax.experimental import pallas as pl
from jax.experimental.pallas import tpu as pltpu

EPS = 1e-5


# ------------------------------------------------------------------ kernels --

def _stats_kernel(x_ref, sum_ref, sq_ref):
    """Per-channel sum and sum-of-squares of relu(x), accumulated over the grid."""
    @pl.when(pl.program_id(0) == 0)
    def _():
        sum_ref[...] = jnp.zeros_like(sum_ref)
        sq_ref[...] = jnp.zeros_like(sq_ref)

    r = jnp.maximum(x_ref[...], 0.0)
    sum_ref[...] += jnp.sum(r, axis=0, keepdims=True)
    sq_ref[...] += jnp.sum(r * r, axis=0, keepdims=True)


def _make_conv_kernel(D, H, W, C, has_residual):
    """Fused ReLU -> BN affine -> 3x3x3 conv (+bias, +residual) for one output
    d-plane.  The three padded input d-planes arrive as three refs; the 27 taps
    are accumulated in VMEM/vregs (no im2col ever touches HBM)."""
    Hp, Wp = H + 2, W + 2

    def kernel(*refs):
        if has_residual:
            x0, x1, x2, sc_ref, sh_ref, w_ref, b_ref, r_ref, o_ref = refs
        else:
            x0, x1, x2, sc_ref, sh_ref, w_ref, b_ref, o_ref = refs
            r_ref = None

        d = pl.program_id(1)
        scale = sc_ref[...]                 # (1, C)
        shift = sh_ref[...]                 # (1, C)

        # Interior mask of the padded (Hp, Wp) plane.  The conv's zero padding
        # applies to the *normalized* activation, so after the fused
        # relu*scale+shift the pad positions must be forced back to exactly 0.
        hi = jax.lax.broadcasted_iota(jnp.int32, (Hp, Wp, C), 0)
        wi = jax.lax.broadcasted_iota(jnp.int32, (Hp, Wp, C), 1)
        hw_ok = (hi >= 1) & (hi <= H) & (wi >= 1) & (wi <= W)

        planes = (x0, x1, x2)
        acc = jnp.zeros((H * W, C), jnp.float32)
        for kd in range(3):
            # padded d-plane index is d + kd; interior iff 1 <= d + kd <= D
            d_ok = (d + kd >= 1) & (d + kd <= D)
            mask = jnp.where(hw_ok & d_ok, 1.0, 0.0)        # (Hp, Wp, C)
            plane = planes[kd][0, 0]                         # (Hp, Wp, C)
            a = (jnp.maximum(plane, 0.0) * scale + shift) * mask
            for kh in range(3):
                for kw in range(3):
                    patch = a[kh:kh + H, kw:kw + W, :].reshape(H * W, C)
                    acc = acc + jnp.dot(
                        patch, w_ref[kd * 9 + kh * 3 + kw],
                        preferred_element_type=jnp.float32)

        out = (acc + b_ref[...]).reshape(H, W, C)
        if has_residual:
            out = out + r_ref[0, 0]
        o_ref[0, 0] = out.astype(o_ref.dtype)

    return kernel


# ----------------------------------------------------------------- wrappers --

def _row_block(m):
    """Largest convenient row-block size that divides m exactly (no dropped tail)."""
    for t in (4096, 2048, 1024, 512, 256, 128, 64, 32, 16, 8):
        if m % t == 0:
            return t
    return m


def relu_channel_stats(x2d):
    """Single Pallas pass: per-channel sum and sum-of-squares of relu(x2d)."""
    m, c = x2d.shape
    tm = _row_block(m)
    return pl.pallas_call(
        _stats_kernel,
        out_shape=(jax.ShapeDtypeStruct((1, c), jnp.float32),
                   jax.ShapeDtypeStruct((1, c), jnp.float32)),
        grid=(m // tm,),
        in_specs=[pl.BlockSpec((tm, c), lambda i: (i, 0))],
        out_specs=(pl.BlockSpec((1, c), lambda i: (0, 0)),
                   pl.BlockSpec((1, c), lambda i: (0, 0))),
        compiler_params=pltpu.CompilerParams(
            dimension_semantics=("arbitrary",)),
    )(x2d)


def bn_affine(s, sq, count, gamma, beta):
    """Training-mode BN folded into a per-channel scale/shift (biased variance)."""
    mean = s / count                                          # (1, C)
    var = jnp.maximum(sq / count - mean * mean, 0.0)          # biased (PyTorch train)
    scale = gamma[None, :] / jnp.sqrt(var + EPS)
    shift = beta[None, :] - mean * scale
    return scale, shift


def conv3x3x3_block(xp, scale, shift, w27, bias, residual=None):
    """Fused relu/bn/conv(+residual) over a padded NDHWC activation."""
    n, dp, hp, wp, c = xp.shape
    d, h, w = dp - 2, hp - 2, wp - 2
    kernel = _make_conv_kernel(d, h, w, c, residual is not None)

    # Same padded activation passed three times; index_map picks planes d, d+1, d+2.
    in_specs = [pl.BlockSpec((1, 1, hp, wp, c),
                             (lambda ni, di, kd=kd: (ni, di + kd, 0, 0, 0)))
                for kd in range(3)]
    in_specs += [
        pl.BlockSpec((1, c), lambda ni, di: (0, 0)),          # BN scale
        pl.BlockSpec((1, c), lambda ni, di: (0, 0)),          # BN shift
        pl.BlockSpec((27, c, c), lambda ni, di: (0, 0, 0)),   # weights (tap, Cin, Cout)
        pl.BlockSpec((1, c), lambda ni, di: (0, 0)),          # conv bias
    ]
    args = [xp, xp, xp, scale, shift, w27, bias]
    if residual is not None:
        in_specs.append(pl.BlockSpec((1, 1, h, w, c),
                                     lambda ni, di: (ni, di, 0, 0, 0)))
        args.append(residual)

    return pl.pallas_call(
        kernel,
        out_shape=jax.ShapeDtypeStruct((n, d, h, w, c), xp.dtype),
        grid=(n, d),
        in_specs=in_specs,
        out_specs=pl.BlockSpec((1, 1, h, w, c),
                               lambda ni, di: (ni, di, 0, 0, 0)),
        compiler_params=pltpu.CompilerParams(
            dimension_semantics=("parallel", "parallel")),
    )(*args)


# -------------------------------------------------------------------- glue ---

def resnet_forward(x_ncdhw, params):
    n, c, d, h, w = x_ncdhw.shape
    count = float(n * d * h * w)

    # NCDHW -> NDHWC once at entry, back once at exit.
    xl = jnp.transpose(x_ncdhw, (0, 2, 3, 4, 1))

    def w_to_taps(wt):  # torch (Cout, Cin, kd, kh, kw) -> (27, Cin, Cout)
        return jnp.transpose(wt, (2, 3, 4, 1, 0)).reshape(27, c, c)

    pad = ((0, 0), (1, 1), (1, 1), (1, 1), (0, 0))

    # stage 1: BN stats of relu(x) -> fused relu/bn/conv
    s1, q1 = relu_channel_stats(xl.reshape(-1, c))
    sc1, sh1 = bn_affine(s1, q1, count, params["gamma1"], params["beta1"])
    h1 = conv3x3x3_block(jnp.pad(xl, pad), sc1, sh1,
                         w_to_taps(params["w1"]), params["b1"][None, :])

    # stage 2: BN stats of relu(h1) -> fused relu/bn/conv + residual add
    s2, q2 = relu_channel_stats(h1.reshape(-1, c))
    sc2, sh2 = bn_affine(s2, q2, count, params["gamma2"], params["beta2"])
    out = conv3x3x3_block(jnp.pad(h1, pad), sc2, sh2,
                          w_to_taps(params["w2"]), params["b2"][None, :],
                          residual=xl)

    return jnp.transpose(out, (0, 4, 1, 2, 3))                # back to NCDHW


# --------------------------------------------------------------- reference ---

def reference_forward(x, params):
    def bn(r, gamma, beta):
        mean = jnp.mean(r, axis=(0, 2, 3, 4), keepdims=True)
        var = jnp.mean((r - mean) ** 2, axis=(0, 2, 3, 4), keepdims=True)
        return ((r - mean) / jnp.sqrt(var + EPS)
                * gamma.reshape(1, -1, 1, 1, 1) + beta.reshape(1, -1, 1, 1, 1))

    def conv(hh, wgt, b):
        out = jax.lax.conv_general_dilated(
            hh, wgt, (1, 1, 1), [(1, 1), (1, 1), (1, 1)],
            dimension_numbers=("NCDHW", "OIDHW", "NCDHW"))
        return out + b.reshape(1, -1, 1, 1, 1)

    hh = bn(jnp.maximum(x, 0.0), params["gamma1"], params["beta1"])
    hh = conv(hh, params["w1"], params["b1"])
    hh = bn(jnp.maximum(hh, 0.0), params["gamma2"], params["beta2"])
    hh = conv(hh, params["w2"], params["b2"])
    return x + hh


# -------------------------------------------------------------------- main ---

if __name__ == "__main__":
    key = jax.random.PRNGKey(0)
    N, C, D, H, W = 2, 8, 8, 8, 8          # in_filters = 8
    ks = jax.random.split(key, 8)

    x = jax.random.normal(ks[0], (N, C, D, H, W), jnp.float32)
    params = {
        "gamma1": 1.0 + 0.1 * jax.random.normal(ks[1], (C,), jnp.float32),
        "beta1": 0.1 * jax.random.normal(ks[2], (C,), jnp.float32),
        "w1": 0.05 * jax.random.normal(ks[3], (C, C, 3, 3, 3), jnp.float32),
        "b1": 0.05 * jax.random.normal(ks[4], (C,), jnp.float32),
        "gamma2": 1.0 + 0.1 * jax.random.normal(ks[5], (C,), jnp.float32),
        "beta2": 0.1 * jax.random.normal(ks[6], (C,), jnp.float32),
        "w2": 0.05 * jax.random.normal(ks[7], (C, C, 3, 3, 3), jnp.float32),
        "b2": jnp.zeros((C,), jnp.float32),
    }

    out = jax.jit(resnet_forward)(x, params)
    out = jax.block_until_ready(out)

    ref = jax.block_until_ready(reference_forward(x, params))
    assert out.shape == x.shape and out.dtype == x.dtype
    assert jnp.max(jnp.abs(out - ref)) < 1e-4, "mismatch vs reference"

    print("KERNEL_OK")
</pallas_src>

<mosaic_0001>
module attributes {stable_mosaic.version = 11 : i64} {
  func.func @_stats_kernel(%arg0: i32, %arg1: memref<1024x8xf32, #tpu.memory_space<vmem>>, %arg2: memref<1x8xf32, #tpu.memory_space<vmem>>, %arg3: memref<1x8xf32, #tpu.memory_space<vmem>>) attributes {dimension_semantics = [#tpu.dimension_semantics<arbitrary>], iteration_bounds = array<i64: 1>, scalar_prefetch = 0 : i64, scratch_operands = 0 : i64, tpu.core_type = #tpu.core_type<tc>, window_params = [{transform_indices = @transform_0, window_bounds = array<i64: 1024, 8>}, {pipeline_mode = #tpu.pipeline_mode<synchronous>, transform_indices = @transform_1, window_bounds = array<i64: 1, 8>}, {pipeline_mode = #tpu.pipeline_mode<synchronous>, transform_indices = @transform_2, window_bounds = array<i64: 1, 8>}]} {
    %c0_i32 = arith.constant 0 : i32
    %0 = arith.cmpi eq, %arg0, %c0_i32 : i32
    %1 = arith.extui %0 : i1 to i32
    %c0_i32_0 = arith.constant 0 : i32
    %2 = arith.cmpi ne, %1, %c0_i32_0 : i32
    scf.if %2 {
      %cst_12 = arith.constant 0.000000e+00 : f32
      %17 = vector.broadcast %cst_12 : f32 to vector<1x8xf32>
      %c0_13 = arith.constant 0 : index
      %c0_14 = arith.constant 0 : index
      %18 = vector.load %arg2[%c0_13, %c0_14] : memref<1x8xf32, #tpu.memory_space<vmem>>, vector<1x8xf32>
      tpu.vector_store %arg2[%c0_13, %c0_14], %17 {strides = array<i32>} : memref<1x8xf32, #tpu.memory_space<vmem>>, vector<1x8xf32>,
      %cst_15 = arith.constant 0.000000e+00 : f32
      %19 = vector.broadcast %cst_15 : f32 to vector<1x8xf32>
      %c0_16 = arith.constant 0 : index
      %c0_17 = arith.constant 0 : index
      %20 = vector.load %arg3[%c0_16, %c0_17] : memref<1x8xf32, #tpu.memory_space<vmem>>, vector<1x8xf32>
      tpu.vector_store %arg3[%c0_16, %c0_17], %19 {strides = array<i32>} : memref<1x8xf32, #tpu.memory_space<vmem>>, vector<1x8xf32>,
    } else {
    }
    %c0 = arith.constant 0 : index
    %c0_1 = arith.constant 0 : index
    %3 = vector.load %arg1[%c0, %c0_1] : memref<1024x8xf32, #tpu.memory_space<vmem>>, vector<1024x8xf32>
    %cst = arith.constant 0.000000e+00 : f32
    %4 = vector.broadcast %cst : f32 to vector<1024x8xf32>
    %5 = arith.maximumf %3, %4 : vector<1024x8xf32>
    %c0_2 = arith.constant 0 : index
    %c0_3 = arith.constant 0 : index
    %6 = vector.load %arg2[%c0_2, %c0_3] : memref<1x8xf32, #tpu.memory_space<vmem>>, vector<1x8xf32>
    %cst_4 = arith.constant dense<0.000000e+00> : vector<8xf32>
    %7 = vector.multi_reduction <add>, %5, %cst_4 [0] : vector<1024x8xf32> to vector<8xf32>
    %8 = vector.shape_cast %7 : vector<8xf32> to vector<1x8xf32>
    %9 = arith.addf %6, %8 : vector<1x8xf32>
    %c0_5 = arith.constant 0 : index
    %c0_6 = arith.constant 0 : index
    %10 = vector.load %arg2[%c0_5, %c0_6] : memref<1x8xf32, #tpu.memory_space<vmem>>, vector<1x8xf32>
    tpu.vector_store %arg2[%c0_5, %c0_6], %9 {strides = array<i32>} : memref<1x8xf32, #tpu.memory_space<vmem>>, vector<1x8xf32>,
    %c0_7 = arith.constant 0 : index
    %c0_8 = arith.constant 0 : index
    %11 = vector.load %arg3[%c0_7, %c0_8] : memref<1x8xf32, #tpu.memory_space<vmem>>, vector<1x8xf32>
    %12 = arith.mulf %5, %5 : vector<1024x8xf32>
    %cst_9 = arith.constant dense<0.000000e+00> : vector<8xf32>
    %13 = vector.multi_reduction <add>, %12, %cst_9 [0] : vector<1024x8xf32> to vector<8xf32>
    %14 = vector.shape_cast %13 : vector<8xf32> to vector<1x8xf32>
    %15 = arith.addf %11, %14 : vector<1x8xf32>
    %c0_10 = arith.constant 0 : index
    %c0_11 = arith.constant 0 : index
    %16 = vector.load %arg3[%c0_10, %c0_11] : memref<1x8xf32, #tpu.memory_space<vmem>>, vector<1x8xf32>
    tpu.vector_store %arg3[%c0_10, %c0_11], %15 {strides = array<i32>} : memref<1x8xf32, #tpu.memory_space<vmem>>, vector<1x8xf32>,
    return
  }
  func.func @transform_0(%arg0: i32) -> (i32, i32) {
    %c0_i32 = arith.constant 0 : i32
    %c0_i32_0 = arith.constant 0 : i32
    return %arg0, %c0_i32 : i32, i32
  }
  func.func @transform_1(%arg0: i32) -> (i32, i32) {
    %c0_i32 = arith.constant 0 : i32
    %c0_i32_0 = arith.constant 0 : i32
    %c0_i32_1 = arith.constant 0 : i32
    return %c0_i32, %c0_i32_0 : i32, i32
  }
  func.func @transform_2(%arg0: i32) -> (i32, i32) {
    %c0_i32 = arith.constant 0 : i32
    %c0_i32_0 = arith.constant 0 : i32
    %c0_i32_1 = arith.constant 0 : i32
    return %c0_i32, %c0_i32_0 : i32, i32
  }
}

module attributes {stable_mosaic.version = 11 : i64} {
  func.func @kernel(%arg0: i32, %arg1: i32, %arg2: memref<1x1x10x10x8xf32, #tpu.memory_space<vmem>>, %arg3: memref<1x1x10x10x8xf32, #tpu.memory_space<vmem>>, %arg4: memref<1x1x10x10x8xf32, #tpu.memory_space<vmem>>, %arg5: memref<1x8xf32, #tpu.memory_space<vmem>>, %arg6: memref<1x8xf32, #tpu.memory_space<vmem>>, %arg7: memref<27x8x8xf32, #tpu.memory_space<vmem>>, %arg8: memref<1x8xf32, #tpu.memory_space<vmem>>, %arg9: memref<1x1x8x8x8xf32, #tpu.memory_space<vmem>>) attributes {dimension_semantics = [#tpu.dimension_semantics<parallel>, #tpu.dimension_semantics<parallel>], iteration_bounds = array<i64: 2, 8>, scalar_prefetch = 0 : i64, scratch_operands = 0 : i64, tpu.core_type = #tpu.core_type<tc>, window_params = [{transform_indices = @transform_0, window_bounds = array<i64: 1, 1, 10, 10, 8>}, {transform_indices = @transform_1, window_bounds = array<i64: 1, 1, 10, 10, 8>}, {transform_indices = @transform_2, window_bounds = array<i64: 1, 1, 10, 10, 8>}, {pipeline_mode = #tpu.pipeline_mode<synchronous>, transform_indices = @transform_3, window_bounds = array<i64: 1, 8>}, {pipeline_mode = #tpu.pipeline_mode<synchronous>, transform_indices = @transform_4, window_bounds = array<i64: 1, 8>}, {pipeline_mode = #tpu.pipeline_mode<synchronous>, transform_indices = @transform_5, window_bounds = array<i64: 27, 8, 8>}, {pipeline_mode = #tpu.pipeline_mode<synchronous>, transform_indices = @transform_6, window_bounds = array<i64: 1, 8>}, {transform_indices = @transform_7, window_bounds = array<i64: 1, 1, 8, 8, 8>}]} {
    %c0 = arith.constant 0 : index
    %c0_0 = arith.constant 0 : index
    %0 = vector.load %arg5[%c0, %c0_0] : memref<1x8xf32, #tpu.memory_space<vmem>>, vector<1x8xf32>
    %c0_1 = arith.constant 0 : index
    %c0_2 = arith.constant 0 : index
    %1 = vector.load %arg6[%c0_1, %c0_2] : memref<1x8xf32, #tpu.memory_space<vmem>>, vector<1x8xf32>
    %2 = tpu.iota {dimensions = array<i32: 0>} : vector<10x10x8xi32>
    %3 = tpu.iota {dimensions = array<i32: 1>} : vector<10x10x8xi32>
    %c1_i32 = arith.constant 1 : i32
    %4 = vector.broadcast %c1_i32 : i32 to vector<10x10x8xi32>
    %5 = arith.cmpi sge, %2, %4 : vector<10x10x8xi32>
    %c8_i32 = arith.constant 8 : i32
    %6 = vector.broadcast %c8_i32 : i32 to vector<10x10x8xi32>
    %7 = arith.cmpi sle, %2, %6 : vector<10x10x8xi32>
    %8 = arith.andi %5, %7 : vector<10x10x8xi1>
    %c1_i32_3 = arith.constant 1 : i32
    %9 = vector.broadcast %c1_i32_3 : i32 to vector<10x10x8xi32>
    %10 = arith.cmpi sge, %3, %9 : vector<10x10x8xi32>
    %11 = arith.andi %8, %10 : vector<10x10x8xi1>
    %c8_i32_4 = arith.constant 8 : i32
    %12 = vector.broadcast %c8_i32_4 : i32 to vector<10x10x8xi32>
    %13 = arith.cmpi sle, %3, %12 : vector<10x10x8xi32>
    %14 = arith.andi %11, %13 : vector<10x10x8xi1>
    %cst = arith.constant 0.000000e+00 : f32
    %15 = vector.broadcast %cst : f32 to vector<64x8xf32>
    %c0_i32 = arith.constant 0 : i32
    %16 = arith.addi %arg1, %c0_i32 : i32
    %c1_i32_5 = arith.constant 1 : i32
    %17 = arith.cmpi sge, %16, %c1_i32_5 : i32
    %c0_i32_6 = arith.constant 0 : i32
    %18 = arith.addi %arg1, %c0_i32_6 : i32
    %c8_i32_7 = arith.constant 8 : i32
    %19 = arith.cmpi sle, %18, %c8_i32_7 : i32
    %20 = arith.andi %17, %19 : i1
    %21 = vector.broadcast %20 : i1 to vector<10x10x8xi1>
    %22 = arith.andi %14, %21 : vector<10x10x8xi1>
    %cst_8 = arith.constant 1.000000e+00 : f32
    %cst_9 = arith.constant 0.000000e+00 : f32
    %23 = vector.broadcast %cst_8 : f32 to vector<10x10x8xf32>
    %24 = vector.broadcast %cst_9 : f32 to vector<10x10x8xf32>
    %25 = arith.select %22, %23, %24 : vector<10x10x8xi1>, vector<10x10x8xf32>
    %c0_10 = arith.constant 0 : index
    %c0_11 = arith.constant 0 : index
    %c0_12 = arith.constant 0 : index
    %c0_13 = arith.constant 0 : index
    %c0_14 = arith.constant 0 : index
    %26 = vector.load %arg2[%c0_10, %c0_11, %c0_12, %c0_13, %c0_14] : memref<1x1x10x10x8xf32, #tpu.memory_space<vmem>>, vector<1x1x10x10x8xf32>
    %27 = vector.shape_cast %26 : vector<1x1x10x10x8xf32> to vector<10x10x8xf32>
    %cst_15 = arith.constant 0.000000e+00 : f32
    %28 = vector.broadcast %cst_15 : f32 to vector<10x10x8xf32>
    %29 = arith.maximumf %27, %28 : vector<10x10x8xf32>
    %30 = vector.shape_cast %0 : vector<1x8xf32> to vector<1x1x8xf32>
    %31 = vector.broadcast %30 : vector<1x1x8xf32> to vector<10x10x8xf32>
    %32 = arith.mulf %29, %31 : vector<10x10x8xf32>
    %33 = vector.shape_cast %1 : vector<1x8xf32> to vector<1x1x8xf32>
    %34 = vector.broadcast %33 : vector<1x1x8xf32> to vector<10x10x8xf32>
    %35 = arith.addf %32, %34 : vector<10x10x8xf32>
    %36 = arith.mulf %35, %25 : vector<10x10x8xf32>
    %37 = vector.extract_strided_slice %36 {offsets = [0, 0, 0], sizes = [8, 8, 8], strides = [1, 1, 1]} : vector<10x10x8xf32> to vector<8x8x8xf32>
    %38 = vector.shape_cast %37 : vector<8x8x8xf32> to vector<64x8xf32>
    %c0_16 = arith.constant 0 : index
    %c0_17 = arith.constant 0 : index
    %c0_18 = arith.constant 0 : index
    %39 = vector.load %arg7[%c0_16, %c0_17, %c0_18] : memref<27x8x8xf32, #tpu.memory_space<vmem>>, vector<1x8x8xf32>
    %40 = vector.shape_cast %39 : vector<1x8x8xf32> to vector<8x8xf32>
    %cst_19 = arith.constant dense<0.000000e+00> : vector<64x8xf32>
    %41 = tpu.matmul %38, %40, %cst_19 {dimension_numbers = #tpu.dot_dimension_numbers<[1], [0], [0], [1], [0, 0, 1, 1], [], []>} : vector<64x8xf32>, vector<8x8xf32>, vector<64x8xf32> -> vector<64x8xf32>
    %42 = arith.addf %15, %41 : vector<64x8xf32>
    %43 = vector.extract_strided_slice %36 {offsets = [0, 1, 0], sizes = [8, 8, 8], strides = [1, 1, 1]} : vector<10x10x8xf32> to vector<8x8x8xf32>
    %44 = vector.shape_cast %43 : vector<8x8x8xf32> to vector<64x8xf32>
    %c1 = arith.constant 1 : index
    %c0_20 = arith.constant 0 : index
    %c0_21 = arith.constant 0 : index
    %45 = vector.load %arg7[%c1, %c0_20, %c0_21] : memref<27x8x8xf32, #tpu.memory_space<vmem>>, vector<1x8x8xf32>
    %46 = vector.shape_cast %45 : vector<1x8x8xf32> to vector<8x8xf32>
    %cst_22 = arith.constant dense<0.000000e+00> : vector<64x8xf32>
    %47 = tpu.matmul %44, %46, %cst_22 {dimension_numbers = #tpu.dot_dimension_numbers<[1], [0], [0], [1], [0, 0, 1, 1], [], []>} : vector<64x8xf32>, vector<8x8xf32>, vector<64x8xf32> -> vector<64x8xf32>
    %48 = arith.addf %42, %47 : vector<64x8xf32>
    %49 = vector.extract_strided_slice %36 {offsets = [0, 2, 0], sizes = [8, 8, 8], strides = [1, 1, 1]} : vector<10x10x8xf32> to vector<8x8x8xf32>
    %50 = vector.shape_cast %49 : vector<8x8x8xf32> to vector<64x8xf32>
    %c2 = arith.constant 2 : index
    %c0_23 = arith.constant 0 : index
    %c0_24 = arith.constant 0 : index
    %51 = vector.load %arg7[%c2, %c0_23, %c0_24] : memref<27x8x8xf32, #tpu.memory_space<vmem>>, vector<1x8x8xf32>
    %52 = vector.shape_cast %51 : vector<1x8x8xf32> to vector<8x8xf32>
    %cst_25 = arith.constant dense<0.000000e+00> : vector<64x8xf32>
    %53 = tpu.matmul %50, %52, %cst_25 {dimension_numbers = #tpu.dot_dimension_numbers<[1], [0], [0], [1], [0, 0, 1, 1], [], []>} : vector<64x8xf32>, vector<8x8xf32>, vector<64x8xf32> -> vector<64x8xf32>
    %54 = arith.addf %48, %53 : vector<64x8xf32>
    %55 = vector.extract_strided_slice %36 {offsets = [1, 0, 0], sizes = [8, 8, 8], strides = [1, 1, 1]} : vector<10x10x8xf32> to vector<8x8x8xf32>
    %56 = vector.shape_cast %55 : vector<8x8x8xf32> to vector<64x8xf32>
    %c3 = arith.constant 3 : index
    %c0_26 = arith.constant 0 : index
    %c0_27 = arith.constant 0 : index
    %57 = vector.load %arg7[%c3, %c0_26, %c0_27] : memref<27x8x8xf32, #tpu.memory_space<vmem>>, vector<1x8x8xf32>
    %58 = vector.shape_cast %57 : vector<1x8x8xf32> to vector<8x8xf32>
    %cst_28 = arith.constant dense<0.000000e+00> : vector<64x8xf32>
    %59 = tpu.matmul %56, %58, %cst_28 {dimension_numbers = #tpu.dot_dimension_numbers<[1], [0], [0], [1], [0, 0, 1, 1], [], []>} : vector<64x8xf32>, vector<8x8xf32>, vector<64x8xf32> -> vector<64x8xf32>
    %60 = arith.addf %54, %59 : vector<64x8xf32>
    %61 = vector.extract_strided_slice %36 {offsets = [1, 1, 0], sizes = [8, 8, 8], strides = [1, 1, 1]} : vector<10x10x8xf32> to vector<8x8x8xf32>
    %62 = vector.shape_cast %61 : vector<8x8x8xf32> to vector<64x8xf32>
    %c4 = arith.constant 4 : index
    %c0_29 = arith.constant 0 : index
    %c0_30 = arith.constant 0 : index
    %63 = vector.load %arg7[%c4, %c0_29, %c0_30] : memref<27x8x8xf32, #tpu.memory_space<vmem>>, vector<1x8x8xf32>
    %64 = vector.shape_cast %63 : vector<1x8x8xf32> to vector<8x8xf32>
    %cst_31 = arith.constant dense<0.000000e+00> : vector<64x8xf32>
    %65 = tpu.matmul %62, %64, %cst_31 {dimension_numbers = #tpu.dot_dimension_numbers<[1], [0], [0], [1], [0, 0, 1, 1], [], []>} : vector<64x8xf32>, vector<8x8xf32>, vector<64x8xf32> -> vector<64x8xf32>
    %66 = arith.addf %60, %65 : vector<64x8xf32>
    %67 = vector.extract_strided_slice %36 {offsets = [1, 2, 0], sizes = [8, 8, 8], strides = [1, 1, 1]} : vector<10x10x8xf32> to vector<8x8x8xf32>
    %68 = vector.shape_cast %67 : vector<8x8x8xf32> to vector<64x8xf32>
    %c5 = arith.constant 5 : index
    %c0_32 = arith.constant 0 : index
    %c0_33 = arith.constant 0 : index
    %69 = vector.load %arg7[%c5, %c0_32, %c0_33] : memref<27x8x8xf32, #tpu.memory_space<vmem>>, vector<1x8x8xf32>
    %70 = vector.shape_cast %69 : vector<1x8x8xf32> to vector<8x8xf32>
    %cst_34 = arith.constant dense<0.000000e+00> : vector<64x8xf32>
    %71 = tpu.matmul %68, %70, %cst_34 {dimension_numbers = #tpu.dot_dimension_numbers<[1], [0], [0], [1], [0, 0, 1, 1], [], []>} : vector<64x8xf32>, vector<8x8xf32>, vector<64x8xf32> -> vector<64x8xf32>
    %72 = arith.addf %66, %71 : vector<64x8xf32>
    %73 = vector.extract_strided_slice %36 {offsets = [2, 0, 0], sizes = [8, 8, 8], strides = [1, 1, 1]} : vector<10x10x8xf32> to vector<8x8x8xf32>
    %74 = vector.shape_cast %73 : vector<8x8x8xf32> to vector<64x8xf32>
    %c6 = arith.constant 6 : index
    %c0_35 = arith.constant 0 : index
    %c0_36 = arith.constant 0 : index
    %75 = vector.load %arg7[%c6, %c0_35, %c0_36] : memref<27x8x8xf32, #tpu.memory_space<vmem>>, vector<1x8x8xf32>
    %76 = vector.shape_cast %75 : vector<1x8x8xf32> to vector<8x8xf32>
    %cst_37 = arith.constant dense<0.000000e+00> : vector<64x8xf32>
    %77 = tpu.matmul %74, %76, %cst_37 {dimension_numbers = #tpu.dot_dimension_numbers<[1], [0], [0], [1], [0, 0, 1, 1], [], []>} : vector<64x8xf32>, vector<8x8xf32>, vector<64x8xf32> -> vector<64x8xf32>
    %78 = arith.addf %72, %77 : vector<64x8xf32>
    %79 = vector.extract_strided_slice %36 {offsets = [2, 1, 0], sizes = [8, 8, 8], strides = [1, 1, 1]} : vector<10x10x8xf32> to vector<8x8x8xf32>
    %80 = vector.shape_cast %79 : vector<8x8x8xf32> to vector<64x8xf32>
    %c7 = arith.constant 7 : index
    %c0_38 = arith.constant 0 : index
    %c0_39 = arith.constant 0 : index
    %81 = vector.load %arg7[%c7, %c0_38, %c0_39] : memref<27x8x8xf32, #tpu.memory_space<vmem>>, vector<1x8x8xf32>
    %82 = vector.shape_cast %81 : vector<1x8x8xf32> to vector<8x8xf32>
    %cst_40 = arith.constant dense<0.000000e+00> : vector<64x8xf32>
    %83 = tpu.matmul %80, %82, %cst_40 {dimension_numbers = #tpu.dot_dimension_numbers<[1], [0], [0], [1], [0, 0, 1, 1], [], []>} : vector<64x8xf32>, vector<8x8xf32>, vector<64x8xf32> -> vector<64x8xf32>
    %84 = arith.addf %78, %83 : vector<64x8xf32>
    %85 = vector.extract_strided_slice %36 {offsets = [2, 2, 0], sizes = [8, 8, 8], strides = [1, 1, 1]} : vector<10x10x8xf32> to vector<8x8x8xf32>
    %86 = vector.shape_cast %85 : vector<8x8x8xf32> to vector<64x8xf32>
    %c8 = arith.constant 8 : index
    %c0_41 = arith.constant 0 : index
    %c0_42 = arith.constant 0 : index
    %87 = vector.load %arg7[%c8, %c0_41, %c0_42] : memref<27x8x8xf32, #tpu.memory_space<vmem>>, vector<1x8x8xf32>
    %88 = vector.shape_cast %87 : vector<1x8x8xf32> to vector<8x8xf32>
    %cst_43 = arith.constant dense<0.000000e+00> : vector<64x8xf32>
    %89 = tpu.matmul %86, %88, %cst_43 {dimension_numbers = #tpu.dot_dimension_numbers<[1], [0], [0], [1], [0, 0, 1, 1], [], []>} : vector<64x8xf32>, vector<8x8xf32>, vector<64x8xf32> -> vector<64x8xf32>
    %90 = arith.addf %84, %89 : vector<64x8xf32>
    %c1_i32_44 = arith.constant 1 : i32
    %91 = arith.addi %arg1, %c1_i32_44 : i32
    %c1_i32_45 = arith.constant 1 : i32
    %92 = arith.cmpi sge, %91, %c1_i32_45 : i32
    %c1_i32_46 = arith.constant 1 : i32
    %93 = arith.addi %arg1, %c1_i32_46 : i32
    %c8_i32_47 = arith.constant 8 : i32
    %94 = arith.cmpi sle, %93, %c8_i32_47 : i32
    %95 = arith.andi %92, %94 : i1
    %96 = vector.broadcast %95 : i1 to vector<10x10x8xi1>
    %97 = arith.andi %14, %96 : vector<10x10x8xi1>
    %cst_48 = arith.constant 1.000000e+00 : f32
    %cst_49 = arith.constant 0.000000e+00 : f32
    %98 = vector.broadcast %cst_48 : f32 to vector<10x10x8xf32>
    %99 = vector.broadcast %cst_49 : f32 to vector<10x10x8xf32>
    %100 = arith.select %97, %98, %99 : vector<10x10x8xi1>, vector<10x10x8xf32>
    %c0_50 = arith.constant 0 : index
    %c0_51 = arith.constant 0 : index
    %c0_52 = arith.constant 0 : index
    %c0_53 = arith.constant 0 : index
    %c0_54 = arith.constant 0 : index
    %101 = vector.load %arg3[%c0_50, %c0_51, %c0_52, %c0_53, %c0_54] : memref<1x1x10x10x8xf32, #tpu.memory_space<vmem>>, vector<1x1x10x10x8xf32>
    %102 = vector.shape_cast %101 : vector<1x1x10x10x8xf32> to vector<10x10x8xf32>
    %cst_55 = arith.constant 0.000000e+00 : f32
    %103 = vector.broadcast %cst_55 : f32 to vector<10x10x8xf32>
    %104 = arith.maximumf %102, %103 : vector<10x10x8xf32>
    %105 = vector.shape_cast %0 : vector<1x8xf32> to vector<1x1x8xf32>
    %106 = vector.broadcast %105 : vector<1x1x8xf32> to vector<10x10x8xf32>
    %107 = arith.mulf %104, %106 : vector<10x10x8xf32>
    %108 = vector.shape_cast %1 : vector<1x8xf32> to vector<1x1x8xf32>
    %109 = vector.broadcast %108 : vector<1x1x8xf32> to vector<10x10x8xf32>
    %110 = arith.addf %107, %109 : vector<10x10x8xf32>
    %111 = arith.mulf %110, %100 : vector<10x10x8xf32>
    %112 = vector.extract_strided_slice %111 {offsets = [0, 0, 0], sizes = [8, 8, 8], strides = [1, 1, 1]} : vector<10x10x8xf32> to vector<8x8x8xf32>
    %113 = vector.shape_cast %112 : vector<8x8x8xf32> to vector<64x8xf32>
    %c9 = arith.constant 9 : index
    %c0_56 = arith.constant 0 : index
    %c0_57 = arith.constant 0 : index
    %114 = vector.load %arg7[%c9, %c0_56, %c0_57] : memref<27x8x8xf32, #tpu.memory_space<vmem>>, vector<1x8x8xf32>
    %115 = vector.shape_cast %114 : vector<1x8x8xf32> to vector<8x8xf32>
    %cst_58 = arith.constant dense<0.000000e+00> : vector<64x8xf32>
    %116 = tpu.matmul %113, %115, %cst_58 {dimension_numbers = #tpu.dot_dimension_numbers<[1], [0], [0], [1], [0, 0, 1, 1], [], []>} : vector<64x8xf32>, vector<8x8xf32>, vector<64x8xf32> -> vector<64x8xf32>
    %117 = arith.addf %90, %116 : vector<64x8xf32>
    %118 = vector.extract_strided_slice %111 {offsets = [0, 1, 0], sizes = [8, 8, 8], strides = [1, 1, 1]} : vector<10x10x8xf32> to vector<8x8x8xf32>
    %119 = vector.shape_cast %118 : vector<8x8x8xf32> to vector<64x8xf32>
    %c10 = arith.constant 10 : index
    %c0_59 = arith.constant 0 : index
    %c0_60 = arith.constant 0 : index
    %120 = vector.load %arg7[%c10, %c0_59, %c0_60] : memref<27x8x8xf32, #tpu.memory_space<vmem>>, vector<1x8x8xf32>
    %121 = vector.shape_cast %120 : vector<1x8x8xf32> to vector<8x8xf32>
    %cst_61 = arith.constant dense<0.000000e+00> : vector<64x8xf32>
    %122 = tpu.matmul %119, %121, %cst_61 {dimension_numbers = #tpu.dot_dimension_numbers<[1], [0], [0], [1], [0, 0, 1, 1], [], []>} : vector<64x8xf32>, vector<8x8xf32>, vector<64x8xf32> -> vector<64x8xf32>
    %123 = arith.addf %117, %122 : vector<64x8xf32>
    %124 = vector.extract_strided_slice %111 {offsets = [0, 2, 0], sizes = [8, 8, 8], strides = [1, 1, 1]} : vector<10x10x8xf32> to vector<8x8x8xf32>
    %125 = vector.shape_cast %124 : vector<8x8x8xf32> to vector<64x8xf32>
    %c11 = arith.constant 11 : index
    %c0_62 = arith.constant 0 : index
    %c0_63 = arith.constant 0 : index
    %126 = vector.load %arg7[%c11, %c0_62, %c0_63] : memref<27x8x8xf32, #tpu.memory_space<vmem>>, vector<1x8x8xf32>
    %127 = vector.shape_cast %126 : vector<1x8x8xf32> to vector<8x8xf32>
    %cst_64 = arith.constant dense<0.000000e+00> : vector<64x8xf32>
    %128 = tpu.matmul %125, %127, %cst_64 {dimension_numbers = #tpu.dot_dimension_numbers<[1], [0], [0], [1], [0, 0, 1, 1], [], []>} : vector<64x8xf32>, vector<8x8xf32>, vector<64x8xf32> -> vector<64x8xf32>
    %129 = arith.addf %123, %128 : vector<64x8xf32>
    %130 = vector.extract_strided_slice %111 {offsets = [1, 0, 0], sizes = [8, 8, 8], strides = [1, 1, 1]} : vector<10x10x8xf32> to vector<8x8x8xf32>
    %131 = vector.shape_cast %130 : vector<8x8x8xf32> to vector<64x8xf32>
    %c12 = arith.constant 12 : index
    %c0_65 = arith.constant 0 : index
    %c0_66 = arith.constant 0 : index
    %132 = vector.load %arg7[%c12, %c0_65, %c0_66] : memref<27x8x8xf32, #tpu.memory_space<vmem>>, vector<1x8x8xf32>
    %133 = vector.shape_cast %132 : vector<1x8x8xf32> to vector<8x8xf32>
    %cst_67 = arith.constant dense<0.000000e+00> : vector<64x8xf32>
    %134 = tpu.matmul %131, %133, %cst_67 {dimension_numbers = #tpu.dot_dimension_numbers<[1], [0], [0], [1], [0, 0, 1, 1], [], []>} : vector<64x8xf32>, vector<8x8xf32>, vector<64x8xf32> -> vector<64x8xf32>
    %135 = arith.addf %129, %134 : vector<64x8xf32>
    %136 = vector.extract_strided_slice %111 {offsets = [1, 1, 0], sizes = [8, 8, 8], strides = [1, 1, 1]} : vector<10x10x8xf32> to vector<8x8x8xf32>
    %137 = vector.shape_cast %136 : vector<8x8x8xf32> to vector<64x8xf32>
    %c13 = arith.constant 13 : index
    %c0_68 = arith.constant 0 : index
    %c0_69 = arith.constant 0 : index
    %138 = vector.load %arg7[%c13, %c0_68, %c0_69] : memref<27x8x8xf32, #tpu.memory_space<vmem>>, vector<1x8x8xf32>
    %139 = vector.shape_cast %138 : vector<1x8x8xf32> to vector<8x8xf32>
    %cst_70 = arith.constant dense<0.000000e+00> : vector<64x8xf32>
    %140 = tpu.matmul %137, %139, %cst_70 {dimension_numbers = #tpu.dot_dimension_numbers<[1], [0], [0], [1], [0, 0, 1, 1], [], []>} : vector<64x8xf32>, vector<8x8xf32>, vector<64x8xf32> -> vector<64x8xf32>
    %141 = arith.addf %135, %140 : vector<64x8xf32>
    %142 = vector.extract_strided_slice %111 {offsets = [1, 2, 0], sizes = [8, 8, 8], strides = [1, 1, 1]} : vector<10x10x8xf32> to vector<8x8x8xf32>
    %143 = vector.shape_cast %142 : vector<8x8x8xf32> to vector<64x8xf32>
    %c14 = arith.constant 14 : index
    %c0_71 = arith.constant 0 : index
    %c0_72 = arith.constant 0 : index
    %144 = vector.load %arg7[%c14, %c0_71, %c0_72] : memref<27x8x8xf32, #tpu.memory_space<vmem>>, vector<1x8x8xf32>
    %145 = vector.shape_cast %144 : vector<1x8x8xf32> to vector<8x8xf32>
    %cst_73 = arith.constant dense<0.000000e+00> : vector<64x8xf32>
    %146 = tpu.matmul %143, %145, %cst_73 {dimension_numbers = #tpu.dot_dimension_numbers<[1], [0], [0], [1], [0, 0, 1, 1], [], []>} : vector<64x8xf32>, vector<8x8xf32>, vector<64x8xf32> -> vector<64x8xf32>
    %147 = arith.addf %141, %146 : vector<64x8xf32>
    %148 = vector.extract_strided_slice %111 {offsets = [2, 0, 0], sizes = [8, 8, 8], strides = [1, 1, 1]} : vector<10x10x8xf32> to vector<8x8x8xf32>
    %149 = vector.shape_cast %148 : vector<8x8x8xf32> to vector<64x8xf32>
    %c15 = arith.constant 15 : index
    %c0_74 = arith.constant 0 : index
    %c0_75 = arith.constant 0 : index
    %150 = vector.load %arg7[%c15, %c0_74, %c0_75] : memref<27x8x8xf32, #tpu.memory_space<vmem>>, vector<1x8x8xf32>
    %151 = vector.shape_cast %150 : vector<1x8x8xf32> to vector<8x8xf32>
    %cst_76 = arith.constant dense<0.000000e+00> : vector<64x8xf32>
    %152 = tpu.matmul %149, %151, %cst_76 {dimension_numbers = #tpu.dot_dimension_numbers<[1], [0], [0], [1], [0, 0, 1, 1], [], []>} : vector<64x8xf32>, vector<8x8xf32>, vector<64x8xf32> -> vector<64x8xf32>
    %153 = arith.addf %147, %152 : vector<64x8xf32>
    %154 = vector.extract_strided_slice %111 {offsets = [2, 1, 0], sizes = [8, 8, 8], strides = [1, 1, 1]} : vector<10x10x8xf32> to vector<8x8x8xf32>
    %155 = vector.shape_cast %154 : vector<8x8x8xf32> to vector<64x8xf32>
    %c16 = arith.constant 16 : index
    %c0_77 = arith.constant 0 : index
    %c0_78 = arith.constant 0 : index
    %156 = vector.load %arg7[%c16, %c0_77, %c0_78] : memref<27x8x8xf32, #tpu.memory_space<vmem>>, vector<1x8x8xf32>
    %157 = vector.shape_cast %156 : vector<1x8x8xf32> to vector<8x8xf32>
    %cst_79 = arith.constant dense<0.000000e+00> : vector<64x8xf32>
    %158 = tpu.matmul %155, %157, %cst_79 {dimension_numbers = #tpu.dot_dimension_numbers<[1], [0], [0], [1], [0, 0, 1, 1], [], []>} : vector<64x8xf32>, vector<8x8xf32>, vector<64x8xf32> -> vector<64x8xf32>
    %159 = arith.addf %153, %158 : vector<64x8xf32>
    %160 = vector.extract_strided_slice %111 {offsets = [2, 2, 0], sizes = [8, 8, 8], strides = [1, 1, 1]} : vector<10x10x8xf32> to vector<8x8x8xf32>
    %161 = vector.shape_cast %160 : vector<8x8x8xf32> to vector<64x8xf32>
    %c17 = arith.constant 17 : index
    %c0_80 = arith.constant 0 : index
    %c0_81 = arith.constant 0 : index
    %162 = vector.load %arg7[%c17, %c0_80, %c0_81] : memref<27x8x8xf32, #tpu.memory_space<vmem>>, vector<1x8x8xf32>
    %163 = vector.shape_cast %162 : vector<1x8x8xf32> to vector<8x8xf32>
    %cst_82 = arith.constant dense<0.000000e+00> : vector<64x8xf32>
    %164 = tpu.matmul %161, %163, %cst_82 {dimension_numbers = #tpu.dot_dimension_numbers<[1], [0], [0], [1], [0, 0, 1, 1], [], []>} : vector<64x8xf32>, vector<8x8xf32>, vector<64x8xf32> -> vector<64x8xf32>
    %165 = arith.addf %159, %164 : vector<64x8xf32>
    %c2_i32 = arith.constant 2 : i32
    %166 = arith.addi %arg1, %c2_i32 : i32
    %c1_i32_83 = arith.constant 1 : i32
    %167 = arith.cmpi sge, %166, %c1_i32_83 : i32
    %c2_i32_84 = arith.constant 2 : i32
    %168 = arith.addi %arg1, %c2_i32_84 : i32
    %c8_i32_85 = arith.constant 8 : i32
    %169 = arith.cmpi sle, %168, %c8_i32_85 : i32
    %170 = arith.andi %167, %169 : i1
    %171 = vector.broadcast %170 : i1 to vector<10x10x8xi1>
    %172 = arith.andi %14, %171 : vector<10x10x8xi1>
    %cst_86 = arith.constant 1.000000e+00 : f32
    %cst_87 = arith.constant 0.000000e+00 : f32
    %173 = vector.broadcast %cst_86 : f32 to vector<10x10x8xf32>
    %174 = vector.broadcast %cst_87 : f32 to vector<10x10x8xf32>
    %175 = arith.select %172, %173, %174 : vector<10x10x8xi1>, vector<10x10x8xf32>
    %c0_88 = arith.constant 0 : index
    %c0_89 = arith.constant 0 : index
    %c0_90 = arith.constant 0 : index
    %c0_91 = arith.constant 0 : index
    %c0_92 = arith.constant 0 : index
    %176 = vector.load %arg4[%c0_88, %c0_89, %c0_90, %c0_91, %c0_92] : memref<1x1x10x10x8xf32, #tpu.memory_space<vmem>>, vector<1x1x10x10x8xf32>
    %177 = vector.shape_cast %176 : vector<1x1x10x10x8xf32> to vector<10x10x8xf32>
    %cst_93 = arith.constant 0.000000e+00 : f32
    %178 = vector.broadcast %cst_93 : f32 to vector<10x10x8xf32>
    %179 = arith.maximumf %177, %178 : vector<10x10x8xf32>
    %180 = vector.shape_cast %0 : vector<1x8xf32> to vector<1x1x8xf32>
    %181 = vector.broadcast %180 : vector<1x1x8xf32> to vector<10x10x8xf32>
    %182 = arith.mulf %179, %181 : vector<10x10x8xf32>
    %183 = vector.shape_cast %1 : vector<1x8xf32> to vector<1x1x8xf32>
    %184 = vector.broadcast %183 : vector<1x1x8xf32> to vector<10x10x8xf32>
    %185 = arith.addf %182, %184 : vector<10x10x8xf32>
    %186 = arith.mulf %185, %175 : vector<10x10x8xf32>
    %187 = vector.extract_strided_slice %186 {offsets = [0, 0, 0], sizes = [8, 8, 8], strides = [1, 1, 1]} : vector<10x10x8xf32> to vector<8x8x8xf32>
    %188 = vector.shape_cast %187 : vector<8x8x8xf32> to vector<64x8xf32>
    %c18 = arith.constant 18 : index
    %c0_94 = arith.constant 0 : index
    %c0_95 = arith.constant 0 : index
    %189 = vector.load %arg7[%c18, %c0_94, %c0_95] : memref<27x8x8xf32, #tpu.memory_space<vmem>>, vector<1x8x8xf32>
    %190 = vector.shape_cast %189 : vector<1x8x8xf32> to vector<8x8xf32>
    %cst_96 = arith.constant dense<0.000000e+00> : vector<64x8xf32>
    %191 = tpu.matmul %188, %190, %cst_96 {dimension_numbers = #tpu.dot_dimension_numbers<[1], [0], [0], [1], [0, 0, 1, 1], [], []>} : vector<64x8xf32>, vector<8x8xf32>, vector<64x8xf32> -> vector<64x8xf32>
    %192 = arith.addf %165, %191 : vector<64x8xf32>
    %193 = vector.extract_strided_slice %186 {offsets = [0, 1, 0], sizes = [8, 8, 8], strides = [1, 1, 1]} : vector<10x10x8xf32> to vector<8x8x8xf32>
    %194 = vector.shape_cast %193 : vector<8x8x8xf32> to vector<64x8xf32>
    %c19 = arith.constant 19 : index
    %c0_97 = arith.constant 0 : index
    %c0_98 = arith.constant 0 : index
    %195 = vector.load %arg7[%c19, %c0_97, %c0_98] : memref<27x8x8xf32, #tpu.memory_space<vmem>>, vector<1x8x8xf32>
    %196 = vector.shape_cast %195 : vector<1x8x8xf32> to vector<8x8xf32>
    %cst_99 = arith.constant dense<0.000000e+00> : vector<64x8xf32>
    %197 = tpu.matmul %194, %196, %cst_99 {dimension_numbers = #tpu.dot_dimension_numbers<[1], [0], [0], [1], [0, 0, 1, 1], [], []>} : vector<64x8xf32>, vector<8x8xf32>, vector<64x8xf32> -> vector<64x8xf32>
    %198 = arith.addf %192, %197 : vector<64x8xf32>
    %199 = vector.extract_strided_slice %186 {offsets = [0, 2, 0], sizes = [8, 8, 8], strides = [1, 1, 1]} : vector<10x10x8xf32> to vector<8x8x8xf32>
    %200 = vector.shape_cast %199 : vector<8x8x8xf32> to vector<64x8xf32>
    %c20 = arith.constant 20 : index
    %c0_100 = arith.constant 0 : index
    %c0_101 = arith.constant 0 : index
    %201 = vector.load %arg7[%c20, %c0_100, %c0_101] : memref<27x8x8xf32, #tpu.memory_space<vmem>>, vector<1x8x8xf32>
    %202 = vector.shape_cast %201 : vector<1x8x8xf32> to vector<8x8xf32>
    %cst_102 = arith.constant dense<0.000000e+00> : vector<64x8xf32>
    %203 = tpu.matmul %200, %202, %cst_102 {dimension_numbers = #tpu.dot_dimension_numbers<[1], [0], [0], [1], [0, 0, 1, 1], [], []>} : vector<64x8xf32>, vector<8x8xf32>, vector<64x8xf32> -> vector<64x8xf32>
    %204 = arith.addf %198, %203 : vector<64x8xf32>
    %205 = vector.extract_strided_slice %186 {offsets = [1, 0, 0], sizes = [8, 8, 8], strides = [1, 1, 1]} : vector<10x10x8xf32> to vector<8x8x8xf32>
    %206 = vector.shape_cast %205 : vector<8x8x8xf32> to vector<64x8xf32>
    %c21 = arith.constant 21 : index
    %c0_103 = arith.constant 0 : index
    %c0_104 = arith.constant 0 : index
    %207 = vector.load %arg7[%c21, %c0_103, %c0_104] : memref<27x8x8xf32, #tpu.memory_space<vmem>>, vector<1x8x8xf32>
    %208 = vector.shape_cast %207 : vector<1x8x8xf32> to vector<8x8xf32>
    %cst_105 = arith.constant dense<0.000000e+00> : vector<64x8xf32>
    %209 = tpu.matmul %206, %208, %cst_105 {dimension_numbers = #tpu.dot_dimension_numbers<[1], [0], [0], [1], [0, 0, 1, 1], [], []>} : vector<64x8xf32>, vector<8x8xf32>, vector<64x8xf32> -> vector<64x8xf32>
    %210 = arith.addf %204, %209 : vector<64x8xf32>
    %211 = vector.extract_strided_slice %186 {offsets = [1, 1, 0], sizes = [8, 8, 8], strides = [1, 1, 1]} : vector<10x10x8xf32> to vector<8x8x8xf32>
    %212 = vector.shape_cast %211 : vector<8x8x8xf32> to vector<64x8xf32>
    %c22 = arith.constant 22 : index
    %c0_106 = arith.constant 0 : index
    %c0_107 = arith.constant 0 : index
    %213 = vector.load %arg7[%c22, %c0_106, %c0_107] : memref<27x8x8xf32, #tpu.memory_space<vmem>>, vector<1x8x8xf32>
    %214 = vector.shape_cast %213 : vector<1x8x8xf32> to vector<8x8xf32>
    %cst_108 = arith.constant dense<0.000000e+00> : vector<64x8xf32>
    %215 = tpu.matmul %212, %214, %cst_108 {dimension_numbers = #tpu.dot_dimension_numbers<[1], [0], [0], [1], [0, 0, 1, 1], [], []>} : vector<64x8xf32>, vector<8x8xf32>, vector<64x8xf32> -> vector<64x8xf32>
    %216 = arith.addf %210, %215 : vector<64x8xf32>
    %217 = vector.extract_strided_slice %186 {offsets = [1, 2, 0], sizes = [8, 8, 8], strides = [1, 1, 1]} : vector<10x10x8xf32> to vector<8x8x8xf32>
    %218 = vector.shape_cast %217 : vector<8x8x8xf32> to vector<64x8xf32>
    %c23 = arith.constant 23 : index
    %c0_109 = arith.constant 0 : index
    %c0_110 = arith.constant 0 : index
    %219 = vector.load %arg7[%c23, %c0_109, %c0_110] : memref<27x8x8xf32, #tpu.memory_space<vmem>>, vector<1x8x8xf32>
    %220 = vector.shape_cast %219 : vector<1x8x8xf32> to vector<8x8xf32>
    %cst_111 = arith.constant dense<0.000000e+00> : vector<64x8xf32>
    %221 = tpu.matmul %218, %220, %cst_111 {dimension_numbers = #tpu.dot_dimension_numbers<[1], [0], [0], [1], [0, 0, 1, 1], [], []>} : vector<64x8xf32>, vector<8x8xf32>, vector<64x8xf32> -> vector<64x8xf32>
    %222 = arith.addf %216, %221 : vector<64x8xf32>
    %223 = vector.extract_strided_slice %186 {offsets = [2, 0, 0], sizes = [8, 8, 8], strides = [1, 1, 1]} : vector<10x10x8xf32> to vector<8x8x8xf32>
    %224 = vector.shape_cast %223 : vector<8x8x8xf32> to vector<64x8xf32>
    %c24 = arith.constant 24 : index
    %c0_112 = arith.constant 0 : index
    %c0_113 = arith.constant 0 : index
    %225 = vector.load %arg7[%c24, %c0_112, %c0_113] : memref<27x8x8xf32, #tpu.memory_space<vmem>>, vector<1x8x8xf32>
    %226 = vector.shape_cast %225 : vector<1x8x8xf32> to vector<8x8xf32>
    %cst_114 = arith.constant dense<0.000000e+00> : vector<64x8xf32>
    %227 = tpu.matmul %224, %226, %cst_114 {dimension_numbers = #tpu.dot_dimension_numbers<[1], [0], [0], [1], [0, 0, 1, 1], [], []>} : vector<64x8xf32>, vector<8x8xf32>, vector<64x8xf32> -> vector<64x8xf32>
    %228 = arith.addf %222, %227 : vector<64x8xf32>
    %229 = vector.extract_strided_slice %186 {offsets = [2, 1, 0], sizes = [8, 8, 8], strides = [1, 1, 1]} : vector<10x10x8xf32> to vector<8x8x8xf32>
    %230 = vector.shape_cast %229 : vector<8x8x8xf32> to vector<64x8xf32>
    %c25 = arith.constant 25 : index
    %c0_115 = arith.constant 0 : index
    %c0_116 = arith.constant 0 : index
    %231 = vector.load %arg7[%c25, %c0_115, %c0_116] : memref<27x8x8xf32, #tpu.memory_space<vmem>>, vector<1x8x8xf32>
    %232 = vector.shape_cast %231 : vector<1x8x8xf32> to vector<8x8xf32>
    %cst_117 = arith.constant dense<0.000000e+00> : vector<64x8xf32>
    %233 = tpu.matmul %230, %232, %cst_117 {dimension_numbers = #tpu.dot_dimension_numbers<[1], [0], [0], [1], [0, 0, 1, 1], [], []>} : vector<64x8xf32>, vector<8x8xf32>, vector<64x8xf32> -> vector<64x8xf32>
    %234 = arith.addf %228, %233 : vector<64x8xf32>
    %235 = vector.extract_strided_slice %186 {offsets = [2, 2, 0], sizes = [8, 8, 8], strides = [1, 1, 1]} : vector<10x10x8xf32> to vector<8x8x8xf32>
    %236 = vector.shape_cast %235 : vector<8x8x8xf32> to vector<64x8xf32>
    %c26 = arith.constant 26 : index
    %c0_118 = arith.constant 0 : index
    %c0_119 = arith.constant 0 : index
    %237 = vector.load %arg7[%c26, %c0_118, %c0_119] : memref<27x8x8xf32, #tpu.memory_space<vmem>>, vector<1x8x8xf32>
    %238 = vector.shape_cast %237 : vector<1x8x8xf32> to vector<8x8xf32>
    %cst_120 = arith.constant dense<0.000000e+00> : vector<64x8xf32>
    %239 = tpu.matmul %236, %238, %cst_120 {dimension_numbers = #tpu.dot_dimension_numbers<[1], [0], [0], [1], [0, 0, 1, 1], [], []>} : vector<64x8xf32>, vector<8x8xf32>, vector<64x8xf32> -> vector<64x8xf32>
    %240 = arith.addf %234, %239 : vector<64x8xf32>
    %c0_121 = arith.constant 0 : index
    %c0_122 = arith.constant 0 : index
    %241 = vector.load %arg8[%c0_121, %c0_122] : memref<1x8xf32, #tpu.memory_space<vmem>>, vector<1x8xf32>
    %242 = vector.broadcast %241 : vector<1x8xf32> to vector<64x8xf32>
    %243 = arith.addf %240, %242 : vector<64x8xf32>
    %244 = vector.shape_cast %243 : vector<64x8xf32> to vector<8x8x8xf32>
    %c0_123 = arith.constant 0 : index
    %c0_124 = arith.constant 0 : index
    %c0_125 = arith.constant 0 : index
    %c0_126 = arith.constant 0 : index
    %c0_127 = arith.constant 0 : index
    %245 = vector.load %arg9[%c0_123, %c0_124, %c0_125, %c0_126, %c0_127] : memref<1x1x8x8x8xf32, #tpu.memory_space<vmem>>, vector<1x1x8x8x8xf32>
    %246 = vector.shape_cast %245 : vector<1x1x8x8x8xf32> to vector<8x8x8xf32>
    %247 = vector.shape_cast %244 : vector<8x8x8xf32> to vector<1x1x8x8x8xf32>
    tpu.vector_store %arg9[%c0_123, %c0_124, %c0_125, %c0_126, %c0_127], %247 {strides = array<i32>} : memref<1x1x8x8x8xf32, #tpu.memory_space<vmem>>, vector<1x1x8x8x8xf32>,
    return
  }
  func.func @transform_0(%arg0: i32, %arg1: i32) -> (i32, i32, i32, i32, i32) {
    %c0_i32 = arith.constant 0 : i32
    %0 = arith.addi %arg1, %c0_i32 : i32
    %c0_i32_0 = arith.constant 0 : i32
    %c0_i32_1 = arith.constant 0 : i32
    %c0_i32_2 = arith.constant 0 : i32
    %c0_i32_3 = arith.constant 0 : i32
    return %arg0, %0, %c0_i32_0, %c0_i32_1, %c0_i32_2 : i32, i32, i32, i32, i32
  }
  func.func @transform_1(%arg0: i32, %arg1: i32) -> (i32, i32, i32, i32, i32) {
    %c1_i32 = arith.constant 1 : i32
    %0 = arith.addi %arg1, %c1_i32 : i32
    %c0_i32 = arith.constant 0 : i32
    %c0_i32_0 = arith.constant 0 : i32
    %c0_i32_1 = arith.constant 0 : i32
    %c0_i32_2 = arith.constant 0 : i32
    return %arg0, %0, %c0_i32, %c0_i32_0, %c0_i32_1 : i32, i32, i32, i32, i32
  }
  func.func @transform_2(%arg0: i32, %arg1: i32) -> (i32, i32, i32, i32, i32) {
    %c2_i32 = arith.constant 2 : i32
    %0 = arith.addi %arg1, %c2_i32 : i32
    %c0_i32 = arith.constant 0 : i32
    %c0_i32_0 = arith.constant 0 : i32
    %c0_i32_1 = arith.constant 0 : i32
    %c0_i32_2 = arith.constant 0 : i32
    return %arg0, %0, %c0_i32, %c0_i32_0, %c0_i32_1 : i32, i32, i32, i32, i32
  }
  func.func @transform_3(%arg0: i32, %arg1: i32) -> (i32, i32) {
    %c0_i32 = arith.constant 0 : i32
    %c0_i32_0 = arith.constant 0 : i32
    %c0_i32_1 = arith.constant 0 : i32
    return %c0_i32, %c0_i32_0 : i32, i32
  }
  func.func @transform_4(%arg0: i32, %arg1: i32) -> (i32, i32) {
    %c0_i32 = arith.constant 0 : i32
    %c0_i32_0 = arith.constant 0 : i32
    %c0_i32_1 = arith.constant 0 : i32
    return %c0_i32, %c0_i32_0 : i32, i32
  }
  func.func @transform_5(%arg0: i32, %arg1: i32) -> (i32, i32, i32) {
    %c0_i32 = arith.constant 0 : i32
    %c0_i32_0 = arith.constant 0 : i32
    %c0_i32_1 = arith.constant 0 : i32
    %c0_i32_2 = arith.constant 0 : i32
    return %c0_i32, %c0_i32_0, %c0_i32_1 : i32, i32, i32
  }
  func.func @transform_6(%arg0: i32, %arg1: i32) -> (i32, i32) {
    %c0_i32 = arith.constant 0 : i32
    %c0_i32_0 = arith.constant 0 : i32
    %c0_i32_1 = arith.constant 0 : i32
    return %c0_i32, %c0_i32_0 : i32, i32
  }
  func.func @transform_7(%arg0: i32, %arg1: i32) -> (i32, i32, i32, i32, i32) {
    %c0_i32 = arith.constant 0 : i32
    %c0_i32_0 = arith.constant 0 : i32
    %c0_i32_1 = arith.constant 0 : i32
    %c0_i32_2 = arith.constant 0 : i32
    return %arg0, %arg1, %c0_i32, %c0_i32_0, %c0_i32_1 : i32, i32, i32, i32, i32
  }
}

module attributes {stable_mosaic.version = 11 : i64} {
  func.func @kernel(%arg0: i32, %arg1: i32, %arg2: memref<1x1x10x10x8xf32, #tpu.memory_space<vmem>>, %arg3: memref<1x1x10x10x8xf32, #tpu.memory_space<vmem>>, %arg4: memref<1x1x10x10x8xf32, #tpu.memory_space<vmem>>, %arg5: memref<1x8xf32, #tpu.memory_space<vmem>>, %arg6: memref<1x8xf32, #tpu.memory_space<vmem>>, %arg7: memref<27x8x8xf32, #tpu.memory_space<vmem>>, %arg8: memref<1x8xf32, #tpu.memory_space<vmem>>, %arg9: memref<1x1x8x8x8xf32, #tpu.memory_space<vmem>>, %arg10: memref<1x1x8x8x8xf32, #tpu.memory_space<vmem>>) attributes {dimension_semantics = [#tpu.dimension_semantics<parallel>, #tpu.dimension_semantics<parallel>], iteration_bounds = array<i64: 2, 8>, scalar_prefetch = 0 : i64, scratch_operands = 0 : i64, tpu.core_type = #tpu.core_type<tc>, window_params = [{transform_indices = @transform_0, window_bounds = array<i64: 1, 1, 10, 10, 8>}, {transform_indices = @transform_1, window_bounds = array<i64: 1, 1, 10, 10, 8>}, {transform_indices = @transform_2, window_bounds = array<i64: 1, 1, 10, 10, 8>}, {pipeline_mode = #tpu.pipeline_mode<synchronous>, transform_indices = @transform_3, window_bounds = array<i64: 1, 8>}, {pipeline_mode = #tpu.pipeline_mode<synchronous>, transform_indices = @transform_4, window_bounds = array<i64: 1, 8>}, {pipeline_mode = #tpu.pipeline_mode<synchronous>, transform_indices = @transform_5, window_bounds = array<i64: 27, 8, 8>}, {pipeline_mode = #tpu.pipeline_mode<synchronous>, transform_indices = @transform_6, window_bounds = array<i64: 1, 8>}, {transform_indices = @transform_7, window_bounds = array<i64: 1, 1, 8, 8, 8>}, {transform_indices = @transform_8, window_bounds = array<i64: 1, 1, 8, 8, 8>}]} {
    %c0 = arith.constant 0 : index
    %c0_0 = arith.constant 0 : index
    %0 = vector.load %arg5[%c0, %c0_0] : memref<1x8xf32, #tpu.memory_space<vmem>>, vector<1x8xf32>
    %c0_1 = arith.constant 0 : index
    %c0_2 = arith.constant 0 : index
    %1 = vector.load %arg6[%c0_1, %c0_2] : memref<1x8xf32, #tpu.memory_space<vmem>>, vector<1x8xf32>
    %2 = tpu.iota {dimensions = array<i32: 0>} : vector<10x10x8xi32>
    %3 = tpu.iota {dimensions = array<i32: 1>} : vector<10x10x8xi32>
    %c1_i32 = arith.constant 1 : i32
    %4 = vector.broadcast %c1_i32 : i32 to vector<10x10x8xi32>
    %5 = arith.cmpi sge, %2, %4 : vector<10x10x8xi32>
    %c8_i32 = arith.constant 8 : i32
    %6 = vector.broadcast %c8_i32 : i32 to vector<10x10x8xi32>
    %7 = arith.cmpi sle, %2, %6 : vector<10x10x8xi32>
    %8 = arith.andi %5, %7 : vector<10x10x8xi1>
    %c1_i32_3 = arith.constant 1 : i32
    %9 = vector.broadcast %c1_i32_3 : i32 to vector<10x10x8xi32>
    %10 = arith.cmpi sge, %3, %9 : vector<10x10x8xi32>
    %11 = arith.andi %8, %10 : vector<10x10x8xi1>
    %c8_i32_4 = arith.constant 8 : i32
    %12 = vector.broadcast %c8_i32_4 : i32 to vector<10x10x8xi32>
    %13 = arith.cmpi sle, %3, %12 : vector<10x10x8xi32>
    %14 = arith.andi %11, %13 : vector<10x10x8xi1>
    %cst = arith.constant 0.000000e+00 : f32
    %15 = vector.broadcast %cst : f32 to vector<64x8xf32>
    %c0_i32 = arith.constant 0 : i32
    %16 = arith.addi %arg1, %c0_i32 : i32
    %c1_i32_5 = arith.constant 1 : i32
    %17 = arith.cmpi sge, %16, %c1_i32_5 : i32
    %c0_i32_6 = arith.constant 0 : i32
    %18 = arith.addi %arg1, %c0_i32_6 : i32
    %c8_i32_7 = arith.constant 8 : i32
    %19 = arith.cmpi sle, %18, %c8_i32_7 : i32
    %20 = arith.andi %17, %19 : i1
    %21 = vector.broadcast %20 : i1 to vector<10x10x8xi1>
    %22 = arith.andi %14, %21 : vector<10x10x8xi1>
    %cst_8 = arith.constant 1.000000e+00 : f32
    %cst_9 = arith.constant 0.000000e+00 : f32
    %23 = vector.broadcast %cst_8 : f32 to vector<10x10x8xf32>
    %24 = vector.broadcast %cst_9 : f32 to vector<10x10x8xf32>
    %25 = arith.select %22, %23, %24 : vector<10x10x8xi1>, vector<10x10x8xf32>
    %c0_10 = arith.constant 0 : index
    %c0_11 = arith.constant 0 : index
    %c0_12 = arith.constant 0 : index
    %c0_13 = arith.constant 0 : index
    %c0_14 = arith.constant 0 : index
    %26 = vector.load %arg2[%c0_10, %c0_11, %c0_12, %c0_13, %c0_14] : memref<1x1x10x10x8xf32, #tpu.memory_space<vmem>>, vector<1x1x10x10x8xf32>
    %27 = vector.shape_cast %26 : vector<1x1x10x10x8xf32> to vector<10x10x8xf32>
    %cst_15 = arith.constant 0.000000e+00 : f32
    %28 = vector.broadcast %cst_15 : f32 to vector<10x10x8xf32>
    %29 = arith.maximumf %27, %28 : vector<10x10x8xf32>
    %30 = vector.shape_cast %0 : vector<1x8xf32> to vector<1x1x8xf32>
    %31 = vector.broadcast %30 : vector<1x1x8xf32> to vector<10x10x8xf32>
    %32 = arith.mulf %29, %31 : vector<10x10x8xf32>
    %33 = vector.shape_cast %1 : vector<1x8xf32> to vector<1x1x8xf32>
    %34 = vector.broadcast %33 : vector<1x1x8xf32> to vector<10x10x8xf32>
    %35 = arith.addf %32, %34 : vector<10x10x8xf32>
    %36 = arith.mulf %35, %25 : vector<10x10x8xf32>
    %37 = vector.extract_strided_slice %36 {offsets = [0, 0, 0], sizes = [8, 8, 8], strides = [1, 1, 1]} : vector<10x10x8xf32> to vector<8x8x8xf32>
    %38 = vector.shape_cast %37 : vector<8x8x8xf32> to vector<64x8xf32>
    %c0_16 = arith.constant 0 : index
    %c0_17 = arith.constant 0 : index
    %c0_18 = arith.constant 0 : index
    %39 = vector.load %arg7[%c0_16, %c0_17, %c0_18] : memref<27x8x8xf32, #tpu.memory_space<vmem>>, vector<1x8x8xf32>
    %40 = vector.shape_cast %39 : vector<1x8x8xf32> to vector<8x8xf32>
    %cst_19 = arith.constant dense<0.000000e+00> : vector<64x8xf32>
    %41 = tpu.matmul %38, %40, %cst_19 {dimension_numbers = #tpu.dot_dimension_numbers<[1], [0], [0], [1], [0, 0, 1, 1], [], []>} : vector<64x8xf32>, vector<8x8xf32>, vector<64x8xf32> -> vector<64x8xf32>
    %42 = arith.addf %15, %41 : vector<64x8xf32>
    %43 = vector.extract_strided_slice %36 {offsets = [0, 1, 0], sizes = [8, 8, 8], strides = [1, 1, 1]} : vector<10x10x8xf32> to vector<8x8x8xf32>
    %44 = vector.shape_cast %43 : vector<8x8x8xf32> to vector<64x8xf32>
    %c1 = arith.constant 1 : index
    %c0_20 = arith.constant 0 : index
    %c0_21 = arith.constant 0 : index
    %45 = vector.load %arg7[%c1, %c0_20, %c0_21] : memref<27x8x8xf32, #tpu.memory_space<vmem>>, vector<1x8x8xf32>
    %46 = vector.shape_cast %45 : vector<1x8x8xf32> to vector<8x8xf32>
    %cst_22 = arith.constant dense<0.000000e+00> : vector<64x8xf32>
    %47 = tpu.matmul %44, %46, %cst_22 {dimension_numbers = #tpu.dot_dimension_numbers<[1], [0], [0], [1], [0, 0, 1, 1], [], []>} : vector<64x8xf32>, vector<8x8xf32>, vector<64x8xf32> -> vector<64x8xf32>
    %48 = arith.addf %42, %47 : vector<64x8xf32>
    %49 = vector.extract_strided_slice %36 {offsets = [0, 2, 0], sizes = [8, 8, 8], strides = [1, 1, 1]} : vector<10x10x8xf32> to vector<8x8x8xf32>
    %50 = vector.shape_cast %49 : vector<8x8x8xf32> to vector<64x8xf32>
    %c2 = arith.constant 2 : index
    %c0_23 = arith.constant 0 : index
    %c0_24 = arith.constant 0 : index
    %51 = vector.load %arg7[%c2, %c0_23, %c0_24] : memref<27x8x8xf32, #tpu.memory_space<vmem>>, vector<1x8x8xf32>
    %52 = vector.shape_cast %51 : vector<1x8x8xf32> to vector<8x8xf32>
    %cst_25 = arith.constant dense<0.000000e+00> : vector<64x8xf32>
    %53 = tpu.matmul %50, %52, %cst_25 {dimension_numbers = #tpu.dot_dimension_numbers<[1], [0], [0], [1], [0, 0, 1, 1], [], []>} : vector<64x8xf32>, vector<8x8xf32>, vector<64x8xf32> -> vector<64x8xf32>
    %54 = arith.addf %48, %53 : vector<64x8xf32>
    %55 = vector.extract_strided_slice %36 {offsets = [1, 0, 0], sizes = [8, 8, 8], strides = [1, 1, 1]} : vector<10x10x8xf32> to vector<8x8x8xf32>
    %56 = vector.shape_cast %55 : vector<8x8x8xf32> to vector<64x8xf32>
    %c3 = arith.constant 3 : index
    %c0_26 = arith.constant 0 : index
    %c0_27 = arith.constant 0 : index
    %57 = vector.load %arg7[%c3, %c0_26, %c0_27] : memref<27x8x8xf32, #tpu.memory_space<vmem>>, vector<1x8x8xf32>
    %58 = vector.shape_cast %57 : vector<1x8x8xf32> to vector<8x8xf32>
    %cst_28 = arith.constant dense<0.000000e+00> : vector<64x8xf32>
    %59 = tpu.matmul %56, %58, %cst_28 {dimension_numbers = #tpu.dot_dimension_numbers<[1], [0], [0], [1], [0, 0, 1, 1], [], []>} : vector<64x8xf32>, vector<8x8xf32>, vector<64x8xf32> -> vector<64x8xf32>
    %60 = arith.addf %54, %59 : vector<64x8xf32>
    %61 = vector.extract_strided_slice %36 {offsets = [1, 1, 0], sizes = [8, 8, 8], strides = [1, 1, 1]} : vector<10x10x8xf32> to vector<8x8x8xf32>
    %62 = vector.shape_cast %61 : vector<8x8x8xf32> to vector<64x8xf32>
    %c4 = arith.constant 4 : index
    %c0_29 = arith.constant 0 : index
    %c0_30 = arith.constant 0 : index
    %63 = vector.load %arg7[%c4, %c0_29, %c0_30] : memref<27x8x8xf32, #tpu.memory_space<vmem>>, vector<1x8x8xf32>
    %64 = vector.shape_cast %63 : vector<1x8x8xf32> to vector<8x8xf32>
    %cst_31 = arith.constant dense<0.000000e+00> : vector<64x8xf32>
    %65 = tpu.matmul %62, %64, %cst_31 {dimension_numbers = #tpu.dot_dimension_numbers<[1], [0], [0], [1], [0, 0, 1, 1], [], []>} : vector<64x8xf32>, vector<8x8xf32>, vector<64x8xf32> -> vector<64x8xf32>
    %66 = arith.addf %60, %65 : vector<64x8xf32>
    %67 = vector.extract_strided_slice %36 {offsets = [1, 2, 0], sizes = [8, 8, 8], strides = [1, 1, 1]} : vector<10x10x8xf32> to vector<8x8x8xf32>
    %68 = vector.shape_cast %67 : vector<8x8x8xf32> to vector<64x8xf32>
    %c5 = arith.constant 5 : index
    %c0_32 = arith.constant 0 : index
    %c0_33 = arith.constant 0 : index
    %69 = vector.load %arg7[%c5, %c0_32, %c0_33] : memref<27x8x8xf32, #tpu.memory_space<vmem>>, vector<1x8x8xf32>
    %70 = vector.shape_cast %69 : vector<1x8x8xf32> to vector<8x8xf32>
    %cst_34 = arith.constant dense<0.000000e+00> : vector<64x8xf32>
    %71 = tpu.matmul %68, %70, %cst_34 {dimension_numbers = #tpu.dot_dimension_numbers<[1], [0], [0], [1], [0, 0, 1, 1], [], []>} : vector<64x8xf32>, vector<8x8xf32>, vector<64x8xf32> -> vector<64x8xf32>
    %72 = arith.addf %66, %71 : vector<64x8xf32>
    %73 = vector.extract_strided_slice %36 {offsets = [2, 0, 0], sizes = [8, 8, 8], strides = [1, 1, 1]} : vector<10x10x8xf32> to vector<8x8x8xf32>
    %74 = vector.shape_cast %73 : vector<8x8x8xf32> to vector<64x8xf32>
    %c6 = arith.constant 6 : index
    %c0_35 = arith.constant 0 : index
    %c0_36 = arith.constant 0 : index
    %75 = vector.load %arg7[%c6, %c0_35, %c0_36] : memref<27x8x8xf32, #tpu.memory_space<vmem>>, vector<1x8x8xf32>
    %76 = vector.shape_cast %75 : vector<1x8x8xf32> to vector<8x8xf32>
    %cst_37 = arith.constant dense<0.000000e+00> : vector<64x8xf32>
    %77 = tpu.matmul %74, %76, %cst_37 {dimension_numbers = #tpu.dot_dimension_numbers<[1], [0], [0], [1], [0, 0, 1, 1], [], []>} : vector<64x8xf32>, vector<8x8xf32>, vector<64x8xf32> -> vector<64x8xf32>
    %78 = arith.addf %72, %77 : vector<64x8xf32>
    %79 = vector.extract_strided_slice %36 {offsets = [2, 1, 0], sizes = [8, 8, 8], strides = [1, 1, 1]} : vector<10x10x8xf32> to vector<8x8x8xf32>
    %80 = vector.shape_cast %79 : vector<8x8x8xf32> to vector<64x8xf32>
    %c7 = arith.constant 7 : index
    %c0_38 = arith.constant 0 : index
    %c0_39 = arith.constant 0 : index
    %81 = vector.load %arg7[%c7, %c0_38, %c0_39] : memref<27x8x8xf32, #tpu.memory_space<vmem>>, vector<1x8x8xf32>
    %82 = vector.shape_cast %81 : vector<1x8x8xf32> to vector<8x8xf32>
    %cst_40 = arith.constant dense<0.000000e+00> : vector<64x8xf32>
    %83 = tpu.matmul %80, %82, %cst_40 {dimension_numbers = #tpu.dot_dimension_numbers<[1], [0], [0], [1], [0, 0, 1, 1], [], []>} : vector<64x8xf32>, vector<8x8xf32>, vector<64x8xf32> -> vector<64x8xf32>
    %84 = arith.addf %78, %83 : vector<64x8xf32>
    %85 = vector.extract_strided_slice %36 {offsets = [2, 2, 0], sizes = [8, 8, 8], strides = [1, 1, 1]} : vector<10x10x8xf32> to vector<8x8x8xf32>
    %86 = vector.shape_cast %85 : vector<8x8x8xf32> to vector<64x8xf32>
    %c8 = arith.constant 8 : index
    %c0_41 = arith.constant 0 : index
    %c0_42 = arith.constant 0 : index
    %87 = vector.load %arg7[%c8, %c0_41, %c0_42] : memref<27x8x8xf32, #tpu.memory_space<vmem>>, vector<1x8x8xf32>
    %88 = vector.shape_cast %87 : vector<1x8x8xf32> to vector<8x8xf32>
    %cst_43 = arith.constant dense<0.000000e+00> : vector<64x8xf32>
    %89 = tpu.matmul %86, %88, %cst_43 {dimension_numbers = #tpu.dot_dimension_numbers<[1], [0], [0], [1], [0, 0, 1, 1], [], []>} : vector<64x8xf32>, vector<8x8xf32>, vector<64x8xf32> -> vector<64x8xf32>
    %90 = arith.addf %84, %89 : vector<64x8xf32>
    %c1_i32_44 = arith.constant 1 : i32
    %91 = arith.addi %arg1, %c1_i32_44 : i32
    %c1_i32_45 = arith.constant 1 : i32
    %92 = arith.cmpi sge, %91, %c1_i32_45 : i32
    %c1_i32_46 = arith.constant 1 : i32
    %93 = arith.addi %arg1, %c1_i32_46 : i32
    %c8_i32_47 = arith.constant 8 : i32
    %94 = arith.cmpi sle, %93, %c8_i32_47 : i32
    %95 = arith.andi %92, %94 : i1
    %96 = vector.broadcast %95 : i1 to vector<10x10x8xi1>
    %97 = arith.andi %14, %96 : vector<10x10x8xi1>
    %cst_48 = arith.constant 1.000000e+00 : f32
    %cst_49 = arith.constant 0.000000e+00 : f32
    %98 = vector.broadcast %cst_48 : f32 to vector<10x10x8xf32>
    %99 = vector.broadcast %cst_49 : f32 to vector<10x10x8xf32>
    %100 = arith.select %97, %98, %99 : vector<10x10x8xi1>, vector<10x10x8xf32>
    %c0_50 = arith.constant 0 : index
    %c0_51 = arith.constant 0 : index
    %c0_52 = arith.constant 0 : index
    %c0_53 = arith.constant 0 : index
    %c0_54 = arith.constant 0 : index
    %101 = vector.load %arg3[%c0_50, %c0_51, %c0_52, %c0_53, %c0_54] : memref<1x1x10x10x8xf32, #tpu.memory_space<vmem>>, vector<1x1x10x10x8xf32>
    %102 = vector.shape_cast %101 : vector<1x1x10x10x8xf32> to vector<10x10x8xf32>
    %cst_55 = arith.constant 0.000000e+00 : f32
    %103 = vector.broadcast %cst_55 : f32 to vector<10x10x8xf32>
    %104 = arith.maximumf %102, %103 : vector<10x10x8xf32>
    %105 = vector.shape_cast %0 : vector<1x8xf32> to vector<1x1x8xf32>
    %106 = vector.broadcast %105 : vector<1x1x8xf32> to vector<10x10x8xf32>
    %107 = arith.mulf %104, %106 : vector<10x10x8xf32>
    %108 = vector.shape_cast %1 : vector<1x8xf32> to vector<1x1x8xf32>
    %109 = vector.broadcast %108 : vector<1x1x8xf32> to vector<10x10x8xf32>
    %110 = arith.addf %107, %109 : vector<10x10x8xf32>
    %111 = arith.mulf %110, %100 : vector<10x10x8xf32>
    %112 = vector.extract_strided_slice %111 {offsets = [0, 0, 0], sizes = [8, 8, 8], strides = [1, 1, 1]} : vector<10x10x8xf32> to vector<8x8x8xf32>
    %113 = vector.shape_cast %112 : vector<8x8x8xf32> to vector<64x8xf32>
    %c9 = arith.constant 9 : index
    %c0_56 = arith.constant 0 : index
    %c0_57 = arith.constant 0 : index
    %114 = vector.load %arg7[%c9, %c0_56, %c0_57] : memref<27x8x8xf32, #tpu.memory_space<vmem>>, vector<1x8x8xf32>
    %115 = vector.shape_cast %114 : vector<1x8x8xf32> to vector<8x8xf32>
    %cst_58 = arith.constant dense<0.000000e+00> : vector<64x8xf32>
    %116 = tpu.matmul %113, %115, %cst_58 {dimension_numbers = #tpu.dot_dimension_numbers<[1], [0], [0], [1], [0, 0, 1, 1], [], []>} : vector<64x8xf32>, vector<8x8xf32>, vector<64x8xf32> -> vector<64x8xf32>
    %117 = arith.addf %90, %116 : vector<64x8xf32>
    %118 = vector.extract_strided_slice %111 {offsets = [0, 1, 0], sizes = [8, 8, 8], strides = [1, 1, 1]} : vector<10x10x8xf32> to vector<8x8x8xf32>
    %119 = vector.shape_cast %118 : vector<8x8x8xf32> to vector<64x8xf32>
    %c10 = arith.constant 10 : index
    %c0_59 = arith.constant 0 : index
    %c0_60 = arith.constant 0 : index
    %120 = vector.load %arg7[%c10, %c0_59, %c0_60] : memref<27x8x8xf32, #tpu.memory_space<vmem>>, vector<1x8x8xf32>
    %121 = vector.shape_cast %120 : vector<1x8x8xf32> to vector<8x8xf32>
    %cst_61 = arith.constant dense<0.000000e+00> : vector<64x8xf32>
    %122 = tpu.matmul %119, %121, %cst_61 {dimension_numbers = #tpu.dot_dimension_numbers<[1], [0], [0], [1], [0, 0, 1, 1], [], []>} : vector<64x8xf32>, vector<8x8xf32>, vector<64x8xf32> -> vector<64x8xf32>
    %123 = arith.addf %117, %122 : vector<64x8xf32>
    %124 = vector.extract_strided_slice %111 {offsets = [0, 2, 0], sizes = [8, 8, 8], strides = [1, 1, 1]} : vector<10x10x8xf32> to vector<8x8x8xf32>
    %125 = vector.shape_cast %124 : vector<8x8x8xf32> to vector<64x8xf32>
    %c11 = arith.constant 11 : index
    %c0_62 = arith.constant 0 : index
    %c0_63 = arith.constant 0 : index
    %126 = vector.load %arg7[%c11, %c0_62, %c0_63] : memref<27x8x8xf32, #tpu.memory_space<vmem>>, vector<1x8x8xf32>
    %127 = vector.shape_cast %126 : vector<1x8x8xf32> to vector<8x8xf32>
    %cst_64 = arith.constant dense<0.000000e+00> : vector<64x8xf32>
    %128 = tpu.matmul %125, %127, %cst_64 {dimension_numbers = #tpu.dot_dimension_numbers<[1], [0], [0], [1], [0, 0, 1, 1], [], []>} : vector<64x8xf32>, vector<8x8xf32>, vector<64x8xf32> -> vector<64x8xf32>
    %129 = arith.addf %123, %128 : vector<64x8xf32>
    %130 = vector.extract_strided_slice %111 {offsets = [1, 0, 0], sizes = [8, 8, 8], strides = [1, 1, 1]} : vector<10x10x8xf32> to vector<8x8x8xf32>
    %131 = vector.shape_cast %130 : vector<8x8x8xf32> to vector<64x8xf32>
    %c12 = arith.constant 12 : index
    %c0_65 = arith.constant 0 : index
    %c0_66 = arith.constant 0 : index
    %132 = vector.load %arg7[%c12, %c0_65, %c0_66] : memref<27x8x8xf32, #tpu.memory_space<vmem>>, vector<1x8x8xf32>
    %133 = vector.shape_cast %132 : vector<1x8x8xf32> to vector<8x8xf32>
    %cst_67 = arith.constant dense<0.000000e+00> : vector<64x8xf32>
    %134 = tpu.matmul %131, %133, %cst_67 {dimension_numbers = #tpu.dot_dimension_numbers<[1], [0], [0], [1], [0, 0, 1, 1], [], []>} : vector<64x8xf32>, vector<8x8xf32>, vector<64x8xf32> -> vector<64x8xf32>
    %135 = arith.addf %129, %134 : vector<64x8xf32>
    %136 = vector.extract_strided_slice %111 {offsets = [1, 1, 0], sizes = [8, 8, 8], strides = [1, 1, 1]} : vector<10x10x8xf32> to vector<8x8x8xf32>
    %137 = vector.shape_cast %136 : vector<8x8x8xf32> to vector<64x8xf32>
    %c13 = arith.constant 13 : index
    %c0_68 = arith.constant 0 : index
    %c0_69 = arith.constant 0 : index
    %138 = vector.load %arg7[%c13, %c0_68, %c0_69] : memref<27x8x8xf32, #tpu.memory_space<vmem>>, vector<1x8x8xf32>
    %139 = vector.shape_cast %138 : vector<1x8x8xf32> to vector<8x8xf32>
    %cst_70 = arith.constant dense<0.000000e+00> : vector<64x8xf32>
    %140 = tpu.matmul %137, %139, %cst_70 {dimension_numbers = #tpu.dot_dimension_numbers<[1], [0], [0], [1], [0, 0, 1, 1], [], []>} : vector<64x8xf32>, vector<8x8xf32>, vector<64x8xf32> -> vector<64x8xf32>
    %141 = arith.addf %135, %140 : vector<64x8xf32>
    %142 = vector.extract_strided_slice %111 {offsets = [1, 2, 0], sizes = [8, 8, 8], strides = [1, 1, 1]} : vector<10x10x8xf32> to vector<8x8x8xf32>
    %143 = vector.shape_cast %142 : vector<8x8x8xf32> to vector<64x8xf32>
    %c14 = arith.constant 14 : index
    %c0_71 = arith.constant 0 : index
    %c0_72 = arith.constant 0 : index
    %144 = vector.load %arg7[%c14, %c0_71, %c0_72] : memref<27x8x8xf32, #tpu.memory_space<vmem>>, vector<1x8x8xf32>
    %145 = vector.shape_cast %144 : vector<1x8x8xf32> to vector<8x8xf32>
    %cst_73 = arith.constant dense<0.000000e+00> : vector<64x8xf32>
    %146 = tpu.matmul %143, %145, %cst_73 {dimension_numbers = #tpu.dot_dimension_numbers<[1], [0], [0], [1], [0, 0, 1, 1], [], []>} : vector<64x8xf32>, vector<8x8xf32>, vector<64x8xf32> -> vector<64x8xf32>
    %147 = arith.addf %141, %146 : vector<64x8xf32>
    %148 = vector.extract_strided_slice %111 {offsets = [2, 0, 0], sizes = [8, 8, 8], strides = [1, 1, 1]} : vector<10x10x8xf32> to vector<8x8x8xf32>
    %149 = vector.shape_cast %148 : vector<8x8x8xf32> to vector<64x8xf32>
    %c15 = arith.constant 15 : index
    %c0_74 = arith.constant 0 : index
    %c0_75 = arith.constant 0 : index
    %150 = vector.load %arg7[%c15, %c0_74, %c0_75] : memref<27x8x8xf32, #tpu.memory_space<vmem>>, vector<1x8x8xf32>
    %151 = vector.shape_cast %150 : vector<1x8x8xf32> to vector<8x8xf32>
    %cst_76 = arith.constant dense<0.000000e+00> : vector<64x8xf32>
    %152 = tpu.matmul %149, %151, %cst_76 {dimension_numbers = #tpu.dot_dimension_numbers<[1], [0], [0], [1], [0, 0, 1, 1], [], []>} : vector<64x8xf32>, vector<8x8xf32>, vector<64x8xf32> -> vector<64x8xf32>
    %153 = arith.addf %147, %152 : vector<64x8xf32>
    %154 = vector.extract_strided_slice %111 {offsets = [2, 1, 0], sizes = [8, 8, 8], strides = [1, 1, 1]} : vector<10x10x8xf32> to vector<8x8x8xf32>
    %155 = vector.shape_cast %154 : vector<8x8x8xf32> to vector<64x8xf32>
    %c16 = arith.constant 16 : index
    %c0_77 = arith.constant 0 : index
    %c0_78 = arith.constant 0 : index
    %156 = vector.load %arg7[%c16, %c0_77, %c0_78] : memref<27x8x8xf32, #tpu.memory_space<vmem>>, vector<1x8x8xf32>
    %157 = vector.shape_cast %156 : vector<1x8x8xf32> to vector<8x8xf32>
    %cst_79 = arith.constant dense<0.000000e+00> : vector<64x8xf32>
    %158 = tpu.matmul %155, %157, %cst_79 {dimension_numbers = #tpu.dot_dimension_numbers<[1], [0], [0], [1], [0, 0, 1, 1], [], []>} : vector<64x8xf32>, vector<8x8xf32>, vector<64x8xf32> -> vector<64x8xf32>
    %159 = arith.addf %153, %158 : vector<64x8xf32>
    %160 = vector.extract_strided_slice %111 {offsets = [2, 2, 0], sizes = [8, 8, 8], strides = [1, 1, 1]} : vector<10x10x8xf32> to vector<8x8x8xf32>
    %161 = vector.shape_cast %160 : vector<8x8x8xf32> to vector<64x8xf32>
    %c17 = arith.constant 17 : index
    %c0_80 = arith.constant 0 : index
    %c0_81 = arith.constant 0 : index
    %162 = vector.load %arg7[%c17, %c0_80, %c0_81] : memref<27x8x8xf32, #tpu.memory_space<vmem>>, vector<1x8x8xf32>
    %163 = vector.shape_cast %162 : vector<1x8x8xf32> to vector<8x8xf32>
    %cst_82 = arith.constant dense<0.000000e+00> : vector<64x8xf32>
    %164 = tpu.matmul %161, %163, %cst_82 {dimension_numbers = #tpu.dot_dimension_numbers<[1], [0], [0], [1], [0, 0, 1, 1], [], []>} : vector<64x8xf32>, vector<8x8xf32>, vector<64x8xf32> -> vector<64x8xf32>
    %165 = arith.addf %159, %164 : vector<64x8xf32>
    %c2_i32 = arith.constant 2 : i32
    %166 = arith.addi %arg1, %c2_i32 : i32
    %c1_i32_83 = arith.constant 1 : i32
    %167 = arith.cmpi sge, %166, %c1_i32_83 : i32
    %c2_i32_84 = arith.constant 2 : i32
    %168 = arith.addi %arg1, %c2_i32_84 : i32
    %c8_i32_85 = arith.constant 8 : i32
    %169 = arith.cmpi sle, %168, %c8_i32_85 : i32
    %170 = arith.andi %167, %169 : i1
    %171 = vector.broadcast %170 : i1 to vector<10x10x8xi1>
    %172 = arith.andi %14, %171 : vector<10x10x8xi1>
    %cst_86 = arith.constant 1.000000e+00 : f32
    %cst_87 = arith.constant 0.000000e+00 : f32
    %173 = vector.broadcast %cst_86 : f32 to vector<10x10x8xf32>
    %174 = vector.broadcast %cst_87 : f32 to vector<10x10x8xf32>
    %175 = arith.select %172, %173, %174 : vector<10x10x8xi1>, vector<10x10x8xf32>
    %c0_88 = arith.constant 0 : index
    %c0_89 = arith.constant 0 : index
    %c0_90 = arith.constant 0 : index
    %c0_91 = arith.constant 0 : index
    %c0_92 = arith.constant 0 : index
    %176 = vector.load %arg4[%c0_88, %c0_89, %c0_90, %c0_91, %c0_92] : memref<1x1x10x10x8xf32, #tpu.memory_space<vmem>>, vector<1x1x10x10x8xf32>
    %177 = vector.shape_cast %176 : vector<1x1x10x10x8xf32> to vector<10x10x8xf32>
    %cst_93 = arith.constant 0.000000e+00 : f32
    %178 = vector.broadcast %cst_93 : f32 to vector<10x10x8xf32>
    %179 = arith.maximumf %177, %178 : vector<10x10x8xf32>
    %180 = vector.shape_cast %0 : vector<1x8xf32> to vector<1x1x8xf32>
    %181 = vector.broadcast %180 : vector<1x1x8xf32> to vector<10x10x8xf32>
    %182 = arith.mulf %179, %181 : vector<10x10x8xf32>
    %183 = vector.shape_cast %1 : vector<1x8xf32> to vector<1x1x8xf32>
    %184 = vector.broadcast %183 : vector<1x1x8xf32> to vector<10x10x8xf32>
    %185 = arith.addf %182, %184 : vector<10x10x8xf32>
    %186 = arith.mulf %185, %175 : vector<10x10x8xf32>
    %187 = vector.extract_strided_slice %186 {offsets = [0, 0, 0], sizes = [8, 8, 8], strides = [1, 1, 1]} : vector<10x10x8xf32> to vector<8x8x8xf32>
    %188 = vector.shape_cast %187 : vector<8x8x8xf32> to vector<64x8xf32>
    %c18 = arith.constant 18 : index
    %c0_94 = arith.constant 0 : index
    %c0_95 = arith.constant 0 : index
    %189 = vector.load %arg7[%c18, %c0_94, %c0_95] : memref<27x8x8xf32, #tpu.memory_space<vmem>>, vector<1x8x8xf32>
    %190 = vector.shape_cast %189 : vector<1x8x8xf32> to vector<8x8xf32>
    %cst_96 = arith.constant dense<0.000000e+00> : vector<64x8xf32>
    %191 = tpu.matmul %188, %190, %cst_96 {dimension_numbers = #tpu.dot_dimension_numbers<[1], [0], [0], [1], [0, 0, 1, 1], [], []>} : vector<64x8xf32>, vector<8x8xf32>, vector<64x8xf32> -> vector<64x8xf32>
    %192 = arith.addf %165, %191 : vector<64x8xf32>
    %193 = vector.extract_strided_slice %186 {offsets = [0, 1, 0], sizes = [8, 8, 8], strides = [1, 1, 1]} : vector<10x10x8xf32> to vector<8x8x8xf32>
    %194 = vector.shape_cast %193 : vector<8x8x8xf32> to vector<64x8xf32>
    %c19 = arith.constant 19 : index
    %c0_97 = arith.constant 0 : index
    %c0_98 = arith.constant 0 : index
    %195 = vector.load %arg7[%c19, %c0_97, %c0_98] : memref<27x8x8xf32, #tpu.memory_space<vmem>>, vector<1x8x8xf32>
    %196 = vector.shape_cast %195 : vector<1x8x8xf32> to vector<8x8xf32>
    %cst_99 = arith.constant dense<0.000000e+00> : vector<64x8xf32>
    %197 = tpu.matmul %194, %196, %cst_99 {dimension_numbers = #tpu.dot_dimension_numbers<[1], [0], [0], [1], [0, 0, 1, 1], [], []>} : vector<64x8xf32>, vector<8x8xf32>, vector<64x8xf32> -> vector<64x8xf32>
    %198 = arith.addf %192, %197 : vector<64x8xf32>
    %199 = vector.extract_strided_slice %186 {offsets = [0, 2, 0], sizes = [8, 8, 8], strides = [1, 1, 1]} : vector<10x10x8xf32> to vector<8x8x8xf32>
    %200 = vector.shape_cast %199 : vector<8x8x8xf32> to vector<64x8xf32>
    %c20 = arith.constant 20 : index
    %c0_100 = arith.constant 0 : index
    %c0_101 = arith.constant 0 : index
    %201 = vector.load %arg7[%c20, %c0_100, %c0_101] : memref<27x8x8xf32, #tpu.memory_space<vmem>>, vector<1x8x8xf32>
    %202 = vector.shape_cast %201 : vector<1x8x8xf32> to vector<8x8xf32>
    %cst_102 = arith.constant dense<0.000000e+00> : vector<64x8xf32>
    %203 = tpu.matmul %200, %202, %cst_102 {dimension_numbers = #tpu.dot_dimension_numbers<[1], [0], [0], [1], [0, 0, 1, 1], [], []>} : vector<64x8xf32>, vector<8x8xf32>, vector<64x8xf32> -> vector<64x8xf32>
    %204 = arith.addf %198, %203 : vector<64x8xf32>
    %205 = vector.extract_strided_slice %186 {offsets = [1, 0, 0], sizes = [8, 8, 8], strides = [1, 1, 1]} : vector<10x10x8xf32> to vector<8x8x8xf32>
    %206 = vector.shape_cast %205 : vector<8x8x8xf32> to vector<64x8xf32>
    %c21 = arith.constant 21 : index
    %c0_103 = arith.constant 0 : index
    %c0_104 = arith.constant 0 : index
    %207 = vector.load %arg7[%c21, %c0_103, %c0_104] : memref<27x8x8xf32, #tpu.memory_space<vmem>>, vector<1x8x8xf32>
    %208 = vector.shape_cast %207 : vector<1x8x8xf32> to vector<8x8xf32>
    %cst_105 = arith.constant dense<0.000000e+00> : vector<64x8xf32>
    %209 = tpu.matmul %206, %208, %cst_105 {dimension_numbers = #tpu.dot_dimension_numbers<[1], [0], [0], [1], [0, 0, 1, 1], [], []>} : vector<64x8xf32>, vector<8x8xf32>, vector<64x8xf32> -> vector<64x8xf32>
    %210 = arith.addf %204, %209 : vector<64x8xf32>
    %211 = vector.extract_strided_slice %186 {offsets = [1, 1, 0], sizes = [8, 8, 8], strides = [1, 1, 1]} : vector<10x10x8xf32> to vector<8x8x8xf32>
    %212 = vector.shape_cast %211 : vector<8x8x8xf32> to vector<64x8xf32>
    %c22 = arith.constant 22 : index
    %c0_106 = arith.constant 0 : index
    %c0_107 = arith.constant 0 : index
    %213 = vector.load %arg7[%c22, %c0_106, %c0_107] : memref<27x8x8xf32, #tpu.memory_space<vmem>>, vector<1x8x8xf32>
    %214 = vector.shape_cast %213 : vector<1x8x8xf32> to vector<8x8xf32>
    %cst_108 = arith.constant dense<0.000000e+00> : vector<64x8xf32>
    %215 = tpu.matmul %212, %214, %cst_108 {dimension_numbers = #tpu.dot_dimension_numbers<[1], [0], [0], [1], [0, 0, 1, 1], [], []>} : vector<64x8xf32>, vector<8x8xf32>, vector<64x8xf32> -> vector<64x8xf32>
    %216 = arith.addf %210, %215 : vector<64x8xf32>
    %217 = vector.extract_strided_slice %186 {offsets = [1, 2, 0], sizes = [8, 8, 8], strides = [1, 1, 1]} : vector<10x10x8xf32> to vector<8x8x8xf32>
    %218 = vector.shape_cast %217 : vector<8x8x8xf32> to vector<64x8xf32>
    %c23 = arith.constant 23 : index
    %c0_109 = arith.constant 0 : index
    %c0_110 = arith.constant 0 : index
    %219 = vector.load %arg7[%c23, %c0_109, %c0_110] : memref<27x8x8xf32, #tpu.memory_space<vmem>>, vector<1x8x8xf32>
    %220 = vector.shape_cast %219 : vector<1x8x8xf32> to vector<8x8xf32>
    %cst_111 = arith.constant dense<0.000000e+00> : vector<64x8xf32>
    %221 = tpu.matmul %218, %220, %cst_111 {dimension_numbers = #tpu.dot_dimension_numbers<[1], [0], [0], [1], [0, 0, 1, 1], [], []>} : vector<64x8xf32>, vector<8x8xf32>, vector<64x8xf32> -> vector<64x8xf32>
    %222 = arith.addf %216, %221 : vector<64x8xf32>
    %223 = vector.extract_strided_slice %186 {offsets = [2, 0, 0], sizes = [8, 8, 8], strides = [1, 1, 1]} : vector<10x10x8xf32> to vector<8x8x8xf32>
    %224 = vector.shape_cast %223 : vector<8x8x8xf32> to vector<64x8xf32>
    %c24 = arith.constant 24 : index
    %c0_112 = arith.constant 0 : index
    %c0_113 = arith.constant 0 : index
    %225 = vector.load %arg7[%c24, %c0_112, %c0_113] : memref<27x8x8xf32, #tpu.memory_space<vmem>>, vector<1x8x8xf32>
    %226 = vector.shape_cast %225 : vector<1x8x8xf32> to vector<8x8xf32>
    %cst_114 = arith.constant dense<0.000000e+00> : vector<64x8xf32>
    %227 = tpu.matmul %224, %226, %cst_114 {dimension_numbers = #tpu.dot_dimension_numbers<[1], [0], [0], [1], [0, 0, 1, 1], [], []>} : vector<64x8xf32>, vector<8x8xf32>, vector<64x8xf32> -> vector<64x8xf32>
    %228 = arith.addf %222, %227 : vector<64x8xf32>
    %229 = vector.extract_strided_slice %186 {offsets = [2, 1, 0], sizes = [8, 8, 8], strides = [1, 1, 1]} : vector<10x10x8xf32> to vector<8x8x8xf32>
    %230 = vector.shape_cast %229 : vector<8x8x8xf32> to vector<64x8xf32>
    %c25 = arith.constant 25 : index
    %c0_115 = arith.constant 0 : index
    %c0_116 = arith.constant 0 : index
    %231 = vector.load %arg7[%c25, %c0_115, %c0_116] : memref<27x8x8xf32, #tpu.memory_space<vmem>>, vector<1x8x8xf32>
    %232 = vector.shape_cast %231 : vector<1x8x8xf32> to vector<8x8xf32>
    %cst_117 = arith.constant dense<0.000000e+00> : vector<64x8xf32>
    %233 = tpu.matmul %230, %232, %cst_117 {dimension_numbers = #tpu.dot_dimension_numbers<[1], [0], [0], [1], [0, 0, 1, 1], [], []>} : vector<64x8xf32>, vector<8x8xf32>, vector<64x8xf32> -> vector<64x8xf32>
    %234 = arith.addf %228, %233 : vector<64x8xf32>
    %235 = vector.extract_strided_slice %186 {offsets = [2, 2, 0], sizes = [8, 8, 8], strides = [1, 1, 1]} : vector<10x10x8xf32> to vector<8x8x8xf32>
    %236 = vector.shape_cast %235 : vector<8x8x8xf32> to vector<64x8xf32>
    %c26 = arith.constant 26 : index
    %c0_118 = arith.constant 0 : index
    %c0_119 = arith.constant 0 : index
    %237 = vector.load %arg7[%c26, %c0_118, %c0_119] : memref<27x8x8xf32, #tpu.memory_space<vmem>>, vector<1x8x8xf32>
    %238 = vector.shape_cast %237 : vector<1x8x8xf32> to vector<8x8xf32>
    %cst_120 = arith.constant dense<0.000000e+00> : vector<64x8xf32>
    %239 = tpu.matmul %236, %238, %cst_120 {dimension_numbers = #tpu.dot_dimension_numbers<[1], [0], [0], [1], [0, 0, 1, 1], [], []>} : vector<64x8xf32>, vector<8x8xf32>, vector<64x8xf32> -> vector<64x8xf32>
    %240 = arith.addf %234, %239 : vector<64x8xf32>
    %c0_121 = arith.constant 0 : index
    %c0_122 = arith.constant 0 : index
    %241 = vector.load %arg8[%c0_121, %c0_122] : memref<1x8xf32, #tpu.memory_space<vmem>>, vector<1x8xf32>
    %242 = vector.broadcast %241 : vector<1x8xf32> to vector<64x8xf32>
    %243 = arith.addf %240, %242 : vector<64x8xf32>
    %244 = vector.shape_cast %243 : vector<64x8xf32> to vector<8x8x8xf32>
    %c0_123 = arith.constant 0 : index
    %c0_124 = arith.constant 0 : index
    %c0_125 = arith.constant 0 : index
    %c0_126 = arith.constant 0 : index
    %c0_127 = arith.constant 0 : index
    %245 = vector.load %arg9[%c0_123, %c0_124, %c0_125, %c0_126, %c0_127] : memref<1x1x8x8x8xf32, #tpu.memory_space<vmem>>, vector<1x1x8x8x8xf32>
    %246 = vector.shape_cast %245 : vector<1x1x8x8x8xf32> to vector<8x8x8xf32>
    %247 = arith.addf %244, %246 : vector<8x8x8xf32>
    %c0_128 = arith.constant 0 : index
    %c0_129 = arith.constant 0 : index
    %c0_130 = arith.constant 0 : index
    %c0_131 = arith.constant 0 : index
    %c0_132 = arith.constant 0 : index
    %248 = vector.load %arg10[%c0_128, %c0_129, %c0_130, %c0_131, %c0_132] : memref<1x1x8x8x8xf32, #tpu.memory_space<vmem>>, vector<1x1x8x8x8xf32>
    %249 = vector.shape_cast %248 : vector<1x1x8x8x8xf32> to vector<8x8x8xf32>
    %250 = vector.shape_cast %247 : vector<8x8x8xf32> to vector<1x1x8x8x8xf32>
    tpu.vector_store %arg10[%c0_128, %c0_129, %c0_130, %c0_131, %c0_132], %250 {strides = array<i32>} : memref<1x1x8x8x8xf32, #tpu.memory_space<vmem>>, vector<1x1x8x8x8xf32>,
    return
  }
  func.func @transform_0(%arg0: i32, %arg1: i32) -> (i32, i32, i32, i32, i32) {
    %c0_i32 = arith.constant 0 : i32
    %0 = arith.addi %arg1, %c0_i32 : i32
    %c0_i32_0 = arith.constant 0 : i32
    %c0_i32_1 = arith.constant 0 : i32
    %c0_i32_2 = arith.constant 0 : i32
    %c0_i32_3 = arith.constant 0 : i32
    return %arg0, %0, %c0_i32_0, %c0_i32_1, %c0_i32_2 : i32, i32, i32, i32, i32
  }
  func.func @transform_1(%arg0: i32, %arg1: i32) -> (i32, i32, i32, i32, i32) {
    %c1_i32 = arith.constant 1 : i32
    %0 = arith.addi %arg1, %c1_i32 : i32
    %c0_i32 = arith.constant 0 : i32
    %c0_i32_0 = arith.constant 0 : i32
    %c0_i32_1 = arith.constant 0 : i32
    %c0_i32_2 = arith.constant 0 : i32
    return %arg0, %0, %c0_i32, %c0_i32_0, %c0_i32_1 : i32, i32, i32, i32, i32
  }
  func.func @transform_2(%arg0: i32, %arg1: i32) -> (i32, i32, i32, i32, i32) {
    %c2_i32 = arith.constant 2 : i32
    %0 = arith.addi %arg1, %c2_i32 : i32
    %c0_i32 = arith.constant 0 : i32
    %c0_i32_0 = arith.constant 0 : i32
    %c0_i32_1 = arith.constant 0 : i32
    %c0_i32_2 = arith.constant 0 : i32
    return %arg0, %0, %c0_i32, %c0_i32_0, %c0_i32_1 : i32, i32, i32, i32, i32
  }
  func.func @transform_3(%arg0: i32, %arg1: i32) -> (i32, i32) {
    %c0_i32 = arith.constant 0 : i32
    %c0_i32_0 = arith.constant 0 : i32
    %c0_i32_1 = arith.constant 0 : i32
    return %c0_i32, %c0_i32_0 : i32, i32
  }
  func.func @transform_4(%arg0: i32, %arg1: i32) -> (i32, i32) {
    %c0_i32 = arith.constant 0 : i32
    %c0_i32_0 = arith.constant 0 : i32
    %c0_i32_1 = arith.constant 0 : i32
    return %c0_i32, %c0_i32_0 : i32, i32
  }
  func.func @transform_5(%arg0: i32, %arg1: i32) -> (i32, i32, i32) {
    %c0_i32 = arith.constant 0 : i32
    %c0_i32_0 = arith.constant 0 : i32
    %c0_i32_1 = arith.constant 0 : i32
    %c0_i32_2 = arith.constant 0 : i32
    return %c0_i32, %c0_i32_0, %c0_i32_1 : i32, i32, i32
  }
  func.func @transform_6(%arg0: i32, %arg1: i32) -> (i32, i32) {
    %c0_i32 = arith.constant 0 : i32
    %c0_i32_0 = arith.constant 0 : i32
    %c0_i32_1 = arith.constant 0 : i32
    return %c0_i32, %c0_i32_0 : i32, i32
  }
  func.func @transform_7(%arg0: i32, %arg1: i32) -> (i32, i32, i32, i32, i32) {
    %c0_i32 = arith.constant 0 : i32
    %c0_i32_0 = arith.constant 0 : i32
    %c0_i32_1 = arith.constant 0 : i32
    %c0_i32_2 = arith.constant 0 : i32
    return %arg0, %arg1, %c0_i32, %c0_i32_0, %c0_i32_1 : i32, i32, i32, i32, i32
  }
  func.func @transform_8(%arg0: i32, %arg1: i32) -> (i32, i32, i32, i32, i32) {
    %c0_i32 = arith.constant 0 : i32
    %c0_i32_0 = arith.constant 0 : i32
    %c0_i32_1 = arith.constant 0 : i32
    %c0_i32_2 = arith.constant 0 : i32
    return %arg0, %arg1, %c0_i32, %c0_i32_0, %c0_i32_1 : i32, i32, i32, i32, i32
  }
}

</mosaic_0001>

<llo_original>
// kernel: resnet_forward.4
$region0: #{resnet_forward.4}
  #allocation0 [shape = 'u32[]', space=smem, size = 0x4, offset = 0x4, fixed_abs, tag = 'smem constant byte address 0x4 - core index']
  #allocation1 [shape = 'u32[72,128]{1,0:T(1,128)}', space=vmem, size = 0x9000, scoped, tag = 'internal scratch']
  %s0 = inlined_call_operand.vmem [shape: f32[1024,8], index: 0, kind: input, shape index: {}]
  %s1 = inlined_call_operand.vmem [shape: f32[1,8], index: 1, kind: output, shape index: {0}]
  %s2 = inlined_call_operand.vmem [shape: f32[1,8], index: 2, kind: output, shape index: {1}]
  %3 = xla_tuple %s1, %s2
  %s4 = sld [smem:[#allocation0]]
  $region26: #{resnet_forward.4} parent=0
    _
  %s6 = ssub.s32 1, %s4
  %s7 = scalar_select 0, %s6, %s4
  // Predicated region
  $region2: #{resnet_forward.4} parent=0 // pred_check
    _
  $region3: #{resnet_forward.4} parent=0 // pred_check_branch
    %9 = sbr.rel (0) target = $region5
  $region4: #{resnet_forward.4} parent=0 // pred_region
    _
  $region5: #{resnet_forward.4} parent=0 // pred_fallthru
    _
  %p10 = scmp.eq.s32.totalorder 0, 0
  // Predicated region
  $region6: #{resnet_forward.4} parent=0 // pred_check
    %p11 = pneg %p10
  $region7: #{resnet_forward.4} parent=0 // pred_check_branch
    %13 = sbr.rel (%p11) target = $region9
  $region8: #{resnet_forward.4} parent=0 // pred_region
    %vm14 = vcmask 57344
    %15 = vst.msk [vmem:[%s1] sm:$0x1] %vm14, 0.0
    %16 = vst.msk [vmem:[%s2] sm:$0x1] %vm14, 0.0
  $region9: #{resnet_forward.4} parent=0 // pred_fallthru
    _
  %v17 = vld [vmem:[%s0] sm:$0xff]
  %v18 = vld [vmem:[%s0 + $0x8] sm:$0xff]
  %v19 = vld [vmem:[%s0 + $0x10] sm:$0xff]
  %v20 = vld [vmem:[%s0 + $0x18] sm:$0xff]
  %v21 = vld [vmem:[%s0 + $0x20] sm:$0xff]
  %v22 = vld [vmem:[%s0 + $0x28] sm:$0xff]
  %v23 = vld [vmem:[%s0 + $0x30] sm:$0xff]
  %v24 = vld [vmem:[%s0 + $0x38] sm:$0xff]
  %v25 = vld [vmem:[%s0 + $0x40] sm:$0xff]
  %v26 = vld [vmem:[%s0 + $0x48] sm:$0xff]
  %v27 = vld [vmem:[%s0 + $0x50] sm:$0xff]
  %v28 = vld [vmem:[%s0 + $0x58] sm:$0xff]
  %v29 = vld [vmem:[%s0 + $0x60] sm:$0xff]
  %v30 = vld [vmem:[%s0 + $0x68] sm:$0xff]
  %v31 = vld [vmem:[%s0 + $0x70] sm:$0xff]
  %v32 = vld [vmem:[%s0 + $0x78] sm:$0xff]
  %v33 = vld [vmem:[%s0 + $0x80] sm:$0xff]
  %v34 = vld [vmem:[%s0 + $0x88] sm:$0xff]
  %v35 = vld [vmem:[%s0 + $0x90] sm:$0xff]
  %v36 = vld [vmem:[%s0 + $0x98] sm:$0xff]
  %v37 = vld [vmem:[%s0 + $0xa0] sm:$0xff]
  %v38 = vld [vmem:[%s0 + $0xa8] sm:$0xff]
  %v39 = vld [vmem:[%s0 + $0xb0] sm:$0xff]
  %v40 = vld [vmem:[%s0 + $0xb8] sm:$0xff]
  %v41 = vld [vmem:[%s0 + $0xc0] sm:$0xff]
  %v42 = vld [vmem:[%s0 + $0xc8] sm:$0xff]
  %v43 = vld [vmem:[%s0 + $0xd0] sm:$0xff]
  %v44 = vld [vmem:[%s0 + $0xd8] sm:$0xff]
  %v45 = vld [vmem:[%s0 + $0xe0] sm:$0xff]
  %v46 = vld [vmem:[%s0 + $0xe8] sm:$0xff]
  %v47 = vld [vmem:[%s0 + $0xf0] sm:$0xff]
  %v48 = vld [vmem:[%s0 + $0xf8] sm:$0xff]
  %v49 = vld [vmem:[%s0 + $0x100] sm:$0xff]
  %v50 = vld [vmem:[%s0 + $0x108] sm:$0xff]
  %v51 = vld [vmem:[%s0 + $0x110] sm:$0xff]
  %v52 = vld [vmem:[%s0 + $0x118] sm:$0xff]
  %v53 = vld [vmem:[%s0 + $0x120] sm:$0xff]
  %v54 = vld [vmem:[%s0 + $0x128] sm:$0xff]
  %v55 = vld [vmem:[%s0 + $0x130] sm:$0xff]
  %v56 = vld [vmem:[%s0 + $0x138] sm:$0xff]
  %v57 = vld [vmem:[%s0 + $0x140] sm:$0xff]
  %v58 = vld [vmem:[%s0 + $0x148] sm:$0xff]
  %v59 = vld [vmem:[%s0 + $0x150] sm:$0xff]
  %v60 = vld [vmem:[%s0 + $0x158] sm:$0xff]
  %v61 = vld [vmem:[%s0 + $0x160] sm:$0xff]
  %v62 = vld [vmem:[%s0 + $0x168] sm:$0xff]
  %v63 = vld [vmem:[%s0 + $0x170] sm:$0xff]
  %v64 = vld [vmem:[%s0 + $0x178] sm:$0xff]
  %v65 = vld [vmem:[%s0 + $0x180] sm:$0xff]
  %v66 = vld [vmem:[%s0 + $0x188] sm:$0xff]
  %v67 = vld [vmem:[%s0 + $0x190] sm:$0xff]
  %v68 = vld [vmem:[%s0 + $0x198] sm:$0xff]
  %v69 = vld [vmem:[%s0 + $0x1a0] sm:$0xff]
  %v70 = vld [vmem:[%s0 + $0x1a8] sm:$0xff]
  %v71 = vld [vmem:[%s0 + $0x1b0] sm:$0xff]
  %v72 = vld [vmem:[%s0 + $0x1b8] sm:$0xff]
  %v73 = vld [vmem:[%s0 + $0x1c0] sm:$0xff]
  %v74 = vld [vmem:[%s0 + $0x1c8] sm:$0xff]
  %v75 = vld [vmem:[%s0 + $0x1d0] sm:$0xff]
  %v76 = vld [vmem:[%s0 + $0x1d8] sm:$0xff]
  %v77 = vld [vmem:[%s0 + $0x1e0] sm:$0xff]
  %v78 = vld [vmem:[%s0 + $0x1e8] sm:$0xff]
  %v79 = vld [vmem:[%s0 + $0x1f0] sm:$0xff]
  %v80 = vld [vmem:[%s0 + $0x1f8] sm:$0xff]
  %v81 = vld [vmem:[%s0 + $0x200] sm:$0xff]
  %v82 = vld [vmem:[%s0 + $0x208] sm:$0xff]
  %v83 = vld [vmem:[%s0 + $0x210] sm:$0xff]
  %v84 = vld [vmem:[%s0 + $0x218] sm:$0xff]
  %v85 = vld [vmem:[%s0 + $0x220] sm:$0xff]
  %v86 = vld [vmem:[%s0 + $0x228] sm:$0xff]
  %v87 = vld [vmem:[%s0 + $0x230] sm:$0xff]
  %v88 = vld [vmem:[%s0 + $0x238] sm:$0xff]
  %v89 = vld [vmem:[%s0 + $0x240] sm:$0xff]
  %v90 = vld [vmem:[%s0 + $0x248] sm:$0xff]
  %v91 = vld [vmem:[%s0 + $0x250] sm:$0xff]
  %v92 = vld [vmem:[%s0 + $0x258] sm:$0xff]
  %v93 = vld [vmem:[%s0 + $0x260] sm:$0xff]
  %v94 = vld [vmem:[%s0 + $0x268] sm:$0xff]
  %v95 = vld [vmem:[%s0 + $0x270] sm:$0xff]
  %v96 = vld [vmem:[%s0 + $0x278] sm:$0xff]
  %v97 = vld [vmem:[%s0 + $0x280] sm:$0xff]
  %v98 = vld [vmem:[%s0 + $0x288] sm:$0xff]
  %v99 = vld [vmem:[%s0 + $0x290] sm:$0xff]
  %v100 = vld [vmem:[%s0 + $0x298] sm:$0xff]
  %v101 = vld [vmem:[%s0 + $0x2a0] sm:$0xff]
  %v102 = vld [vmem:[%s0 + $0x2a8] sm:$0xff]
  %v103 = vld [vmem:[%s0 + $0x2b0] sm:$0xff]
  %v104 = vld [vmem:[%s0 + $0x2b8] sm:$0xff]
  %v105 = vld [vmem:[%s0 + $0x2c0] sm:$0xff]
  %v106 = vld [vmem:[%s0 + $0x2c8] sm:$0xff]
  %v107 = vld [vmem:[%s0 + $0x2d0] sm:$0xff]
  %v108 = vld [vmem:[%s0 + $0x2d8] sm:$0xff]
  %v109 = vld [vmem:[%s0 + $0x2e0] sm:$0xff]
  %v110 = vld [vmem:[%s0 + $0x2e8] sm:$0xff]
  %v111 = vld [vmem:[%s0 + $0x2f0] sm:$0xff]
  %v112 = vld [vmem:[%s0 + $0x2f8] sm:$0xff]
  %v113 = vld [vmem:[%s0 + $0x300] sm:$0xff]
  %v114 = vld [vmem:[%s0 + $0x308] sm:$0xff]
  %v115 = vld [vmem:[%s0 + $0x310] sm:$0xff]
  %v116 = vld [vmem:[%s0 + $0x318] sm:$0xff]
  %v117 = vld [vmem:[%s0 + $0x320] sm:$0xff]
  %v118 = vld [vmem:[%s0 + $0x328] sm:$0xff]
  %v119 = vld [vmem:[%s0 + $0x330] sm:$0xff]
  %v120 = vld [vmem:[%s0 + $0x338] sm:$0xff]
  %v121 = vld [vmem:[%s0 + $0x340] sm:$0xff]
  %v122 = vld [vmem:[%s0 + $0x348] sm:$0xff]
  %v123 = vld [vmem:[%s0 + $0x350] sm:$0xff]
  %v124 = vld [vmem:[%s0 + $0x358] sm:$0xff]
  %v125 = vld [vmem:[%s0 + $0x360] sm:$0xff]
  %v126 = vld [vmem:[%s0 + $0x368] sm:$0xff]
  %v127 = vld [vmem:[%s0 + $0x370] sm:$0xff]
  %v128 = vld [vmem:[%s0 + $0x378] sm:$0xff]
  %v129 = vld [vmem:[%s0 + $0x380] sm:$0xff]
  %v130 = vld [vmem:[%s0 + $0x388] sm:$0xff]
  %v131 = vld [vmem:[%s0 + $0x390] sm:$0xff]
  %v132 = vld [vmem:[%s0 + $0x398] sm:$0xff]
  %v133 = vld [vmem:[%s0 + $0x3a0] sm:$0xff]
  %v134 = vld [vmem:[%s0 + $0x3a8] sm:$0xff]
  %v135 = vld [vmem:[%s0 + $0x3b0] sm:$0xff]
  %v136 = vld [vmem:[%s0 + $0x3b8] sm:$0xff]
  %v137 = vld [vmem:[%s0 + $0x3c0] sm:$0xff]
  %v138 = vld [vmem:[%s0 + $0x3c8] sm:$0xff]
  %v139 = vld [vmem:[%s0 + $0x3d0] sm:$0xff]
  %v140 = vld [vmem:[%s0 + $0x3d8] sm:$0xff]
  %v141 = vld [vmem:[%s0 + $0x3e0] sm:$0xff]
  %v142 = vld [vmem:[%s0 + $0x3e8] sm:$0xff]
  %v143 = vld [vmem:[%s0 + $0x3f0] sm:$0xff]
  %v144 = vld [vmem:[%s0 + $0x3f8] sm:$0xff]
  %v145 = vmax.f32 %v17, 0.0
  %v146 = vmax.f32 %v18, 0.0
  %v147 = vmax.f32 %v19, 0.0
  %v148 = vmax.f32 %v20, 0.0
  %v149 = vmax.f32 %v21, 0.0
  %v150 = vmax.f32 %v22, 0.0
  %v151 = vmax.f32 %v23, 0.0
  %v152 = vmax.f32 %v24, 0.0
  %v153 = vmax.f32 %v25, 0.0
  %v154 = vmax.f32 %v26, 0.0
  %v155 = vmax.f32 %v27, 0.0
  %v156 = vmax.f32 %v28, 0.0
  %v157 = vmax.f32 %v29, 0.0
  %v158 = vmax.f32 %v30, 0.0
  %v159 = vmax.f32 %v31, 0.0
  %v160 = vmax.f32 %v32, 0.0
  %v161 = vmax.f32 %v33, 0.0
  %v162 = vmax.f32 %v34, 0.0
  %v163 = vmax.f32 %v35, 0.0
  %v164 = vmax.f32 %v36, 0.0
  %v165 = vmax.f32 %v37, 0.0
  %v166 = vmax.f32 %v38, 0.0
  %v167 = vmax.f32 %v39, 0.0
  %v168 = vmax.f32 %v40, 0.0
  %v169 = vmax.f32 %v41, 0.0
  %v170 = vmax.f32 %v42, 0.0
  %v171 = vmax.f32 %v43, 0.0
  %v172 = vmax.f32 %v44, 0.0
  %v173 = vmax.f32 %v45, 0.0
  %v174 = vmax.f32 %v46, 0.0
  %v175 = vmax.f32 %v47, 0.0
  %v176 = vmax.f32 %v48, 0.0
  %v177 = vmax.f32 %v49, 0.0
  %v178 = vmax.f32 %v50, 0.0
  %v179 = vmax.f32 %v51, 0.0
  %v180 = vmax.f32 %v52, 0.0
  %v181 = vmax.f32 %v53, 0.0
  %v182 = vmax.f32 %v54, 0.0
  %v183 = vmax.f32 %v55, 0.0
  %v184 = vmax.f32 %v56, 0.0
  %v185 = vmax.f32 %v57, 0.0
  %v186 = vmax.f32 %v58, 0.0
  %v187 = vmax.f32 %v59, 0.0
  %v188 = vmax.f32 %v60, 0.0
  %v189 = vmax.f32 %v61, 0.0
  %v190 = vmax.f32 %v62, 0.0
  %v191 = vmax.f32 %v63, 0.0
  %v192 = vmax.f32 %v64, 0.0
  %v193 = vmax.f32 %v65, 0.0
  %v194 = vmax.f32 %v66, 0.0
  %v195 = vmax.f32 %v67, 0.0
  %v196 = vmax.f32 %v68, 0.0
  %v197 = vmax.f32 %v69, 0.0
  %v198 = vmax.f32 %v70, 0.0
  %v199 = vmax.f32 %v71, 0.0
  %v200 = vmax.f32 %v72, 0.0
  %v201 = vmax.f32 %v73, 0.0
  %v202 = vmax.f32 %v74, 0.0
  %v203 = vmax.f32 %v75, 0.0
  %v204 = vmax.f32 %v76, 0.0
  %v205 = vmax.f32 %v77, 0.0
  %v206 = vmax.f32 %v78, 0.0
  %v207 = vmax.f32 %v79, 0.0
  %v208 = vmax.f32 %v80, 0.0
  %v209 = vmax.f32 %v81, 0.0
  %v210 = vmax.f32 %v82, 0.0
  %v211 = vmax.f32 %v83, 0.0
  %v212 = vmax.f32 %v84, 0.0
  %v213 = vmax.f32 %v85, 0.0
  %v214 = vmax.f32 %v86, 0.0
  %v215 = vmax.f32 %v87, 0.0
  %v216 = vmax.f32 %v88, 0.0
  %v217 = vmax.f32 %v89, 0.0
  %v218 = vmax.f32 %v90, 0.0
  %v219 = vmax.f32 %v91, 0.0
  %v220 = vmax.f32 %v92, 0.0
  %v221 = vmax.f32 %v93, 0.0
  %v222 = vmax.f32 %v94, 0.0
  %v223 = vmax.f32 %v95, 0.0
  %v224 = vmax.f32 %v96, 0.0
  %v225 = vmax.f32 %v97, 0.0
  %v226 = vmax.f32 %v98, 0.0
  %v227 = vmax.f32 %v99, 0.0
  %v228 = vmax.f32 %v100, 0.0
  %v229 = vmax.f32 %v101, 0.0
  %v230 = vmax.f32 %v102, 0.0
  %v231 = vmax.f32 %v103, 0.0
  %v232 = vmax.f32 %v104, 0.0
  %v233 = vmax.f32 %v105, 0.0
  %v234 = vmax.f32 %v106, 0.0
  %v235 = vmax.f32 %v107, 0.0
  %v236 = vmax.f32 %v108, 0.0
  %v237 = vmax.f32 %v109, 0.0
  %v238 = vmax.f32 %v110, 0.0
  %v239 = vmax.f32 %v111, 0.0
  %v240 = vmax.f32 %v112, 0.0
  %v241 = vmax.f32 %v113, 0.0
  %v242 = vmax.f32 %v114, 0.0
  %v243 = vmax.f32 %v115, 0.0
  %v244 = vmax.f32 %v116, 0.0
  %v245 = vmax.f32 %v117, 0.0
  %v246 = vmax.f32 %v118, 0.0
  %v247 = vmax.f32 %v119, 0.0
  %v248 = vmax.f32 %v120, 0.0
  %v249 = vmax.f32 %v121, 0.0
  %v250 = vmax.f32 %v122, 0.0
  %v251 = vmax.f32 %v123, 0.0
  %v252 = vmax.f32 %v124, 0.0
  %v253 = vmax.f32 %v125, 0.0
  %v254 = vmax.f32 %v126, 0.0
  %v255 = vmax.f32 %v127, 0.0
  %v256 = vmax.f32 %v128, 0.0
  %v257 = vmax.f32 %v129, 0.0
  %v258 = vmax.f32 %v130, 0.0
  %v259 = vmax.f32 %v131, 0.0
  %v260 = vmax.f32 %v132, 0.0
  %v261 = vmax.f32 %v133, 0.0
  %v262 = vmax.f32 %v134, 0.0
  %v263 = vmax.f32 %v135, 0.0
  %v264 = vmax.f32 %v136, 0.0
  %v265 = vmax.f32 %v137, 0.0
  %v266 = vmax.f32 %v138, 0.0
  %v267 = vmax.f32 %v139, 0.0
  %v268 = vmax.f32 %v140, 0.0
  %v269 = vmax.f32 %v141, 0.0
  %v270 = vmax.f32 %v142, 0.0
  %v271 = vmax.f32 %v143, 0.0
  %v272 = vmax.f32 %v144, 0.0
  %v273 = vld [vmem:[%s1] sm:$0x1]
  %vm274 = vcmask 64512
  %v275 = vsel %vm274, %v145, 0.0
  %v276 = vsel %vm274, %v146, 0.0
  %v277 = vadd.f32 %v275, %v276
  %v278 = vsel %vm274, %v147, 0.0
  %v279 = vadd.f32 %v277, %v278
  %v280 = vsel %vm274, %v148, 0.0
  %v281 = vadd.f32 %v279, %v280
  %v282 = vsel %vm274, %v149, 0.0
  %v283 = vadd.f32 %v281, %v282
  %v284 = vsel %vm274, %v150, 0.0
  %v285 = vadd.f32 %v283, %v284
  %v286 = vsel %vm274, %v151, 0.0
  %v287 = vadd.f32 %v285, %v286
  %v288 = vsel %vm274, %v152, 0.0
  %v289 = vadd.f32 %v287, %v288
  %v290 = vsel %vm274, %v153, 0.0
  %v291 = vadd.f32 %v289, %v290
  %v292 = vsel %vm274, %v154, 0.0
  %v293 = vadd.f32 %v291, %v292
  %v294 = vsel %vm274, %v155, 0.0
  %v295 = vadd.f32 %v293, %v294
  %v296 = vsel %vm274, %v156, 0.0
  %v297 = vadd.f32 %v295, %v296
  %v298 = vsel %vm274, %v157, 0.0
  %v299 = vadd.f32 %v297, %v298
  %v300 = vsel %vm274, %v158, 0.0
  %v301 = vadd.f32 %v299, %v300
  %v302 = vsel %vm274, %v159, 0.0
  %v303 = vadd.f32 %v301, %v302
  %v304 = vsel %vm274, %v160, 0.0
  %v305 = vadd.f32 %v303, %v304
  %v306 = vsel %vm274, %v161, 0.0
  %v307 = vadd.f32 %v305, %v306
  %v308 = vsel %vm274, %v162, 0.0
  %v309 = vadd.f32 %v307, %v308
  %v310 = vsel %vm274, %v163, 0.0
  %v311 = vadd.f32 %v309, %v310
  %v312 = vsel %vm274, %v164, 0.0
  %v313 = vadd.f32 %v311, %v312
  %v314 = vsel %vm274, %v165, 0.0
  %v315 = vadd.f32 %v313, %v314
  %v316 = vsel %vm274, %v166, 0.0
  %v317 = vadd.f32 %v315, %v316
  %v318 = vsel %vm274, %v167, 0.0
  %v319 = vadd.f32 %v317, %v318
  %v320 = vsel %vm274, %v168, 0.0
  %v321 = vadd.f32 %v319, %v320
  %v322 = vsel %vm274, %v169, 0.0
  %v323 = vadd.f32 %v321, %v322
  %v324 = vsel %vm274, %v170, 0.0
  %v325 = vadd.f32 %v323, %v324
  %v326 = vsel %vm274, %v171, 0.0
  %v327 = vadd.f32 %v325, %v326
  %v328 = vsel %vm274, %v172, 0.0
  %v329 = vadd.f32 %v327, %v328
  %v330 = vsel %vm274, %v173, 0.0
  %v331 = vadd.f32 %v329, %v330
  %v332 = vsel %vm274, %v174, 0.0
  %v333 = vadd.f32 %v331, %v332
  %v334 = vsel %vm274, %v175, 0.0
  %v335 = vadd.f32 %v333, %v334
  %v336 = vsel %vm274, %v176, 0.0
  %v337 = vadd.f32 %v335, %v336
  %v338 = vsel %vm274, %v177, 0.0
  %v339 = vadd.f32 %v337, %v338
  %v340 = vsel %vm274, %v178, 0.0
  %v341 = vadd.f32 %v339, %v340
  %v342 = vsel %vm274, %v179, 0.0
  %v343 = vadd.f32 %v341, %v342
  %v344 = vsel %vm274, %v180, 0.0
  %v345 = vadd.f32 %v343, %v344
  %v346 = vsel %vm274, %v181, 0.0
  %v347 = vadd.f32 %v345, %v346
  %v348 = vsel %vm274, %v182, 0.0
  %v349 = vadd.f32 %v347, %v348
  %v350 = vsel %vm274, %v183, 0.0
  %v351 = vadd.f32 %v349, %v350
  %v352 = vsel %vm274, %v184, 0.0
  %v353 = vadd.f32 %v351, %v352
  %v354 = vsel %vm274, %v185, 0.0
  %v355 = vadd.f32 %v353, %v354
  %v356 = vsel %vm274, %v186, 0.0
  %v357 = vadd.f32 %v355, %v356
  %v358 = vsel %vm274, %v187, 0.0
  %v359 = vadd.f32 %v357, %v358
  %v360 = vsel %vm274, %v188, 0.0
  %v361 = vadd.f32 %v359, %v360
  %v362 = vsel %vm274, %v189, 0.0
  %v363 = vadd.f32 %v361, %v362
  %v364 = vsel %vm274, %v190, 0.0
  %v365 = vadd.f32 %v363, %v364
  %v366 = vsel %vm274, %v191, 0.0
  %v367 = vadd.f32 %v365, %v366
  %v368 = vsel %vm274, %v192, 0.0
  %v369 = vadd.f32 %v367, %v368
  %v370 = vsel %vm274, %v193, 0.0
  %v371 = vadd.f32 %v369, %v370
  %v372 = vsel %vm274, %v194, 0.0
  %v373 = vadd.f32 %v371, %v372
  %v374 = vsel %vm274, %v195, 0.0
  %v375 = vadd.f32 %v373, %v374
  %v376 = vsel %vm274, %v196, 0.0
  %v377 = vadd.f32 %v375, %v376
  %v378 = vsel %vm274, %v197, 0.0
  %v379 = vadd.f32 %v377, %v378
  %v380 = vsel %vm274, %v198, 0.0
  %v381 = vadd.f32 %v379, %v380
  %v382 = vsel %vm274, %v199, 0.0
  %v383 = vadd.f32 %v381, %v382
  %v384 = vsel %vm274, %v200, 0.0
  %v385 = vadd.f32 %v383, %v384
  %v386 = vsel %vm274, %v201, 0.0
  %v387 = vadd.f32 %v385, %v386
  %v388 = vsel %vm274, %v202, 0.0
  %v389 = vadd.f32 %v387, %v388
  %v390 = vsel %vm274, %v203, 0.0
  %v391 = vadd.f32 %v389, %v390
  %v392 = vsel %vm274, %v204, 0.0
  %v393 = vadd.f32 %v391, %v392
  %v394 = vsel %vm274, %v205, 0.0
  %v395 = vadd.f32 %v393, %v394
  %v396 = vsel %vm274, %v206, 0.0
  %v397 = vadd.f32 %v395, %v396
  %v398 = vsel %vm274, %v207, 0.0
  %v399 = vadd.f32 %v397, %v398
  %v400 = vsel %vm274, %v208, 0.0
  %v401 = vadd.f32 %v399, %v400
  %v402 = vsel %vm274, %v209, 0.0
  %v403 = vadd.f32 %v401, %v402
  %v404 = vsel %vm274, %v210, 0.0
  %v405 = vadd.f32 %v403, %v404
  %v406 = vsel %vm274, %v211, 0.0
  %v407 = vadd.f32 %v405, %v406
  %v408 = vsel %vm274, %v212, 0.0
  %v409 = vadd.f32 %v407, %v408
  %v410 = vsel %vm274, %v213, 0.0
  %v411 = vadd.f32 %v409, %v410
  %v412 = vsel %vm274, %v214, 0.0
  %v413 = vadd.f32 %v411, %v412
  %v414 = vsel %vm274, %v215, 0.0
  %v415 = vadd.f32 %v413, %v414
  %v416 = vsel %vm274, %v216, 0.0
  %v417 = vadd.f32 %v415, %v416
  %v418 = vsel %vm274, %v217, 0.0
  %v419 = vadd.f32 %v417, %v418
  %v420 = vsel %vm274, %v218, 0.0
  %v421 = vadd.f32 %v419, %v420
  %v422 = vsel %vm274, %v219, 0.0
  %v423 = vadd.f32 %v421, %v422
  %v424 = vsel %vm274, %v220, 0.0
  %v425 = vadd.f32 %v423, %v424
  %v426 = vsel %vm274, %v221, 0.0
  %v427 = vadd.f32 %v425, %v426
  %v428 = vsel %vm274, %v222, 0.0
  %v429 = vadd.f32 %v427, %v428
  %v430 = vsel %vm274, %v223, 0.0
  %v431 = vadd.f32 %v429, %v430
  %v432 = vsel %vm274, %v224, 0.0
  %v433 = vadd.f32 %v431, %v432
  %v434 = vsel %vm274, %v225, 0.0
  %v435 = vadd.f32 %v433, %v434
  %v436 = vsel %vm274, %v226, 0.0
  %v437 = vadd.f32 %v435, %v436
  %v438 = vsel %vm274, %v227, 0.0
  %v439 = vadd.f32 %v437, %v438
  %v440 = vsel %vm274, %v228, 0.0
  %v441 = vadd.f32 %v439, %v440
  %v442 = vsel %vm274, %v229, 0.0
  %v443 = vadd.f32 %v441, %v442
  %v444 = vsel %vm274, %v230, 0.0
  %v445 = vadd.f32 %v443, %v444
  %v446 = vsel %vm274, %v231, 0.0
  %v447 = vadd.f32 %v445, %v446
  %v448 = vsel %vm274, %v232, 0.0
  %v449 = vadd.f32 %v447, %v448
  %v450 = vsel %vm274, %v233, 0.0
  %v451 = vadd.f32 %v449, %v450
  %v452 = vsel %vm274, %v234, 0.0
  %v453 = vadd.f32 %v451, %v452
  %v454 = vsel %vm274, %v235, 0.0
  %v455 = vadd.f32 %v453, %v454
  %v456 = vsel %vm274, %v236, 0.0
  %v457 = vadd.f32 %v455, %v456
  %v458 = vsel %vm274, %v237, 0.0
  %v459 = vadd.f32 %v457, %v458
  %v460 = vsel %vm274, %v238, 0.0
  %v461 = vadd.f32 %v459, %v460
  %v462 = vsel %vm274, %v239, 0.0
  %v463 = vadd.f32 %v461, %v462
  %v464 = vsel %vm274, %v240, 0.0
  %v465 = vadd.f32 %v463, %v464
  %v466 = vsel %vm274, %v241, 0.0
  %v467 = vadd.f32 %v465, %v466
  %v468 = vsel %vm274, %v242, 0.0
  %v469 = vadd.f32 %v467, %v468
  %v470 = vsel %vm274, %v243, 0.0
  %v471 = vadd.f32 %v469, %v470
  %v472 = vsel %vm274, %v244, 0.0
  %v473 = vadd.f32 %v471, %v472
  %v474 = vsel %vm274, %v245, 0.0
  %v475 = vadd.f32 %v473, %v474
  %v476 = vsel %vm274, %v246, 0.0
  %v477 = vadd.f32 %v475, %v476
  %v478 = vsel %vm274, %v247, 0.0
  %v479 = vadd.f32 %v477, %v478
  %v480 = vsel %vm274, %v248, 0.0
  %v481 = vadd.f32 %v479, %v480
  %v482 = vsel %vm274, %v249, 0.0
  %v483 = vadd.f32 %v481, %v482
  %v484 = vsel %vm274, %v250, 0.0
  %v485 = vadd.f32 %v483, %v484
  %v486 = vsel %vm274, %v251, 0.0
  %v487 = vadd.f32 %v485, %v486
  %v488 = vsel %vm274, %v252, 0.0
  %v489 = vadd.f32 %v487, %v488
  %v490 = vsel %vm274, %v253, 0.0
  %v491 = vadd.f32 %v489, %v490
  %v492 = vsel %vm274, %v254, 0.0
  %v493 = vadd.f32 %v491, %v492
  %v494 = vsel %vm274, %v255, 0.0
  %v495 = vadd.f32 %v493, %v494
  %v496 = vsel %vm274, %v256, 0.0
  %v497 = vadd.f32 %v495, %v496
  %v498 = vsel %vm274, %v257, 0.0
  %v499 = vadd.f32 %v497, %v498
  %v500 = vsel %vm274, %v258, 0.0
  %v501 = vadd.f32 %v499, %v500
  %v502 = vsel %vm274, %v259, 0.0
  %v503 = vadd.f32 %v501, %v502
  %v504 = vsel %vm274, %v260, 0.0
  %v505 = vadd.f32 %v503, %v504
  %v506 = vsel %vm274, %v261, 0.0
  %v507 = vadd.f32 %v505, %v506
  %v508 = vsel %vm274, %v262, 0.0
  %v509 = vadd.f32 %v507, %v508
  %v510 = vsel %vm274, %v263, 0.0
  %v511 = vadd.f32 %v509, %v510
  %v512 = vsel %vm274, %v264, 0.0
  %v513 = vadd.f32 %v511, %v512
  %v514 = vsel %vm274, %v265, 0.0
  %v515 = vadd.f32 %v513, %v514
  %v516 = vsel %vm274, %v266, 0.0
  %v517 = vadd.f32 %v515, %v516
  %v518 = vsel %vm274, %v267, 0.0
  %v519 = vadd.f32 %v517, %v518
  %v520 = vsel %vm274, %v268, 0.0
  %v521 = vadd.f32 %v519, %v520
  %v522 = vsel %vm274, %v269, 0.0
  %v523 = vadd.f32 %v521, %v522
  %v524 = vsel %vm274, %v270, 0.0
  %v525 = vadd.f32 %v523, %v524
  %v526 = vsel %vm274, %v271, 0.0
  %v527 = vadd.f32 %v525, %v526
  %v528 = vsel %vm274, %v272, 0.0
  %v529 = vadd.f32 %v527, %v528
  %v530 = vrot.slane %v529, 4
  %v531 = vadd.f32 %v529, %v530
  %v532 = vrot.slane %v531, 2
  %v533 = vadd.f32 %v531, %v532
  %v534 = vrot.slane %v533, 1
  %v535 = vadd.f32 %v533, %v534
  %v536 = vadd.f32 %v273, %v535
  %vm537 = vcmask 57344
  %538 = vst.msk [vmem:[%s1] sm:$0x1] %vm537, %v536
  %v539 = vld [vmem:[%s2] sm:$0x1]
  %v540 = vmul.f32 %v145, %v145
  %v541 = vmul.f32 %v146, %v146
  %v542 = vmul.f32 %v147, %v147
  %v543 = vmul.f32 %v148, %v148
  %v544 = vmul.f32 %v149, %v149
  %v545 = vmul.f32 %v150, %v150
  %v546 = vmul.f32 %v151, %v151
  %v547 = vmul.f32 %v152, %v152
  %v548 = vmul.f32 %v153, %v153
  %v549 = vmul.f32 %v154, %v154
  %v550 = vmul.f32 %v155, %v155
  %v551 = vmul.f32 %v156, %v156
  %v552 = vmul.f32 %v157, %v157
  %v553 = vmul.f32 %v158, %v158
  %v554 = vmul.f32 %v159, %v159
  %v555 = vmul.f32 %v160, %v160
  %v556 = vmul.f32 %v161, %v161
  %v557 = vmul.f32 %v162, %v162
  %v558 = vmul.f32 %v163, %v163
  %v559 = vmul.f32 %v164, %v164
  %v560 = vmul.f32 %v165, %v165
  %v561 = vmul.f32 %v166, %v166
  %v562 = vmul.f32 %v167, %v167
  %v563 = vmul.f32 %v168, %v168
  %v564 = vmul.f32 %v169, %v169
  %v565 = vmul.f32 %v170, %v170
  %v566 = vmul.f32 %v171, %v171
  %v567 = vmul.f32 %v172, %v172
  %v568 = vmul.f32 %v173, %v173
  %v569 = vmul.f32 %v174, %v174
  %v570 = vmul.f32 %v175, %v175
  %v571 = vmul.f32 %v176, %v176
  %v572 = vmul.f32 %v177, %v177
  %v573 = vmul.f32 %v178, %v178
  %v574 = vmul.f32 %v179, %v179
  %v575 = vmul.f32 %v180, %v180
  %v576 = vmul.f32 %v181, %v181
  %v577 = vmul.f32 %v182, %v182
  %v578 = vmul.f32 %v183, %v183
  %v579 = vmul.f32 %v184, %v184
  %v580 = vmul.f32 %v185, %v185
  %v581 = vmul.f32 %v186, %v186
  %v582 = vmul.f32 %v187, %v187
  %v583 = vmul.f32 %v188, %v188
  %v584 = vmul.f32 %v189, %v189
  %v585 = vmul.f32 %v190, %v190
  %v586 = vmul.f32 %v191, %v191
  %v587 = vmul.f32 %v192, %v192
  %v588 = vmul.f32 %v193, %v193
  %v589 = vmul.f32 %v194, %v194
  %v590 = vmul.f32 %v195, %v195
  %v591 = vmul.f32 %v196, %v196
  %v592 = vmul.f32 %v197, %v197
  %v593 = vmul.f32 %v198, %v198
  %v594 = vmul.f32 %v199, %v199
  %v595 = vmul.f32 %v200, %v200
  %v596 = vmul.f32 %v201, %v201
  %v597 = vmul.f32 %v202, %v202
  %v598 = vmul.f32 %v203, %v203
  %v599 = vmul.f32 %v204, %v204
  %v600 = vmul.f32 %v205, %v205
  %v601 = vmul.f32 %v206, %v206
  %v602 = vmul.f32 %v207, %v207
  %v603 = vmul.f32 %v208, %v208
  %v604 = vmul.f32 %v209, %v209
  %v605 = vmul.f32 %v210, %v210
  %v606 = vmul.f32 %v211, %v211
  %v607 = vmul.f32 %v212, %v212
  %v608 = vmul.f32 %v213, %v213
  %v609 = vmul.f32 %v214, %v214
  %v610 = vmul.f32 %v215, %v215
  %v611 = vmul.f32 %v216, %v216
  %v612 = vmul.f32 %v217, %v217
  %v613 = vmul.f32 %v218, %v218
  %v614 = vmul.f32 %v219, %v219
  %v615 = vmul.f32 %v220, %v220
  %v616 = vmul.f32 %v221, %v221
  %v617 = vmul.f32 %v222, %v222
  %v618 = vmul.f32 %v223, %v223
  %v619 = vmul.f32 %v224, %v224
  %v620 = vmul.f32 %v225, %v225
  %v621 = vmul.f32 %v226, %v226
  %v622 = vmul.f32 %v227, %v227
  %v623 = vmul.f32 %v228, %v228
  %v624 = vmul.f32 %v229, %v229
  %v625 = vmul.f32 %v230, %v230
  %v626 = vmul.f32 %v231, %v231
  %v627 = vmul.f32 %v232, %v232
  %v628 = vmul.f32 %v233, %v233
  %v629 = vmul.f32 %v234, %v234
  %v630 = vmul.f32 %v235, %v235
  %v631 = vmul.f32 %v236, %v236
  %v632 = vmul.f32 %v237, %v237
  %v633 = vmul.f32 %v238, %v238
  %v634 = vmul.f32 %v239, %v239
  %v635 = vmul.f32 %v240, %v240
  %v636 = vmul.f32 %v241, %v241
  %v637 = vmul.f32 %v242, %v242
  %v638 = vmul.f32 %v243, %v243
  %v639 = vmul.f32 %v244, %v244
  %v640 = vmul.f32 %v245, %v245
  %v641 = vmul.f32 %v246, %v246
  %v642 = vmul.f32 %v247, %v247
  %v643 = vmul.f32 %v248, %v248
  %v644 = vmul.f32 %v249, %v249
  %v645 = vmul.f32 %v250, %v250
  %v646 = vmul.f32 %v251, %v251
  %v647 = vmul.f32 %v252, %v252
  %v648 = vmul.f32 %v253, %v253
  %v649 = vmul.f32 %v254, %v254
  %v650 = vmul.f32 %v255, %v255
  %v651 = vmul.f32 %v256, %v256
  %v652 = vmul.f32 %v257, %v257
  %v653 = vmul.f32 %v258, %v258
  %v654 = vmul.f32 %v259, %v259
  %v655 = vmul.f32 %v260, %v260
  %v656 = vmul.f32 %v261, %v261
  %v657 = vmul.f32 %v262, %v262
  %v658 = vmul.f32 %v263, %v263
  %v659 = vmul.f32 %v264, %v264
  %v660 = vmul.f32 %v265, %v265
  %v661 = vmul.f32 %v266, %v266
  %v662 = vmul.f32 %v267, %v267
  %v663 = vmul.f32 %v268, %v268
  %v664 = vmul.f32 %v269, %v269
  %v665 = vmul.f32 %v270, %v270
  %v666 = vmul.f32 %v271, %v271
  %v667 = vmul.f32 %v272, %v272
  %v668 = vsel %vm274, %v540, 0.0
  %v669 = vsel %vm274, %v541, 0.0
  %v670 = vadd.f32 %v668, %v669
  %v671 = vsel %vm274, %v542, 0.0
  %v672 = vadd.f32 %v670, %v671
  %v673 = vsel %vm274, %v543, 0.0
  %v674 = vadd.f32 %v672, %v673
  %v675 = vsel %vm274, %v544, 0.0
  %v676 = vadd.f32 %v674, %v675
  %v677 = vsel %vm274, %v545, 0.0
  %v678 = vadd.f32 %v676, %v677
  %v679 = vsel %vm274, %v546, 0.0
  %v680 = vadd.f32 %v678, %v679
  %v681 = vsel %vm274, %v547, 0.0
  %v682 = vadd.f32 %v680, %v681
  %v683 = vsel %vm274, %v548, 0.0
  %v684 = vadd.f32 %v682, %v683
  %v685 = vsel %vm274, %v549, 0.0
  %v686 = vadd.f32 %v684, %v685
  %v687 = vsel %vm274, %v550, 0.0
  %v688 = vadd.f32 %v686, %v687
  %v689 = vsel %vm274, %v551, 0.0
  %v690 = vadd.f32 %v688, %v689
  %v691 = vsel %vm274, %v552, 0.0
  %v692 = vadd.f32 %v690, %v691
  %v693 = vsel %vm274, %v553, 0.0
  %v694 = vadd.f32 %v692, %v693
  %v695 = vsel %vm274, %v554, 0.0
  %v696 = vadd.f32 %v694, %v695
  %v697 = vsel %vm274, %v555, 0.0
  %v698 = vadd.f32 %v696, %v697
  %v699 = vsel %vm274, %v556, 0.0
  %v700 = vadd.f32 %v698, %v699
  %v701 = vsel %vm274, %v557, 0.0
  %v702 = vadd.f32 %v700, %v701
  %v703 = vsel %vm274, %v558, 0.0
  %v704 = vadd.f32 %v702, %v703
  %v705 = vsel %vm274, %v559, 0.0
  %v706 = vadd.f32 %v704, %v705
  %v707 = vsel %vm274, %v560, 0.0
  %v708 = vadd.f32 %v706, %v707
  %v709 = vsel %vm274, %v561, 0.0
  %v710 = vadd.f32 %v708, %v709
  %v711 = vsel %vm274, %v562, 0.0
  %v712 = vadd.f32 %v710, %v711
  %v713 = vsel %vm274, %v563, 0.0
  %v714 = vadd.f32 %v712, %v713
  %v715 = vsel %vm274, %v564, 0.0
  %v716 = vadd.f32 %v714, %v715
  %v717 = vsel %vm274, %v565, 0.0
  %v718 = vadd.f32 %v716, %v717
  %v719 = vsel %vm274, %v566, 0.0
  %v720 = vadd.f32 %v718, %v719
  %v721 = vsel %vm274, %v567, 0.0
  %v722 = vadd.f32 %v720, %v721
  %v723 = vsel %vm274, %v568, 0.0
  %v724 = vadd.f32 %v722, %v723
  %v725 = vsel %vm274, %v569, 0.0
  %v726 = vadd.f32 %v724, %v725
  %v727 = vsel %vm274, %v570, 0.0
  %v728 = vadd.f32 %v726, %v727
  %v729 = vsel %vm274, %v571, 0.0
  %v730 = vadd.f32 %v728, %v729
  %v731 = vsel %vm274, %v572, 0.0
  %v732 = vadd.f32 %v730, %v731
  %v733 = vsel %vm274, %v573, 0.0
  %v734 = vadd.f32 %v732, %v733
  %v735 = vsel %vm274, %v574, 0.0
  %v736 = vadd.f32 %v734, %v735
  %v737 = vsel %vm274, %v575, 0.0
  %v738 = vadd.f32 %v736, %v737
  %v739 = vsel %vm274, %v576, 0.0
  %v740 = vadd.f32 %v738, %v739
  %v741 = vsel %vm274, %v577, 0.0
  %v742 = vadd.f32 %v740, %v741
  %v743 = vsel %vm274, %v578, 0.0
  %v744 = vadd.f32 %v742, %v743
  %v745 = vsel %vm274, %v579, 0.0
  %v746 = vadd.f32 %v744, %v745
  %v747 = vsel %vm274, %v580, 0.0
  %v748 = vadd.f32 %v746, %v747
  %v749 = vsel %vm274, %v581, 0.0
  %v750 = vadd.f32 %v748, %v749
  %v751 = vsel %vm274, %v582, 0.0
  %v752 = vadd.f32 %v750, %v751
  %v753 = vsel %vm274, %v583, 0.0
  %v754 = vadd.f32 %v752, %v753
  %v755 = vsel %vm274, %v584, 0.0
  %v756 = vadd.f32 %v754, %v755
  %v757 = vsel %vm274, %v585, 0.0
  %v758 = vadd.f32 %v756, %v757
  %v759 = vsel %vm274, %v586, 0.0
  %v760 = vadd.f32 %v758, %v759
  %v761 = vsel %vm274, %v587, 0.0
  %v762 = vadd.f32 %v760, %v761
  %v763 = vsel %vm274, %v588, 0.0
  %v764 = vadd.f32 %v762, %v763
  %v765 = vsel %vm274, %v589, 0.0
  %v766 = vadd.f32 %v764, %v765
  %v767 = vsel %vm274, %v590, 0.0
  %v768 = vadd.f32 %v766, %v767
  %v769 = vsel %vm274, %v591, 0.0
  %v770 = vadd.f32 %v768, %v769
  %v771 = vsel %vm274, %v592, 0.0
  %v772 = vadd.f32 %v770, %v771
  %v773 = vsel %vm274, %v593, 0.0
  %v774 = vadd.f32 %v772, %v773
  %v775 = vsel %vm274, %v594, 0.0
  %v776 = vadd.f32 %v774, %v775
  %v777 = vsel %vm274, %v595, 0.0
  %v778 = vadd.f32 %v776, %v777
  %v779 = vsel %vm274, %v596, 0.0
  %v780 = vadd.f32 %v778, %v779
  %v781 = vsel %vm274, %v597, 0.0
  %v782 = vadd.f32 %v780, %v781
  %v783 = vsel %vm274, %v598, 0.0
  %v784 = vadd.f32 %v782, %v783
  %v785 = vsel %vm274, %v599, 0.0
  %v786 = vadd.f32 %v784, %v785
  %v787 = vsel %vm274, %v600, 0.0
  %v788 = vadd.f32 %v786, %v787
  %v789 = vsel %vm274, %v601, 0.0
  %v790 = vadd.f32 %v788, %v789
  %v791 = vsel %vm274, %v602, 0.0
  %v792 = vadd.f32 %v790, %v791
  %v793 = vsel %vm274, %v603, 0.0
  %v794 = vadd.f32 %v792, %v793
  %v795 = vsel %vm274, %v604, 0.0
  %v796 = vadd.f32 %v794, %v795
  %v797 = vsel %vm274, %v605, 0.0
  %v798 = vadd.f32 %v796, %v797
  %v799 = vsel %vm274, %v606, 0.0
  %v800 = vadd.f32 %v798, %v799
  %v801 = vsel %vm274, %v607, 0.0
  %v802 = vadd.f32 %v800, %v801
  %v803 = vsel %vm274, %v608, 0.0
  %v804 = vadd.f32 %v802, %v803
  %v805 = vsel %vm274, %v609, 0.0
  %v806 = vadd.f32 %v804, %v805
  %v807 = vsel %vm274, %v610, 0.0
  %v808 = vadd.f32 %v806, %v807
  %v809 = vsel %vm274, %v611, 0.0
  %v810 = vadd.f32 %v808, %v809
  %v811 = vsel %vm274, %v612, 0.0
  %v812 = vadd.f32 %v810, %v811
  %v813 = vsel %vm274, %v613, 0.0
  %v814 = vadd.f32 %v812, %v813
  %v815 = vsel %vm274, %v614, 0.0
  %v816 = vadd.f32 %v814, %v815
  %v817 = vsel %vm274, %v615, 0.0
  %v818 = vadd.f32 %v816, %v817
  %v819 = vsel %vm274, %v616, 0.0
  %v820 = vadd.f32 %v818, %v819
  %v821 = vsel %vm274, %v617, 0.0
  %v822 = vadd.f32 %v820, %v821
  %v823 = vsel %vm274, %v618, 0.0
  %v824 = vadd.f32 %v822, %v823
  %v825 = vsel %vm274, %v619, 0.0
  %v826 = vadd.f32 %v824, %v825
  %v827 = vsel %vm274, %v620, 0.0
  %v828 = vadd.f32 %v826, %v827
  %v829 = vsel %vm274, %v621, 0.0
  %v830 = vadd.f32 %v828, %v829
  %v831 = vsel %vm274, %v622, 0.0
  %v832 = vadd.f32 %v830, %v831
  %v833 = vsel %vm274, %v623, 0.0
  %v834 = vadd.f32 %v832, %v833
  %v835 = vsel %vm274, %v624, 0.0
  %v836 = vadd.f32 %v834, %v835
  %v837 = vsel %vm274, %v625, 0.0
  %v838 = vadd.f32 %v836, %v837
  %v839 = vsel %vm274, %v626, 0.0
  %v840 = vadd.f32 %v838, %v839
  %v841 = vsel %vm274, %v627, 0.0
  %v842 = vadd.f32 %v840, %v841
  %v843 = vsel %vm274, %v628, 0.0
  %v844 = vadd.f32 %v842, %v843
  %v845 = vsel %vm274, %v629, 0.0
  %v846 = vadd.f32 %v844, %v845
  %v847 = vsel %vm274, %v630, 0.0
  %v848 = vadd.f32 %v846, %v847
  %v849 = vsel %vm274, %v631, 0.0
  %v850 = vadd.f32 %v848, %v849
  %v851 = vsel %vm274, %v632, 0.0
  %v852 = vadd.f32 %v850, %v851
  %v853 = vsel %vm274, %v633, 0.0
  %v854 = vadd.f32 %v852, %v853
  %v855 = vsel %vm274, %v634, 0.0
  %v856 = vadd.f32 %v854, %v855
  %v857 = vsel %vm274, %v635, 0.0
  %v858 = vadd.f32 %v856, %v857
  %v859 = vsel %vm274, %v636, 0.0
  %v860 = vadd.f32 %v858, %v859
  %v861 = vsel %vm274, %v637, 0.0
  %v862 = vadd.f32 %v860, %v861
  %v863 = vsel %vm274, %v638, 0.0
  %v864 = vadd.f32 %v862, %v863
  %v865 = vsel %vm274, %v639, 0.0
  %v866 = vadd.f32 %v864, %v865
  %v867 = vsel %vm274, %v640, 0.0
  %v868 = vadd.f32 %v866, %v867
  %v869 = vsel %vm274, %v641, 0.0
  %v870 = vadd.f32 %v868, %v869
  %v871 = vsel %vm274, %v642, 0.0
  %v872 = vadd.f32 %v870, %v871
  %v873 = vsel %vm274, %v643, 0.0
  %v874 = vadd.f32 %v872, %v873
  %v875 = vsel %vm274, %v644, 0.0
  %v876 = vadd.f32 %v874, %v875
  %v877 = vsel %vm274, %v645, 0.0
  %v878 = vadd.f32 %v876, %v877
  %v879 = vsel %vm274, %v646, 0.0
  %v880 = vadd.f32 %v878, %v879
  %v881 = vsel %vm274, %v647, 0.0
  %v882 = vadd.f32 %v880, %v881
  %v883 = vsel %vm274, %v648, 0.0
  %v884 = vadd.f32 %v882, %v883
  %v885 = vsel %vm274, %v649, 0.0
  %v886 = vadd.f32 %v884, %v885
  %v887 = vsel %vm274, %v650, 0.0
  %v888 = vadd.f32 %v886, %v887
  %v889 = vsel %vm274, %v651, 0.0
  %v890 = vadd.f32 %v888, %v889
  %v891 = vsel %vm274, %v652, 0.0
  %v892 = vadd.f32 %v890, %v891
  %v893 = vsel %vm274, %v653, 0.0
  %v894 = vadd.f32 %v892, %v893
  %v895 = vsel %vm274, %v654, 0.0
  %v896 = vadd.f32 %v894, %v895
  %v897 = vsel %vm274, %v655, 0.0
  %v898 = vadd.f32 %v896, %v897
  %v899 = vsel %vm274, %v656, 0.0
  %v900 = vadd.f32 %v898, %v899
  %v901 = vsel %vm274, %v657, 0.0
  %v902 = vadd.f32 %v900, %v901
  %v903 = vsel %vm274, %v658, 0.0
  %v904 = vadd.f32 %v902, %v903
  %v905 = vsel %vm274, %v659, 0.0
  %v906 = vadd.f32 %v904, %v905
  %v907 = vsel %vm274, %v660, 0.0
  %v908 = vadd.f32 %v906, %v907
  %v909 = vsel %vm274, %v661, 0.0
  %v910 = vadd.f32 %v908, %v909
  %v911 = vsel %vm274, %v662, 0.0
  %v912 = vadd.f32 %v910, %v911
  %v913 = vsel %vm274, %v663, 0.0
  %v914 = vadd.f32 %v912, %v913
  %v915 = vsel %vm274, %v664, 0.0
  %v916 = vadd.f32 %v914, %v915
  %v917 = vsel %vm274, %v665, 0.0
  %v918 = vadd.f32 %v916, %v917
  %v919 = vsel %vm274, %v666, 0.0
  %v920 = vadd.f32 %v918, %v919
  %v921 = vsel %vm274, %v667, 0.0
  %v922 = vadd.f32 %v920, %v921
  %v923 = vrot.slane %v922, 4
  %v924 = vadd.f32 %v922, %v923
  %v925 = vrot.slane %v924, 2
  %v926 = vadd.f32 %v924, %v925
  %v927 = vrot.slane %v926, 1
  %v928 = vadd.f32 %v926, %v927
  %v929 = vadd.f32 %v539, %v928
  %930 = vst.msk [vmem:[%s2] sm:$0x1] %vm537, %v929
  // Predicated region
  $region10: #{resnet_forward.4} parent=0 // pred_check
    _
  $region11: #{resnet_forward.4} parent=0 // pred_check_branch
    %932 = sbr.rel (0) target = $region13
  $region12: #{resnet_forward.4} parent=0 // pred_region
    _
  $region13: #{resnet_forward.4} parent=0 // pred_fallthru
    _
  // Predicated region
  $region14: #{resnet_forward.4} parent=0 // pred_check
    _
  $region15: #{resnet_forward.4} parent=0 // pred_check_branch
    %934 = sbr.rel (0) target = $region17
  $region16: #{resnet_forward.4} parent=0 // pred_region
    _
  $region17: #{resnet_forward.4} parent=0 // pred_fallthru
    _
  // Predicated region
  $region18: #{resnet_forward.4} parent=0 // pred_check
    _
  $region19: #{resnet_forward.4} parent=0 // pred_check_branch
    %936 = sbr.rel (0) target = $region21
  $region20: #{resnet_forward.4} parent=0 // pred_region
    _
  $region21: #{resnet_forward.4} parent=0 // pred_fallthru
    _
  // Predicated region
  $region22: #{resnet_forward.4} parent=0 // pred_check
    _
  $region23: #{resnet_forward.4} parent=0 // pred_check_branch
    %938 = sbr.rel (0) target = $region25
  $region24: #{resnet_forward.4} parent=0 // pred_region
    _
  $region25: #{resnet_forward.4} parent=0 // pred_fallthru
    _

// kernel: resnet_forward.5
$region0: #{resnet_forward.5}
  #allocation0 [shape = 'u32[]', space=smem, size = 0x4, offset = 0x4, fixed_abs, tag = 'smem constant byte address 0x4 - core index']
  #allocation1 [shape = 'u32[72,128]{1,0:T(1,128)}', space=vmem, size = 0x9000, scoped, tag = 'internal scratch']
  %s0 = inlined_call_operand.vmem [shape: f32[2,10,10,10,8], index: 0, kind: input, shape index: {}, may-alias: {0,1,2}]
  %s1 = inlined_call_operand.vmem [shape: f32[2,10,10,10,8], index: 1, kind: input, shape index: {}, may-alias: {0,1,2}]
  %s2 = inlined_call_operand.vmem [shape: f32[2,10,10,10,8], index: 2, kind: input, shape index: {}, may-alias: {0,1,2}]
  %s3 = inlined_call_operand.vmem [shape: f32[1,8], index: 3, kind: input, shape index: {}]
  %s4 = inlined_call_operand.vmem [shape: f32[1,8], index: 4, kind: input, shape index: {}]
  %s5 = inlined_call_operand.vmem [shape: f32[27,8,8], index: 5, kind: input, shape index: {}]
  %s6 = inlined_call_operand.vmem [shape: f32[1,8], index: 6, kind: input, shape index: {}]
  %s7 = inlined_call_operand.vmem [shape: f32[2,8,8,8,8], index: 7, kind: output, shape index: {}]
  %s8 = sld [smem:[#allocation0]]
  $region61: #{resnet_forward.5} parent=0
    _
  %s10 = ssub.s32 1, %s8
  %s11 = scalar_select 0, %s10, %s8
  loop: start=0, step=1, limit=18
  $region2: #{resnet_forward.5} parent=0 // loop_pre_header
    _
  $region3: #{resnet_forward.5} parent=0 // loop_header
    %s13 = sphi 0, %s17
    %p14 = scmp.ge.s32.totalorder %s13, 18
    %s20 = sphi 0, %s32
    %s21 = sphi 0, %s28
    %s22 = sphi 0, %s20
    %s23 = sphi 0, %s21
    %s24 = sphi 0, %s22
    %s25 = sphi 0, %s23
    %s37 = sphi 0, %s39
    %s40 = sphi 0, %s37
    %s41 = sphi 0, %s40
    %s57 = sphi 0, %s41
    %s67 = sphi 0, %s69
    %s70 = sphi 0, %s67
    %s71 = sphi 0, %s70
    %s87 = sphi 0, %s71
    %s97 = sphi 0, %s99
    %s100 = sphi 0, %s97
    %s101 = sphi 0, %s100
    %s117 = sphi 0, %s101
    %s121 = sphi 0, %s121
    %s123 = sphi 0, %s121
    %s124 = sphi 0, %s123
    %s138 = sphi 0, %s124
    %s142 = sphi 0, %s142
    %s144 = sphi 0, %s142
    %s145 = sphi 0, %s144
    %s159 = sphi 0, %s145
    %s163 = sphi 0, %s163
    %s165 = sphi 0, %s163
    %s166 = sphi 0, %s165
    %s180 = sphi 0, %s166
    %s184 = sphi 0, %s184
    %s186 = sphi 0, %s184
    %s187 = sphi 0, %s186
    %s201 = sphi 0, %s187
    %s209 = sphi 0, %s211
    %s212 = sphi 0, %s209
    %s213 = sphi 0, %s212
    %s229 = sphi 0, %s213
  $region4: #{resnet_forward.5} parent=0 // loop_header_branch
    %16 = sbr.rel (%p14) target = $region8
  $region5: #{resnet_forward.5} parent=0 // loop_body
    %s18 = ssub.s32 %s13, 1
    %s19 = ssub.s32 %s13, 2
    %s26 = sadd.s32 1, %s21
    %p27 = scmp.ge.s32.totalorder %s26, 8
    %s28 = scalar_select %p27, 0, %s26
    %s29 = sadd.s32 1, %s20
    %s30 = scalar_select %p27, %s29, %s20
    %p31 = scmp.ge.s32.totalorder %s30, 2
    %s32 = scalar_select %p31, 0, %s30
    %s33 = ssub.s32 %s20, %s32
    %s34 = ssub.s32 %s21, %s28
    %s35 = sor.u32 %s33, %s34
    %p36 = scmp.eq.s32.totalorder %s35, 0
    %s38 = sadd.s32 %s37, 1
    %s39 = scalar_select %p36, %s37, %s38
    %p42 = pneg %p36
    %p43 = scmp.eq.s32.totalorder %s13, 15
    %p44 = por %p42, %p43
    %p45 = scmp.ne.s32.totalorder %s37, %s40
    %p46 = scmp.eq.s32.totalorder %s13, 0
    %p47 = por %p45, %p46
    %p48 = scmp.ne.s32.totalorder %s37, %s40
    %p49 = scmp.eq.s32.totalorder %s18, 15
    %p50 = por %p48, %p49
    %p51 = scmp.ne.s32.totalorder %s40, %s41
    %p52 = scmp.eq.s32.totalorder %s18, 0
    %p53 = por %p51, %p52
    %p54 = scmp.ne.s32.totalorder %s40, %s41
    %p55 = scmp.eq.s32.totalorder %s19, 15
    %p56 = por %p54, %p55
    %p58 = scmp.ne.s32.totalorder %s41, %s57
    %p59 = scmp.eq.s32.totalorder %s19, 0
    %p60 = por %p58, %p59
    %s61 = sadd.s32 %s21, 1
    %s62 = sadd.s32 %s28, 1
    %s63 = ssub.s32 %s20, %s32
    %s64 = ssub.s32 %s61, %s62
    %s65 = sor.u32 %s63, %s64
    %p66 = scmp.eq.s32.totalorder %s65, 0
    %s68 = sadd.s32 %s67, 1
    %s69 = scalar_select %p66, %s67, %s68
    %p72 = pneg %p66
    %p73 = scmp.eq.s32.totalorder %s13, 15
    %p74 = por %p72, %p73
    %p75 = scmp.ne.s32.totalorder %s67, %s70
    %p76 = scmp.eq.s32.totalorder %s13, 0
    %p77 = por %p75, %p76
    %p78 = scmp.ne.s32.totalorder %s67, %s70
    %p79 = scmp.eq.s32.totalorder %s18, 15
    %p80 = por %p78, %p79
    %p81 = scmp.ne.s32.totalorder %s70, %s71
    %p82 = scmp.eq.s32.totalorder %s18, 0
    %p83 = por %p81, %p82
    %p84 = scmp.ne.s32.totalorder %s70, %s71
    %p85 = scmp.eq.s32.totalorder %s19, 15
    %p86 = por %p84, %p85
    %p88 = scmp.ne.s32.totalorder %s71, %s87
    %p89 = scmp.eq.s32.totalorder %s19, 0
    %p90 = por %p88, %p89
    %s91 = sadd.s32 %s21, 2
    %s92 = sadd.s32 %s28, 2
    %s93 = ssub.s32 %s20, %s32
    %s94 = ssub.s32 %s91, %s92
    %s95 = sor.u32 %s93, %s94
    %p96 = scmp.eq.s32.totalorder %s95, 0
    %s98 = sadd.s32 %s97, 1
    %s99 = scalar_select %p96, %s97, %s98
    %p102 = pneg %p96
    %p103 = scmp.eq.s32.totalorder %s13, 15
    %p104 = por %p102, %p103
    %p105 = scmp.ne.s32.totalorder %s97, %s100
    %p106 = scmp.eq.s32.totalorder %s13, 0
    %p107 = por %p105, %p106
    %p108 = scmp.ne.s32.totalorder %s97, %s100
    %p109 = scmp.eq.s32.totalorder %s18, 15
    %p110 = por %p108, %p109
    %p111 = scmp.ne.s32.totalorder %s100, %s101
    %p112 = scmp.eq.s32.totalorder %s18, 0
    %p113 = por %p111, %p112
    %p114 = scmp.ne.s32.totalorder %s100, %s101
    %p115 = scmp.eq.s32.totalorder %s19, 15
    %p116 = por %p114, %p115
    %p118 = scmp.ne.s32.totalorder %s101, %s117
    %p119 = scmp.eq.s32.totalorder %s19, 0
    %p120 = por %p118, %p119
    %s122 = sadd.s32 %s121, 1
    %p125 = scmp.eq.s32.totalorder %s13, 15
    %p126 = scmp.ne.s32.totalorder %s121, %s123
    %p127 = scmp.eq.s32.totalorder %s13, 0
    %p128 = por %p126, %p127
    %p129 = scmp.ne.s32.totalorder %s121, %s123
    %p130 = scmp.eq.s32.totalorder %s18, 15
    %p131 = por %p129, %p130
    %p132 = scmp.ne.s32.totalorder %s123, %s124
    %p133 = scmp.eq.s32.totalorder %s18, 0
    %p134 = por %p132, %p133
    %p135 = scmp.ne.s32.totalorder %s123, %s124
    %p136 = scmp.eq.s32.totalorder %s19, 15
    %p137 = por %p135, %p136
    %p139 = scmp.ne.s32.totalorder %s124, %s138
    %p140 = scmp.eq.s32.totalorder %s19, 0
    %p141 = por %p139, %p140
    %s143 = sadd.s32 %s142, 1
    %p146 = scmp.eq.s32.totalorder %s13, 15
    %p147 = scmp.ne.s32.totalorder %s142, %s144
    %p148 = scmp.eq.s32.totalorder %s13, 0
    %p149 = por %p147, %p148
    %p150 = scmp.ne.s32.totalorder %s142, %s144
    %p151 = scmp.eq.s32.totalorder %s18, 15
    %p152 = por %p150, %p151
    %p153 = scmp.ne.s32.totalorder %s144, %s145
    %p154 = scmp.eq.s32.totalorder %s18, 0
    %p155 = por %p153, %p154
    %p156 = scmp.ne.s32.totalorder %s144, %s145
    %p157 = scmp.eq.s32.totalorder %s19, 15
    %p158 = por %p156, %p157
    %p160 = scmp.ne.s32.totalorder %s145, %s159
    %p161 = scmp.eq.s32.totalorder %s19, 0
    %p162 = por %p160, %p161
    %s164 = sadd.s32 %s163, 1
    %p167 = scmp.eq.s32.totalorder %s13, 15
    %p168 = scmp.ne.s32.totalorder %s163, %s165
    %p169 = scmp.eq.s32.totalorder %s13, 0
    %p170 = por %p168, %p169
    %p171 = scmp.ne.s32.totalorder %s163, %s165
    %p172 = scmp.eq.s32.totalorder %s18, 15
    %p173 = por %p171, %p172
    %p174 = scmp.ne.s32.totalorder %s165, %s166
    %p175 = scmp.eq.s32.totalorder %s18, 0
    %p176 = por %p174, %p175
    %p177 = scmp.ne.s32.totalorder %s165, %s166
    %p178 = scmp.eq.s32.totalorder %s19, 15
    %p179 = por %p177, %p178
    %p181 = scmp.ne.s32.totalorder %s166, %s180
    %p182 = scmp.eq.s32.totalorder %s19, 0
    %p183 = por %p181, %p182
    %s185 = sadd.s32 %s184, 1
    %p188 = scmp.eq.s32.totalorder %s13, 15
    %p189 = scmp.ne.s32.totalorder %s184, %s186
    %p190 = scmp.eq.s32.totalorder %s13, 0
    %p191 = por %p189, %p190
    %p192 = scmp.ne.s32.totalorder %s184, %s186
    %p193 = scmp.eq.s32.totalorder %s18, 15
    %p194 = por %p192, %p193
    %p195 = scmp.ne.s32.totalorder %s186, %s187
    %p196 = scmp.eq.s32.totalorder %s18, 0
    %p197 = por %p195, %p196
    %p198 = scmp.ne.s32.totalorder %s186, %s187
    %p199 = scmp.eq.s32.totalorder %s19, 15
    %p200 = por %p198, %p199
    %p202 = scmp.ne.s32.totalorder %s187, %s201
    %p203 = scmp.eq.s32.totalorder %s19, 0
    %p204 = por %p202, %p203
    %s205 = ssub.s32 %s20, %s32
    %s206 = ssub.s32 %s21, %s28
    %s207 = sor.u32 %s205, %s206
    %p208 = scmp.eq.s32.totalorder %s207, 0
    %s210 = sadd.s32 %s209, 1
    %s211 = scalar_select %p208, %s209, %s210
    %p214 = pneg %p208
    %p215 = scmp.eq.s32.totalorder %s13, 15
    %p216 = por %p214, %p215
    %p217 = scmp.ne.s32.totalorder %s209, %s212
    %p218 = scmp.eq.s32.totalorder %s13, 0
    %p219 = por %p217, %p218
    %p220 = scmp.ne.s32.totalorder %s209, %s212
    %p221 = scmp.eq.s32.totalorder %s18, 15
    %p222 = por %p220, %p221
    %p223 = scmp.ne.s32.totalorder %s212, %s213
    %p224 = scmp.eq.s32.totalorder %s18, 0
    %p225 = por %p223, %p224
    %p226 = scmp.ne.s32.totalorder %s212, %s213
    %p227 = scmp.eq.s32.totalorder %s19, 15
    %p228 = por %p226, %p227
    %p230 = scmp.ne.s32.totalorder %s213, %s229
    %p231 = scmp.eq.s32.totalorder %s19, 0
    %p232 = por %p230, %p231
    %p233 = scmp.le.s32.totalorder 1, %s13
    %p234 = scmp.lt.s32.totalorder %s13, 17
    %p235 = pnand %p233, %p234
    %p236 = pneg %p235
    // Predicated region
    $region9: #{resnet_forward.5} parent=5 // pred_check
      _
    $region10: #{resnet_forward.5} parent=5 // pred_check_branch
      %238 = sbr.rel (%p235) target = $region12
    $region11: #{resnet_forward.5} parent=5 // pred_region
      %s239 = ssub.s32 %s13, 1
      // Predicated region
      $region13: #{resnet_forward.5} parent=11 // pred_check
        %p240 = pneg %p134
      $region14: #{resnet_forward.5} parent=11 // pred_check_branch
        %242 = sbr.rel (%p240) target = $region16
      $region15: #{resnet_forward.5} parent=11 // pred_region
        _
      $region16: #{resnet_forward.5} parent=11 // pred_fallthru
        _
      // Predicated region
      $region17: #{resnet_forward.5} parent=11 // pred_check
        %p243 = pneg %p155
      $region18: #{resnet_forward.5} parent=11 // pred_check_branch
        %245 = sbr.rel (%p243) target = $region20
      $region19: #{resnet_forward.5} parent=11 // pred_region
        _
      $region20: #{resnet_forward.5} parent=11 // pred_fallthru
        _
      // Predicated region
      $region21: #{resnet_forward.5} parent=11 // pred_check
        %p246 = pneg %p176
      $region22: #{resnet_forward.5} parent=11 // pred_check_branch
        %248 = sbr.rel (%p246) target = $region24
      $region23: #{resnet_forward.5} parent=11 // pred_region
        _
      $region24: #{resnet_forward.5} parent=11 // pred_fallthru
        _
      // Predicated region
      $region25: #{resnet_forward.5} parent=11 // pred_check
        %p249 = pneg %p197
      $region26: #{resnet_forward.5} parent=11 // pred_check_branch
        %251 = sbr.rel (%p249) target = $region28
      $region27: #{resnet_forward.5} parent=11 // pred_region
        _
      $region28: #{resnet_forward.5} parent=11 // pred_fallthru
        _
    $region12: #{resnet_forward.5} parent=5 // pred_fallthru
      _
    %p252 = scmp.lt.s32.totalorder %s13, 16
    // Predicated region
    $region29: #{resnet_forward.5} parent=5 // pred_check
      %p253 = pneg %p252
    $region30: #{resnet_forward.5} parent=5 // pred_check_branch
      %255 = sbr.rel (%p253) target = $region32
    $region31: #{resnet_forward.5} parent=5 // pred_region
      // Predicated region
      $region33: #{resnet_forward.5} parent=31 // pred_check
        %p256 = pneg %p47
      $region34: #{resnet_forward.5} parent=31 // pred_check_branch
        %258 = sbr.rel (%p256) target = $region36
      $region35: #{resnet_forward.5} parent=31 // pred_region
        %p259 = scmp.lt.s32.totalorder %s20, 1
        %s260 = scalar_select %p259, %s20, 1
        %p261 = scmp.lt.s32.totalorder %s21, 9
        %s262 = scalar_select %p261, %s21, 9
        %s263 = smul.addr %s262, 20
        %s264 = smul.addr %s260, 200
        %s265 = sadd.s32 %s263, %s264
        %s266 = smul.addr %s265, 8
        %s267 = scalar_lea.vmem %s0, %s266
      $region36: #{resnet_forward.5} parent=31 // pred_fallthru
        _
      // Predicated region
      $region37: #{resnet_forward.5} parent=31 // pred_check
        %p268 = pneg %p77
      $region38: #{resnet_forward.5} parent=31 // pred_check_branch
        %270 = sbr.rel (%p268) target = $region40
      $region39: #{resnet_forward.5} parent=31 // pred_region
        %s271 = sadd.s32 %s21, 1
        %p272 = scmp.lt.s32.totalorder %s20, 1
        %s273 = scalar_select %p272, %s20, 1
        %p274 = scmp.lt.s32.totalorder %s271, 9
        %s275 = scalar_select %p274, %s271, 9
        %s276 = smul.addr %s275, 20
        %s277 = smul.addr %s273, 200
        %s278 = sadd.s32 %s276, %s277
        %s279 = smul.addr %s278, 8
        %s280 = scalar_lea.vmem %s1, %s279
        %s281 = sadd.s32 %s21, 1
      $region40: #{resnet_forward.5} parent=31 // pred_fallthru
        _
      // Predicated region
      $region41: #{resnet_forward.5} parent=31 // pred_check
        %p282 = pneg %p107
      $region42: #{resnet_forward.5} parent=31 // pred_check_branch
        %284 = sbr.rel (%p282) target = $region44
      $region43: #{resnet_forward.5} parent=31 // pred_region
        %s285 = sadd.s32 %s21, 2
        %p286 = scmp.lt.s32.totalorder %s20, 1
        %s287 = scalar_select %p286, %s20, 1
        %p288 = scmp.lt.s32.totalorder %s285, 9
        %s289 = scalar_select %p288, %s285, 9
        %s290 = smul.addr %s289, 20
        %s291 = smul.addr %s287, 200
        %s292 = sadd.s32 %s290, %s291
        %s293 = smul.addr %s292, 8
        %s294 = scalar_lea.vmem %s2, %s293
        %s295 = sadd.s32 %s21, 2
      $region44: #{resnet_forward.5} parent=31 // pred_fallthru
        _
    $region32: #{resnet_forward.5} parent=5 // pred_fallthru
      _
    %p296 = scmp.le.s32.totalorder 1, %s13
    %p297 = scmp.lt.s32.totalorder %s13, 17
    %p298 = pnand %p296, %p297
    %p299 = pneg %p298
    // Predicated region
    $region45: #{resnet_forward.5} parent=5 // pred_check
      _
    $region46: #{resnet_forward.5} parent=5 // pred_check_branch
      %301 = sbr.rel (%p298) target = $region48
    $region47: #{resnet_forward.5} parent=5 // pred_region
      %s302 = ssub.s32 %s13, 1
      %p303 = scmp.lt.s32.totalorder %s22, 1
      %s304 = scalar_select %p303, %s22, 1
      %p305 = scmp.lt.s32.totalorder %s23, 9
      %s306 = scalar_select %p305, %s23, 9
      %s307 = smul.addr %s306, 20
      %s308 = smul.addr %s304, 200
      %s309 = sadd.s32 %s307, %s308
      %s310 = smul.addr %s309, 8
      %s311 = scalar_lea.vmem %s0, %s310
      %p312 = pneg %p53
      %p313 = pneg %p50
      %s314 = sadd.s32 %s23, 1
      %p315 = scmp.lt.s32.totalorder %s22, 1
      %s316 = scalar_select %p315, %s22, 1
      %p317 = scmp.lt.s32.totalorder %s314, 9
      %s318 = scalar_select %p317, %s314, 9
      %s319 = smul.addr %s318, 20
      %s320 = smul.addr %s316, 200
      %s321 = sadd.s32 %s319, %s320
      %s322 = smul.addr %s321, 8
      %s323 = scalar_lea.vmem %s1, %s322
      %p324 = pneg %p83
      %p325 = pneg %p80
      %s326 = sadd.s32 %s23, 2
      %p327 = scmp.lt.s32.totalorder %s22, 1
      %s328 = scalar_select %p327, %s22, 1
      %p329 = scmp.lt.s32.totalorder %s326, 9
      %s330 = scalar_select %p329, %s326, 9
      %s331 = smul.addr %s330, 20
      %s332 = smul.addr %s328, 200
      %s333 = sadd.s32 %s331, %s332
      %s334 = smul.addr %s333, 8
      %s335 = scalar_lea.vmem %s2, %s334
      %p336 = pneg %p113
      %p337 = pneg %p110
      %p338 = pneg %p134
      %p339 = pneg %p131
      %p340 = pneg %p155
      %p341 = pneg %p152
      %p342 = pneg %p176
      %p343 = pneg %p173
      %p344 = pneg %p197
      %p345 = pneg %p194
      %p346 = pneg %p225
      %p347 = pneg %p222
      %p348 = scmp.lt.s32.totalorder %s22, 1
      %s349 = scalar_select %p348, %s22, 1
      %p350 = scmp.lt.s32.totalorder %s23, 7
      %s351 = scalar_select %p350, %s23, 7
      %s352 = smul.addr %s351, 8
      %s353 = smul.addr %s349, 64
      %s354 = sadd.s32 %s352, %s353
      %s355 = smul.addr %s354, 8
      %s356 = scalar_lea.vmem %s7, %s355
      %p357 = scmp.lt.s32.totalorder %s22, 1
      %s358 = scalar_select %p357, %s22, 1
      %p359 = scmp.lt.s32.totalorder %s23, 9
      %s360 = scalar_select %p359, %s23, 9
      %s361 = smul.addr %s360, 20
      %s362 = smul.addr %s358, 200
      %s363 = sadd.s32 %s361, %s362
      %s364 = smul.addr %s363, 8
      %s365 = scalar_lea.vmem %s0, %s364
      %s366 = sadd.s32 %s23, 1
      %p367 = scmp.lt.s32.totalorder %s22, 1
      %s368 = scalar_select %p367, %s22, 1
      %p369 = scmp.lt.s32.totalorder %s366, 9
      %s370 = scalar_select %p369, %s366, 9
      %s371 = smul.addr %s370, 20
      %s372 = smul.addr %s368, 200
      %s373 = sadd.s32 %s371, %s372
      %s374 = smul.addr %s373, 8
      %s375 = scalar_lea.vmem %s1, %s374
      %s376 = sadd.s32 %s23, 1
      %s377 = sadd.s32 %s23, 2
      %p378 = scmp.lt.s32.totalorder %s22, 1
      %s379 = scalar_select %p378, %s22, 1
      %p380 = scmp.lt.s32.totalorder %s377, 9
      %s381 = scalar_select %p380, %s377, 9
      %s382 = smul.addr %s381, 20
      %s383 = smul.addr %s379, 200
      %s384 = sadd.s32 %s382, %s383
      %s385 = smul.addr %s384, 8
      %s386 = scalar_lea.vmem %s2, %s385
      %s387 = sadd.s32 %s23, 2
      %p388 = scmp.lt.s32.totalorder %s22, 1
      %s389 = scalar_select %p388, %s22, 1
      %p390 = scmp.lt.s32.totalorder %s23, 7
      %s391 = scalar_select %p390, %s23, 7
      %s392 = smul.addr %s391, 8
      %s393 = smul.addr %s389, 64
      %s394 = sadd.s32 %s392, %s393
      %s395 = smul.addr %s394, 8
      %s396 = scalar_lea.vmem %s7, %s395
      %v397 = vld [vmem:[%s3] sm:$0x1]
      %v398 = vld [vmem:[%s4] sm:$0x1]
      %v399 = vlaneseq
      %v400 = vshrl.u32 %v399, 7
      %v401 = vadd.s32 %v400, 8
      %vm402 = vcmp.ge.s32.totalorder %v400, 1
      %vm403 = vcmp.ge.s32.totalorder %v401, 1
      %vm404 = vmand 0, %vm402
      %vm405 = vmand 0, %vm403
      %vm406 = vmand 1, %vm402
      %vm407 = vmand 1, %vm403
      %vm408 = vcmp.le.s32.totalorder %v400, 8
      %vm409 = vcmp.le.s32.totalorder %v401, 8
      %vm410 = vmand %vm404, %vm408
      %vm411 = vmand %vm405, %vm409
      %vm412 = vmand %vm406, %vm408
      %vm413 = vmand %vm407, %vm409
      %p414 = scmp.ge.s32.totalorder %s23, 1
      %p415 = scmp.le.s32.totalorder %s23, 8
      %p416 = pnand %p414, %p415
      %p417 = pneg %p416
      %s418 = scalar_select %p417, 1, 0
      %v419 = vstv %s418
      %vm420 = vcmp.eq.s32.totalorder %v419, 1
      %vm421 = vmand %vm410, %vm420
      %vm422 = vmand %vm411, %vm420
      %vm423 = vmand %vm412, %vm420
      %vm424 = vmand %vm413, %vm420
      %v425 = vsel %vm421, 1.0, 0.0
      %v426 = vsel %vm422, 1.0, 0.0
      %v427 = vsel %vm423, 1.0, 0.0
      %v428 = vsel %vm424, 1.0, 0.0
      %v429 = vld [vmem:[%s365] sm:$0xff]
      %v430 = vld [vmem:[%s365 + $0x8] sm:$0x3]
      %v431 = vld [vmem:[%s365 + $0x10] sm:$0xff]
      %v432 = vld [vmem:[%s365 + $0x18] sm:$0x3]
      %v433 = vld [vmem:[%s365 + $0x20] sm:$0xff]
      %v434 = vld [vmem:[%s365 + $0x28] sm:$0x3]
      %v435 = vld [vmem:[%s365 + $0x30] sm:$0xff]
      %v436 = vld [vmem:[%s365 + $0x38] sm:$0x3]
      %v437 = vld [vmem:[%s365 + $0x40] sm:$0xff]
      %v438 = vld [vmem:[%s365 + $0x48] sm:$0x3]
      %v439 = vld [vmem:[%s365 + $0x50] sm:$0xff]
      %v440 = vld [vmem:[%s365 + $0x58] sm:$0x3]
      %v441 = vld [vmem:[%s365 + $0x60] sm:$0xff]
      %v442 = vld [vmem:[%s365 + $0x68] sm:$0x3]
      %v443 = vld [vmem:[%s365 + $0x70] sm:$0xff]
      %v444 = vld [vmem:[%s365 + $0x78] sm:$0x3]
      %v445 = vld [vmem:[%s365 + $0x80] sm:$0xff]
      %v446 = vld [vmem:[%s365 + $0x88] sm:$0x3]
      %v447 = vld [vmem:[%s365 + $0x90] sm:$0xff]
      %v448 = vld [vmem:[%s365 + $0x98] sm:$0x3]
      %v449 = vmax.f32 %v429, 0.0
      %v450 = vmax.f32 %v430, 0.0
      %v451 = vmax.f32 %v431, 0.0
      %v452 = vmax.f32 %v432, 0.0
      %v453 = vmax.f32 %v433, 0.0
      %v454 = vmax.f32 %v434, 0.0
      %v455 = vmax.f32 %v435, 0.0
      %v456 = vmax.f32 %v436, 0.0
      %v457 = vmax.f32 %v437, 0.0
      %v458 = vmax.f32 %v438, 0.0
      %v459 = vmax.f32 %v439, 0.0
      %v460 = vmax.f32 %v440, 0.0
      %v461 = vmax.f32 %v441, 0.0
      %v462 = vmax.f32 %v442, 0.0
      %v463 = vmax.f32 %v443, 0.0
      %v464 = vmax.f32 %v444, 0.0
      %v465 = vmax.f32 %v445, 0.0
      %v466 = vmax.f32 %v446, 0.0
      %v467 = vmax.f32 %v447, 0.0
      %v468 = vmax.f32 %v448, 0.0
      %v470 = vperm.slane %v397, 0
      %v472 = vmul.f32 %v449, %v470
      %v473 = vmul.f32 %v450, %v470
      %v474 = vmul.f32 %v451, %v470
      %v475 = vmul.f32 %v452, %v470
      %v476 = vmul.f32 %v453, %v470
      %v477 = vmul.f32 %v454, %v470
      %v478 = vmul.f32 %v455, %v470
      %v479 = vmul.f32 %v456, %v470
      %v480 = vmul.f32 %v457, %v470
      %v481 = vmul.f32 %v458, %v470
      %v482 = vmul.f32 %v459, %v470
      %v483 = vmul.f32 %v460, %v470
      %v484 = vmul.f32 %v461, %v470
      %v485 = vmul.f32 %v462, %v470
      %v486 = vmul.f32 %v463, %v470
      %v487 = vmul.f32 %v464, %v470
      %v488 = vmul.f32 %v465, %v470
      %v489 = vmul.f32 %v466, %v470
      %v490 = vmul.f32 %v467, %v470
      %v491 = vmul.f32 %v468, %v470
      %v493 = vperm.slane %v398, 0
      %v495 = vadd.f32 %v472, %v493
      %v496 = vadd.f32 %v473, %v493
      %v497 = vadd.f32 %v474, %v493
      %v498 = vadd.f32 %v475, %v493
      %v499 = vadd.f32 %v476, %v493
      %v500 = vadd.f32 %v477, %v493
      %v501 = vadd.f32 %v478, %v493
      %v502 = vadd.f32 %v479, %v493
      %v503 = vadd.f32 %v480, %v493
      %v504 = vadd.f32 %v481, %v493
      %v505 = vadd.f32 %v482, %v493
      %v506 = vadd.f32 %v483, %v493
      %v507 = vadd.f32 %v484, %v493
      %v508 = vadd.f32 %v485, %v493
      %v509 = vadd.f32 %v486, %v493
      %v510 = vadd.f32 %v487, %v493
      %v511 = vadd.f32 %v488, %v493
      %v512 = vadd.f32 %v489, %v493
      %v513 = vadd.f32 %v490, %v493
      %v514 = vadd.f32 %v491, %v493
      %v515 = vmul.f32 %v495, %v425
      %v516 = vmul.f32 %v496, %v426
      %v517 = vmul.f32 %v497, %v427
      %v518 = vmul.f32 %v498, %v428
      %v519 = vmul.f32 %v499, %v427
      %v520 = vmul.f32 %v500, %v428
      %v521 = vmul.f32 %v501, %v427
      %v522 = vmul.f32 %v502, %v428
      %v523 = vmul.f32 %v503, %v427
      %v524 = vmul.f32 %v504, %v428
      %v525 = vmul.f32 %v505, %v427
      %v526 = vmul.f32 %v506, %v428
      %v527 = vmul.f32 %v507, %v427
      %v528 = vmul.f32 %v508, %v428
      %v529 = vmul.f32 %v509, %v427
      %v530 = vmul.f32 %v510, %v428
      %v531 = vmul.f32 %v511, %v427
      %v532 = vmul.f32 %v512, %v428
      %v533 = vmul.f32 %v513, %v425
      %v534 = vmul.f32 %v514, %v426
      %v535 = vld [vmem:[%s5] sm:$0xff]
      %vm552 = vcmask 1046528
      %v553 = vrot.slane %v515, 1
      %v554 = vrot.slane %v516, 1
      %v555 = vsel %vm552, %v553, %v554
      %v556 = vrot.slane %v517, 1
      %v557 = vrot.slane %v518, 1
      %v558 = vsel %vm552, %v556, %v557
      %v559 = vrot.slane %v519, 1
      %v560 = vrot.slane %v520, 1
      %v561 = vsel %vm552, %v559, %v560
      %v562 = vrot.slane %v521, 1
      %v563 = vrot.slane %v522, 1
      %v564 = vsel %vm552, %v562, %v563
      %v565 = vrot.slane %v523, 1
      %v566 = vrot.slane %v524, 1
      %v567 = vsel %vm552, %v565, %v566
      %v568 = vrot.slane %v525, 1
      %v569 = vrot.slane %v526, 1
      %v570 = vsel %vm552, %v568, %v569
      %v571 = vrot.slane %v527, 1
      %v572 = vrot.slane %v528, 1
      %v573 = vsel %vm552, %v571, %v572
      %v574 = vrot.slane %v529, 1
      %v575 = vrot.slane %v530, 1
      %v576 = vsel %vm552, %v574, %v575
      %s577 = scalar_lea.vmem %s5, 8
      %v578 = vld [vmem:[%s577] sm:$0xff]
      %vm579 = vcmask 64512
      %v580 = vsel %vm579, %v555, 0
      %v582 = vsel %vm579, %v558, 0
      %v584 = vsel %vm579, %v561, 0
      %v586 = vsel %vm579, %v564, 0
      %v588 = vsel %vm579, %v567, 0
      %v590 = vsel %vm579, %v570, 0
      %v592 = vsel %vm579, %v573, 0
      %v594 = vsel %vm579, %v576, 0
      %596 = vmatpush.msra.mxu0 0.0
      %597 = vmatpush.msra.mxu0 0.0
      %598 = vmatpush.msra.mxu0 0.0
      %599 = vmatpush.msra.mxu0 0.0
      %600 = vmatpush.msra.mxu0 0.0
      %601 = vmatpush.msra.mxu0 0.0
      %602 = vmatpush.msra.mxu0 0.0
      %603 = vmatpush.msra.mxu0 0.0
      %604 = vmatpush.msra.mxu0 0.0
      %605 = vmatpush.msra.mxu0 0.0
      %606 = vmatpush.msra.mxu0 0.0
      %607 = vmatpush.msra.mxu0 0.0
      %608 = vmatpush.msra.mxu0 0.0
      %609 = vmatpush.msra.mxu0 0.0
      %610 = vmatpush.msra.mxu0 0.0
      %611 = vmatpush.msra.mxu0 %v578
      %612 = vmatmul.f32.gmra.mxu0 %v580
      %v613 = vpop.f32.mrf.mxu0
      %v614 = vadd.f32 0.0, %v613
      %615 = vmatmul.f32.gmra.mxu0 %v582
      %v616 = vpop.f32.mrf.mxu0
      %v617 = vadd.f32 0.0, %v616
      %618 = vmatmul.f32.gmra.mxu0 %v584
      %v619 = vpop.f32.mrf.mxu0
      %v620 = vadd.f32 0.0, %v619
      %621 = vmatmul.f32.gmra.mxu0 %v586
      %v622 = vpop.f32.mrf.mxu0
      %v623 = vadd.f32 0.0, %v622
      %624 = vmatmul.f32.gmra.mxu0 %v588
      %v625 = vpop.f32.mrf.mxu0
      %v626 = vadd.f32 0.0, %v625
      %627 = vmatmul.f32.gmra.mxu0 %v590
      %v628 = vpop.f32.mrf.mxu0
      %v629 = vadd.f32 0.0, %v628
      %630 = vmatmul.f32.gmra.mxu0 %v592
      %v631 = vpop.f32.mrf.mxu0
      %v632 = vadd.f32 0.0, %v631
      %633 = vmatmul.f32.gmra.mxu0 %v594
      %v634 = vpop.f32.mrf.mxu0
      %v635 = vadd.f32 0.0, %v634
      %636 = vdwg.mxu0
      %v637 = vsel %vm579, %v515, 0
      %v639 = vsel %vm579, %v517, 0
      %v641 = vsel %vm579, %v519, 0
      %v643 = vsel %vm579, %v521, 0
      %v645 = vsel %vm579, %v523, 0
      %v647 = vsel %vm579, %v525, 0
      %v649 = vsel %vm579, %v527, 0
      %v651 = vsel %vm579, %v529, 0
      %653 = vmatpush.msra.mxu0 0.0
      %654 = vmatpush.msra.mxu0 0.0
      %655 = vmatpush.msra.mxu0 0.0
      %656 = vmatpush.msra.mxu0 0.0
      %657 = vmatpush.msra.mxu0 0.0
      %658 = vmatpush.msra.mxu0 0.0
      %659 = vmatpush.msra.mxu0 0.0
      %660 = vmatpush.msra.mxu0 0.0
      %661 = vmatpush.msra.mxu0 0.0
      %662 = vmatpush.msra.mxu0 0.0
      %663 = vmatpush.msra.mxu0 0.0
      %664 = vmatpush.msra.mxu0 0.0
      %665 = vmatpush.msra.mxu0 0.0
      %666 = vmatpush.msra.mxu0 0.0
      %667 = vmatpush.msra.mxu0 0.0
      %668 = vmatpush.msra.mxu0 %v535
      %669 = vmatmul.f32.gmra.mxu0 %v637
      %v670 = vpop.f32.mrf.mxu0
      %v671 = vadd.f32 %v614, %v670
      %672 = vmatmul.f32.gmra.mxu0 %v639
      %v673 = vpop.f32.mrf.mxu0
      %v674 = vadd.f32 %v617, %v673
      %675 = vmatmul.f32.gmra.mxu0 %v641
      %v676 = vpop.f32.mrf.mxu0
      %v677 = vadd.f32 %v620, %v676
      %678 = vmatmul.f32.gmra.mxu0 %v643
      %v679 = vpop.f32.mrf.mxu0
      %v680 = vadd.f32 %v623, %v679
      %681 = vmatmul.f32.gmra.mxu0 %v645
      %v682 = vpop.f32.mrf.mxu0
      %v683 = vadd.f32 %v626, %v682
      %684 = vmatmul.f32.gmra.mxu0 %v647
      %v685 = vpop.f32.mrf.mxu0
      %v686 = vadd.f32 %v629, %v685
      %687 = vmatmul.f32.gmra.mxu0 %v649
      %v688 = vpop.f32.mrf.mxu0
      %v689 = vadd.f32 %v632, %v688
      %690 = vmatmul.f32.gmra.mxu0 %v651
      %v691 = vpop.f32.mrf.mxu0
      %v692 = vadd.f32 %v635, %v691
      %693 = vdwg.mxu0
      %vm694 = vcmask 1045504
      %v695 = vrot.slane %v515, 2
      %v696 = vrot.slane %v516, 2
      %v697 = vsel %vm694, %v695, %v696
      %v698 = vrot.slane %v517, 2
      %v699 = vrot.slane %v518, 2
      %v700 = vsel %vm694, %v698, %v699
      %v701 = vrot.slane %v519, 2
      %v702 = vrot.slane %v520, 2
      %v703 = vsel %vm694, %v701, %v702
      %v704 = vrot.slane %v521, 2
      %v705 = vrot.slane %v522, 2
      %v706 = vsel %vm694, %v704, %v705
      %v707 = vrot.slane %v523, 2
      %v708 = vrot.slane %v524, 2
      %v709 = vsel %vm694, %v707, %v708
      %v710 = vrot.slane %v525, 2
      %v711 = vrot.slane %v526, 2
      %v712 = vsel %vm694, %v710, %v711
      %v713 = vrot.slane %v527, 2
      %v714 = vrot.slane %v528, 2
      %v715 = vsel %vm694, %v713, %v714
      %v716 = vrot.slane %v529, 2
      %v717 = vrot.slane %v530, 2
      %v718 = vsel %vm694, %v716, %v717
      %s719 = scalar_lea.vmem %s5, 16
      %v720 = vld [vmem:[%s719] sm:$0xff]
      %v721 = vsel %vm579, %v697, 0
      %v723 = vsel %vm579, %v700, 0
      %v725 = vsel %vm579, %v703, 0
      %v727 = vsel %vm579, %v706, 0
      %v729 = vsel %vm579, %v709, 0
      %v731 = vsel %vm579, %v712, 0
      %v733 = vsel %vm579, %v715, 0
      %v735 = vsel %vm579, %v718, 0
      %737 = vmatpush.msra.mxu0 0.0
      %738 = vmatpush.msra.mxu0 0.0
      %739 = vmatpush.msra.mxu0 0.0
      %740 = vmatpush.msra.mxu0 0.0
      %741 = vmatpush.msra.mxu0 0.0
      %742 = vmatpush.msra.mxu0 0.0
      %743 = vmatpush.msra.mxu0 0.0
      %744 = vmatpush.msra.mxu0 0.0
      %745 = vmatpush.msra.mxu0 0.0
      %746 = vmatpush.msra.mxu0 0.0
      %747 = vmatpush.msra.mxu0 0.0
      %748 = vmatpush.msra.mxu0 0.0
      %749 = vmatpush.msra.mxu0 0.0
      %750 = vmatpush.msra.mxu0 0.0
      %751 = vmatpush.msra.mxu0 0.0
      %752 = vmatpush.msra.mxu0 %v720
      %753 = vmatmul.f32.gmra.mxu0 %v721
      %v754 = vpop.f32.mrf.mxu0
      %v755 = vadd.f32 0.0, %v754
      %756 = vmatmul.f32.gmra.mxu0 %v723
      %v757 = vpop.f32.mrf.mxu0
      %v758 = vadd.f32 0.0, %v757
      %759 = vmatmul.f32.gmra.mxu0 %v725
      %v760 = vpop.f32.mrf.mxu0
      %v761 = vadd.f32 0.0, %v760
      %762 = vmatmul.f32.gmra.mxu0 %v727
      %v763 = vpop.f32.mrf.mxu0
      %v764 = vadd.f32 0.0, %v763
      %765 = vmatmul.f32.gmra.mxu0 %v729
      %v766 = vpop.f32.mrf.mxu0
      %v767 = vadd.f32 0.0, %v766
      %768 = vmatmul.f32.gmra.mxu0 %v731
      %v769 = vpop.f32.mrf.mxu0
      %v770 = vadd.f32 0.0, %v769
      %771 = vmatmul.f32.gmra.mxu0 %v733
      %v772 = vpop.f32.mrf.mxu0
      %v773 = vadd.f32 0.0, %v772
      %774 = vmatmul.f32.gmra.mxu0 %v735
      %v775 = vpop.f32.mrf.mxu0
      %v776 = vadd.f32 0.0, %v775
      %777 = vdwg.mxu0
      %v778 = vadd.f32 %v671, %v755
      %v779 = vadd.f32 %v674, %v758
      %v780 = vadd.f32 %v677, %v761
      %v781 = vadd.f32 %v680, %v764
      %v782 = vadd.f32 %v683, %v767
      %v783 = vadd.f32 %v686, %v770
      %v784 = vadd.f32 %v689, %v773
      %v785 = vadd.f32 %v692, %v776
      %s786 = scalar_lea.vmem %s5, 24
      %v787 = vld [vmem:[%s786] sm:$0xff]
      %v789 = vsel %vm579, %v531, 0
      %791 = vmatpush.msra.mxu0 0.0
      %792 = vmatpush.msra.mxu0 0.0
      %793 = vmatpush.msra.mxu0 0.0
      %794 = vmatpush.msra.mxu0 0.0
      %795 = vmatpush.msra.mxu0 0.0
      %796 = vmatpush.msra.mxu0 0.0
      %797 = vmatpush.msra.mxu0 0.0
      %798 = vmatpush.msra.mxu0 0.0
      %799 = vmatpush.msra.mxu0 0.0
      %800 = vmatpush.msra.mxu0 0.0
      %801 = vmatpush.msra.mxu0 0.0
      %802 = vmatpush.msra.mxu0 0.0
      %803 = vmatpush.msra.mxu0 0.0
      %804 = vmatpush.msra.mxu0 0.0
      %805 = vmatpush.msra.mxu0 0.0
      %806 = vmatpush.msra.mxu0 %v787
      %807 = vmatmul.f32.gmra.mxu0 %v639
      %v808 = vpop.f32.mrf.mxu0
      %v809 = vadd.f32 0.0, %v808
      %810 = vmatmul.f32.gmra.mxu0 %v641
      %v811 = vpop.f32.mrf.mxu0
      %v812 = vadd.f32 0.0, %v811
      %813 = vmatmul.f32.gmra.mxu0 %v643
      %v814 = vpop.f32.mrf.mxu0
      %v815 = vadd.f32 0.0, %v814
      %816 = vmatmul.f32.gmra.mxu0 %v645
      %v817 = vpop.f32.mrf.mxu0
      %v818 = vadd.f32 0.0, %v817
      %819 = vmatmul.f32.gmra.mxu0 %v647
      %v820 = vpop.f32.mrf.mxu0
      %v821 = vadd.f32 0.0, %v820
      %822 = vmatmul.f32.gmra.mxu0 %v649
      %v823 = vpop.f32.mrf.mxu0
      %v824 = vadd.f32 0.0, %v823
      %825 = vmatmul.f32.gmra.mxu0 %v651
      %v826 = vpop.f32.mrf.mxu0
      %v827 = vadd.f32 0.0, %v826
      %828 = vmatmul.f32.gmra.mxu0 %v789
      %v829 = vpop.f32.mrf.mxu0
      %v830 = vadd.f32 0.0, %v829
      %831 = vdwg.mxu0
      %v832 = vadd.f32 %v778, %v809
      %v833 = vadd.f32 %v779, %v812
      %v834 = vadd.f32 %v780, %v815
      %v835 = vadd.f32 %v781, %v818
      %v836 = vadd.f32 %v782, %v821
      %v837 = vadd.f32 %v783, %v824
      %v838 = vadd.f32 %v784, %v827
      %v839 = vadd.f32 %v785, %v830
      %v841 = vrot.slane %v531, 1
      %v842 = vrot.slane %v532, 1
      %v843 = vsel %vm552, %v841, %v842
      %s844 = scalar_lea.vmem %s5, 32
      %v845 = vld [vmem:[%s844] sm:$0xff]
      %v846 = vsel %vm579, %v843, 0
      %848 = vmatpush.msra.mxu0 0.0
      %849 = vmatpush.msra.mxu0 0.0
      %850 = vmatpush.msra.mxu0 0.0
      %851 = vmatpush.msra.mxu0 0.0
      %852 = vmatpush.msra.mxu0 0.0
      %853 = vmatpush.msra.mxu0 0.0
      %854 = vmatpush.msra.mxu0 0.0
      %855 = vmatpush.msra.mxu0 0.0
      %856 = vmatpush.msra.mxu0 0.0
      %857 = vmatpush.msra.mxu0 0.0
      %858 = vmatpush.msra.mxu0 0.0
      %859 = vmatpush.msra.mxu0 0.0
      %860 = vmatpush.msra.mxu0 0.0
      %861 = vmatpush.msra.mxu0 0.0
      %862 = vmatpush.msra.mxu0 0.0
      %863 = vmatpush.msra.mxu0 %v845
      %864 = vmatmul.f32.gmra.mxu0 %v582
      %v865 = vpop.f32.mrf.mxu0
      %v866 = vadd.f32 0.0, %v865
      %867 = vmatmul.f32.gmra.mxu0 %v584
      %v868 = vpop.f32.mrf.mxu0
      %v869 = vadd.f32 0.0, %v868
      %870 = vmatmul.f32.gmra.mxu0 %v586
      %v871 = vpop.f32.mrf.mxu0
      %v872 = vadd.f32 0.0, %v871
      %873 = vmatmul.f32.gmra.mxu0 %v588
      %v874 = vpop.f32.mrf.mxu0
      %v875 = vadd.f32 0.0, %v874
      %876 = vmatmul.f32.gmra.mxu0 %v590
      %v877 = vpop.f32.mrf.mxu0
      %v878 = vadd.f32 0.0, %v877
      %879 = vmatmul.f32.gmra.mxu0 %v592
      %v880 = vpop.f32.mrf.mxu0
      %v881 = vadd.f32 0.0, %v880
      %882 = vmatmul.f32.gmra.mxu0 %v594
      %v883 = vpop.f32.mrf.mxu0
      %v884 = vadd.f32 0.0, %v883
      %885 = vmatmul.f32.gmra.mxu0 %v846
      %v886 = vpop.f32.mrf.mxu0
      %v887 = vadd.f32 0.0, %v886
      %888 = vdwg.mxu0
      %v889 = vadd.f32 %v832, %v866
      %v890 = vadd.f32 %v833, %v869
      %v891 = vadd.f32 %v834, %v872
      %v892 = vadd.f32 %v835, %v875
      %v893 = vadd.f32 %v836, %v878
      %v894 = vadd.f32 %v837, %v881
      %v895 = vadd.f32 %v838, %v884
      %v896 = vadd.f32 %v839, %v887
      %v897 = vrot.slane %v531, 2
      %v898 = vrot.slane %v532, 2
      %v899 = vsel %vm694, %v897, %v898
      %s900 = scalar_lea.vmem %s5, 40
      %v901 = vld [vmem:[%s900] sm:$0xff]
      %v902 = vsel %vm579, %v899, 0
      %904 = vmatpush.msra.mxu0 0.0
      %905 = vmatpush.msra.mxu0 0.0
      %906 = vmatpush.msra.mxu0 0.0
      %907 = vmatpush.msra.mxu0 0.0
      %908 = vmatpush.msra.mxu0 0.0
      %909 = vmatpush.msra.mxu0 0.0
      %910 = vmatpush.msra.mxu0 0.0
      %911 = vmatpush.msra.mxu0 0.0
      %912 = vmatpush.msra.mxu0 0.0
      %913 = vmatpush.msra.mxu0 0.0
      %914 = vmatpush.msra.mxu0 0.0
      %915 = vmatpush.msra.mxu0 0.0
      %916 = vmatpush.msra.mxu0 0.0
      %917 = vmatpush.msra.mxu0 0.0
      %918 = vmatpush.msra.mxu0 0.0
      %919 = vmatpush.msra.mxu0 %v901
      %920 = vmatmul.f32.gmra.mxu0 %v723
      %v921 = vpop.f32.mrf.mxu0
      %v922 = vadd.f32 0.0, %v921
      %923 = vmatmul.f32.gmra.mxu0 %v725
      %v924 = vpop.f32.mrf.mxu0
      %v925 = vadd.f32 0.0, %v924
      %926 = vmatmul.f32.gmra.mxu0 %v727
      %v927 = vpop.f32.mrf.mxu0
      %v928 = vadd.f32 0.0, %v927
      %929 = vmatmul.f32.gmra.mxu0 %v729
      %v930 = vpop.f32.mrf.mxu0
      %v931 = vadd.f32 0.0, %v930
      %932 = vmatmul.f32.gmra.mxu0 %v731
      %v933 = vpop.f32.mrf.mxu0
      %v934 = vadd.f32 0.0, %v933
      %935 = vmatmul.f32.gmra.mxu0 %v733
      %v936 = vpop.f32.mrf.mxu0
      %v937 = vadd.f32 0.0, %v936
      %938 = vmatmul.f32.gmra.mxu0 %v735
      %v939 = vpop.f32.mrf.mxu0
      %v940 = vadd.f32 0.0, %v939
      %941 = vmatmul.f32.gmra.mxu0 %v902
      %v942 = vpop.f32.mrf.mxu0
      %v943 = vadd.f32 0.0, %v942
      %944 = vdwg.mxu0
      %v945 = vadd.f32 %v889, %v922
      %v946 = vadd.f32 %v890, %v925
      %v947 = vadd.f32 %v891, %v928
      %v948 = vadd.f32 %v892, %v931
      %v949 = vadd.f32 %v893, %v934
      %v950 = vadd.f32 %v894, %v937
      %v951 = vadd.f32 %v895, %v940
      %v952 = vadd.f32 %v896, %v943
      %s953 = scalar_lea.vmem %s5, 48
      %v954 = vld [vmem:[%s953] sm:$0xff]
      %v956 = vsel %vm579, %v533, 0
      %958 = vmatpush.msra.mxu0 0.0
      %959 = vmatpush.msra.mxu0 0.0
      %960 = vmatpush.msra.mxu0 0.0
      %961 = vmatpush.msra.mxu0 0.0
      %962 = vmatpush.msra.mxu0 0.0
      %963 = vmatpush.msra.mxu0 0.0
      %964 = vmatpush.msra.mxu0 0.0
      %965 = vmatpush.msra.mxu0 0.0
      %966 = vmatpush.msra.mxu0 0.0
      %967 = vmatpush.msra.mxu0 0.0
      %968 = vmatpush.msra.mxu0 0.0
      %969 = vmatpush.msra.mxu0 0.0
      %970 = vmatpush.msra.mxu0 0.0
      %971 = vmatpush.msra.mxu0 0.0
      %972 = vmatpush.msra.mxu0 0.0
      %973 = vmatpush.msra.mxu0 %v954
      %974 = vmatmul.f32.gmra.mxu0 %v641
      %v975 = vpop.f32.mrf.mxu0
      %v976 = vadd.f32 0.0, %v975
      %977 = vmatmul.f32.gmra.mxu0 %v643
      %v978 = vpop.f32.mrf.mxu0
      %v979 = vadd.f32 0.0, %v978
      %980 = vmatmul.f32.gmra.mxu0 %v645
      %v981 = vpop.f32.mrf.mxu0
      %v982 = vadd.f32 0.0, %v981
      %983 = vmatmul.f32.gmra.mxu0 %v647
      %v984 = vpop.f32.mrf.mxu0
      %v985 = vadd.f32 0.0, %v984
      %986 = vmatmul.f32.gmra.mxu0 %v649
      %v987 = vpop.f32.mrf.mxu0
      %v988 = vadd.f32 0.0, %v987
      %989 = vmatmul.f32.gmra.mxu0 %v651
      %v990 = vpop.f32.mrf.mxu0
      %v991 = vadd.f32 0.0, %v990
      %992 = vmatmul.f32.gmra.mxu0 %v789
      %v993 = vpop.f32.mrf.mxu0
      %v994 = vadd.f32 0.0, %v993
      %995 = vmatmul.f32.gmra.mxu0 %v956
      %v996 = vpop.f32.mrf.mxu0
      %v997 = vadd.f32 0.0, %v996
      %998 = vdwg.mxu0
      %v999 = vadd.f32 %v945, %v976
      %v1000 = vadd.f32 %v946, %v979
      %v1001 = vadd.f32 %v947, %v982
      %v1002 = vadd.f32 %v948, %v985
      %v1003 = vadd.f32 %v949, %v988
      %v1004 = vadd.f32 %v950, %v991
      %v1005 = vadd.f32 %v951, %v994
      %v1006 = vadd.f32 %v952, %v997
      %v1008 = vrot.slane %v533, 1
      %v1009 = vrot.slane %v534, 1
      %v1010 = vsel %vm552, %v1008, %v1009
      %s1011 = scalar_lea.vmem %s5, 56
      %v1012 = vld [vmem:[%s1011] sm:$0xff]
      %v1013 = vsel %vm579, %v1010, 0
      %1015 = vmatpush.msra.mxu0 0.0
      %1016 = vmatpush.msra.mxu0 0.0
      %1017 = vmatpush.msra.mxu0 0.0
      %1018 = vmatpush.msra.mxu0 0.0
      %1019 = vmatpush.msra.mxu0 0.0
      %1020 = vmatpush.msra.mxu0 0.0
      %1021 = vmatpush.msra.mxu0 0.0
      %1022 = vmatpush.msra.mxu0 0.0
      %1023 = vmatpush.msra.mxu0 0.0
      %1024 = vmatpush.msra.mxu0 0.0
      %1025 = vmatpush.msra.mxu0 0.0
      %1026 = vmatpush.msra.mxu0 0.0
      %1027 = vmatpush.msra.mxu0 0.0
      %1028 = vmatpush.msra.mxu0 0.0
      %1029 = vmatpush.msra.mxu0 0.0
      %1030 = vmatpush.msra.mxu0 %v1012
      %1031 = vmatmul.f32.gmra.mxu0 %v584
      %v1032 = vpop.f32.mrf.mxu0
      %v1033 = vadd.f32 0.0, %v1032
      %1034 = vmatmul.f32.gmra.mxu0 %v586
      %v1035 = vpop.f32.mrf.mxu0
      %v1036 = vadd.f32 0.0, %v1035
      %1037 = vmatmul.f32.gmra.mxu0 %v588
      %v1038 = vpop.f32.mrf.mxu0
      %v1039 = vadd.f32 0.0, %v1038
      %1040 = vmatmul.f32.gmra.mxu0 %v590
      %v1041 = vpop.f32.mrf.mxu0
      %v1042 = vadd.f32 0.0, %v1041
      %1043 = vmatmul.f32.gmra.mxu0 %v592
      %v1044 = vpop.f32.mrf.mxu0
      %v1045 = vadd.f32 0.0, %v1044
      %1046 = vmatmul.f32.gmra.mxu0 %v594
      %v1047 = vpop.f32.mrf.mxu0
      %v1048 = vadd.f32 0.0, %v1047
      %1049 = vmatmul.f32.gmra.mxu0 %v846
      %v1050 = vpop.f32.mrf.mxu0
      %v1051 = vadd.f32 0.0, %v1050
      %1052 = vmatmul.f32.gmra.mxu0 %v1013
      %v1053 = vpop.f32.mrf.mxu0
      %v1054 = vadd.f32 0.0, %v1053
      %1055 = vdwg.mxu0
      %v1056 = vadd.f32 %v999, %v1033
      %v1057 = vadd.f32 %v1000, %v1036
      %v1058 = vadd.f32 %v1001, %v1039
      %v1059 = vadd.f32 %v1002, %v1042
      %v1060 = vadd.f32 %v1003, %v1045
      %v1061 = vadd.f32 %v1004, %v1048
      %v1062 = vadd.f32 %v1005, %v1051
      %v1063 = vadd.f32 %v1006, %v1054
      %v1064 = vrot.slane %v533, 2
      %v1065 = vrot.slane %v534, 2
      %v1066 = vsel %vm694, %v1064, %v1065
      %s1067 = scalar_lea.vmem %s5, 64
      %v1068 = vld [vmem:[%s1067] sm:$0xff]
      %v1069 = vsel %vm579, %v1066, 0
      %1071 = vmatpush.msra.mxu0 0.0
      %1072 = vmatpush.msra.mxu0 0.0
      %1073 = vmatpush.msra.mxu0 0.0
      %1074 = vmatpush.msra.mxu0 0.0
      %1075 = vmatpush.msra.mxu0 0.0
      %1076 = vmatpush.msra.mxu0 0.0
      %1077 = vmatpush.msra.mxu0 0.0
      %1078 = vmatpush.msra.mxu0 0.0
      %1079 = vmatpush.msra.mxu0 0.0
      %1080 = vmatpush.msra.mxu0 0.0
      %1081 = vmatpush.msra.mxu0 0.0
      %1082 = vmatpush.msra.mxu0 0.0
      %1083 = vmatpush.msra.mxu0 0.0
      %1084 = vmatpush.msra.mxu0 0.0
      %1085 = vmatpush.msra.mxu0 0.0
      %1086 = vmatpush.msra.mxu0 %v1068
      %1087 = vmatmul.f32.gmra.mxu0 %v725
      %v1088 = vpop.f32.mrf.mxu0
      %v1089 = vadd.f32 0.0, %v1088
      %1090 = vmatmul.f32.gmra.mxu0 %v727
      %v1091 = vpop.f32.mrf.mxu0
      %v1092 = vadd.f32 0.0, %v1091
      %1093 = vmatmul.f32.gmra.mxu0 %v729
      %v1094 = vpop.f32.mrf.mxu0
      %v1095 = vadd.f32 0.0, %v1094
      %1096 = vmatmul.f32.gmra.mxu0 %v731
      %v1097 = vpop.f32.mrf.mxu0
      %v1098 = vadd.f32 0.0, %v1097
      %1099 = vmatmul.f32.gmra.mxu0 %v733
      %v1100 = vpop.f32.mrf.mxu0
      %v1101 = vadd.f32 0.0, %v1100
      %1102 = vmatmul.f32.gmra.mxu0 %v735
      %v1103 = vpop.f32.mrf.mxu0
      %v1104 = vadd.f32 0.0, %v1103
      %1105 = vmatmul.f32.gmra.mxu0 %v902
      %v1106 = vpop.f32.mrf.mxu0
      %v1107 = vadd.f32 0.0, %v1106
      %1108 = vmatmul.f32.gmra.mxu0 %v1069
      %v1109 = vpop.f32.mrf.mxu0
      %v1110 = vadd.f32 0.0, %v1109
      %1111 = vdwg.mxu0
      %v1112 = vadd.f32 %v1056, %v1089
      %v1113 = vadd.f32 %v1057, %v1092
      %v1114 = vadd.f32 %v1058, %v1095
      %v1115 = vadd.f32 %v1059, %v1098
      %v1116 = vadd.f32 %v1060, %v1101
      %v1117 = vadd.f32 %v1061, %v1104
      %v1118 = vadd.f32 %v1062, %v1107
      %v1119 = vadd.f32 %v1063, %v1110
      %s1120 = sadd.s32 %s23, 1
      %p1121 = scmp.ge.s32.totalorder %s1120, 1
      %p1122 = scmp.le.s32.totalorder %s1120, 8
      %p1123 = pnand %p1121, %p1122
      %p1124 = pneg %p1123
      %s1125 = scalar_select %p1124, 1, 0
      %v1126 = vstv %s1125
      %vm1127 = vcmp.eq.s32.totalorder %v1126, 1
      %vm1128 = vmand %vm410, %vm1127
      %vm1129 = vmand %vm411, %vm1127
      %vm1130 = vmand %vm412, %vm1127
      %vm1131 = vmand %vm413, %vm1127
      %v1132 = vsel %vm1128, 1.0, 0.0
      %v1133 = vsel %vm1129, 1.0, 0.0
      %v1134 = vsel %vm1130, 1.0, 0.0
      %v1135 = vsel %vm1131, 1.0, 0.0
      %v1136 = vld [vmem:[%s375] sm:$0xff]
      %v1137 = vld [vmem:[%s375 + $0x8] sm:$0x3]
      %v1138 = vld [vmem:[%s375 + $0x10] sm:$0xff]
      %v1139 = vld [vmem:[%s375 + $0x18] sm:$0x3]
      %v1140 = vld [vmem:[%s375 + $0x20] sm:$0xff]
      %v1141 = vld [vmem:[%s375 + $0x28] sm:$0x3]
      %v1142 = vld [vmem:[%s375 + $0x30] sm:$0xff]
      %v1143 = vld [vmem:[%s375 + $0x38] sm:$0x3]
      %v1144 = vld [vmem:[%s375 + $0x40] sm:$0xff]
      %v1145 = vld [vmem:[%s375 + $0x48] sm:$0x3]
      %v1146 = vld [vmem:[%s375 + $0x50] sm:$0xff]
      %v1147 = vld [vmem:[%s375 + $0x58] sm:$0x3]
      %v1148 = vld [vmem:[%s375 + $0x60] sm:$0xff]
      %v1149 = vld [vmem:[%s375 + $0x68] sm:$0x3]
      %v1150 = vld [vmem:[%s375 + $0x70] sm:$0xff]
      %v1151 = vld [vmem:[%s375 + $0x78] sm:$0x3]
      %v1152 = vld [vmem:[%s375 + $0x80] sm:$0xff]
      %v1153 = vld [vmem:[%s375 + $0x88] sm:$0x3]
      %v1154 = vld [vmem:[%s375 + $0x90] sm:$0xff]
      %v1155 = vld [vmem:[%s375 + $0x98] sm:$0x3]
      %v1156 = vmax.f32 %v1136, 0.0
      %v1157 = vmax.f32 %v1137, 0.0
      %v1158 = vmax.f32 %v1138, 0.0
      %v1159 = vmax.f32 %v1139, 0.0
      %v1160 = vmax.f32 %v1140, 0.0
      %v1161 = vmax.f32 %v1141, 0.0
      %v1162 = vmax.f32 %v1142, 0.0
      %v1163 = vmax.f32 %v1143, 0.0
      %v1164 = vmax.f32 %v1144, 0.0
      %v1165 = vmax.f32 %v1145, 0.0
      %v1166 = vmax.f32 %v1146, 0.0
      %v1167 = vmax.f32 %v1147, 0.0
      %v1168 = vmax.f32 %v1148, 0.0
      %v1169 = vmax.f32 %v1149, 0.0
      %v1170 = vmax.f32 %v1150, 0.0
      %v1171 = vmax.f32 %v1151, 0.0
      %v1172 = vmax.f32 %v1152, 0.0
      %v1173 = vmax.f32 %v1153, 0.0
      %v1174 = vmax.f32 %v1154, 0.0
      %v1175 = vmax.f32 %v1155, 0.0
      %v1176 = vmul.f32 %v1156, %v470
      %v1177 = vmul.f32 %v1157, %v470
      %v1178 = vmul.f32 %v1158, %v470
      %v1179 = vmul.f32 %v1159, %v470
      %v1180 = vmul.f32 %v1160, %v470
      %v1181 = vmul.f32 %v1161, %v470
      %v1182 = vmul.f32 %v1162, %v470
      %v1183 = vmul.f32 %v1163, %v470
      %v1184 = vmul.f32 %v1164, %v470
      %v1185 = vmul.f32 %v1165, %v470
      %v1186 = vmul.f32 %v1166, %v470
      %v1187 = vmul.f32 %v1167, %v470
      %v1188 = vmul.f32 %v1168, %v470
      %v1189 = vmul.f32 %v1169, %v470
      %v1190 = vmul.f32 %v1170, %v470
      %v1191 = vmul.f32 %v1171, %v470
      %v1192 = vmul.f32 %v1172, %v470
      %v1193 = vmul.f32 %v1173, %v470
      %v1194 = vmul.f32 %v1174, %v470
      %v1195 = vmul.f32 %v1175, %v470
      %v1196 = vadd.f32 %v1176, %v493
      %v1197 = vadd.f32 %v1177, %v493
      %v1198 = vadd.f32 %v1178, %v493
      %v1199 = vadd.f32 %v1179, %v493
      %v1200 = vadd.f32 %v1180, %v493
      %v1201 = vadd.f32 %v1181, %v493
      %v1202 = vadd.f32 %v1182, %v493
      %v1203 = vadd.f32 %v1183, %v493
      %v1204 = vadd.f32 %v1184, %v493
      %v1205 = vadd.f32 %v1185, %v493
      %v1206 = vadd.f32 %v1186, %v493
      %v1207 = vadd.f32 %v1187, %v493
      %v1208 = vadd.f32 %v1188, %v493
      %v1209 = vadd.f32 %v1189, %v493
      %v1210 = vadd.f32 %v1190, %v493
      %v1211 = vadd.f32 %v1191, %v493
      %v1212 = vadd.f32 %v1192, %v493
      %v1213 = vadd.f32 %v1193, %v493
      %v1214 = vadd.f32 %v1194, %v493
      %v1215 = vadd.f32 %v1195, %v493
      %v1216 = vmul.f32 %v1196, %v1132
      %v1217 = vmul.f32 %v1197, %v1133
      %v1218 = vmul.f32 %v1198, %v1134
      %v1219 = vmul.f32 %v1199, %v1135
      %v1220 = vmul.f32 %v1200, %v1134
      %v1221 = vmul.f32 %v1201, %v1135
      %v1222 = vmul.f32 %v1202, %v1134
      %v1223 = vmul.f32 %v1203, %v1135
      %v1224 = vmul.f32 %v1204, %v1134
      %v1225 = vmul.f32 %v1205, %v1135
      %v1226 = vmul.f32 %v1206, %v1134
      %v1227 = vmul.f32 %v1207, %v1135
      %v1228 = vmul.f32 %v1208, %v1134
      %v1229 = vmul.f32 %v1209, %v1135
      %v1230 = vmul.f32 %v1210, %v1134
      %v1231 = vmul.f32 %v1211, %v1135
      %v1232 = vmul.f32 %v1212, %v1134
      %v1233 = vmul.f32 %v1213, %v1135
      %v1234 = vmul.f32 %v1214, %v1132
      %v1235 = vmul.f32 %v1215, %v1133
      %s1236 = scalar_lea.vmem %s5, 72
      %v1237 = vld [vmem:[%s1236] sm:$0xff]
      %v1239 = vsel %vm579, %v1216, 0
      %v1242 = vsel %vm579, %v1218, 0
      %v1245 = vsel %vm579, %v1220, 0
      %v1248 = vsel %vm579, %v1222, 0
      %v1251 = vsel %vm579, %v1224, 0
      %v1254 = vsel %vm579, %v1226, 0
      %v1257 = vsel %vm579, %v1228, 0
      %v1260 = vsel %vm579, %v1230, 0
      %1262 = vmatpush.msra.mxu0 0.0
      %1263 = vmatpush.msra.mxu0 0.0
      %1264 = vmatpush.msra.mxu0 0.0
      %1265 = vmatpush.msra.mxu0 0.0
      %1266 = vmatpush.msra.mxu0 0.0
      %1267 = vmatpush.msra.mxu0 0.0
      %1268 = vmatpush.msra.mxu0 0.0
      %1269 = vmatpush.msra.mxu0 0.0
      %1270 = vmatpush.msra.mxu0 0.0
      %1271 = vmatpush.msra.mxu0 0.0
      %1272 = vmatpush.msra.mxu0 0.0
      %1273 = vmatpush.msra.mxu0 0.0
      %1274 = vmatpush.msra.mxu0 0.0
      %1275 = vmatpush.msra.mxu0 0.0
      %1276 = vmatpush.msra.mxu0 0.0
      %1277 = vmatpush.msra.mxu0 %v1237
      %1278 = vmatmul.f32.gmra.mxu0 %v1239
      %v1279 = vpop.f32.mrf.mxu0
      %v1280 = vadd.f32 0.0, %v1279
      %1281 = vmatmul.f32.gmra.mxu0 %v1242
      %v1282 = vpop.f32.mrf.mxu0
      %v1283 = vadd.f32 0.0, %v1282
      %1284 = vmatmul.f32.gmra.mxu0 %v1245
      %v1285 = vpop.f32.mrf.mxu0
      %v1286 = vadd.f32 0.0, %v1285
      %1287 = vmatmul.f32.gmra.mxu0 %v1248
      %v1288 = vpop.f32.mrf.mxu0
      %v1289 = vadd.f32 0.0, %v1288
      %1290 = vmatmul.f32.gmra.mxu0 %v1251
      %v1291 = vpop.f32.mrf.mxu0
      %v1292 = vadd.f32 0.0, %v1291
      %1293 = vmatmul.f32.gmra.mxu0 %v1254
      %v1294 = vpop.f32.mrf.mxu0
      %v1295 = vadd.f32 0.0, %v1294
      %1296 = vmatmul.f32.gmra.mxu0 %v1257
      %v1297 = vpop.f32.mrf.mxu0
      %v1298 = vadd.f32 0.0, %v1297
      %1299 = vmatmul.f32.gmra.mxu0 %v1260
      %v1300 = vpop.f32.mrf.mxu0
      %v1301 = vadd.f32 0.0, %v1300
      %1302 = vdwg.mxu0
      %v1303 = vadd.f32 %v1112, %v1280
      %v1304 = vadd.f32 %v1113, %v1283
      %v1305 = vadd.f32 %v1114, %v1286
      %v1306 = vadd.f32 %v1115, %v1289
      %v1307 = vadd.f32 %v1116, %v1292
      %v1308 = vadd.f32 %v1117, %v1295
      %v1309 = vadd.f32 %v1118, %v1298
      %v1310 = vadd.f32 %v1119, %v1301
      %v1319 = vrot.slane %v1216, 1
      %v1320 = vrot.slane %v1217, 1
      %v1321 = vsel %vm552, %v1319, %v1320
      %v1322 = vrot.slane %v1218, 1
      %v1323 = vrot.slane %v1219, 1
      %v1324 = vsel %vm552, %v1322, %v1323
      %v1325 = vrot.slane %v1220, 1
      %v1326 = vrot.slane %v1221, 1
      %v1327 = vsel %vm552, %v1325, %v1326
      %v1328 = vrot.slane %v1222, 1
      %v1329 = vrot.slane %v1223, 1
      %v1330 = vsel %vm552, %v1328, %v1329
      %v1331 = vrot.slane %v1224, 1
      %v1332 = vrot.slane %v1225, 1
      %v1333 = vsel %vm552, %v1331, %v1332
      %v1334 = vrot.slane %v1226, 1
      %v1335 = vrot.slane %v1227, 1
      %v1336 = vsel %vm552, %v1334, %v1335
      %v1337 = vrot.slane %v1228, 1
      %v1338 = vrot.slane %v1229, 1
      %v1339 = vsel %vm552, %v1337, %v1338
      %v1340 = vrot.slane %v1230, 1
      %v1341 = vrot.slane %v1231, 1
      %v1342 = vsel %vm552, %v1340, %v1341
      %s1343 = scalar_lea.vmem %s5, 80
      %v1344 = vld [vmem:[%s1343] sm:$0xff]
      %v1345 = vsel %vm579, %v1321, 0
      %v1347 = vsel %vm579, %v1324, 0
      %v1349 = vsel %vm579, %v1327, 0
      %v1351 = vsel %vm579, %v1330, 0
      %v1353 = vsel %vm579, %v1333, 0
      %v1355 = vsel %vm579, %v1336, 0
      %v1357 = vsel %vm579, %v1339, 0
      %v1359 = vsel %vm579, %v1342, 0
      %1361 = vmatpush.msra.mxu0 0.0
      %1362 = vmatpush.msra.mxu0 0.0
      %1363 = vmatpush.msra.mxu0 0.0
      %1364 = vmatpush.msra.mxu0 0.0
      %1365 = vmatpush.msra.mxu0 0.0
      %1366 = vmatpush.msra.mxu0 0.0
      %1367 = vmatpush.msra.mxu0 0.0
      %1368 = vmatpush.msra.mxu0 0.0
      %1369 = vmatpush.msra.mxu0 0.0
      %1370 = vmatpush.msra.mxu0 0.0
      %1371 = vmatpush.msra.mxu0 0.0
      %1372 = vmatpush.msra.mxu0 0.0
      %1373 = vmatpush.msra.mxu0 0.0
      %1374 = vmatpush.msra.mxu0 0.0
      %1375 = vmatpush.msra.mxu0 0.0
      %1376 = vmatpush.msra.mxu0 %v1344
      %1377 = vmatmul.f32.gmra.mxu0 %v1345
      %v1378 = vpop.f32.mrf.mxu0
      %v1379 = vadd.f32 0.0, %v1378
      %1380 = vmatmul.f32.gmra.mxu0 %v1347
      %v1381 = vpop.f32.mrf.mxu0
      %v1382 = vadd.f32 0.0, %v1381
      %1383 = vmatmul.f32.gmra.mxu0 %v1349
      %v1384 = vpop.f32.mrf.mxu0
      %v1385 = vadd.f32 0.0, %v1384
      %1386 = vmatmul.f32.gmra.mxu0 %v1351
      %v1387 = vpop.f32.mrf.mxu0
      %v1388 = vadd.f32 0.0, %v1387
      %1389 = vmatmul.f32.gmra.mxu0 %v1353
      %v1390 = vpop.f32.mrf.mxu0
      %v1391 = vadd.f32 0.0, %v1390
      %1392 = vmatmul.f32.gmra.mxu0 %v1355
      %v1393 = vpop.f32.mrf.mxu0
      %v1394 = vadd.f32 0.0, %v1393
      %1395 = vmatmul.f32.gmra.mxu0 %v1357
      %v1396 = vpop.f32.mrf.mxu0
      %v1397 = vadd.f32 0.0, %v1396
      %1398 = vmatmul.f32.gmra.mxu0 %v1359
      %v1399 = vpop.f32.mrf.mxu0
      %v1400 = vadd.f32 0.0, %v1399
      %1401 = vdwg.mxu0
      %v1402 = vadd.f32 %v1303, %v1379
      %v1403 = vadd.f32 %v1304, %v1382
      %v1404 = vadd.f32 %v1305, %v1385
      %v1405 = vadd.f32 %v1306, %v1388
      %v1406 = vadd.f32 %v1307, %v1391
      %v1407 = vadd.f32 %v1308, %v1394
      %v1408 = vadd.f32 %v1309, %v1397
      %v1409 = vadd.f32 %v1310, %v1400
      %v1410 = vrot.slane %v1216, 2
      %v1411 = vrot.slane %v1217, 2
      %v1412 = vsel %vm694, %v1410, %v1411
      %v1413 = vrot.slane %v1218, 2
      %v1414 = vrot.slane %v1219, 2
      %v1415 = vsel %vm694, %v1413, %v1414
      %v1416 = vrot.slane %v1220, 2
      %v1417 = vrot.slane %v1221, 2
      %v1418 = vsel %vm694, %v1416, %v1417
      %v1419 = vrot.slane %v1222, 2
      %v1420 = vrot.slane %v1223, 2
      %v1421 = vsel %vm694, %v1419, %v1420
      %v1422 = vrot.slane %v1224, 2
      %v1423 = vrot.slane %v1225, 2
      %v1424 = vsel %vm694, %v1422, %v1423
      %v1425 = vrot.slane %v1226, 2
      %v1426 = vrot.slane %v1227, 2
      %v1427 = vsel %vm694, %v1425, %v1426
      %v1428 = vrot.slane %v1228, 2
      %v1429 = vrot.slane %v1229, 2
      %v1430 = vsel %vm694, %v1428, %v1429
      %v1431 = vrot.slane %v1230, 2
      %v1432 = vrot.slane %v1231, 2
      %v1433 = vsel %vm694, %v1431, %v1432
      %s1434 = scalar_lea.vmem %s5, 88
      %v1435 = vld [vmem:[%s1434] sm:$0xff]
      %v1436 = vsel %vm579, %v1412, 0
      %v1438 = vsel %vm579, %v1415, 0
      %v1440 = vsel %vm579, %v1418, 0
      %v1442 = vsel %vm579, %v1421, 0
      %v1444 = vsel %vm579, %v1424, 0
      %v1446 = vsel %vm579, %v1427, 0
      %v1448 = vsel %vm579, %v1430, 0
      %v1450 = vsel %vm579, %v1433, 0
      %1452 = vmatpush.msra.mxu0 0.0
      %1453 = vmatpush.msra.mxu0 0.0
      %1454 = vmatpush.msra.mxu0 0.0
      %1455 = vmatpush.msra.mxu0 0.0
      %1456 = vmatpush.msra.mxu0 0.0
      %1457 = vmatpush.msra.mxu0 0.0
      %1458 = vmatpush.msra.mxu0 0.0
      %1459 = vmatpush.msra.mxu0 0.0
      %1460 = vmatpush.msra.mxu0 0.0
      %1461 = vmatpush.msra.mxu0 0.0
      %1462 = vmatpush.msra.mxu0 0.0
      %1463 = vmatpush.msra.mxu0 0.0
      %1464 = vmatpush.msra.mxu0 0.0
      %1465 = vmatpush.msra.mxu0 0.0
      %1466 = vmatpush.msra.mxu0 0.0
      %1467 = vmatpush.msra.mxu0 %v1435
      %1468 = vmatmul.f32.gmra.mxu0 %v1436
      %v1469 = vpop.f32.mrf.mxu0
      %v1470 = vadd.f32 0.0, %v1469
      %1471 = vmatmul.f32.gmra.mxu0 %v1438
      %v1472 = vpop.f32.mrf.mxu0
      %v1473 = vadd.f32 0.0, %v1472
      %1474 = vmatmul.f32.gmra.mxu0 %v1440
      %v1475 = vpop.f32.mrf.mxu0
      %v1476 = vadd.f32 0.0, %v1475
      %1477 = vmatmul.f32.gmra.mxu0 %v1442
      %v1478 = vpop.f32.mrf.mxu0
      %v1479 = vadd.f32 0.0, %v1478
      %1480 = vmatmul.f32.gmra.mxu0 %v1444
      %v1481 = vpop.f32.mrf.mxu0
      %v1482 = vadd.f32 0.0, %v1481
      %1483 = vmatmul.f32.gmra.mxu0 %v1446
      %v1484 = vpop.f32.mrf.mxu0
      %v1485 = vadd.f32 0.0, %v1484
      %1486 = vmatmul.f32.gmra.mxu0 %v1448
      %v1487 = vpop.f32.mrf.mxu0
      %v1488 = vadd.f32 0.0, %v1487
      %1489 = vmatmul.f32.gmra.mxu0 %v1450
      %v1490 = vpop.f32.mrf.mxu0
      %v1491 = vadd.f32 0.0, %v1490
      %1492 = vdwg.mxu0
      %v1493 = vadd.f32 %v1402, %v1470
      %v1494 = vadd.f32 %v1403, %v1473
      %v1495 = vadd.f32 %v1404, %v1476
      %v1496 = vadd.f32 %v1405, %v1479
      %v1497 = vadd.f32 %v1406, %v1482
      %v1498 = vadd.f32 %v1407, %v1485
      %v1499 = vadd.f32 %v1408, %v1488
      %v1500 = vadd.f32 %v1409, %v1491
      %s1501 = scalar_lea.vmem %s5, 96
      %v1502 = vld [vmem:[%s1501] sm:$0xff]
      %v1504 = vsel %vm579, %v1232, 0
      %1506 = vmatpush.msra.mxu0 0.0
      %1507 = vmatpush.msra.mxu0 0.0
      %1508 = vmatpush.msra.mxu0 0.0
      %1509 = vmatpush.msra.mxu0 0.0
      %1510 = vmatpush.msra.mxu0 0.0
      %1511 = vmatpush.msra.mxu0 0.0
      %1512 = vmatpush.msra.mxu0 0.0
      %1513 = vmatpush.msra.mxu0 0.0
      %1514 = vmatpush.msra.mxu0 0.0
      %1515 = vmatpush.msra.mxu0 0.0
      %1516 = vmatpush.msra.mxu0 0.0
      %1517 = vmatpush.msra.mxu0 0.0
      %1518 = vmatpush.msra.mxu0 0.0
      %1519 = vmatpush.msra.mxu0 0.0
      %1520 = vmatpush.msra.mxu0 0.0
      %1521 = vmatpush.msra.mxu0 %v1502
      %1522 = vmatmul.f32.gmra.mxu0 %v1242
      %v1523 = vpop.f32.mrf.mxu0
      %v1524 = vadd.f32 0.0, %v1523
      %1525 = vmatmul.f32.gmra.mxu0 %v1245
      %v1526 = vpop.f32.mrf.mxu0
      %v1527 = vadd.f32 0.0, %v1526
      %1528 = vmatmul.f32.gmra.mxu0 %v1248
      %v1529 = vpop.f32.mrf.mxu0
      %v1530 = vadd.f32 0.0, %v1529
      %1531 = vmatmul.f32.gmra.mxu0 %v1251
      %v1532 = vpop.f32.mrf.mxu0
      %v1533 = vadd.f32 0.0, %v1532
      %1534 = vmatmul.f32.gmra.mxu0 %v1254
      %v1535 = vpop.f32.mrf.mxu0
      %v1536 = vadd.f32 0.0, %v1535
      %1537 = vmatmul.f32.gmra.mxu0 %v1257
      %v1538 = vpop.f32.mrf.mxu0
      %v1539 = vadd.f32 0.0, %v1538
      %1540 = vmatmul.f32.gmra.mxu0 %v1260
      %v1541 = vpop.f32.mrf.mxu0
      %v1542 = vadd.f32 0.0, %v1541
      %1543 = vmatmul.f32.gmra.mxu0 %v1504
      %v1544 = vpop.f32.mrf.mxu0
      %v1545 = vadd.f32 0.0, %v1544
      %1546 = vdwg.mxu0
      %v1547 = vadd.f32 %v1493, %v1524
      %v1548 = vadd.f32 %v1494, %v1527
      %v1549 = vadd.f32 %v1495, %v1530
      %v1550 = vadd.f32 %v1496, %v1533
      %v1551 = vadd.f32 %v1497, %v1536
      %v1552 = vadd.f32 %v1498, %v1539
      %v1553 = vadd.f32 %v1499, %v1542
      %v1554 = vadd.f32 %v1500, %v1545
      %v1556 = vrot.slane %v1232, 1
      %v1557 = vrot.slane %v1233, 1
      %v1558 = vsel %vm552, %v1556, %v1557
      %s1559 = scalar_lea.vmem %s5, 104
      %v1560 = vld [vmem:[%s1559] sm:$0xff]
      %v1561 = vsel %vm579, %v1558, 0
      %1563 = vmatpush.msra.mxu0 0.0
      %1564 = vmatpush.msra.mxu0 0.0
      %1565 = vmatpush.msra.mxu0 0.0
      %1566 = vmatpush.msra.mxu0 0.0
      %1567 = vmatpush.msra.mxu0 0.0
      %1568 = vmatpush.msra.mxu0 0.0
      %1569 = vmatpush.msra.mxu0 0.0
      %1570 = vmatpush.msra.mxu0 0.0
      %1571 = vmatpush.msra.mxu0 0.0
      %1572 = vmatpush.msra.mxu0 0.0
      %1573 = vmatpush.msra.mxu0 0.0
      %1574 = vmatpush.msra.mxu0 0.0
      %1575 = vmatpush.msra.mxu0 0.0
      %1576 = vmatpush.msra.mxu0 0.0
      %1577 = vmatpush.msra.mxu0 0.0
      %1578 = vmatpush.msra.mxu0 %v1560
      %1579 = vmatmul.f32.gmra.mxu0 %v1347
      %v1580 = vpop.f32.mrf.mxu0
      %v1581 = vadd.f32 0.0, %v1580
      %1582 = vmatmul.f32.gmra.mxu0 %v1349
      %v1583 = vpop.f32.mrf.mxu0
      %v1584 = vadd.f32 0.0, %v1583
      %1585 = vmatmul.f32.gmra.mxu0 %v1351
      %v1586 = vpop.f32.mrf.mxu0
      %v1587 = vadd.f32 0.0, %v1586
      %1588 = vmatmul.f32.gmra.mxu0 %v1353
      %v1589 = vpop.f32.mrf.mxu0
      %v1590 = vadd.f32 0.0, %v1589
      %1591 = vmatmul.f32.gmra.mxu0 %v1355
      %v1592 = vpop.f32.mrf.mxu0
      %v1593 = vadd.f32 0.0, %v1592
      %1594 = vmatmul.f32.gmra.mxu0 %v1357
      %v1595 = vpop.f32.mrf.mxu0
      %v1596 = vadd.f32 0.0, %v1595
      %1597 = vmatmul.f32.gmra.mxu0 %v1359
      %v1598 = vpop.f32.mrf.mxu0
      %v1599 = vadd.f32 0.0, %v1598
      %1600 = vmatmul.f32.gmra.mxu0 %v1561
      %v1601 = vpop.f32.mrf.mxu0
      %v1602 = vadd.f32 0.0, %v1601
      %1603 = vdwg.mxu0
      %v1604 = vadd.f32 %v1547, %v1581
      %v1605 = vadd.f32 %v1548, %v1584
      %v1606 = vadd.f32 %v1549, %v1587
      %v1607 = vadd.f32 %v1550, %v1590
      %v1608 = vadd.f32 %v1551, %v1593
      %v1609 = vadd.f32 %v1552, %v1596
      %v1610 = vadd.f32 %v1553, %v1599
      %v1611 = vadd.f32 %v1554, %v1602
      %v1612 = vrot.slane %v1232, 2
      %v1613 = vrot.slane %v1233, 2
      %v1614 = vsel %vm694, %v1612, %v1613
      %s1615 = scalar_lea.vmem %s5, 112
      %v1616 = vld [vmem:[%s1615] sm:$0xff]
      %v1617 = vsel %vm579, %v1614, 0
      %1619 = vmatpush.msra.mxu0 0.0
      %1620 = vmatpush.msra.mxu0 0.0
      %1621 = vmatpush.msra.mxu0 0.0
      %1622 = vmatpush.msra.mxu0 0.0
      %1623 = vmatpush.msra.mxu0 0.0
      %1624 = vmatpush.msra.mxu0 0.0
      %1625 = vmatpush.msra.mxu0 0.0
      %1626 = vmatpush.msra.mxu0 0.0
      %1627 = vmatpush.msra.mxu0 0.0
      %1628 = vmatpush.msra.mxu0 0.0
      %1629 = vmatpush.msra.mxu0 0.0
      %1630 = vmatpush.msra.mxu0 0.0
      %1631 = vmatpush.msra.mxu0 0.0
      %1632 = vmatpush.msra.mxu0 0.0
      %1633 = vmatpush.msra.mxu0 0.0
      %1634 = vmatpush.msra.mxu0 %v1616
      %1635 = vmatmul.f32.gmra.mxu0 %v1438
      %v1636 = vpop.f32.mrf.mxu0
      %v1637 = vadd.f32 0.0, %v1636
      %1638 = vmatmul.f32.gmra.mxu0 %v1440
      %v1639 = vpop.f32.mrf.mxu0
      %v1640 = vadd.f32 0.0, %v1639
      %1641 = vmatmul.f32.gmra.mxu0 %v1442
      %v1642 = vpop.f32.mrf.mxu0
      %v1643 = vadd.f32 0.0, %v1642
      %1644 = vmatmul.f32.gmra.mxu0 %v1444
      %v1645 = vpop.f32.mrf.mxu0
      %v1646 = vadd.f32 0.0, %v1645
      %1647 = vmatmul.f32.gmra.mxu0 %v1446
      %v1648 = vpop.f32.mrf.mxu0
      %v1649 = vadd.f32 0.0, %v1648
      %1650 = vmatmul.f32.gmra.mxu0 %v1448
      %v1651 = vpop.f32.mrf.mxu0
      %v1652 = vadd.f32 0.0, %v1651
      %1653 = vmatmul.f32.gmra.mxu0 %v1450
      %v1654 = vpop.f32.mrf.mxu0
      %v1655 = vadd.f32 0.0, %v1654
      %1656 = vmatmul.f32.gmra.mxu0 %v1617
      %v1657 = vpop.f32.mrf.mxu0
      %v1658 = vadd.f32 0.0, %v1657
      %1659 = vdwg.mxu0
      %v1660 = vadd.f32 %v1604, %v1637
      %v1661 = vadd.f32 %v1605, %v1640
      %v1662 = vadd.f32 %v1606, %v1643
      %v1663 = vadd.f32 %v1607, %v1646
      %v1664 = vadd.f32 %v1608, %v1649
      %v1665 = vadd.f32 %v1609, %v1652
      %v1666 = vadd.f32 %v1610, %v1655
      %v1667 = vadd.f32 %v1611, %v1658
      %s1668 = scalar_lea.vmem %s5, 120
      %v1669 = vld [vmem:[%s1668] sm:$0xff]
      %v1671 = vsel %vm579, %v1234, 0
      %1673 = vmatpush.msra.mxu0 0.0
      %1674 = vmatpush.msra.mxu0 0.0
      %1675 = vmatpush.msra.mxu0 0.0
      %1676 = vmatpush.msra.mxu0 0.0
      %1677 = vmatpush.msra.mxu0 0.0
      %1678 = vmatpush.msra.mxu0 0.0
      %1679 = vmatpush.msra.mxu0 0.0
      %1680 = vmatpush.msra.mxu0 0.0
      %1681 = vmatpush.msra.mxu0 0.0
      %1682 = vmatpush.msra.mxu0 0.0
      %1683 = vmatpush.msra.mxu0 0.0
      %1684 = vmatpush.msra.mxu0 0.0
      %1685 = vmatpush.msra.mxu0 0.0
      %1686 = vmatpush.msra.mxu0 0.0
      %1687 = vmatpush.msra.mxu0 0.0
      %1688 = vmatpush.msra.mxu0 %v1669
      %1689 = vmatmul.f32.gmra.mxu0 %v1245
      %v1690 = vpop.f32.mrf.mxu0
      %v1691 = vadd.f32 0.0, %v1690
      %1692 = vmatmul.f32.gmra.mxu0 %v1248
      %v1693 = vpop.f32.mrf.mxu0
      %v1694 = vadd.f32 0.0, %v1693
      %1695 = vmatmul.f32.gmra.mxu0 %v1251
      %v1696 = vpop.f32.mrf.mxu0
      %v1697 = vadd.f32 0.0, %v1696
      %1698 = vmatmul.f32.gmra.mxu0 %v1254
      %v1699 = vpop.f32.mrf.mxu0
      %v1700 = vadd.f32 0.0, %v1699
      %1701 = vmatmul.f32.gmra.mxu0 %v1257
      %v1702 = vpop.f32.mrf.mxu0
      %v1703 = vadd.f32 0.0, %v1702
      %1704 = vmatmul.f32.gmra.mxu0 %v1260
      %v1705 = vpop.f32.mrf.mxu0
      %v1706 = vadd.f32 0.0, %v1705
      %1707 = vmatmul.f32.gmra.mxu0 %v1504
      %v1708 = vpop.f32.mrf.mxu0
      %v1709 = vadd.f32 0.0, %v1708
      %1710 = vmatmul.f32.gmra.mxu0 %v1671
      %v1711 = vpop.f32.mrf.mxu0
      %v1712 = vadd.f32 0.0, %v1711
      %1713 = vdwg.mxu0
      %v1714 = vadd.f32 %v1660, %v1691
      %v1715 = vadd.f32 %v1661, %v1694
      %v1716 = vadd.f32 %v1662, %v1697
      %v1717 = vadd.f32 %v1663, %v1700
      %v1718 = vadd.f32 %v1664, %v1703
      %v1719 = vadd.f32 %v1665, %v1706
      %v1720 = vadd.f32 %v1666, %v1709
      %v1721 = vadd.f32 %v1667, %v1712
      %v1723 = vrot.slane %v1234, 1
      %v1724 = vrot.slane %v1235, 1
      %v1725 = vsel %vm552, %v1723, %v1724
      %s1726 = scalar_lea.vmem %s5, 128
      %v1727 = vld [vmem:[%s1726] sm:$0xff]
      %v1728 = vsel %vm579, %v1725, 0
      %1730 = vmatpush.msra.mxu0 0.0
      %1731 = vmatpush.msra.mxu0 0.0
      %1732 = vmatpush.msra.mxu0 0.0
      %1733 = vmatpush.msra.mxu0 0.0
      %1734 = vmatpush.msra.mxu0 0.0
      %1735 = vmatpush.msra.mxu0 0.0
      %1736 = vmatpush.msra.mxu0 0.0
      %1737 = vmatpush.msra.mxu0 0.0
      %1738 = vmatpush.msra.mxu0 0.0
      %1739 = vmatpush.msra.mxu0 0.0
      %1740 = vmatpush.msra.mxu0 0.0
      %1741 = vmatpush.msra.mxu0 0.0
      %1742 = vmatpush.msra.mxu0 0.0
      %1743 = vmatpush.msra.mxu0 0.0
      %1744 = vmatpush.msra.mxu0 0.0
      %1745 = vmatpush.msra.mxu0 %v1727
      %1746 = vmatmul.f32.gmra.mxu0 %v1349
      %v1747 = vpop.f32.mrf.mxu0
      %v1748 = vadd.f32 0.0, %v1747
      %1749 = vmatmul.f32.gmra.mxu0 %v1351
      %v1750 = vpop.f32.mrf.mxu0
      %v1751 = vadd.f32 0.0, %v1750
      %1752 = vmatmul.f32.gmra.mxu0 %v1353
      %v1753 = vpop.f32.mrf.mxu0
      %v1754 = vadd.f32 0.0, %v1753
      %1755 = vmatmul.f32.gmra.mxu0 %v1355
      %v1756 = vpop.f32.mrf.mxu0
      %v1757 = vadd.f32 0.0, %v1756
      %1758 = vmatmul.f32.gmra.mxu0 %v1357
      %v1759 = vpop.f32.mrf.mxu0
      %v1760 = vadd.f32 0.0, %v1759
      %1761 = vmatmul.f32.gmra.mxu0 %v1359
      %v1762 = vpop.f32.mrf.mxu0
      %v1763 = vadd.f32 0.0, %v1762
      %1764 = vmatmul.f32.gmra.mxu0 %v1561
      %v1765 = vpop.f32.mrf.mxu0
      %v1766 = vadd.f32 0.0, %v1765
      %1767 = vmatmul.f32.gmra.mxu0 %v1728
      %v1768 = vpop.f32.mrf.mxu0
      %v1769 = vadd.f32 0.0, %v1768
      %1770 = vdwg.mxu0
      %v1771 = vadd.f32 %v1714, %v1748
      %v1772 = vadd.f32 %v1715, %v1751
      %v1773 = vadd.f32 %v1716, %v1754
      %v1774 = vadd.f32 %v1717, %v1757
      %v1775 = vadd.f32 %v1718, %v1760
      %v1776 = vadd.f32 %v1719, %v1763
      %v1777 = vadd.f32 %v1720, %v1766
      %v1778 = vadd.f32 %v1721, %v1769
      %v1779 = vrot.slane %v1234, 2
      %v1780 = vrot.slane %v1235, 2
      %v1781 = vsel %vm694, %v1779, %v1780
      %s1782 = scalar_lea.vmem %s5, 136
      %v1783 = vld [vmem:[%s1782] sm:$0xff]
      %v1784 = vsel %vm579, %v1781, 0
      %1786 = vmatpush.msra.mxu0 0.0
      %1787 = vmatpush.msra.mxu0 0.0
      %1788 = vmatpush.msra.mxu0 0.0
      %1789 = vmatpush.msra.mxu0 0.0
      %1790 = vmatpush.msra.mxu0 0.0
      %1791 = vmatpush.msra.mxu0 0.0
      %1792 = vmatpush.msra.mxu0 0.0
      %1793 = vmatpush.msra.mxu0 0.0
      %1794 = vmatpush.msra.mxu0 0.0
      %1795 = vmatpush.msra.mxu0 0.0
      %1796 = vmatpush.msra.mxu0 0.0
      %1797 = vmatpush.msra.mxu0 0.0
      %1798 = vmatpush.msra.mxu0 0.0
      %1799 = vmatpush.msra.mxu0 0.0
      %1800 = vmatpush.msra.mxu0 0.0
      %1801 = vmatpush.msra.mxu0 %v1783
      %1802 = vmatmul.f32.gmra.mxu0 %v1440
      %v1803 = vpop.f32.mrf.mxu0
      %v1804 = vadd.f32 0.0, %v1803
      %1805 = vmatmul.f32.gmra.mxu0 %v1442
      %v1806 = vpop.f32.mrf.mxu0
      %v1807 = vadd.f32 0.0, %v1806
      %1808 = vmatmul.f32.gmra.mxu0 %v1444
      %v1809 = vpop.f32.mrf.mxu0
      %v1810 = vadd.f32 0.0, %v1809
      %1811 = vmatmul.f32.gmra.mxu0 %v1446
      %v1812 = vpop.f32.mrf.mxu0
      %v1813 = vadd.f32 0.0, %v1812
      %1814 = vmatmul.f32.gmra.mxu0 %v1448
      %v1815 = vpop.f32.mrf.mxu0
      %v1816 = vadd.f32 0.0, %v1815
      %1817 = vmatmul.f32.gmra.mxu0 %v1450
      %v1818 = vpop.f32.mrf.mxu0
      %v1819 = vadd.f32 0.0, %v1818
      %1820 = vmatmul.f32.gmra.mxu0 %v1617
      %v1821 = vpop.f32.mrf.mxu0
      %v1822 = vadd.f32 0.0, %v1821
      %1823 = vmatmul.f32.gmra.mxu0 %v1784
      %v1824 = vpop.f32.mrf.mxu0
      %v1825 = vadd.f32 0.0, %v1824
      %1826 = vdwg.mxu0
      %v1827 = vadd.f32 %v1771, %v1804
      %v1828 = vadd.f32 %v1772, %v1807
      %v1829 = vadd.f32 %v1773, %v1810
      %v1830 = vadd.f32 %v1774, %v1813
      %v1831 = vadd.f32 %v1775, %v1816
      %v1832 = vadd.f32 %v1776, %v1819
      %v1833 = vadd.f32 %v1777, %v1822
      %v1834 = vadd.f32 %v1778, %v1825
      %s1835 = sadd.s32 %s23, 2
      %p1836 = scmp.ge.s32.totalorder %s1835, 1
      %p1837 = scmp.le.s32.totalorder %s1835, 8
      %p1838 = pnand %p1836, %p1837
      %p1839 = pneg %p1838
      %s1840 = scalar_select %p1839, 1, 0
      %v1841 = vstv %s1840
      %vm1842 = vcmp.eq.s32.totalorder %v1841, 1
      %vm1843 = vmand %vm410, %vm1842
      %vm1844 = vmand %vm411, %vm1842
      %vm1845 = vmand %vm412, %vm1842
      %vm1846 = vmand %vm413, %vm1842
      %v1847 = vsel %vm1843, 1.0, 0.0
      %v1848 = vsel %vm1844, 1.0, 0.0
      %v1849 = vsel %vm1845, 1.0, 0.0
      %v1850 = vsel %vm1846, 1.0, 0.0
      %v1851 = vld [vmem:[%s386] sm:$0xff]
      %v1852 = vld [vmem:[%s386 + $0x8] sm:$0x3]
      %v1853 = vld [vmem:[%s386 + $0x10] sm:$0xff]
      %v1854 = vld [vmem:[%s386 + $0x18] sm:$0x3]
      %v1855 = vld [vmem:[%s386 + $0x20] sm:$0xff]
      %v1856 = vld [vmem:[%s386 + $0x28] sm:$0x3]
      %v1857 = vld [vmem:[%s386 + $0x30] sm:$0xff]
      %v1858 = vld [vmem:[%s386 + $0x38] sm:$0x3]
      %v1859 = vld [vmem:[%s386 + $0x40] sm:$0xff]
      %v1860 = vld [vmem:[%s386 + $0x48] sm:$0x3]
      %v1861 = vld [vmem:[%s386 + $0x50] sm:$0xff]
      %v1862 = vld [vmem:[%s386 + $0x58] sm:$0x3]
      %v1863 = vld [vmem:[%s386 + $0x60] sm:$0xff]
      %v1864 = vld [vmem:[%s386 + $0x68] sm:$0x3]
      %v1865 = vld [vmem:[%s386 + $0x70] sm:$0xff]
      %v1866 = vld [vmem:[%s386 + $0x78] sm:$0x3]
      %v1867 = vld [vmem:[%s386 + $0x80] sm:$0xff]
      %v1868 = vld [vmem:[%s386 + $0x88] sm:$0x3]
      %v1869 = vld [vmem:[%s386 + $0x90] sm:$0xff]
      %v1870 = vld [vmem:[%s386 + $0x98] sm:$0x3]
      %v1871 = vmax.f32 %v1851, 0.0
      %v1872 = vmax.f32 %v1852, 0.0
      %v1873 = vmax.f32 %v1853, 0.0
      %v1874 = vmax.f32 %v1854, 0.0
      %v1875 = vmax.f32 %v1855, 0.0
      %v1876 = vmax.f32 %v1856, 0.0
      %v1877 = vmax.f32 %v1857, 0.0
      %v1878 = vmax.f32 %v1858, 0.0
      %v1879 = vmax.f32 %v1859, 0.0
      %v1880 = vmax.f32 %v1860, 0.0
      %v1881 = vmax.f32 %v1861, 0.0
      %v1882 = vmax.f32 %v1862, 0.0
      %v1883 = vmax.f32 %v1863, 0.0
      %v1884 = vmax.f32 %v1864, 0.0
      %v1885 = vmax.f32 %v1865, 0.0
      %v1886 = vmax.f32 %v1866, 0.0
      %v1887 = vmax.f32 %v1867, 0.0
      %v1888 = vmax.f32 %v1868, 0.0
      %v1889 = vmax.f32 %v1869, 0.0
      %v1890 = vmax.f32 %v1870, 0.0
      %v1891 = vmul.f32 %v1871, %v470
      %v1892 = vmul.f32 %v1872, %v470
      %v1893 = vmul.f32 %v1873, %v470
      %v1894 = vmul.f32 %v1874, %v470
      %v1895 = vmul.f32 %v1875, %v470
      %v1896 = vmul.f32 %v1876, %v470
      %v1897 = vmul.f32 %v1877, %v470
      %v1898 = vmul.f32 %v1878, %v470
      %v1899 = vmul.f32 %v1879, %v470
      %v1900 = vmul.f32 %v1880, %v470
      %v1901 = vmul.f32 %v1881, %v470
      %v1902 = vmul.f32 %v1882, %v470
      %v1903 = vmul.f32 %v1883, %v470
      %v1904 = vmul.f32 %v1884, %v470
      %v1905 = vmul.f32 %v1885, %v470
      %v1906 = vmul.f32 %v1886, %v470
      %v1907 = vmul.f32 %v1887, %v470
      %v1908 = vmul.f32 %v1888, %v470
      %v1909 = vmul.f32 %v1889, %v470
      %v1910 = vmul.f32 %v1890, %v470
      %v1911 = vadd.f32 %v1891, %v493
      %v1912 = vadd.f32 %v1892, %v493
      %v1913 = vadd.f32 %v1893, %v493
      %v1914 = vadd.f32 %v1894, %v493
      %v1915 = vadd.f32 %v1895, %v493
      %v1916 = vadd.f32 %v1896, %v493
      %v1917 = vadd.f32 %v1897, %v493
      %v1918 = vadd.f32 %v1898, %v493
      %v1919 = vadd.f32 %v1899, %v493
      %v1920 = vadd.f32 %v1900, %v493
      %v1921 = vadd.f32 %v1901, %v493
      %v1922 = vadd.f32 %v1902, %v493
      %v1923 = vadd.f32 %v1903, %v493
      %v1924 = vadd.f32 %v1904, %v493
      %v1925 = vadd.f32 %v1905, %v493
      %v1926 = vadd.f32 %v1906, %v493
      %v1927 = vadd.f32 %v1907, %v493
      %v1928 = vadd.f32 %v1908, %v493
      %v1929 = vadd.f32 %v1909, %v493
      %v1930 = vadd.f32 %v1910, %v493
      %v1931 = vmul.f32 %v1911, %v1847
      %v1932 = vmul.f32 %v1912, %v1848
      %v1933 = vmul.f32 %v1913, %v1849
      %v1934 = vmul.f32 %v1914, %v1850
      %v1935 = vmul.f32 %v1915, %v1849
      %v1936 = vmul.f32 %v1916, %v1850
      %v1937 = vmul.f32 %v1917, %v1849
      %v1938 = vmul.f32 %v1918, %v1850
      %v1939 = vmul.f32 %v1919, %v1849
      %v1940 = vmul.f32 %v1920, %v1850
      %v1941 = vmul.f32 %v1921, %v1849
      %v1942 = vmul.f32 %v1922, %v1850
      %v1943 = vmul.f32 %v1923, %v1849
      %v1944 = vmul.f32 %v1924, %v1850
      %v1945 = vmul.f32 %v1925, %v1849
      %v1946 = vmul.f32 %v1926, %v1850
      %v1947 = vmul.f32 %v1927, %v1849
      %v1948 = vmul.f32 %v1928, %v1850
      %v1949 = vmul.f32 %v1929, %v1847
      %v1950 = vmul.f32 %v1930, %v1848
      %s1951 = scalar_lea.vmem %s5, 144
      %v1952 = vld [vmem:[%s1951] sm:$0xff]
      %v1954 = vsel %vm579, %v1931, 0
      %v1957 = vsel %vm579, %v1933, 0
      %v1960 = vsel %vm579, %v1935, 0
      %v1963 = vsel %vm579, %v1937, 0
      %v1966 = vsel %vm579, %v1939, 0
      %v1969 = vsel %vm579, %v1941, 0
      %v1972 = vsel %vm579, %v1943, 0
      %v1975 = vsel %vm579, %v1945, 0
      %1977 = vmatpush.msra.mxu0 0.0
      %1978 = vmatpush.msra.mxu0 0.0
      %1979 = vmatpush.msra.mxu0 0.0
      %1980 = vmatpush.msra.mxu0 0.0
      %1981 = vmatpush.msra.mxu0 0.0
      %1982 = vmatpush.msra.mxu0 0.0
      %1983 = vmatpush.msra.mxu0 0.0
      %1984 = vmatpush.msra.mxu0 0.0
      %1985 = vmatpush.msra.mxu0 0.0
      %1986 = vmatpush.msra.mxu0 0.0
      %1987 = vmatpush.msra.mxu0 0.0
      %1988 = vmatpush.msra.mxu0 0.0
      %1989 = vmatpush.msra.mxu0 0.0
      %1990 = vmatpush.msra.mxu0 0.0
      %1991 = vmatpush.msra.mxu0 0.0
      %1992 = vmatpush.msra.mxu0 %v1952
      %1993 = vmatmul.f32.gmra.mxu0 %v1954
      %v1994 = vpop.f32.mrf.mxu0
      %v1995 = vadd.f32 0.0, %v1994
      %1996 = vmatmul.f32.gmra.mxu0 %v1957
      %v1997 = vpop.f32.mrf.mxu0
      %v1998 = vadd.f32 0.0, %v1997
      %1999 = vmatmul.f32.gmra.mxu0 %v1960
      %v2000 = vpop.f32.mrf.mxu0
      %v2001 = vadd.f32 0.0, %v2000
      %2002 = vmatmul.f32.gmra.mxu0 %v1963
      %v2003 = vpop.f32.mrf.mxu0
      %v2004 = vadd.f32 0.0, %v2003
      %2005 = vmatmul.f32.gmra.mxu0 %v1966
      %v2006 = vpop.f32.mrf.mxu0
      %v2007 = vadd.f32 0.0, %v2006
      %2008 = vmatmul.f32.gmra.mxu0 %v1969
      %v2009 = vpop.f32.mrf.mxu0
      %v2010 = vadd.f32 0.0, %v2009
      %2011 = vmatmul.f32.gmra.mxu0 %v1972
      %v2012 = vpop.f32.mrf.mxu0
      %v2013 = vadd.f32 0.0, %v2012
      %2014 = vmatmul.f32.gmra.mxu0 %v1975
      %v2015 = vpop.f32.mrf.mxu0
      %v2016 = vadd.f32 0.0, %v2015
      %2017 = vdwg.mxu0
      %v2018 = vadd.f32 %v1827, %v1995
      %v2019 = vadd.f32 %v1828, %v1998
      %v2020 = vadd.f32 %v1829, %v2001
      %v2021 = vadd.f32 %v1830, %v2004
      %v2022 = vadd.f32 %v1831, %v2007
      %v2023 = vadd.f32 %v1832, %v2010
      %v2024 = vadd.f32 %v1833, %v2013
      %v2025 = vadd.f32 %v1834, %v2016
      %v2034 = vrot.slane %v1931, 1
      %v2035 = vrot.slane %v1932, 1
      %v2036 = vsel %vm552, %v2034, %v2035
      %v2037 = vrot.slane %v1933, 1
      %v2038 = vrot.slane %v1934, 1
      %v2039 = vsel %vm552, %v2037, %v2038
      %v2040 = vrot.slane %v1935, 1
      %v2041 = vrot.slane %v1936, 1
      %v2042 = vsel %vm552, %v2040, %v2041
      %v2043 = vrot.slane %v1937, 1
      %v2044 = vrot.slane %v1938, 1
      %v2045 = vsel %vm552, %v2043, %v2044
      %v2046 = vrot.slane %v1939, 1
      %v2047 = vrot.slane %v1940, 1
      %v2048 = vsel %vm552, %v2046, %v2047
      %v2049 = vrot.slane %v1941, 1
      %v2050 = vrot.slane %v1942, 1
      %v2051 = vsel %vm552, %v2049, %v2050
      %v2052 = vrot.slane %v1943, 1
      %v2053 = vrot.slane %v1944, 1
      %v2054 = vsel %vm552, %v2052, %v2053
      %v2055 = vrot.slane %v1945, 1
      %v2056 = vrot.slane %v1946, 1
      %v2057 = vsel %vm552, %v2055, %v2056
      %s2058 = scalar_lea.vmem %s5, 152
      %v2059 = vld [vmem:[%s2058] sm:$0xff]
      %v2060 = vsel %vm579, %v2036, 0
      %v2062 = vsel %vm579, %v2039, 0
      %v2064 = vsel %vm579, %v2042, 0
      %v2066 = vsel %vm579, %v2045, 0
      %v2068 = vsel %vm579, %v2048, 0
      %v2070 = vsel %vm579, %v2051, 0
      %v2072 = vsel %vm579, %v2054, 0
      %v2074 = vsel %vm579, %v2057, 0
      %2076 = vmatpush.msra.mxu0 0.0
      %2077 = vmatpush.msra.mxu0 0.0
      %2078 = vmatpush.msra.mxu0 0.0
      %2079 = vmatpush.msra.mxu0 0.0
      %2080 = vmatpush.msra.mxu0 0.0
      %2081 = vmatpush.msra.mxu0 0.0
      %2082 = vmatpush.msra.mxu0 0.0
      %2083 = vmatpush.msra.mxu0 0.0
      %2084 = vmatpush.msra.mxu0 0.0
      %2085 = vmatpush.msra.mxu0 0.0
      %2086 = vmatpush.msra.mxu0 0.0
      %2087 = vmatpush.msra.mxu0 0.0
      %2088 = vmatpush.msra.mxu0 0.0
      %2089 = vmatpush.msra.mxu0 0.0
      %2090 = vmatpush.msra.mxu0 0.0
      %2091 = vmatpush.msra.mxu0 %v2059
      %2092 = vmatmul.f32.gmra.mxu0 %v2060
      %v2093 = vpop.f32.mrf.mxu0
      %v2094 = vadd.f32 0.0, %v2093
      %2095 = vmatmul.f32.gmra.mxu0 %v2062
      %v2096 = vpop.f32.mrf.mxu0
      %v2097 = vadd.f32 0.0, %v2096
      %2098 = vmatmul.f32.gmra.mxu0 %v2064
      %v2099 = vpop.f32.mrf.mxu0
      %v2100 = vadd.f32 0.0, %v2099
      %2101 = vmatmul.f32.gmra.mxu0 %v2066
      %v2102 = vpop.f32.mrf.mxu0
      %v2103 = vadd.f32 0.0, %v2102
      %2104 = vmatmul.f32.gmra.mxu0 %v2068
      %v2105 = vpop.f32.mrf.mxu0
      %v2106 = vadd.f32 0.0, %v2105
      %2107 = vmatmul.f32.gmra.mxu0 %v2070
      %v2108 = vpop.f32.mrf.mxu0
      %v2109 = vadd.f32 0.0, %v2108
      %2110 = vmatmul.f32.gmra.mxu0 %v2072
      %v2111 = vpop.f32.mrf.mxu0
      %v2112 = vadd.f32 0.0, %v2111
      %2113 = vmatmul.f32.gmra.mxu0 %v2074
      %v2114 = vpop.f32.mrf.mxu0
      %v2115 = vadd.f32 0.0, %v2114
      %2116 = vdwg.mxu0
      %v2117 = vadd.f32 %v2018, %v2094
      %v2118 = vadd.f32 %v2019, %v2097
      %v2119 = vadd.f32 %v2020, %v2100
      %v2120 = vadd.f32 %v2021, %v2103
      %v2121 = vadd.f32 %v2022, %v2106
      %v2122 = vadd.f32 %v2023, %v2109
      %v2123 = vadd.f32 %v2024, %v2112
      %v2124 = vadd.f32 %v2025, %v2115
      %v2125 = vrot.slane %v1931, 2
      %v2126 = vrot.slane %v1932, 2
      %v2127 = vsel %vm694, %v2125, %v2126
      %v2128 = vrot.slane %v1933, 2
      %v2129 = vrot.slane %v1934, 2
      %v2130 = vsel %vm694, %v2128, %v2129
      %v2131 = vrot.slane %v1935, 2
      %v2132 = vrot.slane %v1936, 2
      %v2133 = vsel %vm694, %v2131, %v2132
      %v2134 = vrot.slane %v1937, 2
      %v2135 = vrot.slane %v1938, 2
      %v2136 = vsel %vm694, %v2134, %v2135
      %v2137 = vrot.slane %v1939, 2
      %v2138 = vrot.slane %v1940, 2
      %v2139 = vsel %vm694, %v2137, %v2138
      %v2140 = vrot.slane %v1941, 2
      %v2141 = vrot.slane %v1942, 2
      %v2142 = vsel %vm694, %v2140, %v2141
      %v2143 = vrot.slane %v1943, 2
      %v2144 = vrot.slane %v1944, 2
      %v2145 = vsel %vm694, %v2143, %v2144
      %v2146 = vrot.slane %v1945, 2
      %v2147 = vrot.slane %v1946, 2
      %v2148 = vsel %vm694, %v2146, %v2147
      %s2149 = scalar_lea.vmem %s5, 160
      %v2150 = vld [vmem:[%s2149] sm:$0xff]
      %v2151 = vsel %vm579, %v2127, 0
      %v2153 = vsel %vm579, %v2130, 0
      %v2155 = vsel %vm579, %v2133, 0
      %v2157 = vsel %vm579, %v2136, 0
      %v2159 = vsel %vm579, %v2139, 0
      %v2161 = vsel %vm579, %v2142, 0
      %v2163 = vsel %vm579, %v2145, 0
      %v2165 = vsel %vm579, %v2148, 0
      %2167 = vmatpush.msra.mxu0 0.0
      %2168 = vmatpush.msra.mxu0 0.0
      %2169 = vmatpush.msra.mxu0 0.0
      %2170 = vmatpush.msra.mxu0 0.0
      %2171 = vmatpush.msra.mxu0 0.0
      %2172 = vmatpush.msra.mxu0 0.0
      %2173 = vmatpush.msra.mxu0 0.0
      %2174 = vmatpush.msra.mxu0 0.0
      %2175 = vmatpush.msra.mxu0 0.0
      %2176 = vmatpush.msra.mxu0 0.0
      %2177 = vmatpush.msra.mxu0 0.0
      %2178 = vmatpush.msra.mxu0 0.0
      %2179 = vmatpush.msra.mxu0 0.0
      %2180 = vmatpush.msra.mxu0 0.0
      %2181 = vmatpush.msra.mxu0 0.0
      %2182 = vmatpush.msra.mxu0 %v2150
      %2183 = vmatmul.f32.gmra.mxu0 %v2151
      %v2184 = vpop.f32.mrf.mxu0
      %v2185 = vadd.f32 0.0, %v2184
      %2186 = vmatmul.f32.gmra.mxu0 %v2153
      %v2187 = vpop.f32.mrf.mxu0
      %v2188 = vadd.f32 0.0, %v2187
      %2189 = vmatmul.f32.gmra.mxu0 %v2155
      %v2190 = vpop.f32.mrf.mxu0
      %v2191 = vadd.f32 0.0, %v2190
      %2192 = vmatmul.f32.gmra.mxu0 %v2157
      %v2193 = vpop.f32.mrf.mxu0
      %v2194 = vadd.f32 0.0, %v2193
      %2195 = vmatmul.f32.gmra.mxu0 %v2159
      %v2196 = vpop.f32.mrf.mxu0
      %v2197 = vadd.f32 0.0, %v2196
      %2198 = vmatmul.f32.gmra.mxu0 %v2161
      %v2199 = vpop.f32.mrf.mxu0
      %v2200 = vadd.f32 0.0, %v2199
      %2201 = vmatmul.f32.gmra.mxu0 %v2163
      %v2202 = vpop.f32.mrf.mxu0
      %v2203 = vadd.f32 0.0, %v2202
      %2204 = vmatmul.f32.gmra.mxu0 %v2165
      %v2205 = vpop.f32.mrf.mxu0
      %v2206 = vadd.f32 0.0, %v2205
      %2207 = vdwg.mxu0
      %v2208 = vadd.f32 %v2117, %v2185
      %v2209 = vadd.f32 %v2118, %v2188
      %v2210 = vadd.f32 %v2119, %v2191
      %v2211 = vadd.f32 %v2120, %v2194
      %v2212 = vadd.f32 %v2121, %v2197
      %v2213 = vadd.f32 %v2122, %v2200
      %v2214 = vadd.f32 %v2123, %v2203
      %v2215 = vadd.f32 %v2124, %v2206
      %s2216 = scalar_lea.vmem %s5, 168
      %v2217 = vld [vmem:[%s2216] sm:$0xff]
      %v2219 = vsel %vm579, %v1947, 0
      %2221 = vmatpush.msra.mxu0 0.0
      %2222 = vmatpush.msra.mxu0 0.0
      %2223 = vmatpush.msra.mxu0 0.0
      %2224 = vmatpush.msra.mxu0 0.0
      %2225 = vmatpush.msra.mxu0 0.0
      %2226 = vmatpush.msra.mxu0 0.0
      %2227 = vmatpush.msra.mxu0 0.0
      %2228 = vmatpush.msra.mxu0 0.0
      %2229 = vmatpush.msra.mxu0 0.0
      %2230 = vmatpush.msra.mxu0 0.0
      %2231 = vmatpush.msra.mxu0 0.0
      %2232 = vmatpush.msra.mxu0 0.0
      %2233 = vmatpush.msra.mxu0 0.0
      %2234 = vmatpush.msra.mxu0 0.0
      %2235 = vmatpush.msra.mxu0 0.0
      %2236 = vmatpush.msra.mxu0 %v2217
      %2237 = vmatmul.f32.gmra.mxu0 %v1957
      %v2238 = vpop.f32.mrf.mxu0
      %v2239 = vadd.f32 0.0, %v2238
      %2240 = vmatmul.f32.gmra.mxu0 %v1960
      %v2241 = vpop.f32.mrf.mxu0
      %v2242 = vadd.f32 0.0, %v2241
      %2243 = vmatmul.f32.gmra.mxu0 %v1963
      %v2244 = vpop.f32.mrf.mxu0
      %v2245 = vadd.f32 0.0, %v2244
      %2246 = vmatmul.f32.gmra.mxu0 %v1966
      %v2247 = vpop.f32.mrf.mxu0
      %v2248 = vadd.f32 0.0, %v2247
      %2249 = vmatmul.f32.gmra.mxu0 %v1969
      %v2250 = vpop.f32.mrf.mxu0
      %v2251 = vadd.f32 0.0, %v2250
      %2252 = vmatmul.f32.gmra.mxu0 %v1972
      %v2253 = vpop.f32.mrf.mxu0
      %v2254 = vadd.f32 0.0, %v2253
      %2255 = vmatmul.f32.gmra.mxu0 %v1975
      %v2256 = vpop.f32.mrf.mxu0
      %v2257 = vadd.f32 0.0, %v2256
      %2258 = vmatmul.f32.gmra.mxu0 %v2219
      %v2259 = vpop.f32.mrf.mxu0
      %v2260 = vadd.f32 0.0, %v2259
      %2261 = vdwg.mxu0
      %v2262 = vadd.f32 %v2208, %v2239
      %v2263 = vadd.f32 %v2209, %v2242
      %v2264 = vadd.f32 %v2210, %v2245
      %v2265 = vadd.f32 %v2211, %v2248
      %v2266 = vadd.f32 %v2212, %v2251
      %v2267 = vadd.f32 %v2213, %v2254
      %v2268 = vadd.f32 %v2214, %v2257
      %v2269 = vadd.f32 %v2215, %v2260
      %v2271 = vrot.slane %v1947, 1
      %v2272 = vrot.slane %v1948, 1
      %v2273 = vsel %vm552, %v2271, %v2272
      %s2274 = scalar_lea.vmem %s5, 176
      %v2275 = vld [vmem:[%s2274] sm:$0xff]
      %v2276 = vsel %vm579, %v2273, 0
      %2278 = vmatpush.msra.mxu0 0.0
      %2279 = vmatpush.msra.mxu0 0.0
      %2280 = vmatpush.msra.mxu0 0.0
      %2281 = vmatpush.msra.mxu0 0.0
      %2282 = vmatpush.msra.mxu0 0.0
      %2283 = vmatpush.msra.mxu0 0.0
      %2284 = vmatpush.msra.mxu0 0.0
      %2285 = vmatpush.msra.mxu0 0.0
      %2286 = vmatpush.msra.mxu0 0.0
      %2287 = vmatpush.msra.mxu0 0.0
      %2288 = vmatpush.msra.mxu0 0.0
      %2289 = vmatpush.msra.mxu0 0.0
      %2290 = vmatpush.msra.mxu0 0.0
      %2291 = vmatpush.msra.mxu0 0.0
      %2292 = vmatpush.msra.mxu0 0.0
      %2293 = vmatpush.msra.mxu0 %v2275
      %2294 = vmatmul.f32.gmra.mxu0 %v2062
      %v2295 = vpop.f32.mrf.mxu0
      %v2296 = vadd.f32 0.0, %v2295
      %2297 = vmatmul.f32.gmra.mxu0 %v2064
      %v2298 = vpop.f32.mrf.mxu0
      %v2299 = vadd.f32 0.0, %v2298
      %2300 = vmatmul.f32.gmra.mxu0 %v2066
      %v2301 = vpop.f32.mrf.mxu0
      %v2302 = vadd.f32 0.0, %v2301
      %2303 = vmatmul.f32.gmra.mxu0 %v2068
      %v2304 = vpop.f32.mrf.mxu0
      %v2305 = vadd.f32 0.0, %v2304
      %2306 = vmatmul.f32.gmra.mxu0 %v2070
      %v2307 = vpop.f32.mrf.mxu0
      %v2308 = vadd.f32 0.0, %v2307
      %2309 = vmatmul.f32.gmra.mxu0 %v2072
      %v2310 = vpop.f32.mrf.mxu0
      %v2311 = vadd.f32 0.0, %v2310
      %2312 = vmatmul.f32.gmra.mxu0 %v2074
      %v2313 = vpop.f32.mrf.mxu0
      %v2314 = vadd.f32 0.0, %v2313
      %2315 = vmatmul.f32.gmra.mxu0 %v2276
      %v2316 = vpop.f32.mrf.mxu0
      %v2317 = vadd.f32 0.0, %v2316
      %2318 = vdwg.mxu0
      %v2319 = vadd.f32 %v2262, %v2296
      %v2320 = vadd.f32 %v2263, %v2299
      %v2321 = vadd.f32 %v2264, %v2302
      %v2322 = vadd.f32 %v2265, %v2305
      %v2323 = vadd.f32 %v2266, %v2308
      %v2324 = vadd.f32 %v2267, %v2311
      %v2325 = vadd.f32 %v2268, %v2314
      %v2326 = vadd.f32 %v2269, %v2317
      %v2327 = vrot.slane %v1947, 2
      %v2328 = vrot.slane %v1948, 2
      %v2329 = vsel %vm694, %v2327, %v2328
      %s2330 = scalar_lea.vmem %s5, 184
      %v2331 = vld [vmem:[%s2330] sm:$0xff]
      %v2332 = vsel %vm579, %v2329, 0
      %2334 = vmatpush.msra.mxu0 0.0
      %2335 = vmatpush.msra.mxu0 0.0
      %2336 = vmatpush.msra.mxu0 0.0
      %2337 = vmatpush.msra.mxu0 0.0
      %2338 = vmatpush.msra.mxu0 0.0
      %2339 = vmatpush.msra.mxu0 0.0
      %2340 = vmatpush.msra.mxu0 0.0
      %2341 = vmatpush.msra.mxu0 0.0
      %2342 = vmatpush.msra.mxu0 0.0
      %2343 = vmatpush.msra.mxu0 0.0
      %2344 = vmatpush.msra.mxu0 0.0
      %2345 = vmatpush.msra.mxu0 0.0
      %2346 = vmatpush.msra.mxu0 0.0
      %2347 = vmatpush.msra.mxu0 0.0
      %2348 = vmatpush.msra.mxu0 0.0
      %2349 = vmatpush.msra.mxu0 %v2331
      %2350 = vmatmul.f32.gmra.mxu0 %v2153
      %v2351 = vpop.f32.mrf.mxu0
      %v2352 = vadd.f32 0.0, %v2351
      %2353 = vmatmul.f32.gmra.mxu0 %v2155
      %v2354 = vpop.f32.mrf.mxu0
      %v2355 = vadd.f32 0.0, %v2354
      %2356 = vmatmul.f32.gmra.mxu0 %v2157
      %v2357 = vpop.f32.mrf.mxu0
      %v2358 = vadd.f32 0.0, %v2357
      %2359 = vmatmul.f32.gmra.mxu0 %v2159
      %v2360 = vpop.f32.mrf.mxu0
      %v2361 = vadd.f32 0.0, %v2360
      %2362 = vmatmul.f32.gmra.mxu0 %v2161
      %v2363 = vpop.f32.mrf.mxu0
      %v2364 = vadd.f32 0.0, %v2363
      %2365 = vmatmul.f32.gmra.mxu0 %v2163
      %v2366 = vpop.f32.mrf.mxu0
      %v2367 = vadd.f32 0.0, %v2366
      %2368 = vmatmul.f32.gmra.mxu0 %v2165
      %v2369 = vpop.f32.mrf.mxu0
      %v2370 = vadd.f32 0.0, %v2369
      %2371 = vmatmul.f32.gmra.mxu0 %v2332
      %v2372 = vpop.f32.mrf.mxu0
      %v2373 = vadd.f32 0.0, %v2372
      %2374 = vdwg.mxu0
      %v2375 = vadd.f32 %v2319, %v2352
      %v2376 = vadd.f32 %v2320, %v2355
      %v2377 = vadd.f32 %v2321, %v2358
      %v2378 = vadd.f32 %v2322, %v2361
      %v2379 = vadd.f32 %v2323, %v2364
      %v2380 = vadd.f32 %v2324, %v2367
      %v2381 = vadd.f32 %v2325, %v2370
      %v2382 = vadd.f32 %v2326, %v2373
      %s2383 = scalar_lea.vmem %s5, 192
      %v2384 = vld [vmem:[%s2383] sm:$0xff]
      %v2386 = vsel %vm579, %v1949, 0
      %2388 = vmatpush.msra.mxu0 0.0
      %2389 = vmatpush.msra.mxu0 0.0
      %2390 = vmatpush.msra.mxu0 0.0
      %2391 = vmatpush.msra.mxu0 0.0
      %2392 = vmatpush.msra.mxu0 0.0
      %2393 = vmatpush.msra.mxu0 0.0
      %2394 = vmatpush.msra.mxu0 0.0
      %2395 = vmatpush.msra.mxu0 0.0
      %2396 = vmatpush.msra.mxu0 0.0
      %2397 = vmatpush.msra.mxu0 0.0
      %2398 = vmatpush.msra.mxu0 0.0
      %2399 = vmatpush.msra.mxu0 0.0
      %2400 = vmatpush.msra.mxu0 0.0
      %2401 = vmatpush.msra.mxu0 0.0
      %2402 = vmatpush.msra.mxu0 0.0
      %2403 = vmatpush.msra.mxu0 %v2384
      %2404 = vmatmul.f32.gmra.mxu0 %v1960
      %v2405 = vpop.f32.mrf.mxu0
      %v2406 = vadd.f32 0.0, %v2405
      %2407 = vmatmul.f32.gmra.mxu0 %v1963
      %v2408 = vpop.f32.mrf.mxu0
      %v2409 = vadd.f32 0.0, %v2408
      %2410 = vmatmul.f32.gmra.mxu0 %v1966
      %v2411 = vpop.f32.mrf.mxu0
      %v2412 = vadd.f32 0.0, %v2411
      %2413 = vmatmul.f32.gmra.mxu0 %v1969
      %v2414 = vpop.f32.mrf.mxu0
      %v2415 = vadd.f32 0.0, %v2414
      %2416 = vmatmul.f32.gmra.mxu0 %v1972
      %v2417 = vpop.f32.mrf.mxu0
      %v2418 = vadd.f32 0.0, %v2417
      %2419 = vmatmul.f32.gmra.mxu0 %v1975
      %v2420 = vpop.f32.mrf.mxu0
      %v2421 = vadd.f32 0.0, %v2420
      %2422 = vmatmul.f32.gmra.mxu0 %v2219
      %v2423 = vpop.f32.mrf.mxu0
      %v2424 = vadd.f32 0.0, %v2423
      %2425 = vmatmul.f32.gmra.mxu0 %v2386
      %v2426 = vpop.f32.mrf.mxu0
      %v2427 = vadd.f32 0.0, %v2426
      %2428 = vdwg.mxu0
      %v2429 = vadd.f32 %v2375, %v2406
      %v2430 = vadd.f32 %v2376, %v2409
      %v2431 = vadd.f32 %v2377, %v2412
      %v2432 = vadd.f32 %v2378, %v2415
      %v2433 = vadd.f32 %v2379, %v2418
      %v2434 = vadd.f32 %v2380, %v2421
      %v2435 = vadd.f32 %v2381, %v2424
      %v2436 = vadd.f32 %v2382, %v2427
      %v2438 = vrot.slane %v1949, 1
      %v2439 = vrot.slane %v1950, 1
      %v2440 = vsel %vm552, %v2438, %v2439
      %s2441 = scalar_lea.vmem %s5, 200
      %v2442 = vld [vmem:[%s2441] sm:$0xff]
      %v2443 = vsel %vm579, %v2440, 0
      %2445 = vmatpush.msra.mxu0 0.0
      %2446 = vmatpush.msra.mxu0 0.0
      %2447 = vmatpush.msra.mxu0 0.0
      %2448 = vmatpush.msra.mxu0 0.0
      %2449 = vmatpush.msra.mxu0 0.0
      %2450 = vmatpush.msra.mxu0 0.0
      %2451 = vmatpush.msra.mxu0 0.0
      %2452 = vmatpush.msra.mxu0 0.0
      %2453 = vmatpush.msra.mxu0 0.0
      %2454 = vmatpush.msra.mxu0 0.0
      %2455 = vmatpush.msra.mxu0 0.0
      %2456 = vmatpush.msra.mxu0 0.0
      %2457 = vmatpush.msra.mxu0 0.0
      %2458 = vmatpush.msra.mxu0 0.0
      %2459 = vmatpush.msra.mxu0 0.0
      %2460 = vmatpush.msra.mxu0 %v2442
      %2461 = vmatmul.f32.gmra.mxu0 %v2064
      %v2462 = vpop.f32.mrf.mxu0
      %v2463 = vadd.f32 0.0, %v2462
      %2464 = vmatmul.f32.gmra.mxu0 %v2066
      %v2465 = vpop.f32.mrf.mxu0
      %v2466 = vadd.f32 0.0, %v2465
      %2467 = vmatmul.f32.gmra.mxu0 %v2068
      %v2468 = vpop.f32.mrf.mxu0
      %v2469 = vadd.f32 0.0, %v2468
      %2470 = vmatmul.f32.gmra.mxu0 %v2070
      %v2471 = vpop.f32.mrf.mxu0
      %v2472 = vadd.f32 0.0, %v2471
      %2473 = vmatmul.f32.gmra.mxu0 %v2072
      %v2474 = vpop.f32.mrf.mxu0
      %v2475 = vadd.f32 0.0, %v2474
      %2476 = vmatmul.f32.gmra.mxu0 %v2074
      %v2477 = vpop.f32.mrf.mxu0
      %v2478 = vadd.f32 0.0, %v2477
      %2479 = vmatmul.f32.gmra.mxu0 %v2276
      %v2480 = vpop.f32.mrf.mxu0
      %v2481 = vadd.f32 0.0, %v2480
      %2482 = vmatmul.f32.gmra.mxu0 %v2443
      %v2483 = vpop.f32.mrf.mxu0
      %v2484 = vadd.f32 0.0, %v2483
      %2485 = vdwg.mxu0
      %v2486 = vadd.f32 %v2429, %v2463
      %v2487 = vadd.f32 %v2430, %v2466
      %v2488 = vadd.f32 %v2431, %v2469
      %v2489 = vadd.f32 %v2432, %v2472
      %v2490 = vadd.f32 %v2433, %v2475
      %v2491 = vadd.f32 %v2434, %v2478
      %v2492 = vadd.f32 %v2435, %v2481
      %v2493 = vadd.f32 %v2436, %v2484
      %v2494 = vrot.slane %v1949, 2
      %v2495 = vrot.slane %v1950, 2
      %v2496 = vsel %vm694, %v2494, %v2495
      %s2497 = scalar_lea.vmem %s5, 208
      %v2498 = vld [vmem:[%s2497] sm:$0xff]
      %v2499 = vsel %vm579, %v2496, 0
      %2501 = vmatpush.msra.mxu0 0.0
      %2502 = vmatpush.msra.mxu0 0.0
      %2503 = vmatpush.msra.mxu0 0.0
      %2504 = vmatpush.msra.mxu0 0.0
      %2505 = vmatpush.msra.mxu0 0.0
      %2506 = vmatpush.msra.mxu0 0.0
      %2507 = vmatpush.msra.mxu0 0.0
      %2508 = vmatpush.msra.mxu0 0.0
      %2509 = vmatpush.msra.mxu0 0.0
      %2510 = vmatpush.msra.mxu0 0.0
      %2511 = vmatpush.msra.mxu0 0.0
      %2512 = vmatpush.msra.mxu0 0.0
      %2513 = vmatpush.msra.mxu0 0.0
      %2514 = vmatpush.msra.mxu0 0.0
      %2515 = vmatpush.msra.mxu0 0.0
      %2516 = vmatpush.msra.mxu0 %v2498
      %2517 = vmatmul.f32.gmra.mxu0 %v2155
      %v2518 = vpop.f32.mrf.mxu0
      %v2519 = vadd.f32 0.0, %v2518
      %2520 = vmatmul.f32.gmra.mxu0 %v2157
      %v2521 = vpop.f32.mrf.mxu0
      %v2522 = vadd.f32 0.0, %v2521
      %2523 = vmatmul.f32.gmra.mxu0 %v2159
      %v2524 = vpop.f32.mrf.mxu0
      %v2525 = vadd.f32 0.0, %v2524
      %2526 = vmatmul.f32.gmra.mxu0 %v2161
      %v2527 = vpop.f32.mrf.mxu0
      %v2528 = vadd.f32 0.0, %v2527
      %2529 = vmatmul.f32.gmra.mxu0 %v2163
      %v2530 = vpop.f32.mrf.mxu0
      %v2531 = vadd.f32 0.0, %v2530
      %2532 = vmatmul.f32.gmra.mxu0 %v2165
      %v2533 = vpop.f32.mrf.mxu0
      %v2534 = vadd.f32 0.0, %v2533
      %2535 = vmatmul.f32.gmra.mxu0 %v2332
      %v2536 = vpop.f32.mrf.mxu0
      %v2537 = vadd.f32 0.0, %v2536
      %2538 = vmatmul.f32.gmra.mxu0 %v2499
      %v2539 = vpop.f32.mrf.mxu0
      %v2540 = vadd.f32 0.0, %v2539
      %2541 = vdwg.mxu0
      %v2542 = vadd.f32 %v2486, %v2519
      %v2543 = vadd.f32 %v2487, %v2522
      %v2544 = vadd.f32 %v2488, %v2525
      %v2545 = vadd.f32 %v2489, %v2528
      %v2546 = vadd.f32 %v2490, %v2531
      %v2547 = vadd.f32 %v2491, %v2534
      %v2548 = vadd.f32 %v2492, %v2537
      %v2549 = vadd.f32 %v2493, %v2540
      %v2550 = vld [vmem:[%s6] sm:$0x1]
      %v2552 = vperm.slane %v2550, 0
      %v2554 = vadd.f32 %v2542, %v2552
      %v2555 = vadd.f32 %v2543, %v2552
      %v2556 = vadd.f32 %v2544, %v2552
      %v2557 = vadd.f32 %v2545, %v2552
      %v2558 = vadd.f32 %v2546, %v2552
      %v2559 = vadd.f32 %v2547, %v2552
      %v2560 = vadd.f32 %v2548, %v2552
      %v2561 = vadd.f32 %v2549, %v2552
      %2562 = vst.msk [vmem:[%s396] sm:$0xff] %vm579, %v2554
      %2563 = vst.msk [vmem:[%s396 + $0x8] sm:$0xff] %vm579, %v2555
      %2564 = vst.msk [vmem:[%s396 + $0x10] sm:$0xff] %vm579, %v2556
      %2565 = vst.msk [vmem:[%s396 + $0x18] sm:$0xff] %vm579, %v2557
      %2566 = vst.msk [vmem:[%s396 + $0x20] sm:$0xff] %vm579, %v2558
      %2567 = vst.msk [vmem:[%s396 + $0x28] sm:$0xff] %vm579, %v2559
      %2568 = vst.msk [vmem:[%s396 + $0x30] sm:$0xff] %vm579, %v2560
      %2569 = vst.msk [vmem:[%s396 + $0x38] sm:$0xff] %vm579, %v2561
      %p2570 = scmp.lt.s32.totalorder %s22, 1
      %s2571 = scalar_select %p2570, %s22, 1
      %p2572 = scmp.lt.s32.totalorder %s23, 7
      %s2573 = scalar_select %p2572, %s23, 7
      %s2574 = smul.addr %s2573, 8
      %s2575 = smul.addr %s2571, 64
      %s2576 = sadd.s32 %s2574, %s2575
      %s2577 = smul.addr %s2576, 8
      %s2578 = scalar_lea.vmem %s7, %s2577
      // Predicated region
      $region49: #{resnet_forward.5} parent=47 // pred_check
        %p2579 = pneg %p222
      $region50: #{resnet_forward.5} parent=47 // pred_check_branch
        %2581 = sbr.rel (%p2579) target = $region52
      $region51: #{resnet_forward.5} parent=47 // pred_region
        _
      $region52: #{resnet_forward.5} parent=47 // pred_fallthru
        _
    $region48: #{resnet_forward.5} parent=5 // pred_fallthru
      _
    %p2582 = scmp.le.s32.totalorder 2, %s13
    // Predicated region
    $region53: #{resnet_forward.5} parent=5 // pred_check
      %p2583 = pneg %p2582
    $region54: #{resnet_forward.5} parent=5 // pred_check_branch
      %2585 = sbr.rel (%p2583) target = $region56
    $region55: #{resnet_forward.5} parent=5 // pred_region
      %s2586 = ssub.s32 %s13, 2
      // Predicated region
      $region57: #{resnet_forward.5} parent=55 // pred_check
        %p2587 = pneg %p228
      $region58: #{resnet_forward.5} parent=55 // pred_check_branch
        %2589 = sbr.rel (%p2587) target = $region60
      $region59: #{resnet_forward.5} parent=55 // pred_region
        %p2590 = scmp.lt.s32.totalorder %s24, 1
        %s2591 = scalar_select %p2590, %s24, 1
        %p2592 = scmp.lt.s32.totalorder %s25, 7
        %s2593 = scalar_select %p2592, %s25, 7
        %s2594 = smul.addr %s2593, 8
        %s2595 = smul.addr %s2591, 64
        %s2596 = sadd.s32 %s2594, %s2595
        %s2597 = smul.addr %s2596, 8
        %s2598 = scalar_lea.vmem %s7, %s2597
      $region60: #{resnet_forward.5} parent=55 // pred_fallthru
        _
    $region56: #{resnet_forward.5} parent=5 // pred_fallthru
      _
  $region6: #{resnet_forward.5} parent=0 // loop_footer
    %s17 = sadd.s32 1, %s13
  $region7: #{resnet_forward.5} parent=0 // loop_footer_branch
    %12 = sbr.rel target = $region3
  $region8: #{resnet_forward.5} parent=0 // loop_exit
    _

// kernel: resnet_forward.7
$region0: #{resnet_forward.7}
  #allocation0 [shape = 'u32[]', space=smem, size = 0x4, offset = 0x4, fixed_abs, tag = 'smem constant byte address 0x4 - core index']
  #allocation1 [shape = 'u32[72,128]{1,0:T(1,128)}', space=vmem, size = 0x9000, scoped, tag = 'internal scratch']
  %s0 = inlined_call_operand.vmem [shape: f32[2,10,10,10,8], index: 0, kind: input, shape index: {}, may-alias: {0,1,2}]
  %s1 = inlined_call_operand.vmem [shape: f32[2,10,10,10,8], index: 1, kind: input, shape index: {}, may-alias: {0,1,2}]
  %s2 = inlined_call_operand.vmem [shape: f32[2,10,10,10,8], index: 2, kind: input, shape index: {}, may-alias: {0,1,2}]
  %s3 = inlined_call_operand.vmem [shape: f32[1,8], index: 3, kind: input, shape index: {}]
  %s4 = inlined_call_operand.vmem [shape: f32[1,8], index: 4, kind: input, shape index: {}]
  %s5 = inlined_call_operand.vmem [shape: f32[27,8,8], index: 5, kind: input, shape index: {}]
  %s6 = inlined_call_operand.vmem [shape: f32[1,8], index: 6, kind: input, shape index: {}]
  %s7 = inlined_call_operand.vmem [shape: f32[2,8,8,8,8], index: 7, kind: input, shape index: {}]
  %s8 = inlined_call_operand.vmem [shape: f32[2,8,8,8,8], index: 8, kind: output, shape index: {}]
  %s9 = sld [smem:[#allocation0]]
  $region65: #{resnet_forward.7} parent=0
    _
  %s11 = ssub.s32 1, %s9
  %s12 = scalar_select 0, %s11, %s9
  loop: start=0, step=1, limit=18
  $region2: #{resnet_forward.7} parent=0 // loop_pre_header
    _
  $region3: #{resnet_forward.7} parent=0 // loop_header
    %s14 = sphi 0, %s18
    %p15 = scmp.ge.s32.totalorder %s14, 18
    %s21 = sphi 0, %s33
    %s22 = sphi 0, %s29
    %s23 = sphi 0, %s21
    %s24 = sphi 0, %s22
    %s25 = sphi 0, %s23
    %s26 = sphi 0, %s24
    %s38 = sphi 0, %s40
    %s41 = sphi 0, %s38
    %s42 = sphi 0, %s41
    %s58 = sphi 0, %s42
    %s68 = sphi 0, %s70
    %s71 = sphi 0, %s68
    %s72 = sphi 0, %s71
    %s88 = sphi 0, %s72
    %s98 = sphi 0, %s100
    %s101 = sphi 0, %s98
    %s102 = sphi 0, %s101
    %s118 = sphi 0, %s102
    %s122 = sphi 0, %s122
    %s124 = sphi 0, %s122
    %s125 = sphi 0, %s124
    %s139 = sphi 0, %s125
    %s143 = sphi 0, %s143
    %s145 = sphi 0, %s143
    %s146 = sphi 0, %s145
    %s160 = sphi 0, %s146
    %s164 = sphi 0, %s164
    %s166 = sphi 0, %s164
    %s167 = sphi 0, %s166
    %s181 = sphi 0, %s167
    %s185 = sphi 0, %s185
    %s187 = sphi 0, %s185
    %s188 = sphi 0, %s187
    %s202 = sphi 0, %s188
    %s210 = sphi 0, %s212
    %s213 = sphi 0, %s210
    %s214 = sphi 0, %s213
    %s230 = sphi 0, %s214
    %s238 = sphi 0, %s240
    %s241 = sphi 0, %s238
    %s242 = sphi 0, %s241
    %s258 = sphi 0, %s242
  $region4: #{resnet_forward.7} parent=0 // loop_header_branch
    %17 = sbr.rel (%p15) target = $region8
  $region5: #{resnet_forward.7} parent=0 // loop_body
    %s19 = ssub.s32 %s14, 1
    %s20 = ssub.s32 %s14, 2
    %s27 = sadd.s32 1, %s22
    %p28 = scmp.ge.s32.totalorder %s27, 8
    %s29 = scalar_select %p28, 0, %s27
    %s30 = sadd.s32 1, %s21
    %s31 = scalar_select %p28, %s30, %s21
    %p32 = scmp.ge.s32.totalorder %s31, 2
    %s33 = scalar_select %p32, 0, %s31
    %s34 = ssub.s32 %s21, %s33
    %s35 = ssub.s32 %s22, %s29
    %s36 = sor.u32 %s34, %s35
    %p37 = scmp.eq.s32.totalorder %s36, 0
    %s39 = sadd.s32 %s38, 1
    %s40 = scalar_select %p37, %s38, %s39
    %p43 = pneg %p37
    %p44 = scmp.eq.s32.totalorder %s14, 15
    %p45 = por %p43, %p44
    %p46 = scmp.ne.s32.totalorder %s38, %s41
    %p47 = scmp.eq.s32.totalorder %s14, 0
    %p48 = por %p46, %p47
    %p49 = scmp.ne.s32.totalorder %s38, %s41
    %p50 = scmp.eq.s32.totalorder %s19, 15
    %p51 = por %p49, %p50
    %p52 = scmp.ne.s32.totalorder %s41, %s42
    %p53 = scmp.eq.s32.totalorder %s19, 0
    %p54 = por %p52, %p53
    %p55 = scmp.ne.s32.totalorder %s41, %s42
    %p56 = scmp.eq.s32.totalorder %s20, 15
    %p57 = por %p55, %p56
    %p59 = scmp.ne.s32.totalorder %s42, %s58
    %p60 = scmp.eq.s32.totalorder %s20, 0
    %p61 = por %p59, %p60
    %s62 = sadd.s32 %s22, 1
    %s63 = sadd.s32 %s29, 1
    %s64 = ssub.s32 %s21, %s33
    %s65 = ssub.s32 %s62, %s63
    %s66 = sor.u32 %s64, %s65
    %p67 = scmp.eq.s32.totalorder %s66, 0
    %s69 = sadd.s32 %s68, 1
    %s70 = scalar_select %p67, %s68, %s69
    %p73 = pneg %p67
    %p74 = scmp.eq.s32.totalorder %s14, 15
    %p75 = por %p73, %p74
    %p76 = scmp.ne.s32.totalorder %s68, %s71
    %p77 = scmp.eq.s32.totalorder %s14, 0
    %p78 = por %p76, %p77
    %p79 = scmp.ne.s32.totalorder %s68, %s71
    %p80 = scmp.eq.s32.totalorder %s19, 15
    %p81 = por %p79, %p80
    %p82 = scmp.ne.s32.totalorder %s71, %s72
    %p83 = scmp.eq.s32.totalorder %s19, 0
    %p84 = por %p82, %p83
    %p85 = scmp.ne.s32.totalorder %s71, %s72
    %p86 = scmp.eq.s32.totalorder %s20, 15
    %p87 = por %p85, %p86
    %p89 = scmp.ne.s32.totalorder %s72, %s88
    %p90 = scmp.eq.s32.totalorder %s20, 0
    %p91 = por %p89, %p90
    %s92 = sadd.s32 %s22, 2
    %s93 = sadd.s32 %s29, 2
    %s94 = ssub.s32 %s21, %s33
    %s95 = ssub.s32 %s92, %s93
    %s96 = sor.u32 %s94, %s95
    %p97 = scmp.eq.s32.totalorder %s96, 0
    %s99 = sadd.s32 %s98, 1
    %s100 = scalar_select %p97, %s98, %s99
    %p103 = pneg %p97
    %p104 = scmp.eq.s32.totalorder %s14, 15
    %p105 = por %p103, %p104
    %p106 = scmp.ne.s32.totalorder %s98, %s101
    %p107 = scmp.eq.s32.totalorder %s14, 0
    %p108 = por %p106, %p107
    %p109 = scmp.ne.s32.totalorder %s98, %s101
    %p110 = scmp.eq.s32.totalorder %s19, 15
    %p111 = por %p109, %p110
    %p112 = scmp.ne.s32.totalorder %s101, %s102
    %p113 = scmp.eq.s32.totalorder %s19, 0
    %p114 = por %p112, %p113
    %p115 = scmp.ne.s32.totalorder %s101, %s102
    %p116 = scmp.eq.s32.totalorder %s20, 15
    %p117 = por %p115, %p116
    %p119 = scmp.ne.s32.totalorder %s102, %s118
    %p120 = scmp.eq.s32.totalorder %s20, 0
    %p121 = por %p119, %p120
    %s123 = sadd.s32 %s122, 1
    %p126 = scmp.eq.s32.totalorder %s14, 15
    %p127 = scmp.ne.s32.totalorder %s122, %s124
    %p128 = scmp.eq.s32.totalorder %s14, 0
    %p129 = por %p127, %p128
    %p130 = scmp.ne.s32.totalorder %s122, %s124
    %p131 = scmp.eq.s32.totalorder %s19, 15
    %p132 = por %p130, %p131
    %p133 = scmp.ne.s32.totalorder %s124, %s125
    %p134 = scmp.eq.s32.totalorder %s19, 0
    %p135 = por %p133, %p134
    %p136 = scmp.ne.s32.totalorder %s124, %s125
    %p137 = scmp.eq.s32.totalorder %s20, 15
    %p138 = por %p136, %p137
    %p140 = scmp.ne.s32.totalorder %s125, %s139
    %p141 = scmp.eq.s32.totalorder %s20, 0
    %p142 = por %p140, %p141
    %s144 = sadd.s32 %s143, 1
    %p147 = scmp.eq.s32.totalorder %s14, 15
    %p148 = scmp.ne.s32.totalorder %s143, %s145
    %p149 = scmp.eq.s32.totalorder %s14, 0
    %p150 = por %p148, %p149
    %p151 = scmp.ne.s32.totalorder %s143, %s145
    %p152 = scmp.eq.s32.totalorder %s19, 15
    %p153 = por %p151, %p152
    %p154 = scmp.ne.s32.totalorder %s145, %s146
    %p155 = scmp.eq.s32.totalorder %s19, 0
    %p156 = por %p154, %p155
    %p157 = scmp.ne.s32.totalorder %s145, %s146
    %p158 = scmp.eq.s32.totalorder %s20, 15
    %p159 = por %p157, %p158
    %p161 = scmp.ne.s32.totalorder %s146, %s160
    %p162 = scmp.eq.s32.totalorder %s20, 0
    %p163 = por %p161, %p162
    %s165 = sadd.s32 %s164, 1
    %p168 = scmp.eq.s32.totalorder %s14, 15
    %p169 = scmp.ne.s32.totalorder %s164, %s166
    %p170 = scmp.eq.s32.totalorder %s14, 0
    %p171 = por %p169, %p170
    %p172 = scmp.ne.s32.totalorder %s164, %s166
    %p173 = scmp.eq.s32.totalorder %s19, 15
    %p174 = por %p172, %p173
    %p175 = scmp.ne.s32.totalorder %s166, %s167
    %p176 = scmp.eq.s32.totalorder %s19, 0
    %p177 = por %p175, %p176
    %p178 = scmp.ne.s32.totalorder %s166, %s167
    %p179 = scmp.eq.s32.totalorder %s20, 15
    %p180 = por %p178, %p179
    %p182 = scmp.ne.s32.totalorder %s167, %s181
    %p183 = scmp.eq.s32.totalorder %s20, 0
    %p184 = por %p182, %p183
    %s186 = sadd.s32 %s185, 1
    %p189 = scmp.eq.s32.totalorder %s14, 15
    %p190 = scmp.ne.s32.totalorder %s185, %s187
    %p191 = scmp.eq.s32.totalorder %s14, 0
    %p192 = por %p190, %p191
    %p193 = scmp.ne.s32.totalorder %s185, %s187
    %p194 = scmp.eq.s32.totalorder %s19, 15
    %p195 = por %p193, %p194
    %p196 = scmp.ne.s32.totalorder %s187, %s188
    %p197 = scmp.eq.s32.totalorder %s19, 0
    %p198 = por %p196, %p197
    %p199 = scmp.ne.s32.totalorder %s187, %s188
    %p200 = scmp.eq.s32.totalorder %s20, 15
    %p201 = por %p199, %p200
    %p203 = scmp.ne.s32.totalorder %s188, %s202
    %p204 = scmp.eq.s32.totalorder %s20, 0
    %p205 = por %p203, %p204
    %s206 = ssub.s32 %s21, %s33
    %s207 = ssub.s32 %s22, %s29
    %s208 = sor.u32 %s206, %s207
    %p209 = scmp.eq.s32.totalorder %s208, 0
    %s211 = sadd.s32 %s210, 1
    %s212 = scalar_select %p209, %s210, %s211
    %p215 = pneg %p209
    %p216 = scmp.eq.s32.totalorder %s14, 15
    %p217 = por %p215, %p216
    %p218 = scmp.ne.s32.totalorder %s210, %s213
    %p219 = scmp.eq.s32.totalorder %s14, 0
    %p220 = por %p218, %p219
    %p221 = scmp.ne.s32.totalorder %s210, %s213
    %p222 = scmp.eq.s32.totalorder %s19, 15
    %p223 = por %p221, %p222
    %p224 = scmp.ne.s32.totalorder %s213, %s214
    %p225 = scmp.eq.s32.totalorder %s19, 0
    %p226 = por %p224, %p225
    %p227 = scmp.ne.s32.totalorder %s213, %s214
    %p228 = scmp.eq.s32.totalorder %s20, 15
    %p229 = por %p227, %p228
    %p231 = scmp.ne.s32.totalorder %s214, %s230
    %p232 = scmp.eq.s32.totalorder %s20, 0
    %p233 = por %p231, %p232
    %s234 = ssub.s32 %s21, %s33
    %s235 = ssub.s32 %s22, %s29
    %s236 = sor.u32 %s234, %s235
    %p237 = scmp.eq.s32.totalorder %s236, 0
    %s239 = sadd.s32 %s238, 1
    %s240 = scalar_select %p237, %s238, %s239
    %p243 = pneg %p237
    %p244 = scmp.eq.s32.totalorder %s14, 15
    %p245 = por %p243, %p244
    %p246 = scmp.ne.s32.totalorder %s238, %s241
    %p247 = scmp.eq.s32.totalorder %s14, 0
    %p248 = por %p246, %p247
    %p249 = scmp.ne.s32.totalorder %s238, %s241
    %p250 = scmp.eq.s32.totalorder %s19, 15
    %p251 = por %p249, %p250
    %p252 = scmp.ne.s32.totalorder %s241, %s242
    %p253 = scmp.eq.s32.totalorder %s19, 0
    %p254 = por %p252, %p253
    %p255 = scmp.ne.s32.totalorder %s241, %s242
    %p256 = scmp.eq.s32.totalorder %s20, 15
    %p257 = por %p255, %p256
    %p259 = scmp.ne.s32.totalorder %s242, %s258
    %p260 = scmp.eq.s32.totalorder %s20, 0
    %p261 = por %p259, %p260
    %p262 = scmp.le.s32.totalorder 1, %s14
    %p263 = scmp.lt.s32.totalorder %s14, 17
    %p264 = pnand %p262, %p263
    %p265 = pneg %p264
    // Predicated region
    $region9: #{resnet_forward.7} parent=5 // pred_check
      _
    $region10: #{resnet_forward.7} parent=5 // pred_check_branch
      %267 = sbr.rel (%p264) target = $region12
    $region11: #{resnet_forward.7} parent=5 // pred_region
      %s268 = ssub.s32 %s14, 1
      // Predicated region
      $region13: #{resnet_forward.7} parent=11 // pred_check
        %p269 = pneg %p135
      $region14: #{resnet_forward.7} parent=11 // pred_check_branch
        %271 = sbr.rel (%p269) target = $region16
      $region15: #{resnet_forward.7} parent=11 // pred_region
        _
      $region16: #{resnet_forward.7} parent=11 // pred_fallthru
        _
      // Predicated region
      $region17: #{resnet_forward.7} parent=11 // pred_check
        %p272 = pneg %p156
      $region18: #{resnet_forward.7} parent=11 // pred_check_branch
        %274 = sbr.rel (%p272) target = $region20
      $region19: #{resnet_forward.7} parent=11 // pred_region
        _
      $region20: #{resnet_forward.7} parent=11 // pred_fallthru
        _
      // Predicated region
      $region21: #{resnet_forward.7} parent=11 // pred_check
        %p275 = pneg %p177
      $region22: #{resnet_forward.7} parent=11 // pred_check_branch
        %277 = sbr.rel (%p275) target = $region24
      $region23: #{resnet_forward.7} parent=11 // pred_region
        _
      $region24: #{resnet_forward.7} parent=11 // pred_fallthru
        _
      // Predicated region
      $region25: #{resnet_forward.7} parent=11 // pred_check
        %p278 = pneg %p198
      $region26: #{resnet_forward.7} parent=11 // pred_check_branch
        %280 = sbr.rel (%p278) target = $region28
      $region27: #{resnet_forward.7} parent=11 // pred_region
        _
      $region28: #{resnet_forward.7} parent=11 // pred_fallthru
        _
    $region12: #{resnet_forward.7} parent=5 // pred_fallthru
      _
    %p281 = scmp.lt.s32.totalorder %s14, 16
    // Predicated region
    $region29: #{resnet_forward.7} parent=5 // pred_check
      %p282 = pneg %p281
    $region30: #{resnet_forward.7} parent=5 // pred_check_branch
      %284 = sbr.rel (%p282) target = $region32
    $region31: #{resnet_forward.7} parent=5 // pred_region
      // Predicated region
      $region33: #{resnet_forward.7} parent=31 // pred_check
        %p285 = pneg %p48
      $region34: #{resnet_forward.7} parent=31 // pred_check_branch
        %287 = sbr.rel (%p285) target = $region36
      $region35: #{resnet_forward.7} parent=31 // pred_region
        %p288 = scmp.lt.s32.totalorder %s21, 1
        %s289 = scalar_select %p288, %s21, 1
        %p290 = scmp.lt.s32.totalorder %s22, 9
        %s291 = scalar_select %p290, %s22, 9
        %s292 = smul.addr %s291, 20
        %s293 = smul.addr %s289, 200
        %s294 = sadd.s32 %s292, %s293
        %s295 = smul.addr %s294, 8
        %s296 = scalar_lea.vmem %s0, %s295
      $region36: #{resnet_forward.7} parent=31 // pred_fallthru
        _
      // Predicated region
      $region37: #{resnet_forward.7} parent=31 // pred_check
        %p297 = pneg %p78
      $region38: #{resnet_forward.7} parent=31 // pred_check_branch
        %299 = sbr.rel (%p297) target = $region40
      $region39: #{resnet_forward.7} parent=31 // pred_region
        %s300 = sadd.s32 %s22, 1
        %p301 = scmp.lt.s32.totalorder %s21, 1
        %s302 = scalar_select %p301, %s21, 1
        %p303 = scmp.lt.s32.totalorder %s300, 9
        %s304 = scalar_select %p303, %s300, 9
        %s305 = smul.addr %s304, 20
        %s306 = smul.addr %s302, 200
        %s307 = sadd.s32 %s305, %s306
        %s308 = smul.addr %s307, 8
        %s309 = scalar_lea.vmem %s1, %s308
        %s310 = sadd.s32 %s22, 1
      $region40: #{resnet_forward.7} parent=31 // pred_fallthru
        _
      // Predicated region
      $region41: #{resnet_forward.7} parent=31 // pred_check
        %p311 = pneg %p108
      $region42: #{resnet_forward.7} parent=31 // pred_check_branch
        %313 = sbr.rel (%p311) target = $region44
      $region43: #{resnet_forward.7} parent=31 // pred_region
        %s314 = sadd.s32 %s22, 2
        %p315 = scmp.lt.s32.totalorder %s21, 1
        %s316 = scalar_select %p315, %s21, 1
        %p317 = scmp.lt.s32.totalorder %s314, 9
        %s318 = scalar_select %p317, %s314, 9
        %s319 = smul.addr %s318, 20
        %s320 = smul.addr %s316, 200
        %s321 = sadd.s32 %s319, %s320
        %s322 = smul.addr %s321, 8
        %s323 = scalar_lea.vmem %s2, %s322
        %s324 = sadd.s32 %s22, 2
      $region44: #{resnet_forward.7} parent=31 // pred_fallthru
        _
      // Predicated region
      $region45: #{resnet_forward.7} parent=31 // pred_check
        %p325 = pneg %p220
      $region46: #{resnet_forward.7} parent=31 // pred_check_branch
        %327 = sbr.rel (%p325) target = $region48
      $region47: #{resnet_forward.7} parent=31 // pred_region
        %p328 = scmp.lt.s32.totalorder %s21, 1
        %s329 = scalar_select %p328, %s21, 1
        %p330 = scmp.lt.s32.totalorder %s22, 7
        %s331 = scalar_select %p330, %s22, 7
        %s332 = smul.addr %s331, 8
        %s333 = smul.addr %s329, 64
        %s334 = sadd.s32 %s332, %s333
        %s335 = smul.addr %s334, 8
        %s336 = scalar_lea.vmem %s7, %s335
      $region48: #{resnet_forward.7} parent=31 // pred_fallthru
        _
    $region32: #{resnet_forward.7} parent=5 // pred_fallthru
      _
    %p337 = scmp.le.s32.totalorder 1, %s14
    %p338 = scmp.lt.s32.totalorder %s14, 17
    %p339 = pnand %p337, %p338
    %p340 = pneg %p339
    // Predicated region
    $region49: #{resnet_forward.7} parent=5 // pred_check
      _
    $region50: #{resnet_forward.7} parent=5 // pred_check_branch
      %342 = sbr.rel (%p339) target = $region52
    $region51: #{resnet_forward.7} parent=5 // pred_region
      %s343 = ssub.s32 %s14, 1
      %p344 = scmp.lt.s32.totalorder %s23, 1
      %s345 = scalar_select %p344, %s23, 1
      %p346 = scmp.lt.s32.totalorder %s24, 9
      %s347 = scalar_select %p346, %s24, 9
      %s348 = smul.addr %s347, 20
      %s349 = smul.addr %s345, 200
      %s350 = sadd.s32 %s348, %s349
      %s351 = smul.addr %s350, 8
      %s352 = scalar_lea.vmem %s0, %s351
      %p353 = pneg %p54
      %p354 = pneg %p51
      %s355 = sadd.s32 %s24, 1
      %p356 = scmp.lt.s32.totalorder %s23, 1
      %s357 = scalar_select %p356, %s23, 1
      %p358 = scmp.lt.s32.totalorder %s355, 9
      %s359 = scalar_select %p358, %s355, 9
      %s360 = smul.addr %s359, 20
      %s361 = smul.addr %s357, 200
      %s362 = sadd.s32 %s360, %s361
      %s363 = smul.addr %s362, 8
      %s364 = scalar_lea.vmem %s1, %s363
      %p365 = pneg %p84
      %p366 = pneg %p81
      %s367 = sadd.s32 %s24, 2
      %p368 = scmp.lt.s32.totalorder %s23, 1
      %s369 = scalar_select %p368, %s23, 1
      %p370 = scmp.lt.s32.totalorder %s367, 9
      %s371 = scalar_select %p370, %s367, 9
      %s372 = smul.addr %s371, 20
      %s373 = smul.addr %s369, 200
      %s374 = sadd.s32 %s372, %s373
      %s375 = smul.addr %s374, 8
      %s376 = scalar_lea.vmem %s2, %s375
      %p377 = pneg %p114
      %p378 = pneg %p111
      %p379 = pneg %p135
      %p380 = pneg %p132
      %p381 = pneg %p156
      %p382 = pneg %p153
      %p383 = pneg %p177
      %p384 = pneg %p174
      %p385 = pneg %p198
      %p386 = pneg %p195
      %p387 = scmp.lt.s32.totalorder %s23, 1
      %s388 = scalar_select %p387, %s23, 1
      %p389 = scmp.lt.s32.totalorder %s24, 7
      %s390 = scalar_select %p389, %s24, 7
      %s391 = smul.addr %s390, 8
      %s392 = smul.addr %s388, 64
      %s393 = sadd.s32 %s391, %s392
      %s394 = smul.addr %s393, 8
      %s395 = scalar_lea.vmem %s7, %s394
      %p396 = pneg %p226
      %p397 = pneg %p223
      %p398 = pneg %p254
      %p399 = pneg %p251
      %p400 = scmp.lt.s32.totalorder %s23, 1
      %s401 = scalar_select %p400, %s23, 1
      %p402 = scmp.lt.s32.totalorder %s24, 7
      %s403 = scalar_select %p402, %s24, 7
      %s404 = smul.addr %s403, 8
      %s405 = smul.addr %s401, 64
      %s406 = sadd.s32 %s404, %s405
      %s407 = smul.addr %s406, 8
      %s408 = scalar_lea.vmem %s8, %s407
      %p409 = scmp.lt.s32.totalorder %s23, 1
      %s410 = scalar_select %p409, %s23, 1
      %p411 = scmp.lt.s32.totalorder %s24, 9
      %s412 = scalar_select %p411, %s24, 9
      %s413 = smul.addr %s412, 20
      %s414 = smul.addr %s410, 200
      %s415 = sadd.s32 %s413, %s414
      %s416 = smul.addr %s415, 8
      %s417 = scalar_lea.vmem %s0, %s416
      %s418 = sadd.s32 %s24, 1
      %p419 = scmp.lt.s32.totalorder %s23, 1
      %s420 = scalar_select %p419, %s23, 1
      %p421 = scmp.lt.s32.totalorder %s418, 9
      %s422 = scalar_select %p421, %s418, 9
      %s423 = smul.addr %s422, 20
      %s424 = smul.addr %s420, 200
      %s425 = sadd.s32 %s423, %s424
      %s426 = smul.addr %s425, 8
      %s427 = scalar_lea.vmem %s1, %s426
      %s428 = sadd.s32 %s24, 1
      %s429 = sadd.s32 %s24, 2
      %p430 = scmp.lt.s32.totalorder %s23, 1
      %s431 = scalar_select %p430, %s23, 1
      %p432 = scmp.lt.s32.totalorder %s429, 9
      %s433 = scalar_select %p432, %s429, 9
      %s434 = smul.addr %s433, 20
      %s435 = smul.addr %s431, 200
      %s436 = sadd.s32 %s434, %s435
      %s437 = smul.addr %s436, 8
      %s438 = scalar_lea.vmem %s2, %s437
      %s439 = sadd.s32 %s24, 2
      %p440 = scmp.lt.s32.totalorder %s23, 1
      %s441 = scalar_select %p440, %s23, 1
      %p442 = scmp.lt.s32.totalorder %s24, 7
      %s443 = scalar_select %p442, %s24, 7
      %s444 = smul.addr %s443, 8
      %s445 = smul.addr %s441, 64
      %s446 = sadd.s32 %s444, %s445
      %s447 = smul.addr %s446, 8
      %s448 = scalar_lea.vmem %s7, %s447
      %p449 = scmp.lt.s32.totalorder %s23, 1
      %s450 = scalar_select %p449, %s23, 1
      %p451 = scmp.lt.s32.totalorder %s24, 7
      %s452 = scalar_select %p451, %s24, 7
      %s453 = smul.addr %s452, 8
      %s454 = smul.addr %s450, 64
      %s455 = sadd.s32 %s453, %s454
      %s456 = smul.addr %s455, 8
      %s457 = scalar_lea.vmem %s8, %s456
      %v458 = vld [vmem:[%s3] sm:$0x1]
      %v459 = vld [vmem:[%s4] sm:$0x1]
      %v460 = vlaneseq
      %v461 = vshrl.u32 %v460, 7
      %v462 = vadd.s32 %v461, 8
      %vm463 = vcmp.ge.s32.totalorder %v461, 1
      %vm464 = vcmp.ge.s32.totalorder %v462, 1
      %vm465 = vmand 0, %vm463
      %vm466 = vmand 0, %vm464
      %vm467 = vmand 1, %vm463
      %vm468 = vmand 1, %vm464
      %vm469 = vcmp.le.s32.totalorder %v461, 8
      %vm470 = vcmp.le.s32.totalorder %v462, 8
      %vm471 = vmand %vm465, %vm469
      %vm472 = vmand %vm466, %vm470
      %vm473 = vmand %vm467, %vm469
      %vm474 = vmand %vm468, %vm470
      %p475 = scmp.ge.s32.totalorder %s24, 1
      %p476 = scmp.le.s32.totalorder %s24, 8
      %p477 = pnand %p475, %p476
      %p478 = pneg %p477
      %s479 = scalar_select %p478, 1, 0
      %v480 = vstv %s479
      %vm481 = vcmp.eq.s32.totalorder %v480, 1
      %vm482 = vmand %vm471, %vm481
      %vm483 = vmand %vm472, %vm481
      %vm484 = vmand %vm473, %vm481
      %vm485 = vmand %vm474, %vm481
      %v486 = vsel %vm482, 1.0, 0.0
      %v487 = vsel %vm483, 1.0, 0.0
      %v488 = vsel %vm484, 1.0, 0.0
      %v489 = vsel %vm485, 1.0, 0.0
      %v490 = vld [vmem:[%s417] sm:$0xff]
      %v491 = vld [vmem:[%s417 + $0x8] sm:$0x3]
      %v492 = vld [vmem:[%s417 + $0x10] sm:$0xff]
      %v493 = vld [vmem:[%s417 + $0x18] sm:$0x3]
      %v494 = vld [vmem:[%s417 + $0x20] sm:$0xff]
      %v495 = vld [vmem:[%s417 + $0x28] sm:$0x3]
      %v496 = vld [vmem:[%s417 + $0x30] sm:$0xff]
      %v497 = vld [vmem:[%s417 + $0x38] sm:$0x3]
      %v498 = vld [vmem:[%s417 + $0x40] sm:$0xff]
      %v499 = vld [vmem:[%s417 + $0x48] sm:$0x3]
      %v500 = vld [vmem:[%s417 + $0x50] sm:$0xff]
      %v501 = vld [vmem:[%s417 + $0x58] sm:$0x3]
      %v502 = vld [vmem:[%s417 + $0x60] sm:$0xff]
      %v503 = vld [vmem:[%s417 + $0x68] sm:$0x3]
      %v504 = vld [vmem:[%s417 + $0x70] sm:$0xff]
      %v505 = vld [vmem:[%s417 + $0x78] sm:$0x3]
      %v506 = vld [vmem:[%s417 + $0x80] sm:$0xff]
      %v507 = vld [vmem:[%s417 + $0x88] sm:$0x3]
      %v508 = vld [vmem:[%s417 + $0x90] sm:$0xff]
      %v509 = vld [vmem:[%s417 + $0x98] sm:$0x3]
      %v510 = vmax.f32 %v490, 0.0
      %v511 = vmax.f32 %v491, 0.0
      %v512 = vmax.f32 %v492, 0.0
      %v513 = vmax.f32 %v493, 0.0
      %v514 = vmax.f32 %v494, 0.0
      %v515 = vmax.f32 %v495, 0.0
      %v516 = vmax.f32 %v496, 0.0
      %v517 = vmax.f32 %v497, 0.0
      %v518 = vmax.f32 %v498, 0.0
      %v519 = vmax.f32 %v499, 0.0
      %v520 = vmax.f32 %v500, 0.0
      %v521 = vmax.f32 %v501, 0.0
      %v522 = vmax.f32 %v502, 0.0
      %v523 = vmax.f32 %v503, 0.0
      %v524 = vmax.f32 %v504, 0.0
      %v525 = vmax.f32 %v505, 0.0
      %v526 = vmax.f32 %v506, 0.0
      %v527 = vmax.f32 %v507, 0.0
      %v528 = vmax.f32 %v508, 0.0
      %v529 = vmax.f32 %v509, 0.0
      %v531 = vperm.slane %v458, 0
      %v533 = vmul.f32 %v510, %v531
      %v534 = vmul.f32 %v511, %v531
      %v535 = vmul.f32 %v512, %v531
      %v536 = vmul.f32 %v513, %v531
      %v537 = vmul.f32 %v514, %v531
      %v538 = vmul.f32 %v515, %v531
      %v539 = vmul.f32 %v516, %v531
      %v540 = vmul.f32 %v517, %v531
      %v541 = vmul.f32 %v518, %v531
      %v542 = vmul.f32 %v519, %v531
      %v543 = vmul.f32 %v520, %v531
      %v544 = vmul.f32 %v521, %v531
      %v545 = vmul.f32 %v522, %v531
      %v546 = vmul.f32 %v523, %v531
      %v547 = vmul.f32 %v524, %v531
      %v548 = vmul.f32 %v525, %v531
      %v549 = vmul.f32 %v526, %v531
      %v550 = vmul.f32 %v527, %v531
      %v551 = vmul.f32 %v528, %v531
      %v552 = vmul.f32 %v529, %v531
      %v554 = vperm.slane %v459, 0
      %v556 = vadd.f32 %v533, %v554
      %v557 = vadd.f32 %v534, %v554
      %v558 = vadd.f32 %v535, %v554
      %v559 = vadd.f32 %v536, %v554
      %v560 = vadd.f32 %v537, %v554
      %v561 = vadd.f32 %v538, %v554
      %v562 = vadd.f32 %v539, %v554
      %v563 = vadd.f32 %v540, %v554
      %v564 = vadd.f32 %v541, %v554
      %v565 = vadd.f32 %v542, %v554
      %v566 = vadd.f32 %v543, %v554
      %v567 = vadd.f32 %v544, %v554
      %v568 = vadd.f32 %v545, %v554
      %v569 = vadd.f32 %v546, %v554
      %v570 = vadd.f32 %v547, %v554
      %v571 = vadd.f32 %v548, %v554
      %v572 = vadd.f32 %v549, %v554
      %v573 = vadd.f32 %v550, %v554
      %v574 = vadd.f32 %v551, %v554
      %v575 = vadd.f32 %v552, %v554
      %v576 = vmul.f32 %v556, %v486
      %v577 = vmul.f32 %v557, %v487
      %v578 = vmul.f32 %v558, %v488
      %v579 = vmul.f32 %v559, %v489
      %v580 = vmul.f32 %v560, %v488
      %v581 = vmul.f32 %v561, %v489
      %v582 = vmul.f32 %v562, %v488
      %v583 = vmul.f32 %v563, %v489
      %v584 = vmul.f32 %v564, %v488
      %v585 = vmul.f32 %v565, %v489
      %v586 = vmul.f32 %v566, %v488
      %v587 = vmul.f32 %v567, %v489
      %v588 = vmul.f32 %v568, %v488
      %v589 = vmul.f32 %v569, %v489
      %v590 = vmul.f32 %v570, %v488
      %v591 = vmul.f32 %v571, %v489
      %v592 = vmul.f32 %v572, %v488
      %v593 = vmul.f32 %v573, %v489
      %v594 = vmul.f32 %v574, %v486
      %v595 = vmul.f32 %v575, %v487
      %v596 = vld [vmem:[%s5] sm:$0xff]
      %vm613 = vcmask 1046528
      %v614 = vrot.slane %v576, 1
      %v615 = vrot.slane %v577, 1
      %v616 = vsel %vm613, %v614, %v615
      %v617 = vrot.slane %v578, 1
      %v618 = vrot.slane %v579, 1
      %v619 = vsel %vm613, %v617, %v618
      %v620 = vrot.slane %v580, 1
      %v621 = vrot.slane %v581, 1
      %v622 = vsel %vm613, %v620, %v621
      %v623 = vrot.slane %v582, 1
      %v624 = vrot.slane %v583, 1
      %v625 = vsel %vm613, %v623, %v624
      %v626 = vrot.slane %v584, 1
      %v627 = vrot.slane %v585, 1
      %v628 = vsel %vm613, %v626, %v627
      %v629 = vrot.slane %v586, 1
      %v630 = vrot.slane %v587, 1
      %v631 = vsel %vm613, %v629, %v630
      %v632 = vrot.slane %v588, 1
      %v633 = vrot.slane %v589, 1
      %v634 = vsel %vm613, %v632, %v633
      %v635 = vrot.slane %v590, 1
      %v636 = vrot.slane %v591, 1
      %v637 = vsel %vm613, %v635, %v636
      %s638 = scalar_lea.vmem %s5, 8
      %v639 = vld [vmem:[%s638] sm:$0xff]
      %vm640 = vcmask 64512
      %v641 = vsel %vm640, %v616, 0
      %v643 = vsel %vm640, %v619, 0
      %v645 = vsel %vm640, %v622, 0
      %v647 = vsel %vm640, %v625, 0
      %v649 = vsel %vm640, %v628, 0
      %v651 = vsel %vm640, %v631, 0
      %v653 = vsel %vm640, %v634, 0
      %v655 = vsel %vm640, %v637, 0
      %657 = vmatpush.msra.mxu0 0.0
      %658 = vmatpush.msra.mxu0 0.0
      %659 = vmatpush.msra.mxu0 0.0
      %660 = vmatpush.msra.mxu0 0.0
      %661 = vmatpush.msra.mxu0 0.0
      %662 = vmatpush.msra.mxu0 0.0
      %663 = vmatpush.msra.mxu0 0.0
      %664 = vmatpush.msra.mxu0 0.0
      %665 = vmatpush.msra.mxu0 0.0
      %666 = vmatpush.msra.mxu0 0.0
      %667 = vmatpush.msra.mxu0 0.0
      %668 = vmatpush.msra.mxu0 0.0
      %669 = vmatpush.msra.mxu0 0.0
      %670 = vmatpush.msra.mxu0 0.0
      %671 = vmatpush.msra.mxu0 0.0
      %672 = vmatpush.msra.mxu0 %v639
      %673 = vmatmul.f32.gmra.mxu0 %v641
      %v674 = vpop.f32.mrf.mxu0
      %v675 = vadd.f32 0.0, %v674
      %676 = vmatmul.f32.gmra.mxu0 %v643
      %v677 = vpop.f32.mrf.mxu0
      %v678 = vadd.f32 0.0, %v677
      %679 = vmatmul.f32.gmra.mxu0 %v645
      %v680 = vpop.f32.mrf.mxu0
      %v681 = vadd.f32 0.0, %v680
      %682 = vmatmul.f32.gmra.mxu0 %v647
      %v683 = vpop.f32.mrf.mxu0
      %v684 = vadd.f32 0.0, %v683
      %685 = vmatmul.f32.gmra.mxu0 %v649
      %v686 = vpop.f32.mrf.mxu0
      %v687 = vadd.f32 0.0, %v686
      %688 = vmatmul.f32.gmra.mxu0 %v651
      %v689 = vpop.f32.mrf.mxu0
      %v690 = vadd.f32 0.0, %v689
      %691 = vmatmul.f32.gmra.mxu0 %v653
      %v692 = vpop.f32.mrf.mxu0
      %v693 = vadd.f32 0.0, %v692
      %694 = vmatmul.f32.gmra.mxu0 %v655
      %v695 = vpop.f32.mrf.mxu0
      %v696 = vadd.f32 0.0, %v695
      %697 = vdwg.mxu0
      %v698 = vsel %vm640, %v576, 0
      %v700 = vsel %vm640, %v578, 0
      %v702 = vsel %vm640, %v580, 0
      %v704 = vsel %vm640, %v582, 0
      %v706 = vsel %vm640, %v584, 0
      %v708 = vsel %vm640, %v586, 0
      %v710 = vsel %vm640, %v588, 0
      %v712 = vsel %vm640, %v590, 0
      %714 = vmatpush.msra.mxu0 0.0
      %715 = vmatpush.msra.mxu0 0.0
      %716 = vmatpush.msra.mxu0 0.0
      %717 = vmatpush.msra.mxu0 0.0
      %718 = vmatpush.msra.mxu0 0.0
      %719 = vmatpush.msra.mxu0 0.0
      %720 = vmatpush.msra.mxu0 0.0
      %721 = vmatpush.msra.mxu0 0.0
      %722 = vmatpush.msra.mxu0 0.0
      %723 = vmatpush.msra.mxu0 0.0
      %724 = vmatpush.msra.mxu0 0.0
      %725 = vmatpush.msra.mxu0 0.0
      %726 = vmatpush.msra.mxu0 0.0
      %727 = vmatpush.msra.mxu0 0.0
      %728 = vmatpush.msra.mxu0 0.0
      %729 = vmatpush.msra.mxu0 %v596
      %730 = vmatmul.f32.gmra.mxu0 %v698
      %v731 = vpop.f32.mrf.mxu0
      %v732 = vadd.f32 %v675, %v731
      %733 = vmatmul.f32.gmra.mxu0 %v700
      %v734 = vpop.f32.mrf.mxu0
      %v735 = vadd.f32 %v678, %v734
      %736 = vmatmul.f32.gmra.mxu0 %v702
      %v737 = vpop.f32.mrf.mxu0
      %v738 = vadd.f32 %v681, %v737
      %739 = vmatmul.f32.gmra.mxu0 %v704
      %v740 = vpop.f32.mrf.mxu0
      %v741 = vadd.f32 %v684, %v740
      %742 = vmatmul.f32.gmra.mxu0 %v706
      %v743 = vpop.f32.mrf.mxu0
      %v744 = vadd.f32 %v687, %v743
      %745 = vmatmul.f32.gmra.mxu0 %v708
      %v746 = vpop.f32.mrf.mxu0
      %v747 = vadd.f32 %v690, %v746
      %748 = vmatmul.f32.gmra.mxu0 %v710
      %v749 = vpop.f32.mrf.mxu0
      %v750 = vadd.f32 %v693, %v749
      %751 = vmatmul.f32.gmra.mxu0 %v712
      %v752 = vpop.f32.mrf.mxu0
      %v753 = vadd.f32 %v696, %v752
      %754 = vdwg.mxu0
      %vm755 = vcmask 1045504
      %v756 = vrot.slane %v576, 2
      %v757 = vrot.slane %v577, 2
      %v758 = vsel %vm755, %v756, %v757
      %v759 = vrot.slane %v578, 2
      %v760 = vrot.slane %v579, 2
      %v761 = vsel %vm755, %v759, %v760
      %v762 = vrot.slane %v580, 2
      %v763 = vrot.slane %v581, 2
      %v764 = vsel %vm755, %v762, %v763
      %v765 = vrot.slane %v582, 2
      %v766 = vrot.slane %v583, 2
      %v767 = vsel %vm755, %v765, %v766
      %v768 = vrot.slane %v584, 2
      %v769 = vrot.slane %v585, 2
      %v770 = vsel %vm755, %v768, %v769
      %v771 = vrot.slane %v586, 2
      %v772 = vrot.slane %v587, 2
      %v773 = vsel %vm755, %v771, %v772
      %v774 = vrot.slane %v588, 2
      %v775 = vrot.slane %v589, 2
      %v776 = vsel %vm755, %v774, %v775
      %v777 = vrot.slane %v590, 2
      %v778 = vrot.slane %v591, 2
      %v779 = vsel %vm755, %v777, %v778
      %s780 = scalar_lea.vmem %s5, 16
      %v781 = vld [vmem:[%s780] sm:$0xff]
      %v782 = vsel %vm640, %v758, 0
      %v784 = vsel %vm640, %v761, 0
      %v786 = vsel %vm640, %v764, 0
      %v788 = vsel %vm640, %v767, 0
      %v790 = vsel %vm640, %v770, 0
      %v792 = vsel %vm640, %v773, 0
      %v794 = vsel %vm640, %v776, 0
      %v796 = vsel %vm640, %v779, 0
      %798 = vmatpush.msra.mxu0 0.0
      %799 = vmatpush.msra.mxu0 0.0
      %800 = vmatpush.msra.mxu0 0.0
      %801 = vmatpush.msra.mxu0 0.0
      %802 = vmatpush.msra.mxu0 0.0
      %803 = vmatpush.msra.mxu0 0.0
      %804 = vmatpush.msra.mxu0 0.0
      %805 = vmatpush.msra.mxu0 0.0
      %806 = vmatpush.msra.mxu0 0.0
      %807 = vmatpush.msra.mxu0 0.0
      %808 = vmatpush.msra.mxu0 0.0
      %809 = vmatpush.msra.mxu0 0.0
      %810 = vmatpush.msra.mxu0 0.0
      %811 = vmatpush.msra.mxu0 0.0
      %812 = vmatpush.msra.mxu0 0.0
      %813 = vmatpush.msra.mxu0 %v781
      %814 = vmatmul.f32.gmra.mxu0 %v782
      %v815 = vpop.f32.mrf.mxu0
      %v816 = vadd.f32 0.0, %v815
      %817 = vmatmul.f32.gmra.mxu0 %v784
      %v818 = vpop.f32.mrf.mxu0
      %v819 = vadd.f32 0.0, %v818
      %820 = vmatmul.f32.gmra.mxu0 %v786
      %v821 = vpop.f32.mrf.mxu0
      %v822 = vadd.f32 0.0, %v821
      %823 = vmatmul.f32.gmra.mxu0 %v788
      %v824 = vpop.f32.mrf.mxu0
      %v825 = vadd.f32 0.0, %v824
      %826 = vmatmul.f32.gmra.mxu0 %v790
      %v827 = vpop.f32.mrf.mxu0
      %v828 = vadd.f32 0.0, %v827
      %829 = vmatmul.f32.gmra.mxu0 %v792
      %v830 = vpop.f32.mrf.mxu0
      %v831 = vadd.f32 0.0, %v830
      %832 = vmatmul.f32.gmra.mxu0 %v794
      %v833 = vpop.f32.mrf.mxu0
      %v834 = vadd.f32 0.0, %v833
      %835 = vmatmul.f32.gmra.mxu0 %v796
      %v836 = vpop.f32.mrf.mxu0
      %v837 = vadd.f32 0.0, %v836
      %838 = vdwg.mxu0
      %v839 = vadd.f32 %v732, %v816
      %v840 = vadd.f32 %v735, %v819
      %v841 = vadd.f32 %v738, %v822
      %v842 = vadd.f32 %v741, %v825
      %v843 = vadd.f32 %v744, %v828
      %v844 = vadd.f32 %v747, %v831
      %v845 = vadd.f32 %v750, %v834
      %v846 = vadd.f32 %v753, %v837
      %s847 = scalar_lea.vmem %s5, 24
      %v848 = vld [vmem:[%s847] sm:$0xff]
      %v850 = vsel %vm640, %v592, 0
      %852 = vmatpush.msra.mxu0 0.0
      %853 = vmatpush.msra.mxu0 0.0
      %854 = vmatpush.msra.mxu0 0.0
      %855 = vmatpush.msra.mxu0 0.0
      %856 = vmatpush.msra.mxu0 0.0
      %857 = vmatpush.msra.mxu0 0.0
      %858 = vmatpush.msra.mxu0 0.0
      %859 = vmatpush.msra.mxu0 0.0
      %860 = vmatpush.msra.mxu0 0.0
      %861 = vmatpush.msra.mxu0 0.0
      %862 = vmatpush.msra.mxu0 0.0
      %863 = vmatpush.msra.mxu0 0.0
      %864 = vmatpush.msra.mxu0 0.0
      %865 = vmatpush.msra.mxu0 0.0
      %866 = vmatpush.msra.mxu0 0.0
      %867 = vmatpush.msra.mxu0 %v848
      %868 = vmatmul.f32.gmra.mxu0 %v700
      %v869 = vpop.f32.mrf.mxu0
      %v870 = vadd.f32 0.0, %v869
      %871 = vmatmul.f32.gmra.mxu0 %v702
      %v872 = vpop.f32.mrf.mxu0
      %v873 = vadd.f32 0.0, %v872
      %874 = vmatmul.f32.gmra.mxu0 %v704
      %v875 = vpop.f32.mrf.mxu0
      %v876 = vadd.f32 0.0, %v875
      %877 = vmatmul.f32.gmra.mxu0 %v706
      %v878 = vpop.f32.mrf.mxu0
      %v879 = vadd.f32 0.0, %v878
      %880 = vmatmul.f32.gmra.mxu0 %v708
      %v881 = vpop.f32.mrf.mxu0
      %v882 = vadd.f32 0.0, %v881
      %883 = vmatmul.f32.gmra.mxu0 %v710
      %v884 = vpop.f32.mrf.mxu0
      %v885 = vadd.f32 0.0, %v884
      %886 = vmatmul.f32.gmra.mxu0 %v712
      %v887 = vpop.f32.mrf.mxu0
      %v888 = vadd.f32 0.0, %v887
      %889 = vmatmul.f32.gmra.mxu0 %v850
      %v890 = vpop.f32.mrf.mxu0
      %v891 = vadd.f32 0.0, %v890
      %892 = vdwg.mxu0
      %v893 = vadd.f32 %v839, %v870
      %v894 = vadd.f32 %v840, %v873
      %v895 = vadd.f32 %v841, %v876
      %v896 = vadd.f32 %v842, %v879
      %v897 = vadd.f32 %v843, %v882
      %v898 = vadd.f32 %v844, %v885
      %v899 = vadd.f32 %v845, %v888
      %v900 = vadd.f32 %v846, %v891
      %v902 = vrot.slane %v592, 1
      %v903 = vrot.slane %v593, 1
      %v904 = vsel %vm613, %v902, %v903
      %s905 = scalar_lea.vmem %s5, 32
      %v906 = vld [vmem:[%s905] sm:$0xff]
      %v907 = vsel %vm640, %v904, 0
      %909 = vmatpush.msra.mxu0 0.0
      %910 = vmatpush.msra.mxu0 0.0
      %911 = vmatpush.msra.mxu0 0.0
      %912 = vmatpush.msra.mxu0 0.0
      %913 = vmatpush.msra.mxu0 0.0
      %914 = vmatpush.msra.mxu0 0.0
      %915 = vmatpush.msra.mxu0 0.0
      %916 = vmatpush.msra.mxu0 0.0
      %917 = vmatpush.msra.mxu0 0.0
      %918 = vmatpush.msra.mxu0 0.0
      %919 = vmatpush.msra.mxu0 0.0
      %920 = vmatpush.msra.mxu0 0.0
      %921 = vmatpush.msra.mxu0 0.0
      %922 = vmatpush.msra.mxu0 0.0
      %923 = vmatpush.msra.mxu0 0.0
      %924 = vmatpush.msra.mxu0 %v906
      %925 = vmatmul.f32.gmra.mxu0 %v643
      %v926 = vpop.f32.mrf.mxu0
      %v927 = vadd.f32 0.0, %v926
      %928 = vmatmul.f32.gmra.mxu0 %v645
      %v929 = vpop.f32.mrf.mxu0
      %v930 = vadd.f32 0.0, %v929
      %931 = vmatmul.f32.gmra.mxu0 %v647
      %v932 = vpop.f32.mrf.mxu0
      %v933 = vadd.f32 0.0, %v932
      %934 = vmatmul.f32.gmra.mxu0 %v649
      %v935 = vpop.f32.mrf.mxu0
      %v936 = vadd.f32 0.0, %v935
      %937 = vmatmul.f32.gmra.mxu0 %v651
      %v938 = vpop.f32.mrf.mxu0
      %v939 = vadd.f32 0.0, %v938
      %940 = vmatmul.f32.gmra.mxu0 %v653
      %v941 = vpop.f32.mrf.mxu0
      %v942 = vadd.f32 0.0, %v941
      %943 = vmatmul.f32.gmra.mxu0 %v655
      %v944 = vpop.f32.mrf.mxu0
      %v945 = vadd.f32 0.0, %v944
      %946 = vmatmul.f32.gmra.mxu0 %v907
      %v947 = vpop.f32.mrf.mxu0
      %v948 = vadd.f32 0.0, %v947
      %949 = vdwg.mxu0
      %v950 = vadd.f32 %v893, %v927
      %v951 = vadd.f32 %v894, %v930
      %v952 = vadd.f32 %v895, %v933
      %v953 = vadd.f32 %v896, %v936
      %v954 = vadd.f32 %v897, %v939
      %v955 = vadd.f32 %v898, %v942
      %v956 = vadd.f32 %v899, %v945
      %v957 = vadd.f32 %v900, %v948
      %v958 = vrot.slane %v592, 2
      %v959 = vrot.slane %v593, 2
      %v960 = vsel %vm755, %v958, %v959
      %s961 = scalar_lea.vmem %s5, 40
      %v962 = vld [vmem:[%s961] sm:$0xff]
      %v963 = vsel %vm640, %v960, 0
      %965 = vmatpush.msra.mxu0 0.0
      %966 = vmatpush.msra.mxu0 0.0
      %967 = vmatpush.msra.mxu0 0.0
      %968 = vmatpush.msra.mxu0 0.0
      %969 = vmatpush.msra.mxu0 0.0
      %970 = vmatpush.msra.mxu0 0.0
      %971 = vmatpush.msra.mxu0 0.0
      %972 = vmatpush.msra.mxu0 0.0
      %973 = vmatpush.msra.mxu0 0.0
      %974 = vmatpush.msra.mxu0 0.0
      %975 = vmatpush.msra.mxu0 0.0
      %976 = vmatpush.msra.mxu0 0.0
      %977 = vmatpush.msra.mxu0 0.0
      %978 = vmatpush.msra.mxu0 0.0
      %979 = vmatpush.msra.mxu0 0.0
      %980 = vmatpush.msra.mxu0 %v962
      %981 = vmatmul.f32.gmra.mxu0 %v784
      %v982 = vpop.f32.mrf.mxu0
      %v983 = vadd.f32 0.0, %v982
      %984 = vmatmul.f32.gmra.mxu0 %v786
      %v985 = vpop.f32.mrf.mxu0
      %v986 = vadd.f32 0.0, %v985
      %987 = vmatmul.f32.gmra.mxu0 %v788
      %v988 = vpop.f32.mrf.mxu0
      %v989 = vadd.f32 0.0, %v988
      %990 = vmatmul.f32.gmra.mxu0 %v790
      %v991 = vpop.f32.mrf.mxu0
      %v992 = vadd.f32 0.0, %v991
      %993 = vmatmul.f32.gmra.mxu0 %v792
      %v994 = vpop.f32.mrf.mxu0
      %v995 = vadd.f32 0.0, %v994
      %996 = vmatmul.f32.gmra.mxu0 %v794
      %v997 = vpop.f32.mrf.mxu0
      %v998 = vadd.f32 0.0, %v997
      %999 = vmatmul.f32.gmra.mxu0 %v796
      %v1000 = vpop.f32.mrf.mxu0
      %v1001 = vadd.f32 0.0, %v1000
      %1002 = vmatmul.f32.gmra.mxu0 %v963
      %v1003 = vpop.f32.mrf.mxu0
      %v1004 = vadd.f32 0.0, %v1003
      %1005 = vdwg.mxu0
      %v1006 = vadd.f32 %v950, %v983
      %v1007 = vadd.f32 %v951, %v986
      %v1008 = vadd.f32 %v952, %v989
      %v1009 = vadd.f32 %v953, %v992
      %v1010 = vadd.f32 %v954, %v995
      %v1011 = vadd.f32 %v955, %v998
      %v1012 = vadd.f32 %v956, %v1001
      %v1013 = vadd.f32 %v957, %v1004
      %s1014 = scalar_lea.vmem %s5, 48
      %v1015 = vld [vmem:[%s1014] sm:$0xff]
      %v1017 = vsel %vm640, %v594, 0
      %1019 = vmatpush.msra.mxu0 0.0
      %1020 = vmatpush.msra.mxu0 0.0
      %1021 = vmatpush.msra.mxu0 0.0
      %1022 = vmatpush.msra.mxu0 0.0
      %1023 = vmatpush.msra.mxu0 0.0
      %1024 = vmatpush.msra.mxu0 0.0
      %1025 = vmatpush.msra.mxu0 0.0
      %1026 = vmatpush.msra.mxu0 0.0
      %1027 = vmatpush.msra.mxu0 0.0
      %1028 = vmatpush.msra.mxu0 0.0
      %1029 = vmatpush.msra.mxu0 0.0
      %1030 = vmatpush.msra.mxu0 0.0
      %1031 = vmatpush.msra.mxu0 0.0
      %1032 = vmatpush.msra.mxu0 0.0
      %1033 = vmatpush.msra.mxu0 0.0
      %1034 = vmatpush.msra.mxu0 %v1015
      %1035 = vmatmul.f32.gmra.mxu0 %v702
      %v1036 = vpop.f32.mrf.mxu0
      %v1037 = vadd.f32 0.0, %v1036
      %1038 = vmatmul.f32.gmra.mxu0 %v704
      %v1039 = vpop.f32.mrf.mxu0
      %v1040 = vadd.f32 0.0, %v1039
      %1041 = vmatmul.f32.gmra.mxu0 %v706
      %v1042 = vpop.f32.mrf.mxu0
      %v1043 = vadd.f32 0.0, %v1042
      %1044 = vmatmul.f32.gmra.mxu0 %v708
      %v1045 = vpop.f32.mrf.mxu0
      %v1046 = vadd.f32 0.0, %v1045
      %1047 = vmatmul.f32.gmra.mxu0 %v710
      %v1048 = vpop.f32.mrf.mxu0
      %v1049 = vadd.f32 0.0, %v1048
      %1050 = vmatmul.f32.gmra.mxu0 %v712
      %v1051 = vpop.f32.mrf.mxu0
      %v1052 = vadd.f32 0.0, %v1051
      %1053 = vmatmul.f32.gmra.mxu0 %v850
      %v1054 = vpop.f32.mrf.mxu0
      %v1055 = vadd.f32 0.0, %v1054
      %1056 = vmatmul.f32.gmra.mxu0 %v1017
      %v1057 = vpop.f32.mrf.mxu0
      %v1058 = vadd.f32 0.0, %v1057
      %1059 = vdwg.mxu0
      %v1060 = vadd.f32 %v1006, %v1037
      %v1061 = vadd.f32 %v1007, %v1040
      %v1062 = vadd.f32 %v1008, %v1043
      %v1063 = vadd.f32 %v1009, %v1046
      %v1064 = vadd.f32 %v1010, %v1049
      %v1065 = vadd.f32 %v1011, %v1052
      %v1066 = vadd.f32 %v1012, %v1055
      %v1067 = vadd.f32 %v1013, %v1058
      %v1069 = vrot.slane %v594, 1
      %v1070 = vrot.slane %v595, 1
      %v1071 = vsel %vm613, %v1069, %v1070
      %s1072 = scalar_lea.vmem %s5, 56
      %v1073 = vld [vmem:[%s1072] sm:$0xff]
      %v1074 = vsel %vm640, %v1071, 0
      %1076 = vmatpush.msra.mxu0 0.0
      %1077 = vmatpush.msra.mxu0 0.0
      %1078 = vmatpush.msra.mxu0 0.0
      %1079 = vmatpush.msra.mxu0 0.0
      %1080 = vmatpush.msra.mxu0 0.0
      %1081 = vmatpush.msra.mxu0 0.0
      %1082 = vmatpush.msra.mxu0 0.0
      %1083 = vmatpush.msra.mxu0 0.0
      %1084 = vmatpush.msra.mxu0 0.0
      %1085 = vmatpush.msra.mxu0 0.0
      %1086 = vmatpush.msra.mxu0 0.0
      %1087 = vmatpush.msra.mxu0 0.0
      %1088 = vmatpush.msra.mxu0 0.0
      %1089 = vmatpush.msra.mxu0 0.0
      %1090 = vmatpush.msra.mxu0 0.0
      %1091 = vmatpush.msra.mxu0 %v1073
      %1092 = vmatmul.f32.gmra.mxu0 %v645
      %v1093 = vpop.f32.mrf.mxu0
      %v1094 = vadd.f32 0.0, %v1093
      %1095 = vmatmul.f32.gmra.mxu0 %v647
      %v1096 = vpop.f32.mrf.mxu0
      %v1097 = vadd.f32 0.0, %v1096
      %1098 = vmatmul.f32.gmra.mxu0 %v649
      %v1099 = vpop.f32.mrf.mxu0
      %v1100 = vadd.f32 0.0, %v1099
      %1101 = vmatmul.f32.gmra.mxu0 %v651
      %v1102 = vpop.f32.mrf.mxu0
      %v1103 = vadd.f32 0.0, %v1102
      %1104 = vmatmul.f32.gmra.mxu0 %v653
      %v1105 = vpop.f32.mrf.mxu0
      %v1106 = vadd.f32 0.0, %v1105
      %1107 = vmatmul.f32.gmra.mxu0 %v655
      %v1108 = vpop.f32.mrf.mxu0
      %v1109 = vadd.f32 0.0, %v1108
      %1110 = vmatmul.f32.gmra.mxu0 %v907
      %v1111 = vpop.f32.mrf.mxu0
      %v1112 = vadd.f32 0.0, %v1111
      %1113 = vmatmul.f32.gmra.mxu0 %v1074
      %v1114 = vpop.f32.mrf.mxu0
      %v1115 = vadd.f32 0.0, %v1114
      %1116 = vdwg.mxu0
      %v1117 = vadd.f32 %v1060, %v1094
      %v1118 = vadd.f32 %v1061, %v1097
      %v1119 = vadd.f32 %v1062, %v1100
      %v1120 = vadd.f32 %v1063, %v1103
      %v1121 = vadd.f32 %v1064, %v1106
      %v1122 = vadd.f32 %v1065, %v1109
      %v1123 = vadd.f32 %v1066, %v1112
      %v1124 = vadd.f32 %v1067, %v1115
      %v1125 = vrot.slane %v594, 2
      %v1126 = vrot.slane %v595, 2
      %v1127 = vsel %vm755, %v1125, %v1126
      %s1128 = scalar_lea.vmem %s5, 64
      %v1129 = vld [vmem:[%s1128] sm:$0xff]
      %v1130 = vsel %vm640, %v1127, 0
      %1132 = vmatpush.msra.mxu0 0.0
      %1133 = vmatpush.msra.mxu0 0.0
      %1134 = vmatpush.msra.mxu0 0.0
      %1135 = vmatpush.msra.mxu0 0.0
      %1136 = vmatpush.msra.mxu0 0.0
      %1137 = vmatpush.msra.mxu0 0.0
      %1138 = vmatpush.msra.mxu0 0.0
      %1139 = vmatpush.msra.mxu0 0.0
      %1140 = vmatpush.msra.mxu0 0.0
      %1141 = vmatpush.msra.mxu0 0.0
      %1142 = vmatpush.msra.mxu0 0.0
      %1143 = vmatpush.msra.mxu0 0.0
      %1144 = vmatpush.msra.mxu0 0.0
      %1145 = vmatpush.msra.mxu0 0.0
      %1146 = vmatpush.msra.mxu0 0.0
      %1147 = vmatpush.msra.mxu0 %v1129
      %1148 = vmatmul.f32.gmra.mxu0 %v786
      %v1149 = vpop.f32.mrf.mxu0
      %v1150 = vadd.f32 0.0, %v1149
      %1151 = vmatmul.f32.gmra.mxu0 %v788
      %v1152 = vpop.f32.mrf.mxu0
      %v1153 = vadd.f32 0.0, %v1152
      %1154 = vmatmul.f32.gmra.mxu0 %v790
      %v1155 = vpop.f32.mrf.mxu0
      %v1156 = vadd.f32 0.0, %v1155
      %1157 = vmatmul.f32.gmra.mxu0 %v792
      %v1158 = vpop.f32.mrf.mxu0
      %v1159 = vadd.f32 0.0, %v1158
      %1160 = vmatmul.f32.gmra.mxu0 %v794
      %v1161 = vpop.f32.mrf.mxu0
      %v1162 = vadd.f32 0.0, %v1161
      %1163 = vmatmul.f32.gmra.mxu0 %v796
      %v1164 = vpop.f32.mrf.mxu0
      %v1165 = vadd.f32 0.0, %v1164
      %1166 = vmatmul.f32.gmra.mxu0 %v963
      %v1167 = vpop.f32.mrf.mxu0
      %v1168 = vadd.f32 0.0, %v1167
      %1169 = vmatmul.f32.gmra.mxu0 %v1130
      %v1170 = vpop.f32.mrf.mxu0
      %v1171 = vadd.f32 0.0, %v1170
      %1172 = vdwg.mxu0
      %v1173 = vadd.f32 %v1117, %v1150
      %v1174 = vadd.f32 %v1118, %v1153
      %v1175 = vadd.f32 %v1119, %v1156
      %v1176 = vadd.f32 %v1120, %v1159
      %v1177 = vadd.f32 %v1121, %v1162
      %v1178 = vadd.f32 %v1122, %v1165
      %v1179 = vadd.f32 %v1123, %v1168
      %v1180 = vadd.f32 %v1124, %v1171
      %s1181 = sadd.s32 %s24, 1
      %p1182 = scmp.ge.s32.totalorder %s1181, 1
      %p1183 = scmp.le.s32.totalorder %s1181, 8
      %p1184 = pnand %p1182, %p1183
      %p1185 = pneg %p1184
      %s1186 = scalar_select %p1185, 1, 0
      %v1187 = vstv %s1186
      %vm1188 = vcmp.eq.s32.totalorder %v1187, 1
      %vm1189 = vmand %vm471, %vm1188
      %vm1190 = vmand %vm472, %vm1188
      %vm1191 = vmand %vm473, %vm1188
      %vm1192 = vmand %vm474, %vm1188
      %v1193 = vsel %vm1189, 1.0, 0.0
      %v1194 = vsel %vm1190, 1.0, 0.0
      %v1195 = vsel %vm1191, 1.0, 0.0
      %v1196 = vsel %vm1192, 1.0, 0.0
      %v1197 = vld [vmem:[%s427] sm:$0xff]
      %v1198 = vld [vmem:[%s427 + $0x8] sm:$0x3]
      %v1199 = vld [vmem:[%s427 + $0x10] sm:$0xff]
      %v1200 = vld [vmem:[%s427 + $0x18] sm:$0x3]
      %v1201 = vld [vmem:[%s427 + $0x20] sm:$0xff]
      %v1202 = vld [vmem:[%s427 + $0x28] sm:$0x3]
      %v1203 = vld [vmem:[%s427 + $0x30] sm:$0xff]
      %v1204 = vld [vmem:[%s427 + $0x38] sm:$0x3]
      %v1205 = vld [vmem:[%s427 + $0x40] sm:$0xff]
      %v1206 = vld [vmem:[%s427 + $0x48] sm:$0x3]
      %v1207 = vld [vmem:[%s427 + $0x50] sm:$0xff]
      %v1208 = vld [vmem:[%s427 + $0x58] sm:$0x3]
      %v1209 = vld [vmem:[%s427 + $0x60] sm:$0xff]
      %v1210 = vld [vmem:[%s427 + $0x68] sm:$0x3]
      %v1211 = vld [vmem:[%s427 + $0x70] sm:$0xff]
      %v1212 = vld [vmem:[%s427 + $0x78] sm:$0x3]
      %v1213 = vld [vmem:[%s427 + $0x80] sm:$0xff]
      %v1214 = vld [vmem:[%s427 + $0x88] sm:$0x3]
      %v1215 = vld [vmem:[%s427 + $0x90] sm:$0xff]
      %v1216 = vld [vmem:[%s427 + $0x98] sm:$0x3]
      %v1217 = vmax.f32 %v1197, 0.0
      %v1218 = vmax.f32 %v1198, 0.0
      %v1219 = vmax.f32 %v1199, 0.0
      %v1220 = vmax.f32 %v1200, 0.0
      %v1221 = vmax.f32 %v1201, 0.0
      %v1222 = vmax.f32 %v1202, 0.0
      %v1223 = vmax.f32 %v1203, 0.0
      %v1224 = vmax.f32 %v1204, 0.0
      %v1225 = vmax.f32 %v1205, 0.0
      %v1226 = vmax.f32 %v1206, 0.0
      %v1227 = vmax.f32 %v1207, 0.0
      %v1228 = vmax.f32 %v1208, 0.0
      %v1229 = vmax.f32 %v1209, 0.0
      %v1230 = vmax.f32 %v1210, 0.0
      %v1231 = vmax.f32 %v1211, 0.0
      %v1232 = vmax.f32 %v1212, 0.0
      %v1233 = vmax.f32 %v1213, 0.0
      %v1234 = vmax.f32 %v1214, 0.0
      %v1235 = vmax.f32 %v1215, 0.0
      %v1236 = vmax.f32 %v1216, 0.0
      %v1237 = vmul.f32 %v1217, %v531
      %v1238 = vmul.f32 %v1218, %v531
      %v1239 = vmul.f32 %v1219, %v531
      %v1240 = vmul.f32 %v1220, %v531
      %v1241 = vmul.f32 %v1221, %v531
      %v1242 = vmul.f32 %v1222, %v531
      %v1243 = vmul.f32 %v1223, %v531
      %v1244 = vmul.f32 %v1224, %v531
      %v1245 = vmul.f32 %v1225, %v531
      %v1246 = vmul.f32 %v1226, %v531
      %v1247 = vmul.f32 %v1227, %v531
      %v1248 = vmul.f32 %v1228, %v531
      %v1249 = vmul.f32 %v1229, %v531
      %v1250 = vmul.f32 %v1230, %v531
      %v1251 = vmul.f32 %v1231, %v531
      %v1252 = vmul.f32 %v1232, %v531
      %v1253 = vmul.f32 %v1233, %v531
      %v1254 = vmul.f32 %v1234, %v531
      %v1255 = vmul.f32 %v1235, %v531
      %v1256 = vmul.f32 %v1236, %v531
      %v1257 = vadd.f32 %v1237, %v554
      %v1258 = vadd.f32 %v1238, %v554
      %v1259 = vadd.f32 %v1239, %v554
      %v1260 = vadd.f32 %v1240, %v554
      %v1261 = vadd.f32 %v1241, %v554
      %v1262 = vadd.f32 %v1242, %v554
      %v1263 = vadd.f32 %v1243, %v554
      %v1264 = vadd.f32 %v1244, %v554
      %v1265 = vadd.f32 %v1245, %v554
      %v1266 = vadd.f32 %v1246, %v554
      %v1267 = vadd.f32 %v1247, %v554
      %v1268 = vadd.f32 %v1248, %v554
      %v1269 = vadd.f32 %v1249, %v554
      %v1270 = vadd.f32 %v1250, %v554
      %v1271 = vadd.f32 %v1251, %v554
      %v1272 = vadd.f32 %v1252, %v554
      %v1273 = vadd.f32 %v1253, %v554
      %v1274 = vadd.f32 %v1254, %v554
      %v1275 = vadd.f32 %v1255, %v554
      %v1276 = vadd.f32 %v1256, %v554
      %v1277 = vmul.f32 %v1257, %v1193
      %v1278 = vmul.f32 %v1258, %v1194
      %v1279 = vmul.f32 %v1259, %v1195
      %v1280 = vmul.f32 %v1260, %v1196
      %v1281 = vmul.f32 %v1261, %v1195
      %v1282 = vmul.f32 %v1262, %v1196
      %v1283 = vmul.f32 %v1263, %v1195
      %v1284 = vmul.f32 %v1264, %v1196
      %v1285 = vmul.f32 %v1265, %v1195
      %v1286 = vmul.f32 %v1266, %v1196
      %v1287 = vmul.f32 %v1267, %v1195
      %v1288 = vmul.f32 %v1268, %v1196
      %v1289 = vmul.f32 %v1269, %v1195
      %v1290 = vmul.f32 %v1270, %v1196
      %v1291 = vmul.f32 %v1271, %v1195
      %v1292 = vmul.f32 %v1272, %v1196
      %v1293 = vmul.f32 %v1273, %v1195
      %v1294 = vmul.f32 %v1274, %v1196
      %v1295 = vmul.f32 %v1275, %v1193
      %v1296 = vmul.f32 %v1276, %v1194
      %s1297 = scalar_lea.vmem %s5, 72
      %v1298 = vld [vmem:[%s1297] sm:$0xff]
      %v1300 = vsel %vm640, %v1277, 0
      %v1303 = vsel %vm640, %v1279, 0
      %v1306 = vsel %vm640, %v1281, 0
      %v1309 = vsel %vm640, %v1283, 0
      %v1312 = vsel %vm640, %v1285, 0
      %v1315 = vsel %vm640, %v1287, 0
      %v1318 = vsel %vm640, %v1289, 0
      %v1321 = vsel %vm640, %v1291, 0
      %1323 = vmatpush.msra.mxu0 0.0
      %1324 = vmatpush.msra.mxu0 0.0
      %1325 = vmatpush.msra.mxu0 0.0
      %1326 = vmatpush.msra.mxu0 0.0
      %1327 = vmatpush.msra.mxu0 0.0
      %1328 = vmatpush.msra.mxu0 0.0
      %1329 = vmatpush.msra.mxu0 0.0
      %1330 = vmatpush.msra.mxu0 0.0
      %1331 = vmatpush.msra.mxu0 0.0
      %1332 = vmatpush.msra.mxu0 0.0
      %1333 = vmatpush.msra.mxu0 0.0
      %1334 = vmatpush.msra.mxu0 0.0
      %1335 = vmatpush.msra.mxu0 0.0
      %1336 = vmatpush.msra.mxu0 0.0
      %1337 = vmatpush.msra.mxu0 0.0
      %1338 = vmatpush.msra.mxu0 %v1298
      %1339 = vmatmul.f32.gmra.mxu0 %v1300
      %v1340 = vpop.f32.mrf.mxu0
      %v1341 = vadd.f32 0.0, %v1340
      %1342 = vmatmul.f32.gmra.mxu0 %v1303
      %v1343 = vpop.f32.mrf.mxu0
      %v1344 = vadd.f32 0.0, %v1343
      %1345 = vmatmul.f32.gmra.mxu0 %v1306
      %v1346 = vpop.f32.mrf.mxu0
      %v1347 = vadd.f32 0.0, %v1346
      %1348 = vmatmul.f32.gmra.mxu0 %v1309
      %v1349 = vpop.f32.mrf.mxu0
      %v1350 = vadd.f32 0.0, %v1349
      %1351 = vmatmul.f32.gmra.mxu0 %v1312
      %v1352 = vpop.f32.mrf.mxu0
      %v1353 = vadd.f32 0.0, %v1352
      %1354 = vmatmul.f32.gmra.mxu0 %v1315
      %v1355 = vpop.f32.mrf.mxu0
      %v1356 = vadd.f32 0.0, %v1355
      %1357 = vmatmul.f32.gmra.mxu0 %v1318
      %v1358 = vpop.f32.mrf.mxu0
      %v1359 = vadd.f32 0.0, %v1358
      %1360 = vmatmul.f32.gmra.mxu0 %v1321
      %v1361 = vpop.f32.mrf.mxu0
      %v1362 = vadd.f32 0.0, %v1361
      %1363 = vdwg.mxu0
      %v1364 = vadd.f32 %v1173, %v1341
      %v1365 = vadd.f32 %v1174, %v1344
      %v1366 = vadd.f32 %v1175, %v1347
      %v1367 = vadd.f32 %v1176, %v1350
      %v1368 = vadd.f32 %v1177, %v1353
      %v1369 = vadd.f32 %v1178, %v1356
      %v1370 = vadd.f32 %v1179, %v1359
      %v1371 = vadd.f32 %v1180, %v1362
      %v1380 = vrot.slane %v1277, 1
      %v1381 = vrot.slane %v1278, 1
      %v1382 = vsel %vm613, %v1380, %v1381
      %v1383 = vrot.slane %v1279, 1
      %v1384 = vrot.slane %v1280, 1
      %v1385 = vsel %vm613, %v1383, %v1384
      %v1386 = vrot.slane %v1281, 1
      %v1387 = vrot.slane %v1282, 1
      %v1388 = vsel %vm613, %v1386, %v1387
      %v1389 = vrot.slane %v1283, 1
      %v1390 = vrot.slane %v1284, 1
      %v1391 = vsel %vm613, %v1389, %v1390
      %v1392 = vrot.slane %v1285, 1
      %v1393 = vrot.slane %v1286, 1
      %v1394 = vsel %vm613, %v1392, %v1393
      %v1395 = vrot.slane %v1287, 1
      %v1396 = vrot.slane %v1288, 1
      %v1397 = vsel %vm613, %v1395, %v1396
      %v1398 = vrot.slane %v1289, 1
      %v1399 = vrot.slane %v1290, 1
      %v1400 = vsel %vm613, %v1398, %v1399
      %v1401 = vrot.slane %v1291, 1
      %v1402 = vrot.slane %v1292, 1
      %v1403 = vsel %vm613, %v1401, %v1402
      %s1404 = scalar_lea.vmem %s5, 80
      %v1405 = vld [vmem:[%s1404] sm:$0xff]
      %v1406 = vsel %vm640, %v1382, 0
      %v1408 = vsel %vm640, %v1385, 0
      %v1410 = vsel %vm640, %v1388, 0
      %v1412 = vsel %vm640, %v1391, 0
      %v1414 = vsel %vm640, %v1394, 0
      %v1416 = vsel %vm640, %v1397, 0
      %v1418 = vsel %vm640, %v1400, 0
      %v1420 = vsel %vm640, %v1403, 0
      %1422 = vmatpush.msra.mxu0 0.0
      %1423 = vmatpush.msra.mxu0 0.0
      %1424 = vmatpush.msra.mxu0 0.0
      %1425 = vmatpush.msra.mxu0 0.0
      %1426 = vmatpush.msra.mxu0 0.0
      %1427 = vmatpush.msra.mxu0 0.0
      %1428 = vmatpush.msra.mxu0 0.0
      %1429 = vmatpush.msra.mxu0 0.0
      %1430 = vmatpush.msra.mxu0 0.0
      %1431 = vmatpush.msra.mxu0 0.0
      %1432 = vmatpush.msra.mxu0 0.0
      %1433 = vmatpush.msra.mxu0 0.0
      %1434 = vmatpush.msra.mxu0 0.0
      %1435 = vmatpush.msra.mxu0 0.0
      %1436 = vmatpush.msra.mxu0 0.0
      %1437 = vmatpush.msra.mxu0 %v1405
      %1438 = vmatmul.f32.gmra.mxu0 %v1406
      %v1439 = vpop.f32.mrf.mxu0
      %v1440 = vadd.f32 0.0, %v1439
      %1441 = vmatmul.f32.gmra.mxu0 %v1408
      %v1442 = vpop.f32.mrf.mxu0
      %v1443 = vadd.f32 0.0, %v1442
      %1444 = vmatmul.f32.gmra.mxu0 %v1410
      %v1445 = vpop.f32.mrf.mxu0
      %v1446 = vadd.f32 0.0, %v1445
      %1447 = vmatmul.f32.gmra.mxu0 %v1412
      %v1448 = vpop.f32.mrf.mxu0
      %v1449 = vadd.f32 0.0, %v1448
      %1450 = vmatmul.f32.gmra.mxu0 %v1414
      %v1451 = vpop.f32.mrf.mxu0
      %v1452 = vadd.f32 0.0, %v1451
      %1453 = vmatmul.f32.gmra.mxu0 %v1416
      %v1454 = vpop.f32.mrf.mxu0
      %v1455 = vadd.f32 0.0, %v1454
      %1456 = vmatmul.f32.gmra.mxu0 %v1418
      %v1457 = vpop.f32.mrf.mxu0
      %v1458 = vadd.f32 0.0, %v1457
      %1459 = vmatmul.f32.gmra.mxu0 %v1420
      %v1460 = vpop.f32.mrf.mxu0
      %v1461 = vadd.f32 0.0, %v1460
      %1462 = vdwg.mxu0
      %v1463 = vadd.f32 %v1364, %v1440
      %v1464 = vadd.f32 %v1365, %v1443
      %v1465 = vadd.f32 %v1366, %v1446
      %v1466 = vadd.f32 %v1367, %v1449
      %v1467 = vadd.f32 %v1368, %v1452
      %v1468 = vadd.f32 %v1369, %v1455
      %v1469 = vadd.f32 %v1370, %v1458
      %v1470 = vadd.f32 %v1371, %v1461
      %v1471 = vrot.slane %v1277, 2
      %v1472 = vrot.slane %v1278, 2
      %v1473 = vsel %vm755, %v1471, %v1472
      %v1474 = vrot.slane %v1279, 2
      %v1475 = vrot.slane %v1280, 2
      %v1476 = vsel %vm755, %v1474, %v1475
      %v1477 = vrot.slane %v1281, 2
      %v1478 = vrot.slane %v1282, 2
      %v1479 = vsel %vm755, %v1477, %v1478
      %v1480 = vrot.slane %v1283, 2
      %v1481 = vrot.slane %v1284, 2
      %v1482 = vsel %vm755, %v1480, %v1481
      %v1483 = vrot.slane %v1285, 2
      %v1484 = vrot.slane %v1286, 2
      %v1485 = vsel %vm755, %v1483, %v1484
      %v1486 = vrot.slane %v1287, 2
      %v1487 = vrot.slane %v1288, 2
      %v1488 = vsel %vm755, %v1486, %v1487
      %v1489 = vrot.slane %v1289, 2
      %v1490 = vrot.slane %v1290, 2
      %v1491 = vsel %vm755, %v1489, %v1490
      %v1492 = vrot.slane %v1291, 2
      %v1493 = vrot.slane %v1292, 2
      %v1494 = vsel %vm755, %v1492, %v1493
      %s1495 = scalar_lea.vmem %s5, 88
      %v1496 = vld [vmem:[%s1495] sm:$0xff]
      %v1497 = vsel %vm640, %v1473, 0
      %v1499 = vsel %vm640, %v1476, 0
      %v1501 = vsel %vm640, %v1479, 0
      %v1503 = vsel %vm640, %v1482, 0
      %v1505 = vsel %vm640, %v1485, 0
      %v1507 = vsel %vm640, %v1488, 0
      %v1509 = vsel %vm640, %v1491, 0
      %v1511 = vsel %vm640, %v1494, 0
      %1513 = vmatpush.msra.mxu0 0.0
      %1514 = vmatpush.msra.mxu0 0.0
      %1515 = vmatpush.msra.mxu0 0.0
      %1516 = vmatpush.msra.mxu0 0.0
      %1517 = vmatpush.msra.mxu0 0.0
      %1518 = vmatpush.msra.mxu0 0.0
      %1519 = vmatpush.msra.mxu0 0.0
      %1520 = vmatpush.msra.mxu0 0.0
      %1521 = vmatpush.msra.mxu0 0.0
      %1522 = vmatpush.msra.mxu0 0.0
      %1523 = vmatpush.msra.mxu0 0.0
      %1524 = vmatpush.msra.mxu0 0.0
      %1525 = vmatpush.msra.mxu0 0.0
      %1526 = vmatpush.msra.mxu0 0.0
      %1527 = vmatpush.msra.mxu0 0.0
      %1528 = vmatpush.msra.mxu0 %v1496
      %1529 = vmatmul.f32.gmra.mxu0 %v1497
      %v1530 = vpop.f32.mrf.mxu0
      %v1531 = vadd.f32 0.0, %v1530
      %1532 = vmatmul.f32.gmra.mxu0 %v1499
      %v1533 = vpop.f32.mrf.mxu0
      %v1534 = vadd.f32 0.0, %v1533
      %1535 = vmatmul.f32.gmra.mxu0 %v1501
      %v1536 = vpop.f32.mrf.mxu0
      %v1537 = vadd.f32 0.0, %v1536
      %1538 = vmatmul.f32.gmra.mxu0 %v1503
      %v1539 = vpop.f32.mrf.mxu0
      %v1540 = vadd.f32 0.0, %v1539
      %1541 = vmatmul.f32.gmra.mxu0 %v1505
      %v1542 = vpop.f32.mrf.mxu0
      %v1543 = vadd.f32 0.0, %v1542
      %1544 = vmatmul.f32.gmra.mxu0 %v1507
      %v1545 = vpop.f32.mrf.mxu0
      %v1546 = vadd.f32 0.0, %v1545
      %1547 = vmatmul.f32.gmra.mxu0 %v1509
      %v1548 = vpop.f32.mrf.mxu0
      %v1549 = vadd.f32 0.0, %v1548
      %1550 = vmatmul.f32.gmra.mxu0 %v1511
      %v1551 = vpop.f32.mrf.mxu0
      %v1552 = vadd.f32 0.0, %v1551
      %1553 = vdwg.mxu0
      %v1554 = vadd.f32 %v1463, %v1531
      %v1555 = vadd.f32 %v1464, %v1534
      %v1556 = vadd.f32 %v1465, %v1537
      %v1557 = vadd.f32 %v1466, %v1540
      %v1558 = vadd.f32 %v1467, %v1543
      %v1559 = vadd.f32 %v1468, %v1546
      %v1560 = vadd.f32 %v1469, %v1549
      %v1561 = vadd.f32 %v1470, %v1552
      %s1562 = scalar_lea.vmem %s5, 96
      %v1563 = vld [vmem:[%s1562] sm:$0xff]
      %v1565 = vsel %vm640, %v1293, 0
      %1567 = vmatpush.msra.mxu0 0.0
      %1568 = vmatpush.msra.mxu0 0.0
      %1569 = vmatpush.msra.mxu0 0.0
      %1570 = vmatpush.msra.mxu0 0.0
      %1571 = vmatpush.msra.mxu0 0.0
      %1572 = vmatpush.msra.mxu0 0.0
      %1573 = vmatpush.msra.mxu0 0.0
      %1574 = vmatpush.msra.mxu0 0.0
      %1575 = vmatpush.msra.mxu0 0.0
      %1576 = vmatpush.msra.mxu0 0.0
      %1577 = vmatpush.msra.mxu0 0.0
      %1578 = vmatpush.msra.mxu0 0.0
      %1579 = vmatpush.msra.mxu0 0.0
      %1580 = vmatpush.msra.mxu0 0.0
      %1581 = vmatpush.msra.mxu0 0.0
      %1582 = vmatpush.msra.mxu0 %v1563
      %1583 = vmatmul.f32.gmra.mxu0 %v1303
      %v1584 = vpop.f32.mrf.mxu0
      %v1585 = vadd.f32 0.0, %v1584
      %1586 = vmatmul.f32.gmra.mxu0 %v1306
      %v1587 = vpop.f32.mrf.mxu0
      %v1588 = vadd.f32 0.0, %v1587
      %1589 = vmatmul.f32.gmra.mxu0 %v1309
      %v1590 = vpop.f32.mrf.mxu0
      %v1591 = vadd.f32 0.0, %v1590
      %1592 = vmatmul.f32.gmra.mxu0 %v1312
      %v1593 = vpop.f32.mrf.mxu0
      %v1594 = vadd.f32 0.0, %v1593
      %1595 = vmatmul.f32.gmra.mxu0 %v1315
      %v1596 = vpop.f32.mrf.mxu0
      %v1597 = vadd.f32 0.0, %v1596
      %1598 = vmatmul.f32.gmra.mxu0 %v1318
      %v1599 = vpop.f32.mrf.mxu0
      %v1600 = vadd.f32 0.0, %v1599
      %1601 = vmatmul.f32.gmra.mxu0 %v1321
      %v1602 = vpop.f32.mrf.mxu0
      %v1603 = vadd.f32 0.0, %v1602
      %1604 = vmatmul.f32.gmra.mxu0 %v1565
      %v1605 = vpop.f32.mrf.mxu0
      %v1606 = vadd.f32 0.0, %v1605
      %1607 = vdwg.mxu0
      %v1608 = vadd.f32 %v1554, %v1585
      %v1609 = vadd.f32 %v1555, %v1588
      %v1610 = vadd.f32 %v1556, %v1591
      %v1611 = vadd.f32 %v1557, %v1594
      %v1612 = vadd.f32 %v1558, %v1597
      %v1613 = vadd.f32 %v1559, %v1600
      %v1614 = vadd.f32 %v1560, %v1603
      %v1615 = vadd.f32 %v1561, %v1606
      %v1617 = vrot.slane %v1293, 1
      %v1618 = vrot.slane %v1294, 1
      %v1619 = vsel %vm613, %v1617, %v1618
      %s1620 = scalar_lea.vmem %s5, 104
      %v1621 = vld [vmem:[%s1620] sm:$0xff]
      %v1622 = vsel %vm640, %v1619, 0
      %1624 = vmatpush.msra.mxu0 0.0
      %1625 = vmatpush.msra.mxu0 0.0
      %1626 = vmatpush.msra.mxu0 0.0
      %1627 = vmatpush.msra.mxu0 0.0
      %1628 = vmatpush.msra.mxu0 0.0
      %1629 = vmatpush.msra.mxu0 0.0
      %1630 = vmatpush.msra.mxu0 0.0
      %1631 = vmatpush.msra.mxu0 0.0
      %1632 = vmatpush.msra.mxu0 0.0
      %1633 = vmatpush.msra.mxu0 0.0
      %1634 = vmatpush.msra.mxu0 0.0
      %1635 = vmatpush.msra.mxu0 0.0
      %1636 = vmatpush.msra.mxu0 0.0
      %1637 = vmatpush.msra.mxu0 0.0
      %1638 = vmatpush.msra.mxu0 0.0
      %1639 = vmatpush.msra.mxu0 %v1621
      %1640 = vmatmul.f32.gmra.mxu0 %v1408
      %v1641 = vpop.f32.mrf.mxu0
      %v1642 = vadd.f32 0.0, %v1641
      %1643 = vmatmul.f32.gmra.mxu0 %v1410
      %v1644 = vpop.f32.mrf.mxu0
      %v1645 = vadd.f32 0.0, %v1644
      %1646 = vmatmul.f32.gmra.mxu0 %v1412
      %v1647 = vpop.f32.mrf.mxu0
      %v1648 = vadd.f32 0.0, %v1647
      %1649 = vmatmul.f32.gmra.mxu0 %v1414
      %v1650 = vpop.f32.mrf.mxu0
      %v1651 = vadd.f32 0.0, %v1650
      %1652 = vmatmul.f32.gmra.mxu0 %v1416
      %v1653 = vpop.f32.mrf.mxu0
      %v1654 = vadd.f32 0.0, %v1653
      %1655 = vmatmul.f32.gmra.mxu0 %v1418
      %v1656 = vpop.f32.mrf.mxu0
      %v1657 = vadd.f32 0.0, %v1656
      %1658 = vmatmul.f32.gmra.mxu0 %v1420
      %v1659 = vpop.f32.mrf.mxu0
      %v1660 = vadd.f32 0.0, %v1659
      %1661 = vmatmul.f32.gmra.mxu0 %v1622
      %v1662 = vpop.f32.mrf.mxu0
      %v1663 = vadd.f32 0.0, %v1662
      %1664 = vdwg.mxu0
      %v1665 = vadd.f32 %v1608, %v1642
      %v1666 = vadd.f32 %v1609, %v1645
      %v1667 = vadd.f32 %v1610, %v1648
      %v1668 = vadd.f32 %v1611, %v1651
      %v1669 = vadd.f32 %v1612, %v1654
      %v1670 = vadd.f32 %v1613, %v1657
      %v1671 = vadd.f32 %v1614, %v1660
      %v1672 = vadd.f32 %v1615, %v1663
      %v1673 = vrot.slane %v1293, 2
      %v1674 = vrot.slane %v1294, 2
      %v1675 = vsel %vm755, %v1673, %v1674
      %s1676 = scalar_lea.vmem %s5, 112
      %v1677 = vld [vmem:[%s1676] sm:$0xff]
      %v1678 = vsel %vm640, %v1675, 0
      %1680 = vmatpush.msra.mxu0 0.0
      %1681 = vmatpush.msra.mxu0 0.0
      %1682 = vmatpush.msra.mxu0 0.0
      %1683 = vmatpush.msra.mxu0 0.0
      %1684 = vmatpush.msra.mxu0 0.0
      %1685 = vmatpush.msra.mxu0 0.0
      %1686 = vmatpush.msra.mxu0 0.0
      %1687 = vmatpush.msra.mxu0 0.0
      %1688 = vmatpush.msra.mxu0 0.0
      %1689 = vmatpush.msra.mxu0 0.0
      %1690 = vmatpush.msra.mxu0 0.0
      %1691 = vmatpush.msra.mxu0 0.0
      %1692 = vmatpush.msra.mxu0 0.0
      %1693 = vmatpush.msra.mxu0 0.0
      %1694 = vmatpush.msra.mxu0 0.0
      %1695 = vmatpush.msra.mxu0 %v1677
      %1696 = vmatmul.f32.gmra.mxu0 %v1499
      %v1697 = vpop.f32.mrf.mxu0
      %v1698 = vadd.f32 0.0, %v1697
      %1699 = vmatmul.f32.gmra.mxu0 %v1501
      %v1700 = vpop.f32.mrf.mxu0
      %v1701 = vadd.f32 0.0, %v1700
      %1702 = vmatmul.f32.gmra.mxu0 %v1503
      %v1703 = vpop.f32.mrf.mxu0
      %v1704 = vadd.f32 0.0, %v1703
      %1705 = vmatmul.f32.gmra.mxu0 %v1505
      %v1706 = vpop.f32.mrf.mxu0
      %v1707 = vadd.f32 0.0, %v1706
      %1708 = vmatmul.f32.gmra.mxu0 %v1507
      %v1709 = vpop.f32.mrf.mxu0
      %v1710 = vadd.f32 0.0, %v1709
      %1711 = vmatmul.f32.gmra.mxu0 %v1509
      %v1712 = vpop.f32.mrf.mxu0
      %v1713 = vadd.f32 0.0, %v1712
      %1714 = vmatmul.f32.gmra.mxu0 %v1511
      %v1715 = vpop.f32.mrf.mxu0
      %v1716 = vadd.f32 0.0, %v1715
      %1717 = vmatmul.f32.gmra.mxu0 %v1678
      %v1718 = vpop.f32.mrf.mxu0
      %v1719 = vadd.f32 0.0, %v1718
      %1720 = vdwg.mxu0
      %v1721 = vadd.f32 %v1665, %v1698
      %v1722 = vadd.f32 %v1666, %v1701
      %v1723 = vadd.f32 %v1667, %v1704
      %v1724 = vadd.f32 %v1668, %v1707
      %v1725 = vadd.f32 %v1669, %v1710
      %v1726 = vadd.f32 %v1670, %v1713
      %v1727 = vadd.f32 %v1671, %v1716
      %v1728 = vadd.f32 %v1672, %v1719
      %s1729 = scalar_lea.vmem %s5, 120
      %v1730 = vld [vmem:[%s1729] sm:$0xff]
      %v1732 = vsel %vm640, %v1295, 0
      %1734 = vmatpush.msra.mxu0 0.0
      %1735 = vmatpush.msra.mxu0 0.0
      %1736 = vmatpush.msra.mxu0 0.0
      %1737 = vmatpush.msra.mxu0 0.0
      %1738 = vmatpush.msra.mxu0 0.0
      %1739 = vmatpush.msra.mxu0 0.0
      %1740 = vmatpush.msra.mxu0 0.0
      %1741 = vmatpush.msra.mxu0 0.0
      %1742 = vmatpush.msra.mxu0 0.0
      %1743 = vmatpush.msra.mxu0 0.0
      %1744 = vmatpush.msra.mxu0 0.0
      %1745 = vmatpush.msra.mxu0 0.0
      %1746 = vmatpush.msra.mxu0 0.0
      %1747 = vmatpush.msra.mxu0 0.0
      %1748 = vmatpush.msra.mxu0 0.0
      %1749 = vmatpush.msra.mxu0 %v1730
      %1750 = vmatmul.f32.gmra.mxu0 %v1306
      %v1751 = vpop.f32.mrf.mxu0
      %v1752 = vadd.f32 0.0, %v1751
      %1753 = vmatmul.f32.gmra.mxu0 %v1309
      %v1754 = vpop.f32.mrf.mxu0
      %v1755 = vadd.f32 0.0, %v1754
      %1756 = vmatmul.f32.gmra.mxu0 %v1312
      %v1757 = vpop.f32.mrf.mxu0
      %v1758 = vadd.f32 0.0, %v1757
      %1759 = vmatmul.f32.gmra.mxu0 %v1315
      %v1760 = vpop.f32.mrf.mxu0
      %v1761 = vadd.f32 0.0, %v1760
      %1762 = vmatmul.f32.gmra.mxu0 %v1318
      %v1763 = vpop.f32.mrf.mxu0
      %v1764 = vadd.f32 0.0, %v1763
      %1765 = vmatmul.f32.gmra.mxu0 %v1321
      %v1766 = vpop.f32.mrf.mxu0
      %v1767 = vadd.f32 0.0, %v1766
      %1768 = vmatmul.f32.gmra.mxu0 %v1565
      %v1769 = vpop.f32.mrf.mxu0
      %v1770 = vadd.f32 0.0, %v1769
      %1771 = vmatmul.f32.gmra.mxu0 %v1732
      %v1772 = vpop.f32.mrf.mxu0
      %v1773 = vadd.f32 0.0, %v1772
      %1774 = vdwg.mxu0
      %v1775 = vadd.f32 %v1721, %v1752
      %v1776 = vadd.f32 %v1722, %v1755
      %v1777 = vadd.f32 %v1723, %v1758
      %v1778 = vadd.f32 %v1724, %v1761
      %v1779 = vadd.f32 %v1725, %v1764
      %v1780 = vadd.f32 %v1726, %v1767
      %v1781 = vadd.f32 %v1727, %v1770
      %v1782 = vadd.f32 %v1728, %v1773
      %v1784 = vrot.slane %v1295, 1
      %v1785 = vrot.slane %v1296, 1
      %v1786 = vsel %vm613, %v1784, %v1785
      %s1787 = scalar_lea.vmem %s5, 128
      %v1788 = vld [vmem:[%s1787] sm:$0xff]
      %v1789 = vsel %vm640, %v1786, 0
      %1791 = vmatpush.msra.mxu0 0.0
      %1792 = vmatpush.msra.mxu0 0.0
      %1793 = vmatpush.msra.mxu0 0.0
      %1794 = vmatpush.msra.mxu0 0.0
      %1795 = vmatpush.msra.mxu0 0.0
      %1796 = vmatpush.msra.mxu0 0.0
      %1797 = vmatpush.msra.mxu0 0.0
      %1798 = vmatpush.msra.mxu0 0.0
      %1799 = vmatpush.msra.mxu0 0.0
      %1800 = vmatpush.msra.mxu0 0.0
      %1801 = vmatpush.msra.mxu0 0.0
      %1802 = vmatpush.msra.mxu0 0.0
      %1803 = vmatpush.msra.mxu0 0.0
      %1804 = vmatpush.msra.mxu0 0.0
      %1805 = vmatpush.msra.mxu0 0.0
      %1806 = vmatpush.msra.mxu0 %v1788
      %1807 = vmatmul.f32.gmra.mxu0 %v1410
      %v1808 = vpop.f32.mrf.mxu0
      %v1809 = vadd.f32 0.0, %v1808
      %1810 = vmatmul.f32.gmra.mxu0 %v1412
      %v1811 = vpop.f32.mrf.mxu0
      %v1812 = vadd.f32 0.0, %v1811
      %1813 = vmatmul.f32.gmra.mxu0 %v1414
      %v1814 = vpop.f32.mrf.mxu0
      %v1815 = vadd.f32 0.0, %v1814
      %1816 = vmatmul.f32.gmra.mxu0 %v1416
      %v1817 = vpop.f32.mrf.mxu0
      %v1818 = vadd.f32 0.0, %v1817
      %1819 = vmatmul.f32.gmra.mxu0 %v1418
      %v1820 = vpop.f32.mrf.mxu0
      %v1821 = vadd.f32 0.0, %v1820
      %1822 = vmatmul.f32.gmra.mxu0 %v1420
      %v1823 = vpop.f32.mrf.mxu0
      %v1824 = vadd.f32 0.0, %v1823
      %1825 = vmatmul.f32.gmra.mxu0 %v1622
      %v1826 = vpop.f32.mrf.mxu0
      %v1827 = vadd.f32 0.0, %v1826
      %1828 = vmatmul.f32.gmra.mxu0 %v1789
      %v1829 = vpop.f32.mrf.mxu0
      %v1830 = vadd.f32 0.0, %v1829
      %1831 = vdwg.mxu0
      %v1832 = vadd.f32 %v1775, %v1809
      %v1833 = vadd.f32 %v1776, %v1812
      %v1834 = vadd.f32 %v1777, %v1815
      %v1835 = vadd.f32 %v1778, %v1818
      %v1836 = vadd.f32 %v1779, %v1821
      %v1837 = vadd.f32 %v1780, %v1824
      %v1838 = vadd.f32 %v1781, %v1827
      %v1839 = vadd.f32 %v1782, %v1830
      %v1840 = vrot.slane %v1295, 2
      %v1841 = vrot.slane %v1296, 2
      %v1842 = vsel %vm755, %v1840, %v1841
      %s1843 = scalar_lea.vmem %s5, 136
      %v1844 = vld [vmem:[%s1843] sm:$0xff]
      %v1845 = vsel %vm640, %v1842, 0
      %1847 = vmatpush.msra.mxu0 0.0
      %1848 = vmatpush.msra.mxu0 0.0
      %1849 = vmatpush.msra.mxu0 0.0
      %1850 = vmatpush.msra.mxu0 0.0
      %1851 = vmatpush.msra.mxu0 0.0
      %1852 = vmatpush.msra.mxu0 0.0
      %1853 = vmatpush.msra.mxu0 0.0
      %1854 = vmatpush.msra.mxu0 0.0
      %1855 = vmatpush.msra.mxu0 0.0
      %1856 = vmatpush.msra.mxu0 0.0
      %1857 = vmatpush.msra.mxu0 0.0
      %1858 = vmatpush.msra.mxu0 0.0
      %1859 = vmatpush.msra.mxu0 0.0
      %1860 = vmatpush.msra.mxu0 0.0
      %1861 = vmatpush.msra.mxu0 0.0
      %1862 = vmatpush.msra.mxu0 %v1844
      %1863 = vmatmul.f32.gmra.mxu0 %v1501
      %v1864 = vpop.f32.mrf.mxu0
      %v1865 = vadd.f32 0.0, %v1864
      %1866 = vmatmul.f32.gmra.mxu0 %v1503
      %v1867 = vpop.f32.mrf.mxu0
      %v1868 = vadd.f32 0.0, %v1867
      %1869 = vmatmul.f32.gmra.mxu0 %v1505
      %v1870 = vpop.f32.mrf.mxu0
      %v1871 = vadd.f32 0.0, %v1870
      %1872 = vmatmul.f32.gmra.mxu0 %v1507
      %v1873 = vpop.f32.mrf.mxu0
      %v1874 = vadd.f32 0.0, %v1873
      %1875 = vmatmul.f32.gmra.mxu0 %v1509
      %v1876 = vpop.f32.mrf.mxu0
      %v1877 = vadd.f32 0.0, %v1876
      %1878 = vmatmul.f32.gmra.mxu0 %v1511
      %v1879 = vpop.f32.mrf.mxu0
      %v1880 = vadd.f32 0.0, %v1879
      %1881 = vmatmul.f32.gmra.mxu0 %v1678
      %v1882 = vpop.f32.mrf.mxu0
      %v1883 = vadd.f32 0.0, %v1882
      %1884 = vmatmul.f32.gmra.mxu0 %v1845
      %v1885 = vpop.f32.mrf.mxu0
      %v1886 = vadd.f32 0.0, %v1885
      %1887 = vdwg.mxu0
      %v1888 = vadd.f32 %v1832, %v1865
      %v1889 = vadd.f32 %v1833, %v1868
      %v1890 = vadd.f32 %v1834, %v1871
      %v1891 = vadd.f32 %v1835, %v1874
      %v1892 = vadd.f32 %v1836, %v1877
      %v1893 = vadd.f32 %v1837, %v1880
      %v1894 = vadd.f32 %v1838, %v1883
      %v1895 = vadd.f32 %v1839, %v1886
      %s1896 = sadd.s32 %s24, 2
      %p1897 = scmp.ge.s32.totalorder %s1896, 1
      %p1898 = scmp.le.s32.totalorder %s1896, 8
      %p1899 = pnand %p1897, %p1898
      %p1900 = pneg %p1899
      %s1901 = scalar_select %p1900, 1, 0
      %v1902 = vstv %s1901
      %vm1903 = vcmp.eq.s32.totalorder %v1902, 1
      %vm1904 = vmand %vm471, %vm1903
      %vm1905 = vmand %vm472, %vm1903
      %vm1906 = vmand %vm473, %vm1903
      %vm1907 = vmand %vm474, %vm1903
      %v1908 = vsel %vm1904, 1.0, 0.0
      %v1909 = vsel %vm1905, 1.0, 0.0
      %v1910 = vsel %vm1906, 1.0, 0.0
      %v1911 = vsel %vm1907, 1.0, 0.0
      %v1912 = vld [vmem:[%s438] sm:$0xff]
      %v1913 = vld [vmem:[%s438 + $0x8] sm:$0x3]
      %v1914 = vld [vmem:[%s438 + $0x10] sm:$0xff]
      %v1915 = vld [vmem:[%s438 + $0x18] sm:$0x3]
      %v1916 = vld [vmem:[%s438 + $0x20] sm:$0xff]
      %v1917 = vld [vmem:[%s438 + $0x28] sm:$0x3]
      %v1918 = vld [vmem:[%s438 + $0x30] sm:$0xff]
      %v1919 = vld [vmem:[%s438 + $0x38] sm:$0x3]
      %v1920 = vld [vmem:[%s438 + $0x40] sm:$0xff]
      %v1921 = vld [vmem:[%s438 + $0x48] sm:$0x3]
      %v1922 = vld [vmem:[%s438 + $0x50] sm:$0xff]
      %v1923 = vld [vmem:[%s438 + $0x58] sm:$0x3]
      %v1924 = vld [vmem:[%s438 + $0x60] sm:$0xff]
      %v1925 = vld [vmem:[%s438 + $0x68] sm:$0x3]
      %v1926 = vld [vmem:[%s438 + $0x70] sm:$0xff]
      %v1927 = vld [vmem:[%s438 + $0x78] sm:$0x3]
      %v1928 = vld [vmem:[%s438 + $0x80] sm:$0xff]
      %v1929 = vld [vmem:[%s438 + $0x88] sm:$0x3]
      %v1930 = vld [vmem:[%s438 + $0x90] sm:$0xff]
      %v1931 = vld [vmem:[%s438 + $0x98] sm:$0x3]
      %v1932 = vmax.f32 %v1912, 0.0
      %v1933 = vmax.f32 %v1913, 0.0
      %v1934 = vmax.f32 %v1914, 0.0
      %v1935 = vmax.f32 %v1915, 0.0
      %v1936 = vmax.f32 %v1916, 0.0
      %v1937 = vmax.f32 %v1917, 0.0
      %v1938 = vmax.f32 %v1918, 0.0
      %v1939 = vmax.f32 %v1919, 0.0
      %v1940 = vmax.f32 %v1920, 0.0
      %v1941 = vmax.f32 %v1921, 0.0
      %v1942 = vmax.f32 %v1922, 0.0
      %v1943 = vmax.f32 %v1923, 0.0
      %v1944 = vmax.f32 %v1924, 0.0
      %v1945 = vmax.f32 %v1925, 0.0
      %v1946 = vmax.f32 %v1926, 0.0
      %v1947 = vmax.f32 %v1927, 0.0
      %v1948 = vmax.f32 %v1928, 0.0
      %v1949 = vmax.f32 %v1929, 0.0
      %v1950 = vmax.f32 %v1930, 0.0
      %v1951 = vmax.f32 %v1931, 0.0
      %v1952 = vmul.f32 %v1932, %v531
      %v1953 = vmul.f32 %v1933, %v531
      %v1954 = vmul.f32 %v1934, %v531
      %v1955 = vmul.f32 %v1935, %v531
      %v1956 = vmul.f32 %v1936, %v531
      %v1957 = vmul.f32 %v1937, %v531
      %v1958 = vmul.f32 %v1938, %v531
      %v1959 = vmul.f32 %v1939, %v531
      %v1960 = vmul.f32 %v1940, %v531
      %v1961 = vmul.f32 %v1941, %v531
      %v1962 = vmul.f32 %v1942, %v531
      %v1963 = vmul.f32 %v1943, %v531
      %v1964 = vmul.f32 %v1944, %v531
      %v1965 = vmul.f32 %v1945, %v531
      %v1966 = vmul.f32 %v1946, %v531
      %v1967 = vmul.f32 %v1947, %v531
      %v1968 = vmul.f32 %v1948, %v531
      %v1969 = vmul.f32 %v1949, %v531
      %v1970 = vmul.f32 %v1950, %v531
      %v1971 = vmul.f32 %v1951, %v531
      %v1972 = vadd.f32 %v1952, %v554
      %v1973 = vadd.f32 %v1953, %v554
      %v1974 = vadd.f32 %v1954, %v554
      %v1975 = vadd.f32 %v1955, %v554
      %v1976 = vadd.f32 %v1956, %v554
      %v1977 = vadd.f32 %v1957, %v554
      %v1978 = vadd.f32 %v1958, %v554
      %v1979 = vadd.f32 %v1959, %v554
      %v1980 = vadd.f32 %v1960, %v554
      %v1981 = vadd.f32 %v1961, %v554
      %v1982 = vadd.f32 %v1962, %v554
      %v1983 = vadd.f32 %v1963, %v554
      %v1984 = vadd.f32 %v1964, %v554
      %v1985 = vadd.f32 %v1965, %v554
      %v1986 = vadd.f32 %v1966, %v554
      %v1987 = vadd.f32 %v1967, %v554
      %v1988 = vadd.f32 %v1968, %v554
      %v1989 = vadd.f32 %v1969, %v554
      %v1990 = vadd.f32 %v1970, %v554
      %v1991 = vadd.f32 %v1971, %v554
      %v1992 = vmul.f32 %v1972, %v1908
      %v1993 = vmul.f32 %v1973, %v1909
      %v1994 = vmul.f32 %v1974, %v1910
      %v1995 = vmul.f32 %v1975, %v1911
      %v1996 = vmul.f32 %v1976, %v1910
      %v1997 = vmul.f32 %v1977, %v1911
      %v1998 = vmul.f32 %v1978, %v1910
      %v1999 = vmul.f32 %v1979, %v1911
      %v2000 = vmul.f32 %v1980, %v1910
      %v2001 = vmul.f32 %v1981, %v1911
      %v2002 = vmul.f32 %v1982, %v1910
      %v2003 = vmul.f32 %v1983, %v1911
      %v2004 = vmul.f32 %v1984, %v1910
      %v2005 = vmul.f32 %v1985, %v1911
      %v2006 = vmul.f32 %v1986, %v1910
      %v2007 = vmul.f32 %v1987, %v1911
      %v2008 = vmul.f32 %v1988, %v1910
      %v2009 = vmul.f32 %v1989, %v1911
      %v2010 = vmul.f32 %v1990, %v1908
      %v2011 = vmul.f32 %v1991, %v1909
      %s2012 = scalar_lea.vmem %s5, 144
      %v2013 = vld [vmem:[%s2012] sm:$0xff]
      %v2015 = vsel %vm640, %v1992, 0
      %v2018 = vsel %vm640, %v1994, 0
      %v2021 = vsel %vm640, %v1996, 0
      %v2024 = vsel %vm640, %v1998, 0
      %v2027 = vsel %vm640, %v2000, 0
      %v2030 = vsel %vm640, %v2002, 0
      %v2033 = vsel %vm640, %v2004, 0
      %v2036 = vsel %vm640, %v2006, 0
      %2038 = vmatpush.msra.mxu0 0.0
      %2039 = vmatpush.msra.mxu0 0.0
      %2040 = vmatpush.msra.mxu0 0.0
      %2041 = vmatpush.msra.mxu0 0.0
      %2042 = vmatpush.msra.mxu0 0.0
      %2043 = vmatpush.msra.mxu0 0.0
      %2044 = vmatpush.msra.mxu0 0.0
      %2045 = vmatpush.msra.mxu0 0.0
      %2046 = vmatpush.msra.mxu0 0.0
      %2047 = vmatpush.msra.mxu0 0.0
      %2048 = vmatpush.msra.mxu0 0.0
      %2049 = vmatpush.msra.mxu0 0.0
      %2050 = vmatpush.msra.mxu0 0.0
      %2051 = vmatpush.msra.mxu0 0.0
      %2052 = vmatpush.msra.mxu0 0.0
      %2053 = vmatpush.msra.mxu0 %v2013
      %2054 = vmatmul.f32.gmra.mxu0 %v2015
      %v2055 = vpop.f32.mrf.mxu0
      %v2056 = vadd.f32 0.0, %v2055
      %2057 = vmatmul.f32.gmra.mxu0 %v2018
      %v2058 = vpop.f32.mrf.mxu0
      %v2059 = vadd.f32 0.0, %v2058
      %2060 = vmatmul.f32.gmra.mxu0 %v2021
      %v2061 = vpop.f32.mrf.mxu0
      %v2062 = vadd.f32 0.0, %v2061
      %2063 = vmatmul.f32.gmra.mxu0 %v2024
      %v2064 = vpop.f32.mrf.mxu0
      %v2065 = vadd.f32 0.0, %v2064
      %2066 = vmatmul.f32.gmra.mxu0 %v2027
      %v2067 = vpop.f32.mrf.mxu0
      %v2068 = vadd.f32 0.0, %v2067
      %2069 = vmatmul.f32.gmra.mxu0 %v2030
      %v2070 = vpop.f32.mrf.mxu0
      %v2071 = vadd.f32 0.0, %v2070
      %2072 = vmatmul.f32.gmra.mxu0 %v2033
      %v2073 = vpop.f32.mrf.mxu0
      %v2074 = vadd.f32 0.0, %v2073
      %2075 = vmatmul.f32.gmra.mxu0 %v2036
      %v2076 = vpop.f32.mrf.mxu0
      %v2077 = vadd.f32 0.0, %v2076
      %2078 = vdwg.mxu0
      %v2079 = vadd.f32 %v1888, %v2056
      %v2080 = vadd.f32 %v1889, %v2059
      %v2081 = vadd.f32 %v1890, %v2062
      %v2082 = vadd.f32 %v1891, %v2065
      %v2083 = vadd.f32 %v1892, %v2068
      %v2084 = vadd.f32 %v1893, %v2071
      %v2085 = vadd.f32 %v1894, %v2074
      %v2086 = vadd.f32 %v1895, %v2077
      %v2095 = vrot.slane %v1992, 1
      %v2096 = vrot.slane %v1993, 1
      %v2097 = vsel %vm613, %v2095, %v2096
      %v2098 = vrot.slane %v1994, 1
      %v2099 = vrot.slane %v1995, 1
      %v2100 = vsel %vm613, %v2098, %v2099
      %v2101 = vrot.slane %v1996, 1
      %v2102 = vrot.slane %v1997, 1
      %v2103 = vsel %vm613, %v2101, %v2102
      %v2104 = vrot.slane %v1998, 1
      %v2105 = vrot.slane %v1999, 1
      %v2106 = vsel %vm613, %v2104, %v2105
      %v2107 = vrot.slane %v2000, 1
      %v2108 = vrot.slane %v2001, 1
      %v2109 = vsel %vm613, %v2107, %v2108
      %v2110 = vrot.slane %v2002, 1
      %v2111 = vrot.slane %v2003, 1
      %v2112 = vsel %vm613, %v2110, %v2111
      %v2113 = vrot.slane %v2004, 1
      %v2114 = vrot.slane %v2005, 1
      %v2115 = vsel %vm613, %v2113, %v2114
      %v2116 = vrot.slane %v2006, 1
      %v2117 = vrot.slane %v2007, 1
      %v2118 = vsel %vm613, %v2116, %v2117
      %s2119 = scalar_lea.vmem %s5, 152
      %v2120 = vld [vmem:[%s2119] sm:$0xff]
      %v2121 = vsel %vm640, %v2097, 0
      %v2123 = vsel %vm640, %v2100, 0
      %v2125 = vsel %vm640, %v2103, 0
      %v2127 = vsel %vm640, %v2106, 0
      %v2129 = vsel %vm640, %v2109, 0
      %v2131 = vsel %vm640, %v2112, 0
      %v2133 = vsel %vm640, %v2115, 0
      %v2135 = vsel %vm640, %v2118, 0
      %2137 = vmatpush.msra.mxu0 0.0
      %2138 = vmatpush.msra.mxu0 0.0
      %2139 = vmatpush.msra.mxu0 0.0
      %2140 = vmatpush.msra.mxu0 0.0
      %2141 = vmatpush.msra.mxu0 0.0
      %2142 = vmatpush.msra.mxu0 0.0
      %2143 = vmatpush.msra.mxu0 0.0
      %2144 = vmatpush.msra.mxu0 0.0
      %2145 = vmatpush.msra.mxu0 0.0
      %2146 = vmatpush.msra.mxu0 0.0
      %2147 = vmatpush.msra.mxu0 0.0
      %2148 = vmatpush.msra.mxu0 0.0
      %2149 = vmatpush.msra.mxu0 0.0
      %2150 = vmatpush.msra.mxu0 0.0
      %2151 = vmatpush.msra.mxu0 0.0
      %2152 = vmatpush.msra.mxu0 %v2120
      %2153 = vmatmul.f32.gmra.mxu0 %v2121
      %v2154 = vpop.f32.mrf.mxu0
      %v2155 = vadd.f32 0.0, %v2154
      %2156 = vmatmul.f32.gmra.mxu0 %v2123
      %v2157 = vpop.f32.mrf.mxu0
      %v2158 = vadd.f32 0.0, %v2157
      %2159 = vmatmul.f32.gmra.mxu0 %v2125
      %v2160 = vpop.f32.mrf.mxu0
      %v2161 = vadd.f32 0.0, %v2160
      %2162 = vmatmul.f32.gmra.mxu0 %v2127
      %v2163 = vpop.f32.mrf.mxu0
      %v2164 = vadd.f32 0.0, %v2163
      %2165 = vmatmul.f32.gmra.mxu0 %v2129
      %v2166 = vpop.f32.mrf.mxu0
      %v2167 = vadd.f32 0.0, %v2166
      %2168 = vmatmul.f32.gmra.mxu0 %v2131
      %v2169 = vpop.f32.mrf.mxu0
      %v2170 = vadd.f32 0.0, %v2169
      %2171 = vmatmul.f32.gmra.mxu0 %v2133
      %v2172 = vpop.f32.mrf.mxu0
      %v2173 = vadd.f32 0.0, %v2172
      %2174 = vmatmul.f32.gmra.mxu0 %v2135
      %v2175 = vpop.f32.mrf.mxu0
      %v2176 = vadd.f32 0.0, %v2175
      %2177 = vdwg.mxu0
      %v2178 = vadd.f32 %v2079, %v2155
      %v2179 = vadd.f32 %v2080, %v2158
      %v2180 = vadd.f32 %v2081, %v2161
      %v2181 = vadd.f32 %v2082, %v2164
      %v2182 = vadd.f32 %v2083, %v2167
      %v2183 = vadd.f32 %v2084, %v2170
      %v2184 = vadd.f32 %v2085, %v2173
      %v2185 = vadd.f32 %v2086, %v2176
      %v2186 = vrot.slane %v1992, 2
      %v2187 = vrot.slane %v1993, 2
      %v2188 = vsel %vm755, %v2186, %v2187
      %v2189 = vrot.slane %v1994, 2
      %v2190 = vrot.slane %v1995, 2
      %v2191 = vsel %vm755, %v2189, %v2190
      %v2192 = vrot.slane %v1996, 2
      %v2193 = vrot.slane %v1997, 2
      %v2194 = vsel %vm755, %v2192, %v2193
      %v2195 = vrot.slane %v1998, 2
      %v2196 = vrot.slane %v1999, 2
      %v2197 = vsel %vm755, %v2195, %v2196
      %v2198 = vrot.slane %v2000, 2
      %v2199 = vrot.slane %v2001, 2
      %v2200 = vsel %vm755, %v2198, %v2199
      %v2201 = vrot.slane %v2002, 2
      %v2202 = vrot.slane %v2003, 2
      %v2203 = vsel %vm755, %v2201, %v2202
      %v2204 = vrot.slane %v2004, 2
      %v2205 = vrot.slane %v2005, 2
      %v2206 = vsel %vm755, %v2204, %v2205
      %v2207 = vrot.slane %v2006, 2
      %v2208 = vrot.slane %v2007, 2
      %v2209 = vsel %vm755, %v2207, %v2208
      %s2210 = scalar_lea.vmem %s5, 160
      %v2211 = vld [vmem:[%s2210] sm:$0xff]
      %v2212 = vsel %vm640, %v2188, 0
      %v2214 = vsel %vm640, %v2191, 0
      %v2216 = vsel %vm640, %v2194, 0
      %v2218 = vsel %vm640, %v2197, 0
      %v2220 = vsel %vm640, %v2200, 0
      %v2222 = vsel %vm640, %v2203, 0
      %v2224 = vsel %vm640, %v2206, 0
      %v2226 = vsel %vm640, %v2209, 0
      %2228 = vmatpush.msra.mxu0 0.0
      %2229 = vmatpush.msra.mxu0 0.0
      %2230 = vmatpush.msra.mxu0 0.0
      %2231 = vmatpush.msra.mxu0 0.0
      %2232 = vmatpush.msra.mxu0 0.0
      %2233 = vmatpush.msra.mxu0 0.0
      %2234 = vmatpush.msra.mxu0 0.0
      %2235 = vmatpush.msra.mxu0 0.0
      %2236 = vmatpush.msra.mxu0 0.0
      %2237 = vmatpush.msra.mxu0 0.0
      %2238 = vmatpush.msra.mxu0 0.0
      %2239 = vmatpush.msra.mxu0 0.0
      %2240 = vmatpush.msra.mxu0 0.0
      %2241 = vmatpush.msra.mxu0 0.0
      %2242 = vmatpush.msra.mxu0 0.0
      %2243 = vmatpush.msra.mxu0 %v2211
      %2244 = vmatmul.f32.gmra.mxu0 %v2212
      %v2245 = vpop.f32.mrf.mxu0
      %v2246 = vadd.f32 0.0, %v2245
      %2247 = vmatmul.f32.gmra.mxu0 %v2214
      %v2248 = vpop.f32.mrf.mxu0
      %v2249 = vadd.f32 0.0, %v2248
      %2250 = vmatmul.f32.gmra.mxu0 %v2216
      %v2251 = vpop.f32.mrf.mxu0
      %v2252 = vadd.f32 0.0, %v2251
      %2253 = vmatmul.f32.gmra.mxu0 %v2218
      %v2254 = vpop.f32.mrf.mxu0
      %v2255 = vadd.f32 0.0, %v2254
      %2256 = vmatmul.f32.gmra.mxu0 %v2220
      %v2257 = vpop.f32.mrf.mxu0
      %v2258 = vadd.f32 0.0, %v2257
      %2259 = vmatmul.f32.gmra.mxu0 %v2222
      %v2260 = vpop.f32.mrf.mxu0
      %v2261 = vadd.f32 0.0, %v2260
      %2262 = vmatmul.f32.gmra.mxu0 %v2224
      %v2263 = vpop.f32.mrf.mxu0
      %v2264 = vadd.f32 0.0, %v2263
      %2265 = vmatmul.f32.gmra.mxu0 %v2226
      %v2266 = vpop.f32.mrf.mxu0
      %v2267 = vadd.f32 0.0, %v2266
      %2268 = vdwg.mxu0
      %v2269 = vadd.f32 %v2178, %v2246
      %v2270 = vadd.f32 %v2179, %v2249
      %v2271 = vadd.f32 %v2180, %v2252
      %v2272 = vadd.f32 %v2181, %v2255
      %v2273 = vadd.f32 %v2182, %v2258
      %v2274 = vadd.f32 %v2183, %v2261
      %v2275 = vadd.f32 %v2184, %v2264
      %v2276 = vadd.f32 %v2185, %v2267
      %s2277 = scalar_lea.vmem %s5, 168
      %v2278 = vld [vmem:[%s2277] sm:$0xff]
      %v2280 = vsel %vm640, %v2008, 0
      %2282 = vmatpush.msra.mxu0 0.0
      %2283 = vmatpush.msra.mxu0 0.0
      %2284 = vmatpush.msra.mxu0 0.0
      %2285 = vmatpush.msra.mxu0 0.0
      %2286 = vmatpush.msra.mxu0 0.0
      %2287 = vmatpush.msra.mxu0 0.0
      %2288 = vmatpush.msra.mxu0 0.0
      %2289 = vmatpush.msra.mxu0 0.0
      %2290 = vmatpush.msra.mxu0 0.0
      %2291 = vmatpush.msra.mxu0 0.0
      %2292 = vmatpush.msra.mxu0 0.0
      %2293 = vmatpush.msra.mxu0 0.0
      %2294 = vmatpush.msra.mxu0 0.0
      %2295 = vmatpush.msra.mxu0 0.0
      %2296 = vmatpush.msra.mxu0 0.0
      %2297 = vmatpush.msra.mxu0 %v2278
      %2298 = vmatmul.f32.gmra.mxu0 %v2018
      %v2299 = vpop.f32.mrf.mxu0
      %v2300 = vadd.f32 0.0, %v2299
      %2301 = vmatmul.f32.gmra.mxu0 %v2021
      %v2302 = vpop.f32.mrf.mxu0
      %v2303 = vadd.f32 0.0, %v2302
      %2304 = vmatmul.f32.gmra.mxu0 %v2024
      %v2305 = vpop.f32.mrf.mxu0
      %v2306 = vadd.f32 0.0, %v2305
      %2307 = vmatmul.f32.gmra.mxu0 %v2027
      %v2308 = vpop.f32.mrf.mxu0
      %v2309 = vadd.f32 0.0, %v2308
      %2310 = vmatmul.f32.gmra.mxu0 %v2030
      %v2311 = vpop.f32.mrf.mxu0
      %v2312 = vadd.f32 0.0, %v2311
      %2313 = vmatmul.f32.gmra.mxu0 %v2033
      %v2314 = vpop.f32.mrf.mxu0
      %v2315 = vadd.f32 0.0, %v2314
      %2316 = vmatmul.f32.gmra.mxu0 %v2036
      %v2317 = vpop.f32.mrf.mxu0
      %v2318 = vadd.f32 0.0, %v2317
      %2319 = vmatmul.f32.gmra.mxu0 %v2280
      %v2320 = vpop.f32.mrf.mxu0
      %v2321 = vadd.f32 0.0, %v2320
      %2322 = vdwg.mxu0
      %v2323 = vadd.f32 %v2269, %v2300
      %v2324 = vadd.f32 %v2270, %v2303
      %v2325 = vadd.f32 %v2271, %v2306
      %v2326 = vadd.f32 %v2272, %v2309
      %v2327 = vadd.f32 %v2273, %v2312
      %v2328 = vadd.f32 %v2274, %v2315
      %v2329 = vadd.f32 %v2275, %v2318
      %v2330 = vadd.f32 %v2276, %v2321
      %v2332 = vrot.slane %v2008, 1
      %v2333 = vrot.slane %v2009, 1
      %v2334 = vsel %vm613, %v2332, %v2333
      %s2335 = scalar_lea.vmem %s5, 176
      %v2336 = vld [vmem:[%s2335] sm:$0xff]
      %v2337 = vsel %vm640, %v2334, 0
      %2339 = vmatpush.msra.mxu0 0.0
      %2340 = vmatpush.msra.mxu0 0.0
      %2341 = vmatpush.msra.mxu0 0.0
      %2342 = vmatpush.msra.mxu0 0.0
      %2343 = vmatpush.msra.mxu0 0.0
      %2344 = vmatpush.msra.mxu0 0.0
      %2345 = vmatpush.msra.mxu0 0.0
      %2346 = vmatpush.msra.mxu0 0.0
      %2347 = vmatpush.msra.mxu0 0.0
      %2348 = vmatpush.msra.mxu0 0.0
      %2349 = vmatpush.msra.mxu0 0.0
      %2350 = vmatpush.msra.mxu0 0.0
      %2351 = vmatpush.msra.mxu0 0.0
      %2352 = vmatpush.msra.mxu0 0.0
      %2353 = vmatpush.msra.mxu0 0.0
      %2354 = vmatpush.msra.mxu0 %v2336
      %2355 = vmatmul.f32.gmra.mxu0 %v2123
      %v2356 = vpop.f32.mrf.mxu0
      %v2357 = vadd.f32 0.0, %v2356
      %2358 = vmatmul.f32.gmra.mxu0 %v2125
      %v2359 = vpop.f32.mrf.mxu0
      %v2360 = vadd.f32 0.0, %v2359
      %2361 = vmatmul.f32.gmra.mxu0 %v2127
      %v2362 = vpop.f32.mrf.mxu0
      %v2363 = vadd.f32 0.0, %v2362
      %2364 = vmatmul.f32.gmra.mxu0 %v2129
      %v2365 = vpop.f32.mrf.mxu0
      %v2366 = vadd.f32 0.0, %v2365
      %2367 = vmatmul.f32.gmra.mxu0 %v2131
      %v2368 = vpop.f32.mrf.mxu0
      %v2369 = vadd.f32 0.0, %v2368
      %2370 = vmatmul.f32.gmra.mxu0 %v2133
      %v2371 = vpop.f32.mrf.mxu0
      %v2372 = vadd.f32 0.0, %v2371
      %2373 = vmatmul.f32.gmra.mxu0 %v2135
      %v2374 = vpop.f32.mrf.mxu0
      %v2375 = vadd.f32 0.0, %v2374
      %2376 = vmatmul.f32.gmra.mxu0 %v2337
      %v2377 = vpop.f32.mrf.mxu0
      %v2378 = vadd.f32 0.0, %v2377
      %2379 = vdwg.mxu0
      %v2380 = vadd.f32 %v2323, %v2357
      %v2381 = vadd.f32 %v2324, %v2360
      %v2382 = vadd.f32 %v2325, %v2363
      %v2383 = vadd.f32 %v2326, %v2366
      %v2384 = vadd.f32 %v2327, %v2369
      %v2385 = vadd.f32 %v2328, %v2372
      %v2386 = vadd.f32 %v2329, %v2375
      %v2387 = vadd.f32 %v2330, %v2378
      %v2388 = vrot.slane %v2008, 2
      %v2389 = vrot.slane %v2009, 2
      %v2390 = vsel %vm755, %v2388, %v2389
      %s2391 = scalar_lea.vmem %s5, 184
      %v2392 = vld [vmem:[%s2391] sm:$0xff]
      %v2393 = vsel %vm640, %v2390, 0
      %2395 = vmatpush.msra.mxu0 0.0
      %2396 = vmatpush.msra.mxu0 0.0
      %2397 = vmatpush.msra.mxu0 0.0
      %2398 = vmatpush.msra.mxu0 0.0
      %2399 = vmatpush.msra.mxu0 0.0
      %2400 = vmatpush.msra.mxu0 0.0
      %2401 = vmatpush.msra.mxu0 0.0
      %2402 = vmatpush.msra.mxu0 0.0
      %2403 = vmatpush.msra.mxu0 0.0
      %2404 = vmatpush.msra.mxu0 0.0
      %2405 = vmatpush.msra.mxu0 0.0
      %2406 = vmatpush.msra.mxu0 0.0
      %2407 = vmatpush.msra.mxu0 0.0
      %2408 = vmatpush.msra.mxu0 0.0
      %2409 = vmatpush.msra.mxu0 0.0
      %2410 = vmatpush.msra.mxu0 %v2392
      %2411 = vmatmul.f32.gmra.mxu0 %v2214
      %v2412 = vpop.f32.mrf.mxu0
      %v2413 = vadd.f32 0.0, %v2412
      %2414 = vmatmul.f32.gmra.mxu0 %v2216
      %v2415 = vpop.f32.mrf.mxu0
      %v2416 = vadd.f32 0.0, %v2415
      %2417 = vmatmul.f32.gmra.mxu0 %v2218
      %v2418 = vpop.f32.mrf.mxu0
      %v2419 = vadd.f32 0.0, %v2418
      %2420 = vmatmul.f32.gmra.mxu0 %v2220
      %v2421 = vpop.f32.mrf.mxu0
      %v2422 = vadd.f32 0.0, %v2421
      %2423 = vmatmul.f32.gmra.mxu0 %v2222
      %v2424 = vpop.f32.mrf.mxu0
      %v2425 = vadd.f32 0.0, %v2424
      %2426 = vmatmul.f32.gmra.mxu0 %v2224
      %v2427 = vpop.f32.mrf.mxu0
      %v2428 = vadd.f32 0.0, %v2427
      %2429 = vmatmul.f32.gmra.mxu0 %v2226
      %v2430 = vpop.f32.mrf.mxu0
      %v2431 = vadd.f32 0.0, %v2430
      %2432 = vmatmul.f32.gmra.mxu0 %v2393
      %v2433 = vpop.f32.mrf.mxu0
      %v2434 = vadd.f32 0.0, %v2433
      %2435 = vdwg.mxu0
      %v2436 = vadd.f32 %v2380, %v2413
      %v2437 = vadd.f32 %v2381, %v2416
      %v2438 = vadd.f32 %v2382, %v2419
      %v2439 = vadd.f32 %v2383, %v2422
      %v2440 = vadd.f32 %v2384, %v2425
      %v2441 = vadd.f32 %v2385, %v2428
      %v2442 = vadd.f32 %v2386, %v2431
      %v2443 = vadd.f32 %v2387, %v2434
      %s2444 = scalar_lea.vmem %s5, 192
      %v2445 = vld [vmem:[%s2444] sm:$0xff]
      %v2447 = vsel %vm640, %v2010, 0
      %2449 = vmatpush.msra.mxu0 0.0
      %2450 = vmatpush.msra.mxu0 0.0
      %2451 = vmatpush.msra.mxu0 0.0
      %2452 = vmatpush.msra.mxu0 0.0
      %2453 = vmatpush.msra.mxu0 0.0
      %2454 = vmatpush.msra.mxu0 0.0
      %2455 = vmatpush.msra.mxu0 0.0
      %2456 = vmatpush.msra.mxu0 0.0
      %2457 = vmatpush.msra.mxu0 0.0
      %2458 = vmatpush.msra.mxu0 0.0
      %2459 = vmatpush.msra.mxu0 0.0
      %2460 = vmatpush.msra.mxu0 0.0
      %2461 = vmatpush.msra.mxu0 0.0
      %2462 = vmatpush.msra.mxu0 0.0
      %2463 = vmatpush.msra.mxu0 0.0
      %2464 = vmatpush.msra.mxu0 %v2445
      %2465 = vmatmul.f32.gmra.mxu0 %v2021
      %v2466 = vpop.f32.mrf.mxu0
      %v2467 = vadd.f32 0.0, %v2466
      %2468 = vmatmul.f32.gmra.mxu0 %v2024
      %v2469 = vpop.f32.mrf.mxu0
      %v2470 = vadd.f32 0.0, %v2469
      %2471 = vmatmul.f32.gmra.mxu0 %v2027
      %v2472 = vpop.f32.mrf.mxu0
      %v2473 = vadd.f32 0.0, %v2472
      %2474 = vmatmul.f32.gmra.mxu0 %v2030
      %v2475 = vpop.f32.mrf.mxu0
      %v2476 = vadd.f32 0.0, %v2475
      %2477 = vmatmul.f32.gmra.mxu0 %v2033
      %v2478 = vpop.f32.mrf.mxu0
      %v2479 = vadd.f32 0.0, %v2478
      %2480 = vmatmul.f32.gmra.mxu0 %v2036
      %v2481 = vpop.f32.mrf.mxu0
      %v2482 = vadd.f32 0.0, %v2481
      %2483 = vmatmul.f32.gmra.mxu0 %v2280
      %v2484 = vpop.f32.mrf.mxu0
      %v2485 = vadd.f32 0.0, %v2484
      %2486 = vmatmul.f32.gmra.mxu0 %v2447
      %v2487 = vpop.f32.mrf.mxu0
      %v2488 = vadd.f32 0.0, %v2487
      %2489 = vdwg.mxu0
      %v2490 = vadd.f32 %v2436, %v2467
      %v2491 = vadd.f32 %v2437, %v2470
      %v2492 = vadd.f32 %v2438, %v2473
      %v2493 = vadd.f32 %v2439, %v2476
      %v2494 = vadd.f32 %v2440, %v2479
      %v2495 = vadd.f32 %v2441, %v2482
      %v2496 = vadd.f32 %v2442, %v2485
      %v2497 = vadd.f32 %v2443, %v2488
      %v2499 = vrot.slane %v2010, 1
      %v2500 = vrot.slane %v2011, 1
      %v2501 = vsel %vm613, %v2499, %v2500
      %s2502 = scalar_lea.vmem %s5, 200
      %v2503 = vld [vmem:[%s2502] sm:$0xff]
      %v2504 = vsel %vm640, %v2501, 0
      %2506 = vmatpush.msra.mxu0 0.0
      %2507 = vmatpush.msra.mxu0 0.0
      %2508 = vmatpush.msra.mxu0 0.0
      %2509 = vmatpush.msra.mxu0 0.0
      %2510 = vmatpush.msra.mxu0 0.0
      %2511 = vmatpush.msra.mxu0 0.0
      %2512 = vmatpush.msra.mxu0 0.0
      %2513 = vmatpush.msra.mxu0 0.0
      %2514 = vmatpush.msra.mxu0 0.0
      %2515 = vmatpush.msra.mxu0 0.0
      %2516 = vmatpush.msra.mxu0 0.0
      %2517 = vmatpush.msra.mxu0 0.0
      %2518 = vmatpush.msra.mxu0 0.0
      %2519 = vmatpush.msra.mxu0 0.0
      %2520 = vmatpush.msra.mxu0 0.0
      %2521 = vmatpush.msra.mxu0 %v2503
      %2522 = vmatmul.f32.gmra.mxu0 %v2125
      %v2523 = vpop.f32.mrf.mxu0
      %v2524 = vadd.f32 0.0, %v2523
      %2525 = vmatmul.f32.gmra.mxu0 %v2127
      %v2526 = vpop.f32.mrf.mxu0
      %v2527 = vadd.f32 0.0, %v2526
      %2528 = vmatmul.f32.gmra.mxu0 %v2129
      %v2529 = vpop.f32.mrf.mxu0
      %v2530 = vadd.f32 0.0, %v2529
      %2531 = vmatmul.f32.gmra.mxu0 %v2131
      %v2532 = vpop.f32.mrf.mxu0
      %v2533 = vadd.f32 0.0, %v2532
      %2534 = vmatmul.f32.gmra.mxu0 %v2133
      %v2535 = vpop.f32.mrf.mxu0
      %v2536 = vadd.f32 0.0, %v2535
      %2537 = vmatmul.f32.gmra.mxu0 %v2135
      %v2538 = vpop.f32.mrf.mxu0
      %v2539 = vadd.f32 0.0, %v2538
      %2540 = vmatmul.f32.gmra.mxu0 %v2337
      %v2541 = vpop.f32.mrf.mxu0
      %v2542 = vadd.f32 0.0, %v2541
      %2543 = vmatmul.f32.gmra.mxu0 %v2504
      %v2544 = vpop.f32.mrf.mxu0
      %v2545 = vadd.f32 0.0, %v2544
      %2546 = vdwg.mxu0
      %v2547 = vadd.f32 %v2490, %v2524
      %v2548 = vadd.f32 %v2491, %v2527
      %v2549 = vadd.f32 %v2492, %v2530
      %v2550 = vadd.f32 %v2493, %v2533
      %v2551 = vadd.f32 %v2494, %v2536
      %v2552 = vadd.f32 %v2495, %v2539
      %v2553 = vadd.f32 %v2496, %v2542
      %v2554 = vadd.f32 %v2497, %v2545
      %v2555 = vrot.slane %v2010, 2
      %v2556 = vrot.slane %v2011, 2
      %v2557 = vsel %vm755, %v2555, %v2556
      %s2558 = scalar_lea.vmem %s5, 208
      %v2559 = vld [vmem:[%s2558] sm:$0xff]
      %v2560 = vsel %vm640, %v2557, 0
      %2562 = vmatpush.msra.mxu0 0.0
      %2563 = vmatpush.msra.mxu0 0.0
      %2564 = vmatpush.msra.mxu0 0.0
      %2565 = vmatpush.msra.mxu0 0.0
      %2566 = vmatpush.msra.mxu0 0.0
      %2567 = vmatpush.msra.mxu0 0.0
      %2568 = vmatpush.msra.mxu0 0.0
      %2569 = vmatpush.msra.mxu0 0.0
      %2570 = vmatpush.msra.mxu0 0.0
      %2571 = vmatpush.msra.mxu0 0.0
      %2572 = vmatpush.msra.mxu0 0.0
      %2573 = vmatpush.msra.mxu0 0.0
      %2574 = vmatpush.msra.mxu0 0.0
      %2575 = vmatpush.msra.mxu0 0.0
      %2576 = vmatpush.msra.mxu0 0.0
      %2577 = vmatpush.msra.mxu0 %v2559
      %2578 = vmatmul.f32.gmra.mxu0 %v2216
      %v2579 = vpop.f32.mrf.mxu0
      %v2580 = vadd.f32 0.0, %v2579
      %2581 = vmatmul.f32.gmra.mxu0 %v2218
      %v2582 = vpop.f32.mrf.mxu0
      %v2583 = vadd.f32 0.0, %v2582
      %2584 = vmatmul.f32.gmra.mxu0 %v2220
      %v2585 = vpop.f32.mrf.mxu0
      %v2586 = vadd.f32 0.0, %v2585
      %2587 = vmatmul.f32.gmra.mxu0 %v2222
      %v2588 = vpop.f32.mrf.mxu0
      %v2589 = vadd.f32 0.0, %v2588
      %2590 = vmatmul.f32.gmra.mxu0 %v2224
      %v2591 = vpop.f32.mrf.mxu0
      %v2592 = vadd.f32 0.0, %v2591
      %2593 = vmatmul.f32.gmra.mxu0 %v2226
      %v2594 = vpop.f32.mrf.mxu0
      %v2595 = vadd.f32 0.0, %v2594
      %2596 = vmatmul.f32.gmra.mxu0 %v2393
      %v2597 = vpop.f32.mrf.mxu0
      %v2598 = vadd.f32 0.0, %v2597
      %2599 = vmatmul.f32.gmra.mxu0 %v2560
      %v2600 = vpop.f32.mrf.mxu0
      %v2601 = vadd.f32 0.0, %v2600
      %2602 = vdwg.mxu0
      %v2603 = vadd.f32 %v2547, %v2580
      %v2604 = vadd.f32 %v2548, %v2583
      %v2605 = vadd.f32 %v2549, %v2586
      %v2606 = vadd.f32 %v2550, %v2589
      %v2607 = vadd.f32 %v2551, %v2592
      %v2608 = vadd.f32 %v2552, %v2595
      %v2609 = vadd.f32 %v2553, %v2598
      %v2610 = vadd.f32 %v2554, %v2601
      %v2611 = vld [vmem:[%s6] sm:$0x1]
      %v2613 = vperm.slane %v2611, 0
      %v2615 = vadd.f32 %v2603, %v2613
      %v2616 = vadd.f32 %v2604, %v2613
      %v2617 = vadd.f32 %v2605, %v2613
      %v2618 = vadd.f32 %v2606, %v2613
      %v2619 = vadd.f32 %v2607, %v2613
      %v2620 = vadd.f32 %v2608, %v2613
      %v2621 = vadd.f32 %v2609, %v2613
      %v2622 = vadd.f32 %v2610, %v2613
      %v2623 = vld [vmem:[%s448] sm:$0xff]
      %v2624 = vld [vmem:[%s448 + $0x8] sm:$0xff]
      %v2625 = vld [vmem:[%s448 + $0x10] sm:$0xff]
      %v2626 = vld [vmem:[%s448 + $0x18] sm:$0xff]
      %v2627 = vld [vmem:[%s448 + $0x20] sm:$0xff]
      %v2628 = vld [vmem:[%s448 + $0x28] sm:$0xff]
      %v2629 = vld [vmem:[%s448 + $0x30] sm:$0xff]
      %v2630 = vld [vmem:[%s448 + $0x38] sm:$0xff]
      %v2631 = vadd.f32 %v2615, %v2623
      %v2632 = vadd.f32 %v2616, %v2624
      %v2633 = vadd.f32 %v2617, %v2625
      %v2634 = vadd.f32 %v2618, %v2626
      %v2635 = vadd.f32 %v2619, %v2627
      %v2636 = vadd.f32 %v2620, %v2628
      %v2637 = vadd.f32 %v2621, %v2629
      %v2638 = vadd.f32 %v2622, %v2630
      %2639 = vst.msk [vmem:[%s457] sm:$0xff] %vm640, %v2631
      %2640 = vst.msk [vmem:[%s457 + $0x8] sm:$0xff] %vm640, %v2632
      %2641 = vst.msk [vmem:[%s457 + $0x10] sm:$0xff] %vm640, %v2633
      %2642 = vst.msk [vmem:[%s457 + $0x18] sm:$0xff] %vm640, %v2634
      %2643 = vst.msk [vmem:[%s457 + $0x20] sm:$0xff] %vm640, %v2635
      %2644 = vst.msk [vmem:[%s457 + $0x28] sm:$0xff] %vm640, %v2636
      %2645 = vst.msk [vmem:[%s457 + $0x30] sm:$0xff] %vm640, %v2637
      %2646 = vst.msk [vmem:[%s457 + $0x38] sm:$0xff] %vm640, %v2638
      %p2647 = scmp.lt.s32.totalorder %s23, 1
      %s2648 = scalar_select %p2647, %s23, 1
      %p2649 = scmp.lt.s32.totalorder %s24, 7
      %s2650 = scalar_select %p2649, %s24, 7
      %s2651 = smul.addr %s2650, 8
      %s2652 = smul.addr %s2648, 64
      %s2653 = sadd.s32 %s2651, %s2652
      %s2654 = smul.addr %s2653, 8
      %s2655 = scalar_lea.vmem %s8, %s2654
      // Predicated region
      $region53: #{resnet_forward.7} parent=51 // pred_check
        %p2656 = pneg %p251
      $region54: #{resnet_forward.7} parent=51 // pred_check_branch
        %2658 = sbr.rel (%p2656) target = $region56
      $region55: #{resnet_forward.7} parent=51 // pred_region
        _
      $region56: #{resnet_forward.7} parent=51 // pred_fallthru
        _
    $region52: #{resnet_forward.7} parent=5 // pred_fallthru
      _
    %p2659 = scmp.le.s32.totalorder 2, %s14
    // Predicated region
    $region57: #{resnet_forward.7} parent=5 // pred_check
      %p2660 = pneg %p2659
    $region58: #{resnet_forward.7} parent=5 // pred_check_branch
      %2662 = sbr.rel (%p2660) target = $region60
    $region59: #{resnet_forward.7} parent=5 // pred_region
      %s2663 = ssub.s32 %s14, 2
      // Predicated region
      $region61: #{resnet_forward.7} parent=59 // pred_check
        %p2664 = pneg %p257
      $region62: #{resnet_forward.7} parent=59 // pred_check_branch
        %2666 = sbr.rel (%p2664) target = $region64
      $region63: #{resnet_forward.7} parent=59 // pred_region
        %p2667 = scmp.lt.s32.totalorder %s25, 1
        %s2668 = scalar_select %p2667, %s25, 1
        %p2669 = scmp.lt.s32.totalorder %s26, 7
        %s2670 = scalar_select %p2669, %s26, 7
        %s2671 = smul.addr %s2670, 8
        %s2672 = smul.addr %s2668, 64
        %s2673 = sadd.s32 %s2671, %s2672
        %s2674 = smul.addr %s2673, 8
        %s2675 = scalar_lea.vmem %s8, %s2674
      $region64: #{resnet_forward.7} parent=59 // pred_fallthru
        _
    $region60: #{resnet_forward.7} parent=5 // pred_fallthru
      _
  $region6: #{resnet_forward.7} parent=0 // loop_footer
    %s18 = sadd.s32 1, %s14
  $region7: #{resnet_forward.7} parent=0 // loop_footer_branch
    %13 = sbr.rel target = $region3
  $region8: #{resnet_forward.7} parent=0 // loop_exit
    _

</llo_original>
